<compile_context>
chip_gen: v7x
topology: tpu7x:2x2x1
jax: 0.10.0
libtpu: 0.0.40
codegen_flags: <defaults>
</compile_context>

<pallas_src>
import functools
import math

import jax
import jax.numpy as jnp
from jax.experimental import pallas as pl
from jax.experimental.pallas import tpu as pltpu


def _round_up(x, m):
    return ((x + m - 1) // m) * m


# ---------------------------------------------------------------------------
# Weight packing.
#
# PyTorch GRU layout per (layer, direction):
#   weight_ih: (3H, in)  rows stacked [r; z; n]; weight_hh: (3H, H); biases (3H,).
#
# Packed column layout (width 3*gate_pad): gate group g in {r, z, n} occupies lanes
# [g*gate_pad, (g+1)*gate_pad); inside a group the fwd direction sits at [0, H),
# the bwd direction at [H, 2H), the rest is zero padding -> every gate slice in the
# kernel is 128-lane aligned.
#   wih  : (in_packed, 3*gate_pad)  dense over directions (no reversed/zero blocks)
#   whh  : (gate_pad,  3*gate_pad)  block-diagonal over direction (rows 0:H fwd, H:2H bwd)
#   b_pre: (1, 3*gate_pad)          bias_ih (all gates) + bias_hh (r, z gates folded in)
#   bhn  : (1, gate_pad)            bias_hh of the n gate (must stay inside r*(gh_n+bhn))
# ---------------------------------------------------------------------------
def pack_bidir_layer(raw, H, in_packed, gate_pad):
    W = 3 * gate_pad
    in_size = raw["wih_f"].shape[1]
    wih = jnp.zeros((in_packed, W), jnp.float32)
    whh = jnp.zeros((gate_pad, W), jnp.float32)
    b_pre = jnp.zeros((1, W), jnp.float32)
    bhn = jnp.zeros((1, gate_pad), jnp.float32)
    for g in range(3):
        c0 = g * gate_pad
        wih = wih.at[:in_size, c0:c0 + H].set(raw["wih_f"][g * H:(g + 1) * H, :].T)
        wih = wih.at[:in_size, c0 + H:c0 + 2 * H].set(raw["wih_b"][g * H:(g + 1) * H, :].T)
        whh = whh.at[0:H, c0:c0 + H].set(raw["whh_f"][g * H:(g + 1) * H, :].T)
        whh = whh.at[H:2 * H, c0 + H:c0 + 2 * H].set(raw["whh_b"][g * H:(g + 1) * H, :].T)
        bf = raw["bih_f"][g * H:(g + 1) * H]
        bb = raw["bih_b"][g * H:(g + 1) * H]
        if g < 2:  # r, z: fold bias_hh into the hoisted input-projection bias
            bf = bf + raw["bhh_f"][g * H:(g + 1) * H]
            bb = bb + raw["bhh_b"][g * H:(g + 1) * H]
        b_pre = b_pre.at[0, c0:c0 + H].set(bf)
        b_pre = b_pre.at[0, c0 + H:c0 + 2 * H].set(bb)
    bhn = bhn.at[0, 0:H].set(raw["bhh_f"][2 * H:3 * H])
    bhn = bhn.at[0, H:2 * H].set(raw["bhh_b"][2 * H:3 * H])
    return {"wih": wih, "whh": whh, "b_pre": b_pre, "bhn": bhn}


# ---------------------------------------------------------------------------
# Fused kernel (no grid: single invocation, all weights/activations VMEM-resident).
# GRU math per direction (handled jointly via the packed layout):
#   r = sigmoid(x Wir + bir + h Whr + bhr)
#   z = sigmoid(x Wiz + biz + h Whz + bhz)
#   n = tanh   (x Win + bin + r * (h Whn + bhn))
#   h' = (1 - z) * n + z * h
# ---------------------------------------------------------------------------
def _make_kernel(B_pad, T, H, num_layers, gate_pad):
    W = 3 * gate_pad

    def kernel(*refs):
        x_ref = refs[0]
        layer_refs = refs[1:1 + 4 * num_layers]
        lin_w_ref, lin_b_ref, out_ref = refs[1 + 4 * num_layers:]

        # Lane masks (hoisted constants): fwd columns vs bwd columns.
        lane_w = jax.lax.broadcasted_iota(jnp.int32, (B_pad, W), 1)
        fwd_mask_w = (lane_w % gate_pad) < H              # per-gate-group fwd lanes
        lane_g = jax.lax.broadcasted_iota(jnp.int32, (B_pad, gate_pad), 1)
        fwd_mask_g = lane_g < H                            # fwd half of the state

        x = x_ref[...]                                     # (T, B_pad, F) time-major
        flat_in = x.reshape(T * B_pad, x.shape[-1])        # (T*B_pad, in)

        for layer in range(num_layers):
            wih_ref, whh_ref, bpre_ref, bhn_ref = layer_refs[4 * layer:4 * layer + 4]
            wih = wih_ref[...]
            whh = whh_ref[...]

            # Hoisted input projection for ALL timesteps, both directions, one matmul.
            gi = (jnp.dot(flat_in, wih, preferred_element_type=jnp.float32)
                  + bpre_ref[...])                         # (T*B_pad, 3*gate_pad)
            gi = gi.reshape(T, B_pad, W)

            # Per-step gate inputs: fwd columns from time s, bwd columns from time
            # T-1-s. Lane-mask select, hoisted off the serial recurrence path.
            gsteps = [jnp.where(fwd_mask_w, gi[s], gi[T - 1 - s]) for s in range(T)]
            bhn_b = jnp.broadcast_to(bhn_ref[...], (B_pad, gate_pad))  # hoisted

            # Sequential recurrence; both directions carried in one (B_pad, gate_pad)
            # state (fwd at lanes 0:H, bwd at H:2H, pad lanes stay exactly zero).
            h = jnp.zeros((B_pad, gate_pad), jnp.float32)
            steps = []
            for s in range(T):
                gh = jnp.dot(h, whh, preferred_element_type=jnp.float32)  # (B_pad, W)
                g = gsteps[s]
                r = jax.nn.sigmoid(g[:, 0:gate_pad] + gh[:, 0:gate_pad])
                z = jax.nn.sigmoid(g[:, gate_pad:2 * gate_pad]
                                   + gh[:, gate_pad:2 * gate_pad])
                n = jnp.tanh(g[:, 2 * gate_pad:3 * gate_pad]
                             + r * (gh[:, 2 * gate_pad:3 * gate_pad] + bhn_b))
                h = (1.0 - z) * n + z * h
                steps.append(h)

            # Time-major layer output: time t <- [fwd after step t | bwd after step T-1-t].
            rows = [jnp.where(fwd_mask_g, steps[t], steps[T - 1 - t]) for t in range(T)]
            flat_in = jnp.concatenate(rows, axis=0)        # (T*B_pad, gate_pad)

        # Head: ReLU -> Dropout(p=0, identity) -> Linear(2H -> H), one fused matmul.
        act = jnp.maximum(flat_in, 0.0)
        y = (jnp.dot(act, lin_w_ref[...], preferred_element_type=jnp.float32)
             + lin_b_ref[...])                             # (T*B_pad, H)
        out_ref[...] = y.astype(out_ref.dtype)             # single dense slab store

    return kernel


def _vmem_estimate_bytes(T, B_pad, F, H, num_layers, gate_pad):
    W = 3 * gate_pad
    total = T * B_pad * F * 4
    for layer in range(num_layers):
        in_p = F if layer == 0 else gate_pad
        total += (in_p * W + gate_pad * W + W + gate_pad) * 4      # packed weights/biases
        total += T * B_pad * W * 4                                  # gi slab
        total += T * B_pad * gate_pad * 4                           # layer output slab
    total += (gate_pad * H + H + T * B_pad * H) * 4                 # head + output
    return total


def simple_rnn_forward(input_seq, params, hidden_n, num_layers):
    """input_seq: (B, T, F) -> (B, T, hidden_n), matching SimpleRNN.forward (hidden=None)."""
    B, T, F = input_seq.shape
    H = hidden_n
    B_pad = max(8, _round_up(B, 8))
    gate_pad = _round_up(2 * H, 128)

    # Time-major, batch-padded input (cheap fused XLA ops outside the kernel).
    xt = jnp.transpose(input_seq.astype(jnp.float32), (1, 0, 2))   # (T, B, F)
    if B_pad != B:
        xt = jnp.pad(xt, ((0, 0), (0, B_pad - B), (0, 0)))

    kernel = _make_kernel(B_pad, T, H, num_layers, gate_pad)
    flat_params = []
    for lp in params["layers"]:
        flat_params += [lp["wih"], lp["whh"], lp["b_pre"], lp["bhn"]]
    args = (xt, *flat_params, params["lin_w_p"], params["lin_b"])

    vmem_spec = pl.BlockSpec(memory_space=pltpu.MemorySpace.VMEM)
    est = _vmem_estimate_bytes(T, B_pad, F, H, num_layers, gate_pad)
    vmem_limit = int(min(64 * 1024 * 1024, max(16 * 1024 * 1024, 4 * est)))

    out_flat = pl.pallas_call(
        kernel,
        out_shape=jax.ShapeDtypeStruct((T * B_pad, H), jnp.float32),
        in_specs=[vmem_spec] * len(args),
        out_specs=vmem_spec,
        compiler_params=pltpu.CompilerParams(vmem_limit_bytes=vmem_limit),
    )(*args)

    out = out_flat.reshape(T, B_pad, H)[:, :B, :]                  # un-pad batch
    return jnp.transpose(out, (1, 0, 2))                           # (B, T, H)


# ---------------------------------------------------------------------------
# Deterministic parameter construction (PyTorch-shaped raw weights + packed forms).
# ---------------------------------------------------------------------------
def init_params(key, hidden_n, feature_len, num_layers, bidirectional=True):
    assert bidirectional, "kernel implements the module default bidirectional=True"
    H = hidden_n
    gate_pad = _round_up(2 * H, 128)
    bound = 1.0 / math.sqrt(H)
    params = {"layers": [], "layers_raw": []}
    for layer in range(num_layers):
        in_size = feature_len if layer == 0 else 2 * H
        in_packed = feature_len if layer == 0 else gate_pad
        key, *ks = jax.random.split(key, 9)

        def u(k, shape):
            return jax.random.uniform(k, shape, jnp.float32, -bound, bound)

        raw = {
            "wih_f": u(ks[0], (3 * H, in_size)), "whh_f": u(ks[1], (3 * H, H)),
            "bih_f": u(ks[2], (3 * H,)), "bhh_f": u(ks[3], (3 * H,)),
            "wih_b": u(ks[4], (3 * H, in_size)), "whh_b": u(ks[5], (3 * H, H)),
            "bih_b": u(ks[6], (3 * H,)), "bhh_b": u(ks[7], (3 * H,)),
        }
        params["layers_raw"].append(raw)
        params["layers"].append(pack_bidir_layer(raw, H, in_packed, gate_pad))

    key, k1, k2 = jax.random.split(key, 3)
    lb = 1.0 / math.sqrt(2 * H)
    lin_w = jax.random.uniform(k1, (2 * H, H), jnp.float32, -lb, lb)
    params["lin_w"] = lin_w
    params["lin_w_p"] = jnp.zeros((gate_pad, H), jnp.float32).at[:2 * H, :].set(lin_w)
    params["lin_b"] = jax.random.uniform(k2, (1, H), jnp.float32, -lb, lb)
    return params


# ---------------------------------------------------------------------------
# Pure-JAX reference (PyTorch GRU semantics) for the correctness check.
# ---------------------------------------------------------------------------
def _gru_ref_direction(x_tm, wih, whh, bih, bhh, H):
    T, B, _ = x_tm.shape
    h = jnp.zeros((B, H), jnp.float32)
    outs = []
    for t in range(T):
        gi = x_tm[t] @ wih.T + bih
        gh = h @ whh.T + bhh
        r = jax.nn.sigmoid(gi[:, 0:H] + gh[:, 0:H])
        z = jax.nn.sigmoid(gi[:, H:2 * H] + gh[:, H:2 * H])
        n = jnp.tanh(gi[:, 2 * H:3 * H] + r * gh[:, 2 * H:3 * H])
        h = (1.0 - z) * n + z * h
        outs.append(h)
    return jnp.stack(outs, axis=0)


def simple_rnn_reference(x, params, hidden_n, num_layers):
    xt = jnp.transpose(x, (1, 0, 2)).astype(jnp.float32)
    for layer in range(num_layers):
        raw = params["layers_raw"][layer]
        out_f = _gru_ref_direction(xt, raw["wih_f"], raw["whh_f"], raw["bih_f"],
                                   raw["bhh_f"], hidden_n)
        out_b = _gru_ref_direction(xt[::-1], raw["wih_b"], raw["whh_b"], raw["bih_b"],
                                   raw["bhh_b"], hidden_n)[::-1]
        xt = jnp.concatenate([out_f, out_b], axis=-1)
    gru_out = jnp.transpose(xt, (1, 0, 2))
    return jnp.maximum(gru_out, 0.0) @ params["lin_w"] + params["lin_b"]


if __name__ == "__main__":
    BATCH, SEQ, FEATURE, HIDDEN = 2, 8, 12, 32
    NUM_LAYERS = 3

    key = jax.random.PRNGKey(0)
    key, pkey, xkey = jax.random.split(key, 3)
    params = init_params(pkey, HIDDEN, FEATURE, NUM_LAYERS, bidirectional=True)
    x = jax.random.normal(xkey, (BATCH, SEQ, FEATURE), jnp.float32)

    fwd = jax.jit(functools.partial(simple_rnn_forward,
                                    hidden_n=HIDDEN, num_layers=NUM_LAYERS))
    out = fwd(x, params)
    jax.block_until_ready(out)
    assert out.shape == (BATCH, SEQ, HIDDEN), out.shape

    ref = simple_rnn_reference(x, params, HIDDEN, NUM_LAYERS)
    max_err = float(jnp.max(jnp.abs(out - ref)))
    assert max_err < 5e-3, f"mismatch vs reference: max abs err {max_err}"

    print("KERNEL_OK")
</pallas_src>

<mosaic_0001>
module attributes {stable_mosaic.version = 11 : i64} {
  func.func @kernel(%arg0: memref<8x8x12xf32, #tpu.memory_space<vmem>>, %arg1: memref<12x384xf32, #tpu.memory_space<vmem>>, %arg2: memref<128x384xf32, #tpu.memory_space<vmem>>, %arg3: memref<1x384xf32, #tpu.memory_space<vmem>>, %arg4: memref<1x128xf32, #tpu.memory_space<vmem>>, %arg5: memref<128x384xf32, #tpu.memory_space<vmem>>, %arg6: memref<128x384xf32, #tpu.memory_space<vmem>>, %arg7: memref<1x384xf32, #tpu.memory_space<vmem>>, %arg8: memref<1x128xf32, #tpu.memory_space<vmem>>, %arg9: memref<128x384xf32, #tpu.memory_space<vmem>>, %arg10: memref<128x384xf32, #tpu.memory_space<vmem>>, %arg11: memref<1x384xf32, #tpu.memory_space<vmem>>, %arg12: memref<1x128xf32, #tpu.memory_space<vmem>>, %arg13: memref<128x32xf32, #tpu.memory_space<vmem>>, %arg14: memref<1x32xf32, #tpu.memory_space<vmem>>, %arg15: memref<64x32xf32, #tpu.memory_space<vmem>>) attributes {dimension_semantics = [], scalar_prefetch = 0 : i64, scratch_operands = 0 : i64, tpu.core_type = #tpu.core_type<tc>} {
    %0 = tpu.iota {dimensions = array<i32: 1>} : vector<8x384xi32>
    %c128_i32 = arith.constant 128 : i32
    %c0_i32 = arith.constant 0 : i32
    %1 = arith.cmpi eq, %c128_i32, %c0_i32 : i32
    %c1_i32 = arith.constant 1 : i32
    %2 = arith.select %1, %c1_i32, %c128_i32 : i32
    %3 = vector.broadcast %2 : i32 to vector<8x384xi32>
    %4 = arith.remsi %0, %3 : vector<8x384xi32>
    %c0_i32_0 = arith.constant 0 : i32
    %5 = vector.broadcast %c0_i32_0 : i32 to vector<8x384xi32>
    %6 = arith.cmpi ne, %4, %5 : vector<8x384xi32>
    %c0_i32_1 = arith.constant 0 : i32
    %7 = vector.broadcast %c0_i32_1 : i32 to vector<8x384xi32>
    %8 = arith.cmpi slt, %4, %7 : vector<8x384xi32>
    %c0_i32_2 = arith.constant 0 : i32
    %9 = arith.cmpi slt, %2, %c0_i32_2 : i32
    %10 = vector.broadcast %9 : i1 to vector<8x384xi1>
    %11 = vector.broadcast %10 : vector<8x384xi1> to vector<8x384xi1>
    %12 = arith.xori %8, %11 : vector<8x384xi1>
    %13 = arith.andi %12, %6 : vector<8x384xi1>
    %14 = vector.broadcast %2 : i32 to vector<8x384xi32>
    %15 = arith.addi %4, %14 : vector<8x384xi32>
    %16 = arith.select %13, %15, %4 : vector<8x384xi1>, vector<8x384xi32>
    %c32_i32 = arith.constant 32 : i32
    %17 = vector.broadcast %c32_i32 : i32 to vector<8x384xi32>
    %18 = arith.cmpi slt, %16, %17 : vector<8x384xi32>
    %19 = tpu.iota {dimensions = array<i32: 1>} : vector<8x128xi32>
    %c32_i32_3 = arith.constant 32 : i32
    %20 = vector.broadcast %c32_i32_3 : i32 to vector<8x128xi32>
    %21 = arith.cmpi slt, %19, %20 : vector<8x128xi32>
    %c0 = arith.constant 0 : index
    %c0_4 = arith.constant 0 : index
    %c0_5 = arith.constant 0 : index
    %22 = vector.load %arg0[%c0, %c0_4, %c0_5] : memref<8x8x12xf32, #tpu.memory_space<vmem>>, vector<8x8x12xf32>
    %23 = vector.shape_cast %22 : vector<8x8x12xf32> to vector<64x12xf32>
    %c0_6 = arith.constant 0 : index
    %c0_7 = arith.constant 0 : index
    %24 = vector.load %arg1[%c0_6, %c0_7] : memref<12x384xf32, #tpu.memory_space<vmem>>, vector<12x384xf32>
    %c0_8 = arith.constant 0 : index
    %c0_9 = arith.constant 0 : index
    %25 = vector.load %arg2[%c0_8, %c0_9] : memref<128x384xf32, #tpu.memory_space<vmem>>, vector<128x384xf32>
    %cst = arith.constant dense<0.000000e+00> : vector<64x384xf32>
    %26 = tpu.matmul %23, %24, %cst {dimension_numbers = #tpu.dot_dimension_numbers<[1], [0], [0], [1], [0, 0, 1, 1], [], []>} : vector<64x12xf32>, vector<12x384xf32>, vector<64x384xf32> -> vector<64x384xf32>
    %c0_10 = arith.constant 0 : index
    %c0_11 = arith.constant 0 : index
    %27 = vector.load %arg3[%c0_10, %c0_11] : memref<1x384xf32, #tpu.memory_space<vmem>>, vector<1x384xf32>
    %28 = vector.broadcast %27 : vector<1x384xf32> to vector<64x384xf32>
    %29 = arith.addf %26, %28 : vector<64x384xf32>
    %30 = vector.shape_cast %29 : vector<64x384xf32> to vector<8x8x384xf32>
    %31 = vector.extract_strided_slice %30 {offsets = [0, 0, 0], sizes = [1, 8, 384], strides = [1, 1, 1]} : vector<8x8x384xf32> to vector<1x8x384xf32>
    %32 = vector.shape_cast %31 : vector<1x8x384xf32> to vector<8x384xf32>
    %33 = vector.extract_strided_slice %30 {offsets = [7, 0, 0], sizes = [1, 8, 384], strides = [1, 1, 1]} : vector<8x8x384xf32> to vector<1x8x384xf32>
    %34 = vector.shape_cast %33 : vector<1x8x384xf32> to vector<8x384xf32>
    %35 = arith.select %18, %32, %34 : vector<8x384xi1>, vector<8x384xf32>
    %36 = vector.extract_strided_slice %30 {offsets = [1, 0, 0], sizes = [1, 8, 384], strides = [1, 1, 1]} : vector<8x8x384xf32> to vector<1x8x384xf32>
    %37 = vector.shape_cast %36 : vector<1x8x384xf32> to vector<8x384xf32>
    %38 = vector.extract_strided_slice %30 {offsets = [6, 0, 0], sizes = [1, 8, 384], strides = [1, 1, 1]} : vector<8x8x384xf32> to vector<1x8x384xf32>
    %39 = vector.shape_cast %38 : vector<1x8x384xf32> to vector<8x384xf32>
    %40 = arith.select %18, %37, %39 : vector<8x384xi1>, vector<8x384xf32>
    %41 = vector.extract_strided_slice %30 {offsets = [2, 0, 0], sizes = [1, 8, 384], strides = [1, 1, 1]} : vector<8x8x384xf32> to vector<1x8x384xf32>
    %42 = vector.shape_cast %41 : vector<1x8x384xf32> to vector<8x384xf32>
    %43 = vector.extract_strided_slice %30 {offsets = [5, 0, 0], sizes = [1, 8, 384], strides = [1, 1, 1]} : vector<8x8x384xf32> to vector<1x8x384xf32>
    %44 = vector.shape_cast %43 : vector<1x8x384xf32> to vector<8x384xf32>
    %45 = arith.select %18, %42, %44 : vector<8x384xi1>, vector<8x384xf32>
    %46 = vector.extract_strided_slice %30 {offsets = [3, 0, 0], sizes = [1, 8, 384], strides = [1, 1, 1]} : vector<8x8x384xf32> to vector<1x8x384xf32>
    %47 = vector.shape_cast %46 : vector<1x8x384xf32> to vector<8x384xf32>
    %48 = vector.extract_strided_slice %30 {offsets = [4, 0, 0], sizes = [1, 8, 384], strides = [1, 1, 1]} : vector<8x8x384xf32> to vector<1x8x384xf32>
    %49 = vector.shape_cast %48 : vector<1x8x384xf32> to vector<8x384xf32>
    %50 = arith.select %18, %47, %49 : vector<8x384xi1>, vector<8x384xf32>
    %51 = vector.extract_strided_slice %30 {offsets = [4, 0, 0], sizes = [1, 8, 384], strides = [1, 1, 1]} : vector<8x8x384xf32> to vector<1x8x384xf32>
    %52 = vector.shape_cast %51 : vector<1x8x384xf32> to vector<8x384xf32>
    %53 = vector.extract_strided_slice %30 {offsets = [3, 0, 0], sizes = [1, 8, 384], strides = [1, 1, 1]} : vector<8x8x384xf32> to vector<1x8x384xf32>
    %54 = vector.shape_cast %53 : vector<1x8x384xf32> to vector<8x384xf32>
    %55 = arith.select %18, %52, %54 : vector<8x384xi1>, vector<8x384xf32>
    %56 = vector.extract_strided_slice %30 {offsets = [5, 0, 0], sizes = [1, 8, 384], strides = [1, 1, 1]} : vector<8x8x384xf32> to vector<1x8x384xf32>
    %57 = vector.shape_cast %56 : vector<1x8x384xf32> to vector<8x384xf32>
    %58 = vector.extract_strided_slice %30 {offsets = [2, 0, 0], sizes = [1, 8, 384], strides = [1, 1, 1]} : vector<8x8x384xf32> to vector<1x8x384xf32>
    %59 = vector.shape_cast %58 : vector<1x8x384xf32> to vector<8x384xf32>
    %60 = arith.select %18, %57, %59 : vector<8x384xi1>, vector<8x384xf32>
    %61 = vector.extract_strided_slice %30 {offsets = [6, 0, 0], sizes = [1, 8, 384], strides = [1, 1, 1]} : vector<8x8x384xf32> to vector<1x8x384xf32>
    %62 = vector.shape_cast %61 : vector<1x8x384xf32> to vector<8x384xf32>
    %63 = vector.extract_strided_slice %30 {offsets = [1, 0, 0], sizes = [1, 8, 384], strides = [1, 1, 1]} : vector<8x8x384xf32> to vector<1x8x384xf32>
    %64 = vector.shape_cast %63 : vector<1x8x384xf32> to vector<8x384xf32>
    %65 = arith.select %18, %62, %64 : vector<8x384xi1>, vector<8x384xf32>
    %66 = vector.extract_strided_slice %30 {offsets = [7, 0, 0], sizes = [1, 8, 384], strides = [1, 1, 1]} : vector<8x8x384xf32> to vector<1x8x384xf32>
    %67 = vector.shape_cast %66 : vector<1x8x384xf32> to vector<8x384xf32>
    %68 = vector.extract_strided_slice %30 {offsets = [0, 0, 0], sizes = [1, 8, 384], strides = [1, 1, 1]} : vector<8x8x384xf32> to vector<1x8x384xf32>
    %69 = vector.shape_cast %68 : vector<1x8x384xf32> to vector<8x384xf32>
    %70 = arith.select %18, %67, %69 : vector<8x384xi1>, vector<8x384xf32>
    %c0_12 = arith.constant 0 : index
    %c0_13 = arith.constant 0 : index
    %71 = vector.load %arg4[%c0_12, %c0_13] : memref<1x128xf32, #tpu.memory_space<vmem>>, vector<1x128xf32>
    %72 = vector.shape_cast %71 : vector<1x128xf32> to vector<1x128xf32>
    %73 = vector.broadcast %72 : vector<1x128xf32> to vector<8x128xf32>
    %cst_14 = arith.constant 0.000000e+00 : f32
    %74 = vector.broadcast %cst_14 : f32 to vector<8x128xf32>
    %cst_15 = arith.constant dense<0.000000e+00> : vector<8x384xf32>
    %75 = tpu.matmul %74, %25, %cst_15 {dimension_numbers = #tpu.dot_dimension_numbers<[1], [0], [0], [1], [0, 0, 1, 1], [], []>} : vector<8x128xf32>, vector<128x384xf32>, vector<8x384xf32> -> vector<8x384xf32>
    %76 = vector.extract_strided_slice %35 {offsets = [0, 0], sizes = [8, 128], strides = [1, 1]} : vector<8x384xf32> to vector<8x128xf32>
    %77 = vector.extract_strided_slice %75 {offsets = [0, 0], sizes = [8, 128], strides = [1, 1]} : vector<8x384xf32> to vector<8x128xf32>
    %78 = arith.addf %76, %77 : vector<8x128xf32>
    %79 = arith.negf %78 : vector<8x128xf32>
    %80 = math.exp %79 : vector<8x128xf32>
    %cst_16 = arith.constant 1.000000e+00 : f32
    %81 = vector.broadcast %cst_16 : f32 to vector<8x128xf32>
    %82 = arith.addf %81, %80 : vector<8x128xf32>
    %83 = arith.divf %81, %82 : vector<8x128xf32>
    %84 = vector.extract_strided_slice %35 {offsets = [0, 128], sizes = [8, 128], strides = [1, 1]} : vector<8x384xf32> to vector<8x128xf32>
    %85 = vector.extract_strided_slice %75 {offsets = [0, 128], sizes = [8, 128], strides = [1, 1]} : vector<8x384xf32> to vector<8x128xf32>
    %86 = arith.addf %84, %85 : vector<8x128xf32>
    %87 = arith.negf %86 : vector<8x128xf32>
    %88 = math.exp %87 : vector<8x128xf32>
    %cst_17 = arith.constant 1.000000e+00 : f32
    %89 = vector.broadcast %cst_17 : f32 to vector<8x128xf32>
    %90 = arith.addf %89, %88 : vector<8x128xf32>
    %91 = arith.divf %89, %90 : vector<8x128xf32>
    %92 = vector.extract_strided_slice %35 {offsets = [0, 256], sizes = [8, 128], strides = [1, 1]} : vector<8x384xf32> to vector<8x128xf32>
    %93 = vector.extract_strided_slice %75 {offsets = [0, 256], sizes = [8, 128], strides = [1, 1]} : vector<8x384xf32> to vector<8x128xf32>
    %94 = arith.addf %93, %73 : vector<8x128xf32>
    %95 = arith.mulf %83, %94 : vector<8x128xf32>
    %96 = arith.addf %92, %95 : vector<8x128xf32>
    %97 = math.tanh %96 : vector<8x128xf32>
    %cst_18 = arith.constant 1.000000e+00 : f32
    %98 = vector.broadcast %cst_18 : f32 to vector<8x128xf32>
    %99 = arith.subf %98, %91 : vector<8x128xf32>
    %100 = arith.mulf %99, %97 : vector<8x128xf32>
    %101 = arith.mulf %91, %74 : vector<8x128xf32>
    %102 = arith.addf %100, %101 : vector<8x128xf32>
    %cst_19 = arith.constant dense<0.000000e+00> : vector<8x384xf32>
    %103 = tpu.matmul %102, %25, %cst_19 {dimension_numbers = #tpu.dot_dimension_numbers<[1], [0], [0], [1], [0, 0, 1, 1], [], []>} : vector<8x128xf32>, vector<128x384xf32>, vector<8x384xf32> -> vector<8x384xf32>
    %104 = vector.extract_strided_slice %40 {offsets = [0, 0], sizes = [8, 128], strides = [1, 1]} : vector<8x384xf32> to vector<8x128xf32>
    %105 = vector.extract_strided_slice %103 {offsets = [0, 0], sizes = [8, 128], strides = [1, 1]} : vector<8x384xf32> to vector<8x128xf32>
    %106 = arith.addf %104, %105 : vector<8x128xf32>
    %107 = arith.negf %106 : vector<8x128xf32>
    %108 = math.exp %107 : vector<8x128xf32>
    %cst_20 = arith.constant 1.000000e+00 : f32
    %109 = vector.broadcast %cst_20 : f32 to vector<8x128xf32>
    %110 = arith.addf %109, %108 : vector<8x128xf32>
    %111 = arith.divf %109, %110 : vector<8x128xf32>
    %112 = vector.extract_strided_slice %40 {offsets = [0, 128], sizes = [8, 128], strides = [1, 1]} : vector<8x384xf32> to vector<8x128xf32>
    %113 = vector.extract_strided_slice %103 {offsets = [0, 128], sizes = [8, 128], strides = [1, 1]} : vector<8x384xf32> to vector<8x128xf32>
    %114 = arith.addf %112, %113 : vector<8x128xf32>
    %115 = arith.negf %114 : vector<8x128xf32>
    %116 = math.exp %115 : vector<8x128xf32>
    %cst_21 = arith.constant 1.000000e+00 : f32
    %117 = vector.broadcast %cst_21 : f32 to vector<8x128xf32>
    %118 = arith.addf %117, %116 : vector<8x128xf32>
    %119 = arith.divf %117, %118 : vector<8x128xf32>
    %120 = vector.extract_strided_slice %40 {offsets = [0, 256], sizes = [8, 128], strides = [1, 1]} : vector<8x384xf32> to vector<8x128xf32>
    %121 = vector.extract_strided_slice %103 {offsets = [0, 256], sizes = [8, 128], strides = [1, 1]} : vector<8x384xf32> to vector<8x128xf32>
    %122 = arith.addf %121, %73 : vector<8x128xf32>
    %123 = arith.mulf %111, %122 : vector<8x128xf32>
    %124 = arith.addf %120, %123 : vector<8x128xf32>
    %125 = math.tanh %124 : vector<8x128xf32>
    %cst_22 = arith.constant 1.000000e+00 : f32
    %126 = vector.broadcast %cst_22 : f32 to vector<8x128xf32>
    %127 = arith.subf %126, %119 : vector<8x128xf32>
    %128 = arith.mulf %127, %125 : vector<8x128xf32>
    %129 = arith.mulf %119, %102 : vector<8x128xf32>
    %130 = arith.addf %128, %129 : vector<8x128xf32>
    %cst_23 = arith.constant dense<0.000000e+00> : vector<8x384xf32>
    %131 = tpu.matmul %130, %25, %cst_23 {dimension_numbers = #tpu.dot_dimension_numbers<[1], [0], [0], [1], [0, 0, 1, 1], [], []>} : vector<8x128xf32>, vector<128x384xf32>, vector<8x384xf32> -> vector<8x384xf32>
    %132 = vector.extract_strided_slice %45 {offsets = [0, 0], sizes = [8, 128], strides = [1, 1]} : vector<8x384xf32> to vector<8x128xf32>
    %133 = vector.extract_strided_slice %131 {offsets = [0, 0], sizes = [8, 128], strides = [1, 1]} : vector<8x384xf32> to vector<8x128xf32>
    %134 = arith.addf %132, %133 : vector<8x128xf32>
    %135 = arith.negf %134 : vector<8x128xf32>
    %136 = math.exp %135 : vector<8x128xf32>
    %cst_24 = arith.constant 1.000000e+00 : f32
    %137 = vector.broadcast %cst_24 : f32 to vector<8x128xf32>
    %138 = arith.addf %137, %136 : vector<8x128xf32>
    %139 = arith.divf %137, %138 : vector<8x128xf32>
    %140 = vector.extract_strided_slice %45 {offsets = [0, 128], sizes = [8, 128], strides = [1, 1]} : vector<8x384xf32> to vector<8x128xf32>
    %141 = vector.extract_strided_slice %131 {offsets = [0, 128], sizes = [8, 128], strides = [1, 1]} : vector<8x384xf32> to vector<8x128xf32>
    %142 = arith.addf %140, %141 : vector<8x128xf32>
    %143 = arith.negf %142 : vector<8x128xf32>
    %144 = math.exp %143 : vector<8x128xf32>
    %cst_25 = arith.constant 1.000000e+00 : f32
    %145 = vector.broadcast %cst_25 : f32 to vector<8x128xf32>
    %146 = arith.addf %145, %144 : vector<8x128xf32>
    %147 = arith.divf %145, %146 : vector<8x128xf32>
    %148 = vector.extract_strided_slice %45 {offsets = [0, 256], sizes = [8, 128], strides = [1, 1]} : vector<8x384xf32> to vector<8x128xf32>
    %149 = vector.extract_strided_slice %131 {offsets = [0, 256], sizes = [8, 128], strides = [1, 1]} : vector<8x384xf32> to vector<8x128xf32>
    %150 = arith.addf %149, %73 : vector<8x128xf32>
    %151 = arith.mulf %139, %150 : vector<8x128xf32>
    %152 = arith.addf %148, %151 : vector<8x128xf32>
    %153 = math.tanh %152 : vector<8x128xf32>
    %cst_26 = arith.constant 1.000000e+00 : f32
    %154 = vector.broadcast %cst_26 : f32 to vector<8x128xf32>
    %155 = arith.subf %154, %147 : vector<8x128xf32>
    %156 = arith.mulf %155, %153 : vector<8x128xf32>
    %157 = arith.mulf %147, %130 : vector<8x128xf32>
    %158 = arith.addf %156, %157 : vector<8x128xf32>
    %cst_27 = arith.constant dense<0.000000e+00> : vector<8x384xf32>
    %159 = tpu.matmul %158, %25, %cst_27 {dimension_numbers = #tpu.dot_dimension_numbers<[1], [0], [0], [1], [0, 0, 1, 1], [], []>} : vector<8x128xf32>, vector<128x384xf32>, vector<8x384xf32> -> vector<8x384xf32>
    %160 = vector.extract_strided_slice %50 {offsets = [0, 0], sizes = [8, 128], strides = [1, 1]} : vector<8x384xf32> to vector<8x128xf32>
    %161 = vector.extract_strided_slice %159 {offsets = [0, 0], sizes = [8, 128], strides = [1, 1]} : vector<8x384xf32> to vector<8x128xf32>
    %162 = arith.addf %160, %161 : vector<8x128xf32>
    %163 = arith.negf %162 : vector<8x128xf32>
    %164 = math.exp %163 : vector<8x128xf32>
    %cst_28 = arith.constant 1.000000e+00 : f32
    %165 = vector.broadcast %cst_28 : f32 to vector<8x128xf32>
    %166 = arith.addf %165, %164 : vector<8x128xf32>
    %167 = arith.divf %165, %166 : vector<8x128xf32>
    %168 = vector.extract_strided_slice %50 {offsets = [0, 128], sizes = [8, 128], strides = [1, 1]} : vector<8x384xf32> to vector<8x128xf32>
    %169 = vector.extract_strided_slice %159 {offsets = [0, 128], sizes = [8, 128], strides = [1, 1]} : vector<8x384xf32> to vector<8x128xf32>
    %170 = arith.addf %168, %169 : vector<8x128xf32>
    %171 = arith.negf %170 : vector<8x128xf32>
    %172 = math.exp %171 : vector<8x128xf32>
    %cst_29 = arith.constant 1.000000e+00 : f32
    %173 = vector.broadcast %cst_29 : f32 to vector<8x128xf32>
    %174 = arith.addf %173, %172 : vector<8x128xf32>
    %175 = arith.divf %173, %174 : vector<8x128xf32>
    %176 = vector.extract_strided_slice %50 {offsets = [0, 256], sizes = [8, 128], strides = [1, 1]} : vector<8x384xf32> to vector<8x128xf32>
    %177 = vector.extract_strided_slice %159 {offsets = [0, 256], sizes = [8, 128], strides = [1, 1]} : vector<8x384xf32> to vector<8x128xf32>
    %178 = arith.addf %177, %73 : vector<8x128xf32>
    %179 = arith.mulf %167, %178 : vector<8x128xf32>
    %180 = arith.addf %176, %179 : vector<8x128xf32>
    %181 = math.tanh %180 : vector<8x128xf32>
    %cst_30 = arith.constant 1.000000e+00 : f32
    %182 = vector.broadcast %cst_30 : f32 to vector<8x128xf32>
    %183 = arith.subf %182, %175 : vector<8x128xf32>
    %184 = arith.mulf %183, %181 : vector<8x128xf32>
    %185 = arith.mulf %175, %158 : vector<8x128xf32>
    %186 = arith.addf %184, %185 : vector<8x128xf32>
    %cst_31 = arith.constant dense<0.000000e+00> : vector<8x384xf32>
    %187 = tpu.matmul %186, %25, %cst_31 {dimension_numbers = #tpu.dot_dimension_numbers<[1], [0], [0], [1], [0, 0, 1, 1], [], []>} : vector<8x128xf32>, vector<128x384xf32>, vector<8x384xf32> -> vector<8x384xf32>
    %188 = vector.extract_strided_slice %55 {offsets = [0, 0], sizes = [8, 128], strides = [1, 1]} : vector<8x384xf32> to vector<8x128xf32>
    %189 = vector.extract_strided_slice %187 {offsets = [0, 0], sizes = [8, 128], strides = [1, 1]} : vector<8x384xf32> to vector<8x128xf32>
    %190 = arith.addf %188, %189 : vector<8x128xf32>
    %191 = arith.negf %190 : vector<8x128xf32>
    %192 = math.exp %191 : vector<8x128xf32>
    %cst_32 = arith.constant 1.000000e+00 : f32
    %193 = vector.broadcast %cst_32 : f32 to vector<8x128xf32>
    %194 = arith.addf %193, %192 : vector<8x128xf32>
    %195 = arith.divf %193, %194 : vector<8x128xf32>
    %196 = vector.extract_strided_slice %55 {offsets = [0, 128], sizes = [8, 128], strides = [1, 1]} : vector<8x384xf32> to vector<8x128xf32>
    %197 = vector.extract_strided_slice %187 {offsets = [0, 128], sizes = [8, 128], strides = [1, 1]} : vector<8x384xf32> to vector<8x128xf32>
    %198 = arith.addf %196, %197 : vector<8x128xf32>
    %199 = arith.negf %198 : vector<8x128xf32>
    %200 = math.exp %199 : vector<8x128xf32>
    %cst_33 = arith.constant 1.000000e+00 : f32
    %201 = vector.broadcast %cst_33 : f32 to vector<8x128xf32>
    %202 = arith.addf %201, %200 : vector<8x128xf32>
    %203 = arith.divf %201, %202 : vector<8x128xf32>
    %204 = vector.extract_strided_slice %55 {offsets = [0, 256], sizes = [8, 128], strides = [1, 1]} : vector<8x384xf32> to vector<8x128xf32>
    %205 = vector.extract_strided_slice %187 {offsets = [0, 256], sizes = [8, 128], strides = [1, 1]} : vector<8x384xf32> to vector<8x128xf32>
    %206 = arith.addf %205, %73 : vector<8x128xf32>
    %207 = arith.mulf %195, %206 : vector<8x128xf32>
    %208 = arith.addf %204, %207 : vector<8x128xf32>
    %209 = math.tanh %208 : vector<8x128xf32>
    %cst_34 = arith.constant 1.000000e+00 : f32
    %210 = vector.broadcast %cst_34 : f32 to vector<8x128xf32>
    %211 = arith.subf %210, %203 : vector<8x128xf32>
    %212 = arith.mulf %211, %209 : vector<8x128xf32>
    %213 = arith.mulf %203, %186 : vector<8x128xf32>
    %214 = arith.addf %212, %213 : vector<8x128xf32>
    %cst_35 = arith.constant dense<0.000000e+00> : vector<8x384xf32>
    %215 = tpu.matmul %214, %25, %cst_35 {dimension_numbers = #tpu.dot_dimension_numbers<[1], [0], [0], [1], [0, 0, 1, 1], [], []>} : vector<8x128xf32>, vector<128x384xf32>, vector<8x384xf32> -> vector<8x384xf32>
    %216 = vector.extract_strided_slice %60 {offsets = [0, 0], sizes = [8, 128], strides = [1, 1]} : vector<8x384xf32> to vector<8x128xf32>
    %217 = vector.extract_strided_slice %215 {offsets = [0, 0], sizes = [8, 128], strides = [1, 1]} : vector<8x384xf32> to vector<8x128xf32>
    %218 = arith.addf %216, %217 : vector<8x128xf32>
    %219 = arith.negf %218 : vector<8x128xf32>
    %220 = math.exp %219 : vector<8x128xf32>
    %cst_36 = arith.constant 1.000000e+00 : f32
    %221 = vector.broadcast %cst_36 : f32 to vector<8x128xf32>
    %222 = arith.addf %221, %220 : vector<8x128xf32>
    %223 = arith.divf %221, %222 : vector<8x128xf32>
    %224 = vector.extract_strided_slice %60 {offsets = [0, 128], sizes = [8, 128], strides = [1, 1]} : vector<8x384xf32> to vector<8x128xf32>
    %225 = vector.extract_strided_slice %215 {offsets = [0, 128], sizes = [8, 128], strides = [1, 1]} : vector<8x384xf32> to vector<8x128xf32>
    %226 = arith.addf %224, %225 : vector<8x128xf32>
    %227 = arith.negf %226 : vector<8x128xf32>
    %228 = math.exp %227 : vector<8x128xf32>
    %cst_37 = arith.constant 1.000000e+00 : f32
    %229 = vector.broadcast %cst_37 : f32 to vector<8x128xf32>
    %230 = arith.addf %229, %228 : vector<8x128xf32>
    %231 = arith.divf %229, %230 : vector<8x128xf32>
    %232 = vector.extract_strided_slice %60 {offsets = [0, 256], sizes = [8, 128], strides = [1, 1]} : vector<8x384xf32> to vector<8x128xf32>
    %233 = vector.extract_strided_slice %215 {offsets = [0, 256], sizes = [8, 128], strides = [1, 1]} : vector<8x384xf32> to vector<8x128xf32>
    %234 = arith.addf %233, %73 : vector<8x128xf32>
    %235 = arith.mulf %223, %234 : vector<8x128xf32>
    %236 = arith.addf %232, %235 : vector<8x128xf32>
    %237 = math.tanh %236 : vector<8x128xf32>
    %cst_38 = arith.constant 1.000000e+00 : f32
    %238 = vector.broadcast %cst_38 : f32 to vector<8x128xf32>
    %239 = arith.subf %238, %231 : vector<8x128xf32>
    %240 = arith.mulf %239, %237 : vector<8x128xf32>
    %241 = arith.mulf %231, %214 : vector<8x128xf32>
    %242 = arith.addf %240, %241 : vector<8x128xf32>
    %cst_39 = arith.constant dense<0.000000e+00> : vector<8x384xf32>
    %243 = tpu.matmul %242, %25, %cst_39 {dimension_numbers = #tpu.dot_dimension_numbers<[1], [0], [0], [1], [0, 0, 1, 1], [], []>} : vector<8x128xf32>, vector<128x384xf32>, vector<8x384xf32> -> vector<8x384xf32>
    %244 = vector.extract_strided_slice %65 {offsets = [0, 0], sizes = [8, 128], strides = [1, 1]} : vector<8x384xf32> to vector<8x128xf32>
    %245 = vector.extract_strided_slice %243 {offsets = [0, 0], sizes = [8, 128], strides = [1, 1]} : vector<8x384xf32> to vector<8x128xf32>
    %246 = arith.addf %244, %245 : vector<8x128xf32>
    %247 = arith.negf %246 : vector<8x128xf32>
    %248 = math.exp %247 : vector<8x128xf32>
    %cst_40 = arith.constant 1.000000e+00 : f32
    %249 = vector.broadcast %cst_40 : f32 to vector<8x128xf32>
    %250 = arith.addf %249, %248 : vector<8x128xf32>
    %251 = arith.divf %249, %250 : vector<8x128xf32>
    %252 = vector.extract_strided_slice %65 {offsets = [0, 128], sizes = [8, 128], strides = [1, 1]} : vector<8x384xf32> to vector<8x128xf32>
    %253 = vector.extract_strided_slice %243 {offsets = [0, 128], sizes = [8, 128], strides = [1, 1]} : vector<8x384xf32> to vector<8x128xf32>
    %254 = arith.addf %252, %253 : vector<8x128xf32>
    %255 = arith.negf %254 : vector<8x128xf32>
    %256 = math.exp %255 : vector<8x128xf32>
    %cst_41 = arith.constant 1.000000e+00 : f32
    %257 = vector.broadcast %cst_41 : f32 to vector<8x128xf32>
    %258 = arith.addf %257, %256 : vector<8x128xf32>
    %259 = arith.divf %257, %258 : vector<8x128xf32>
    %260 = vector.extract_strided_slice %65 {offsets = [0, 256], sizes = [8, 128], strides = [1, 1]} : vector<8x384xf32> to vector<8x128xf32>
    %261 = vector.extract_strided_slice %243 {offsets = [0, 256], sizes = [8, 128], strides = [1, 1]} : vector<8x384xf32> to vector<8x128xf32>
    %262 = arith.addf %261, %73 : vector<8x128xf32>
    %263 = arith.mulf %251, %262 : vector<8x128xf32>
    %264 = arith.addf %260, %263 : vector<8x128xf32>
    %265 = math.tanh %264 : vector<8x128xf32>
    %cst_42 = arith.constant 1.000000e+00 : f32
    %266 = vector.broadcast %cst_42 : f32 to vector<8x128xf32>
    %267 = arith.subf %266, %259 : vector<8x128xf32>
    %268 = arith.mulf %267, %265 : vector<8x128xf32>
    %269 = arith.mulf %259, %242 : vector<8x128xf32>
    %270 = arith.addf %268, %269 : vector<8x128xf32>
    %cst_43 = arith.constant dense<0.000000e+00> : vector<8x384xf32>
    %271 = tpu.matmul %270, %25, %cst_43 {dimension_numbers = #tpu.dot_dimension_numbers<[1], [0], [0], [1], [0, 0, 1, 1], [], []>} : vector<8x128xf32>, vector<128x384xf32>, vector<8x384xf32> -> vector<8x384xf32>
    %272 = vector.extract_strided_slice %70 {offsets = [0, 0], sizes = [8, 128], strides = [1, 1]} : vector<8x384xf32> to vector<8x128xf32>
    %273 = vector.extract_strided_slice %271 {offsets = [0, 0], sizes = [8, 128], strides = [1, 1]} : vector<8x384xf32> to vector<8x128xf32>
    %274 = arith.addf %272, %273 : vector<8x128xf32>
    %275 = arith.negf %274 : vector<8x128xf32>
    %276 = math.exp %275 : vector<8x128xf32>
    %cst_44 = arith.constant 1.000000e+00 : f32
    %277 = vector.broadcast %cst_44 : f32 to vector<8x128xf32>
    %278 = arith.addf %277, %276 : vector<8x128xf32>
    %279 = arith.divf %277, %278 : vector<8x128xf32>
    %280 = vector.extract_strided_slice %70 {offsets = [0, 128], sizes = [8, 128], strides = [1, 1]} : vector<8x384xf32> to vector<8x128xf32>
    %281 = vector.extract_strided_slice %271 {offsets = [0, 128], sizes = [8, 128], strides = [1, 1]} : vector<8x384xf32> to vector<8x128xf32>
    %282 = arith.addf %280, %281 : vector<8x128xf32>
    %283 = arith.negf %282 : vector<8x128xf32>
    %284 = math.exp %283 : vector<8x128xf32>
    %cst_45 = arith.constant 1.000000e+00 : f32
    %285 = vector.broadcast %cst_45 : f32 to vector<8x128xf32>
    %286 = arith.addf %285, %284 : vector<8x128xf32>
    %287 = arith.divf %285, %286 : vector<8x128xf32>
    %288 = vector.extract_strided_slice %70 {offsets = [0, 256], sizes = [8, 128], strides = [1, 1]} : vector<8x384xf32> to vector<8x128xf32>
    %289 = vector.extract_strided_slice %271 {offsets = [0, 256], sizes = [8, 128], strides = [1, 1]} : vector<8x384xf32> to vector<8x128xf32>
    %290 = arith.addf %289, %73 : vector<8x128xf32>
    %291 = arith.mulf %279, %290 : vector<8x128xf32>
    %292 = arith.addf %288, %291 : vector<8x128xf32>
    %293 = math.tanh %292 : vector<8x128xf32>
    %cst_46 = arith.constant 1.000000e+00 : f32
    %294 = vector.broadcast %cst_46 : f32 to vector<8x128xf32>
    %295 = arith.subf %294, %287 : vector<8x128xf32>
    %296 = arith.mulf %295, %293 : vector<8x128xf32>
    %297 = arith.mulf %287, %270 : vector<8x128xf32>
    %298 = arith.addf %296, %297 : vector<8x128xf32>
    %299 = arith.select %21, %102, %298 : vector<8x128xi1>, vector<8x128xf32>
    %300 = arith.select %21, %130, %270 : vector<8x128xi1>, vector<8x128xf32>
    %301 = arith.select %21, %158, %242 : vector<8x128xi1>, vector<8x128xf32>
    %302 = arith.select %21, %186, %214 : vector<8x128xi1>, vector<8x128xf32>
    %303 = arith.select %21, %214, %186 : vector<8x128xi1>, vector<8x128xf32>
    %304 = arith.select %21, %242, %158 : vector<8x128xi1>, vector<8x128xf32>
    %305 = arith.select %21, %270, %130 : vector<8x128xi1>, vector<8x128xf32>
    %306 = arith.select %21, %298, %102 : vector<8x128xi1>, vector<8x128xf32>
    %307 = tpu.concatenate %299, %300, %301, %302, %303, %304, %305, %306 in 0 : vector<8x128xf32>, vector<8x128xf32>, vector<8x128xf32>, vector<8x128xf32>, vector<8x128xf32>, vector<8x128xf32>, vector<8x128xf32>, vector<8x128xf32> -> vector<64x128xf32>
    %c0_47 = arith.constant 0 : index
    %c0_48 = arith.constant 0 : index
    %308 = vector.load %arg5[%c0_47, %c0_48] : memref<128x384xf32, #tpu.memory_space<vmem>>, vector<128x384xf32>
    %c0_49 = arith.constant 0 : index
    %c0_50 = arith.constant 0 : index
    %309 = vector.load %arg6[%c0_49, %c0_50] : memref<128x384xf32, #tpu.memory_space<vmem>>, vector<128x384xf32>
    %cst_51 = arith.constant dense<0.000000e+00> : vector<64x384xf32>
    %310 = tpu.matmul %307, %308, %cst_51 {dimension_numbers = #tpu.dot_dimension_numbers<[1], [0], [0], [1], [0, 0, 1, 1], [], []>} : vector<64x128xf32>, vector<128x384xf32>, vector<64x384xf32> -> vector<64x384xf32>
    %c0_52 = arith.constant 0 : index
    %c0_53 = arith.constant 0 : index
    %311 = vector.load %arg7[%c0_52, %c0_53] : memref<1x384xf32, #tpu.memory_space<vmem>>, vector<1x384xf32>
    %312 = vector.broadcast %311 : vector<1x384xf32> to vector<64x384xf32>
    %313 = arith.addf %310, %312 : vector<64x384xf32>
    %314 = vector.shape_cast %313 : vector<64x384xf32> to vector<8x8x384xf32>
    %315 = vector.extract_strided_slice %314 {offsets = [0, 0, 0], sizes = [1, 8, 384], strides = [1, 1, 1]} : vector<8x8x384xf32> to vector<1x8x384xf32>
    %316 = vector.shape_cast %315 : vector<1x8x384xf32> to vector<8x384xf32>
    %317 = vector.extract_strided_slice %314 {offsets = [7, 0, 0], sizes = [1, 8, 384], strides = [1, 1, 1]} : vector<8x8x384xf32> to vector<1x8x384xf32>
    %318 = vector.shape_cast %317 : vector<1x8x384xf32> to vector<8x384xf32>
    %319 = arith.select %18, %316, %318 : vector<8x384xi1>, vector<8x384xf32>
    %320 = vector.extract_strided_slice %314 {offsets = [1, 0, 0], sizes = [1, 8, 384], strides = [1, 1, 1]} : vector<8x8x384xf32> to vector<1x8x384xf32>
    %321 = vector.shape_cast %320 : vector<1x8x384xf32> to vector<8x384xf32>
    %322 = vector.extract_strided_slice %314 {offsets = [6, 0, 0], sizes = [1, 8, 384], strides = [1, 1, 1]} : vector<8x8x384xf32> to vector<1x8x384xf32>
    %323 = vector.shape_cast %322 : vector<1x8x384xf32> to vector<8x384xf32>
    %324 = arith.select %18, %321, %323 : vector<8x384xi1>, vector<8x384xf32>
    %325 = vector.extract_strided_slice %314 {offsets = [2, 0, 0], sizes = [1, 8, 384], strides = [1, 1, 1]} : vector<8x8x384xf32> to vector<1x8x384xf32>
    %326 = vector.shape_cast %325 : vector<1x8x384xf32> to vector<8x384xf32>
    %327 = vector.extract_strided_slice %314 {offsets = [5, 0, 0], sizes = [1, 8, 384], strides = [1, 1, 1]} : vector<8x8x384xf32> to vector<1x8x384xf32>
    %328 = vector.shape_cast %327 : vector<1x8x384xf32> to vector<8x384xf32>
    %329 = arith.select %18, %326, %328 : vector<8x384xi1>, vector<8x384xf32>
    %330 = vector.extract_strided_slice %314 {offsets = [3, 0, 0], sizes = [1, 8, 384], strides = [1, 1, 1]} : vector<8x8x384xf32> to vector<1x8x384xf32>
    %331 = vector.shape_cast %330 : vector<1x8x384xf32> to vector<8x384xf32>
    %332 = vector.extract_strided_slice %314 {offsets = [4, 0, 0], sizes = [1, 8, 384], strides = [1, 1, 1]} : vector<8x8x384xf32> to vector<1x8x384xf32>
    %333 = vector.shape_cast %332 : vector<1x8x384xf32> to vector<8x384xf32>
    %334 = arith.select %18, %331, %333 : vector<8x384xi1>, vector<8x384xf32>
    %335 = vector.extract_strided_slice %314 {offsets = [4, 0, 0], sizes = [1, 8, 384], strides = [1, 1, 1]} : vector<8x8x384xf32> to vector<1x8x384xf32>
    %336 = vector.shape_cast %335 : vector<1x8x384xf32> to vector<8x384xf32>
    %337 = vector.extract_strided_slice %314 {offsets = [3, 0, 0], sizes = [1, 8, 384], strides = [1, 1, 1]} : vector<8x8x384xf32> to vector<1x8x384xf32>
    %338 = vector.shape_cast %337 : vector<1x8x384xf32> to vector<8x384xf32>
    %339 = arith.select %18, %336, %338 : vector<8x384xi1>, vector<8x384xf32>
    %340 = vector.extract_strided_slice %314 {offsets = [5, 0, 0], sizes = [1, 8, 384], strides = [1, 1, 1]} : vector<8x8x384xf32> to vector<1x8x384xf32>
    %341 = vector.shape_cast %340 : vector<1x8x384xf32> to vector<8x384xf32>
    %342 = vector.extract_strided_slice %314 {offsets = [2, 0, 0], sizes = [1, 8, 384], strides = [1, 1, 1]} : vector<8x8x384xf32> to vector<1x8x384xf32>
    %343 = vector.shape_cast %342 : vector<1x8x384xf32> to vector<8x384xf32>
    %344 = arith.select %18, %341, %343 : vector<8x384xi1>, vector<8x384xf32>
    %345 = vector.extract_strided_slice %314 {offsets = [6, 0, 0], sizes = [1, 8, 384], strides = [1, 1, 1]} : vector<8x8x384xf32> to vector<1x8x384xf32>
    %346 = vector.shape_cast %345 : vector<1x8x384xf32> to vector<8x384xf32>
    %347 = vector.extract_strided_slice %314 {offsets = [1, 0, 0], sizes = [1, 8, 384], strides = [1, 1, 1]} : vector<8x8x384xf32> to vector<1x8x384xf32>
    %348 = vector.shape_cast %347 : vector<1x8x384xf32> to vector<8x384xf32>
    %349 = arith.select %18, %346, %348 : vector<8x384xi1>, vector<8x384xf32>
    %350 = vector.extract_strided_slice %314 {offsets = [7, 0, 0], sizes = [1, 8, 384], strides = [1, 1, 1]} : vector<8x8x384xf32> to vector<1x8x384xf32>
    %351 = vector.shape_cast %350 : vector<1x8x384xf32> to vector<8x384xf32>
    %352 = vector.extract_strided_slice %314 {offsets = [0, 0, 0], sizes = [1, 8, 384], strides = [1, 1, 1]} : vector<8x8x384xf32> to vector<1x8x384xf32>
    %353 = vector.shape_cast %352 : vector<1x8x384xf32> to vector<8x384xf32>
    %354 = arith.select %18, %351, %353 : vector<8x384xi1>, vector<8x384xf32>
    %c0_54 = arith.constant 0 : index
    %c0_55 = arith.constant 0 : index
    %355 = vector.load %arg8[%c0_54, %c0_55] : memref<1x128xf32, #tpu.memory_space<vmem>>, vector<1x128xf32>
    %356 = vector.shape_cast %355 : vector<1x128xf32> to vector<1x128xf32>
    %357 = vector.broadcast %356 : vector<1x128xf32> to vector<8x128xf32>
    %cst_56 = arith.constant 0.000000e+00 : f32
    %358 = vector.broadcast %cst_56 : f32 to vector<8x128xf32>
    %cst_57 = arith.constant dense<0.000000e+00> : vector<8x384xf32>
    %359 = tpu.matmul %358, %309, %cst_57 {dimension_numbers = #tpu.dot_dimension_numbers<[1], [0], [0], [1], [0, 0, 1, 1], [], []>} : vector<8x128xf32>, vector<128x384xf32>, vector<8x384xf32> -> vector<8x384xf32>
    %360 = vector.extract_strided_slice %319 {offsets = [0, 0], sizes = [8, 128], strides = [1, 1]} : vector<8x384xf32> to vector<8x128xf32>
    %361 = vector.extract_strided_slice %359 {offsets = [0, 0], sizes = [8, 128], strides = [1, 1]} : vector<8x384xf32> to vector<8x128xf32>
    %362 = arith.addf %360, %361 : vector<8x128xf32>
    %363 = arith.negf %362 : vector<8x128xf32>
    %364 = math.exp %363 : vector<8x128xf32>
    %cst_58 = arith.constant 1.000000e+00 : f32
    %365 = vector.broadcast %cst_58 : f32 to vector<8x128xf32>
    %366 = arith.addf %365, %364 : vector<8x128xf32>
    %367 = arith.divf %365, %366 : vector<8x128xf32>
    %368 = vector.extract_strided_slice %319 {offsets = [0, 128], sizes = [8, 128], strides = [1, 1]} : vector<8x384xf32> to vector<8x128xf32>
    %369 = vector.extract_strided_slice %359 {offsets = [0, 128], sizes = [8, 128], strides = [1, 1]} : vector<8x384xf32> to vector<8x128xf32>
    %370 = arith.addf %368, %369 : vector<8x128xf32>
    %371 = arith.negf %370 : vector<8x128xf32>
    %372 = math.exp %371 : vector<8x128xf32>
    %cst_59 = arith.constant 1.000000e+00 : f32
    %373 = vector.broadcast %cst_59 : f32 to vector<8x128xf32>
    %374 = arith.addf %373, %372 : vector<8x128xf32>
    %375 = arith.divf %373, %374 : vector<8x128xf32>
    %376 = vector.extract_strided_slice %319 {offsets = [0, 256], sizes = [8, 128], strides = [1, 1]} : vector<8x384xf32> to vector<8x128xf32>
    %377 = vector.extract_strided_slice %359 {offsets = [0, 256], sizes = [8, 128], strides = [1, 1]} : vector<8x384xf32> to vector<8x128xf32>
    %378 = arith.addf %377, %357 : vector<8x128xf32>
    %379 = arith.mulf %367, %378 : vector<8x128xf32>
    %380 = arith.addf %376, %379 : vector<8x128xf32>
    %381 = math.tanh %380 : vector<8x128xf32>
    %cst_60 = arith.constant 1.000000e+00 : f32
    %382 = vector.broadcast %cst_60 : f32 to vector<8x128xf32>
    %383 = arith.subf %382, %375 : vector<8x128xf32>
    %384 = arith.mulf %383, %381 : vector<8x128xf32>
    %385 = arith.mulf %375, %358 : vector<8x128xf32>
    %386 = arith.addf %384, %385 : vector<8x128xf32>
    %cst_61 = arith.constant dense<0.000000e+00> : vector<8x384xf32>
    %387 = tpu.matmul %386, %309, %cst_61 {dimension_numbers = #tpu.dot_dimension_numbers<[1], [0], [0], [1], [0, 0, 1, 1], [], []>} : vector<8x128xf32>, vector<128x384xf32>, vector<8x384xf32> -> vector<8x384xf32>
    %388 = vector.extract_strided_slice %324 {offsets = [0, 0], sizes = [8, 128], strides = [1, 1]} : vector<8x384xf32> to vector<8x128xf32>
    %389 = vector.extract_strided_slice %387 {offsets = [0, 0], sizes = [8, 128], strides = [1, 1]} : vector<8x384xf32> to vector<8x128xf32>
    %390 = arith.addf %388, %389 : vector<8x128xf32>
    %391 = arith.negf %390 : vector<8x128xf32>
    %392 = math.exp %391 : vector<8x128xf32>
    %cst_62 = arith.constant 1.000000e+00 : f32
    %393 = vector.broadcast %cst_62 : f32 to vector<8x128xf32>
    %394 = arith.addf %393, %392 : vector<8x128xf32>
    %395 = arith.divf %393, %394 : vector<8x128xf32>
    %396 = vector.extract_strided_slice %324 {offsets = [0, 128], sizes = [8, 128], strides = [1, 1]} : vector<8x384xf32> to vector<8x128xf32>
    %397 = vector.extract_strided_slice %387 {offsets = [0, 128], sizes = [8, 128], strides = [1, 1]} : vector<8x384xf32> to vector<8x128xf32>
    %398 = arith.addf %396, %397 : vector<8x128xf32>
    %399 = arith.negf %398 : vector<8x128xf32>
    %400 = math.exp %399 : vector<8x128xf32>
    %cst_63 = arith.constant 1.000000e+00 : f32
    %401 = vector.broadcast %cst_63 : f32 to vector<8x128xf32>
    %402 = arith.addf %401, %400 : vector<8x128xf32>
    %403 = arith.divf %401, %402 : vector<8x128xf32>
    %404 = vector.extract_strided_slice %324 {offsets = [0, 256], sizes = [8, 128], strides = [1, 1]} : vector<8x384xf32> to vector<8x128xf32>
    %405 = vector.extract_strided_slice %387 {offsets = [0, 256], sizes = [8, 128], strides = [1, 1]} : vector<8x384xf32> to vector<8x128xf32>
    %406 = arith.addf %405, %357 : vector<8x128xf32>
    %407 = arith.mulf %395, %406 : vector<8x128xf32>
    %408 = arith.addf %404, %407 : vector<8x128xf32>
    %409 = math.tanh %408 : vector<8x128xf32>
    %cst_64 = arith.constant 1.000000e+00 : f32
    %410 = vector.broadcast %cst_64 : f32 to vector<8x128xf32>
    %411 = arith.subf %410, %403 : vector<8x128xf32>
    %412 = arith.mulf %411, %409 : vector<8x128xf32>
    %413 = arith.mulf %403, %386 : vector<8x128xf32>
    %414 = arith.addf %412, %413 : vector<8x128xf32>
    %cst_65 = arith.constant dense<0.000000e+00> : vector<8x384xf32>
    %415 = tpu.matmul %414, %309, %cst_65 {dimension_numbers = #tpu.dot_dimension_numbers<[1], [0], [0], [1], [0, 0, 1, 1], [], []>} : vector<8x128xf32>, vector<128x384xf32>, vector<8x384xf32> -> vector<8x384xf32>
    %416 = vector.extract_strided_slice %329 {offsets = [0, 0], sizes = [8, 128], strides = [1, 1]} : vector<8x384xf32> to vector<8x128xf32>
    %417 = vector.extract_strided_slice %415 {offsets = [0, 0], sizes = [8, 128], strides = [1, 1]} : vector<8x384xf32> to vector<8x128xf32>
    %418 = arith.addf %416, %417 : vector<8x128xf32>
    %419 = arith.negf %418 : vector<8x128xf32>
    %420 = math.exp %419 : vector<8x128xf32>
    %cst_66 = arith.constant 1.000000e+00 : f32
    %421 = vector.broadcast %cst_66 : f32 to vector<8x128xf32>
    %422 = arith.addf %421, %420 : vector<8x128xf32>
    %423 = arith.divf %421, %422 : vector<8x128xf32>
    %424 = vector.extract_strided_slice %329 {offsets = [0, 128], sizes = [8, 128], strides = [1, 1]} : vector<8x384xf32> to vector<8x128xf32>
    %425 = vector.extract_strided_slice %415 {offsets = [0, 128], sizes = [8, 128], strides = [1, 1]} : vector<8x384xf32> to vector<8x128xf32>
    %426 = arith.addf %424, %425 : vector<8x128xf32>
    %427 = arith.negf %426 : vector<8x128xf32>
    %428 = math.exp %427 : vector<8x128xf32>
    %cst_67 = arith.constant 1.000000e+00 : f32
    %429 = vector.broadcast %cst_67 : f32 to vector<8x128xf32>
    %430 = arith.addf %429, %428 : vector<8x128xf32>
    %431 = arith.divf %429, %430 : vector<8x128xf32>
    %432 = vector.extract_strided_slice %329 {offsets = [0, 256], sizes = [8, 128], strides = [1, 1]} : vector<8x384xf32> to vector<8x128xf32>
    %433 = vector.extract_strided_slice %415 {offsets = [0, 256], sizes = [8, 128], strides = [1, 1]} : vector<8x384xf32> to vector<8x128xf32>
    %434 = arith.addf %433, %357 : vector<8x128xf32>
    %435 = arith.mulf %423, %434 : vector<8x128xf32>
    %436 = arith.addf %432, %435 : vector<8x128xf32>
    %437 = math.tanh %436 : vector<8x128xf32>
    %cst_68 = arith.constant 1.000000e+00 : f32
    %438 = vector.broadcast %cst_68 : f32 to vector<8x128xf32>
    %439 = arith.subf %438, %431 : vector<8x128xf32>
    %440 = arith.mulf %439, %437 : vector<8x128xf32>
    %441 = arith.mulf %431, %414 : vector<8x128xf32>
    %442 = arith.addf %440, %441 : vector<8x128xf32>
    %cst_69 = arith.constant dense<0.000000e+00> : vector<8x384xf32>
    %443 = tpu.matmul %442, %309, %cst_69 {dimension_numbers = #tpu.dot_dimension_numbers<[1], [0], [0], [1], [0, 0, 1, 1], [], []>} : vector<8x128xf32>, vector<128x384xf32>, vector<8x384xf32> -> vector<8x384xf32>
    %444 = vector.extract_strided_slice %334 {offsets = [0, 0], sizes = [8, 128], strides = [1, 1]} : vector<8x384xf32> to vector<8x128xf32>
    %445 = vector.extract_strided_slice %443 {offsets = [0, 0], sizes = [8, 128], strides = [1, 1]} : vector<8x384xf32> to vector<8x128xf32>
    %446 = arith.addf %444, %445 : vector<8x128xf32>
    %447 = arith.negf %446 : vector<8x128xf32>
    %448 = math.exp %447 : vector<8x128xf32>
    %cst_70 = arith.constant 1.000000e+00 : f32
    %449 = vector.broadcast %cst_70 : f32 to vector<8x128xf32>
    %450 = arith.addf %449, %448 : vector<8x128xf32>
    %451 = arith.divf %449, %450 : vector<8x128xf32>
    %452 = vector.extract_strided_slice %334 {offsets = [0, 128], sizes = [8, 128], strides = [1, 1]} : vector<8x384xf32> to vector<8x128xf32>
    %453 = vector.extract_strided_slice %443 {offsets = [0, 128], sizes = [8, 128], strides = [1, 1]} : vector<8x384xf32> to vector<8x128xf32>
    %454 = arith.addf %452, %453 : vector<8x128xf32>
    %455 = arith.negf %454 : vector<8x128xf32>
    %456 = math.exp %455 : vector<8x128xf32>
    %cst_71 = arith.constant 1.000000e+00 : f32
    %457 = vector.broadcast %cst_71 : f32 to vector<8x128xf32>
    %458 = arith.addf %457, %456 : vector<8x128xf32>
    %459 = arith.divf %457, %458 : vector<8x128xf32>
    %460 = vector.extract_strided_slice %334 {offsets = [0, 256], sizes = [8, 128], strides = [1, 1]} : vector<8x384xf32> to vector<8x128xf32>
    %461 = vector.extract_strided_slice %443 {offsets = [0, 256], sizes = [8, 128], strides = [1, 1]} : vector<8x384xf32> to vector<8x128xf32>
    %462 = arith.addf %461, %357 : vector<8x128xf32>
    %463 = arith.mulf %451, %462 : vector<8x128xf32>
    %464 = arith.addf %460, %463 : vector<8x128xf32>
    %465 = math.tanh %464 : vector<8x128xf32>
    %cst_72 = arith.constant 1.000000e+00 : f32
    %466 = vector.broadcast %cst_72 : f32 to vector<8x128xf32>
    %467 = arith.subf %466, %459 : vector<8x128xf32>
    %468 = arith.mulf %467, %465 : vector<8x128xf32>
    %469 = arith.mulf %459, %442 : vector<8x128xf32>
    %470 = arith.addf %468, %469 : vector<8x128xf32>
    %cst_73 = arith.constant dense<0.000000e+00> : vector<8x384xf32>
    %471 = tpu.matmul %470, %309, %cst_73 {dimension_numbers = #tpu.dot_dimension_numbers<[1], [0], [0], [1], [0, 0, 1, 1], [], []>} : vector<8x128xf32>, vector<128x384xf32>, vector<8x384xf32> -> vector<8x384xf32>
    %472 = vector.extract_strided_slice %339 {offsets = [0, 0], sizes = [8, 128], strides = [1, 1]} : vector<8x384xf32> to vector<8x128xf32>
    %473 = vector.extract_strided_slice %471 {offsets = [0, 0], sizes = [8, 128], strides = [1, 1]} : vector<8x384xf32> to vector<8x128xf32>
    %474 = arith.addf %472, %473 : vector<8x128xf32>
    %475 = arith.negf %474 : vector<8x128xf32>
    %476 = math.exp %475 : vector<8x128xf32>
    %cst_74 = arith.constant 1.000000e+00 : f32
    %477 = vector.broadcast %cst_74 : f32 to vector<8x128xf32>
    %478 = arith.addf %477, %476 : vector<8x128xf32>
    %479 = arith.divf %477, %478 : vector<8x128xf32>
    %480 = vector.extract_strided_slice %339 {offsets = [0, 128], sizes = [8, 128], strides = [1, 1]} : vector<8x384xf32> to vector<8x128xf32>
    %481 = vector.extract_strided_slice %471 {offsets = [0, 128], sizes = [8, 128], strides = [1, 1]} : vector<8x384xf32> to vector<8x128xf32>
    %482 = arith.addf %480, %481 : vector<8x128xf32>
    %483 = arith.negf %482 : vector<8x128xf32>
    %484 = math.exp %483 : vector<8x128xf32>
    %cst_75 = arith.constant 1.000000e+00 : f32
    %485 = vector.broadcast %cst_75 : f32 to vector<8x128xf32>
    %486 = arith.addf %485, %484 : vector<8x128xf32>
    %487 = arith.divf %485, %486 : vector<8x128xf32>
    %488 = vector.extract_strided_slice %339 {offsets = [0, 256], sizes = [8, 128], strides = [1, 1]} : vector<8x384xf32> to vector<8x128xf32>
    %489 = vector.extract_strided_slice %471 {offsets = [0, 256], sizes = [8, 128], strides = [1, 1]} : vector<8x384xf32> to vector<8x128xf32>
    %490 = arith.addf %489, %357 : vector<8x128xf32>
    %491 = arith.mulf %479, %490 : vector<8x128xf32>
    %492 = arith.addf %488, %491 : vector<8x128xf32>
    %493 = math.tanh %492 : vector<8x128xf32>
    %cst_76 = arith.constant 1.000000e+00 : f32
    %494 = vector.broadcast %cst_76 : f32 to vector<8x128xf32>
    %495 = arith.subf %494, %487 : vector<8x128xf32>
    %496 = arith.mulf %495, %493 : vector<8x128xf32>
    %497 = arith.mulf %487, %470 : vector<8x128xf32>
    %498 = arith.addf %496, %497 : vector<8x128xf32>
    %cst_77 = arith.constant dense<0.000000e+00> : vector<8x384xf32>
    %499 = tpu.matmul %498, %309, %cst_77 {dimension_numbers = #tpu.dot_dimension_numbers<[1], [0], [0], [1], [0, 0, 1, 1], [], []>} : vector<8x128xf32>, vector<128x384xf32>, vector<8x384xf32> -> vector<8x384xf32>
    %500 = vector.extract_strided_slice %344 {offsets = [0, 0], sizes = [8, 128], strides = [1, 1]} : vector<8x384xf32> to vector<8x128xf32>
    %501 = vector.extract_strided_slice %499 {offsets = [0, 0], sizes = [8, 128], strides = [1, 1]} : vector<8x384xf32> to vector<8x128xf32>
    %502 = arith.addf %500, %501 : vector<8x128xf32>
    %503 = arith.negf %502 : vector<8x128xf32>
    %504 = math.exp %503 : vector<8x128xf32>
    %cst_78 = arith.constant 1.000000e+00 : f32
    %505 = vector.broadcast %cst_78 : f32 to vector<8x128xf32>
    %506 = arith.addf %505, %504 : vector<8x128xf32>
    %507 = arith.divf %505, %506 : vector<8x128xf32>
    %508 = vector.extract_strided_slice %344 {offsets = [0, 128], sizes = [8, 128], strides = [1, 1]} : vector<8x384xf32> to vector<8x128xf32>
    %509 = vector.extract_strided_slice %499 {offsets = [0, 128], sizes = [8, 128], strides = [1, 1]} : vector<8x384xf32> to vector<8x128xf32>
    %510 = arith.addf %508, %509 : vector<8x128xf32>
    %511 = arith.negf %510 : vector<8x128xf32>
    %512 = math.exp %511 : vector<8x128xf32>
    %cst_79 = arith.constant 1.000000e+00 : f32
    %513 = vector.broadcast %cst_79 : f32 to vector<8x128xf32>
    %514 = arith.addf %513, %512 : vector<8x128xf32>
    %515 = arith.divf %513, %514 : vector<8x128xf32>
    %516 = vector.extract_strided_slice %344 {offsets = [0, 256], sizes = [8, 128], strides = [1, 1]} : vector<8x384xf32> to vector<8x128xf32>
    %517 = vector.extract_strided_slice %499 {offsets = [0, 256], sizes = [8, 128], strides = [1, 1]} : vector<8x384xf32> to vector<8x128xf32>
    %518 = arith.addf %517, %357 : vector<8x128xf32>
    %519 = arith.mulf %507, %518 : vector<8x128xf32>
    %520 = arith.addf %516, %519 : vector<8x128xf32>
    %521 = math.tanh %520 : vector<8x128xf32>
    %cst_80 = arith.constant 1.000000e+00 : f32
    %522 = vector.broadcast %cst_80 : f32 to vector<8x128xf32>
    %523 = arith.subf %522, %515 : vector<8x128xf32>
    %524 = arith.mulf %523, %521 : vector<8x128xf32>
    %525 = arith.mulf %515, %498 : vector<8x128xf32>
    %526 = arith.addf %524, %525 : vector<8x128xf32>
    %cst_81 = arith.constant dense<0.000000e+00> : vector<8x384xf32>
    %527 = tpu.matmul %526, %309, %cst_81 {dimension_numbers = #tpu.dot_dimension_numbers<[1], [0], [0], [1], [0, 0, 1, 1], [], []>} : vector<8x128xf32>, vector<128x384xf32>, vector<8x384xf32> -> vector<8x384xf32>
    %528 = vector.extract_strided_slice %349 {offsets = [0, 0], sizes = [8, 128], strides = [1, 1]} : vector<8x384xf32> to vector<8x128xf32>
    %529 = vector.extract_strided_slice %527 {offsets = [0, 0], sizes = [8, 128], strides = [1, 1]} : vector<8x384xf32> to vector<8x128xf32>
    %530 = arith.addf %528, %529 : vector<8x128xf32>
    %531 = arith.negf %530 : vector<8x128xf32>
    %532 = math.exp %531 : vector<8x128xf32>
    %cst_82 = arith.constant 1.000000e+00 : f32
    %533 = vector.broadcast %cst_82 : f32 to vector<8x128xf32>
    %534 = arith.addf %533, %532 : vector<8x128xf32>
    %535 = arith.divf %533, %534 : vector<8x128xf32>
    %536 = vector.extract_strided_slice %349 {offsets = [0, 128], sizes = [8, 128], strides = [1, 1]} : vector<8x384xf32> to vector<8x128xf32>
    %537 = vector.extract_strided_slice %527 {offsets = [0, 128], sizes = [8, 128], strides = [1, 1]} : vector<8x384xf32> to vector<8x128xf32>
    %538 = arith.addf %536, %537 : vector<8x128xf32>
    %539 = arith.negf %538 : vector<8x128xf32>
    %540 = math.exp %539 : vector<8x128xf32>
    %cst_83 = arith.constant 1.000000e+00 : f32
    %541 = vector.broadcast %cst_83 : f32 to vector<8x128xf32>
    %542 = arith.addf %541, %540 : vector<8x128xf32>
    %543 = arith.divf %541, %542 : vector<8x128xf32>
    %544 = vector.extract_strided_slice %349 {offsets = [0, 256], sizes = [8, 128], strides = [1, 1]} : vector<8x384xf32> to vector<8x128xf32>
    %545 = vector.extract_strided_slice %527 {offsets = [0, 256], sizes = [8, 128], strides = [1, 1]} : vector<8x384xf32> to vector<8x128xf32>
    %546 = arith.addf %545, %357 : vector<8x128xf32>
    %547 = arith.mulf %535, %546 : vector<8x128xf32>
    %548 = arith.addf %544, %547 : vector<8x128xf32>
    %549 = math.tanh %548 : vector<8x128xf32>
    %cst_84 = arith.constant 1.000000e+00 : f32
    %550 = vector.broadcast %cst_84 : f32 to vector<8x128xf32>
    %551 = arith.subf %550, %543 : vector<8x128xf32>
    %552 = arith.mulf %551, %549 : vector<8x128xf32>
    %553 = arith.mulf %543, %526 : vector<8x128xf32>
    %554 = arith.addf %552, %553 : vector<8x128xf32>
    %cst_85 = arith.constant dense<0.000000e+00> : vector<8x384xf32>
    %555 = tpu.matmul %554, %309, %cst_85 {dimension_numbers = #tpu.dot_dimension_numbers<[1], [0], [0], [1], [0, 0, 1, 1], [], []>} : vector<8x128xf32>, vector<128x384xf32>, vector<8x384xf32> -> vector<8x384xf32>
    %556 = vector.extract_strided_slice %354 {offsets = [0, 0], sizes = [8, 128], strides = [1, 1]} : vector<8x384xf32> to vector<8x128xf32>
    %557 = vector.extract_strided_slice %555 {offsets = [0, 0], sizes = [8, 128], strides = [1, 1]} : vector<8x384xf32> to vector<8x128xf32>
    %558 = arith.addf %556, %557 : vector<8x128xf32>
    %559 = arith.negf %558 : vector<8x128xf32>
    %560 = math.exp %559 : vector<8x128xf32>
    %cst_86 = arith.constant 1.000000e+00 : f32
    %561 = vector.broadcast %cst_86 : f32 to vector<8x128xf32>
    %562 = arith.addf %561, %560 : vector<8x128xf32>
    %563 = arith.divf %561, %562 : vector<8x128xf32>
    %564 = vector.extract_strided_slice %354 {offsets = [0, 128], sizes = [8, 128], strides = [1, 1]} : vector<8x384xf32> to vector<8x128xf32>
    %565 = vector.extract_strided_slice %555 {offsets = [0, 128], sizes = [8, 128], strides = [1, 1]} : vector<8x384xf32> to vector<8x128xf32>
    %566 = arith.addf %564, %565 : vector<8x128xf32>
    %567 = arith.negf %566 : vector<8x128xf32>
    %568 = math.exp %567 : vector<8x128xf32>
    %cst_87 = arith.constant 1.000000e+00 : f32
    %569 = vector.broadcast %cst_87 : f32 to vector<8x128xf32>
    %570 = arith.addf %569, %568 : vector<8x128xf32>
    %571 = arith.divf %569, %570 : vector<8x128xf32>
    %572 = vector.extract_strided_slice %354 {offsets = [0, 256], sizes = [8, 128], strides = [1, 1]} : vector<8x384xf32> to vector<8x128xf32>
    %573 = vector.extract_strided_slice %555 {offsets = [0, 256], sizes = [8, 128], strides = [1, 1]} : vector<8x384xf32> to vector<8x128xf32>
    %574 = arith.addf %573, %357 : vector<8x128xf32>
    %575 = arith.mulf %563, %574 : vector<8x128xf32>
    %576 = arith.addf %572, %575 : vector<8x128xf32>
    %577 = math.tanh %576 : vector<8x128xf32>
    %cst_88 = arith.constant 1.000000e+00 : f32
    %578 = vector.broadcast %cst_88 : f32 to vector<8x128xf32>
    %579 = arith.subf %578, %571 : vector<8x128xf32>
    %580 = arith.mulf %579, %577 : vector<8x128xf32>
    %581 = arith.mulf %571, %554 : vector<8x128xf32>
    %582 = arith.addf %580, %581 : vector<8x128xf32>
    %583 = arith.select %21, %386, %582 : vector<8x128xi1>, vector<8x128xf32>
    %584 = arith.select %21, %414, %554 : vector<8x128xi1>, vector<8x128xf32>
    %585 = arith.select %21, %442, %526 : vector<8x128xi1>, vector<8x128xf32>
    %586 = arith.select %21, %470, %498 : vector<8x128xi1>, vector<8x128xf32>
    %587 = arith.select %21, %498, %470 : vector<8x128xi1>, vector<8x128xf32>
    %588 = arith.select %21, %526, %442 : vector<8x128xi1>, vector<8x128xf32>
    %589 = arith.select %21, %554, %414 : vector<8x128xi1>, vector<8x128xf32>
    %590 = arith.select %21, %582, %386 : vector<8x128xi1>, vector<8x128xf32>
    %591 = tpu.concatenate %583, %584, %585, %586, %587, %588, %589, %590 in 0 : vector<8x128xf32>, vector<8x128xf32>, vector<8x128xf32>, vector<8x128xf32>, vector<8x128xf32>, vector<8x128xf32>, vector<8x128xf32>, vector<8x128xf32> -> vector<64x128xf32>
    %c0_89 = arith.constant 0 : index
    %c0_90 = arith.constant 0 : index
    %592 = vector.load %arg9[%c0_89, %c0_90] : memref<128x384xf32, #tpu.memory_space<vmem>>, vector<128x384xf32>
    %c0_91 = arith.constant 0 : index
    %c0_92 = arith.constant 0 : index
    %593 = vector.load %arg10[%c0_91, %c0_92] : memref<128x384xf32, #tpu.memory_space<vmem>>, vector<128x384xf32>
    %cst_93 = arith.constant dense<0.000000e+00> : vector<64x384xf32>
    %594 = tpu.matmul %591, %592, %cst_93 {dimension_numbers = #tpu.dot_dimension_numbers<[1], [0], [0], [1], [0, 0, 1, 1], [], []>} : vector<64x128xf32>, vector<128x384xf32>, vector<64x384xf32> -> vector<64x384xf32>
    %c0_94 = arith.constant 0 : index
    %c0_95 = arith.constant 0 : index
    %595 = vector.load %arg11[%c0_94, %c0_95] : memref<1x384xf32, #tpu.memory_space<vmem>>, vector<1x384xf32>
    %596 = vector.broadcast %595 : vector<1x384xf32> to vector<64x384xf32>
    %597 = arith.addf %594, %596 : vector<64x384xf32>
    %598 = vector.shape_cast %597 : vector<64x384xf32> to vector<8x8x384xf32>
    %599 = vector.extract_strided_slice %598 {offsets = [0, 0, 0], sizes = [1, 8, 384], strides = [1, 1, 1]} : vector<8x8x384xf32> to vector<1x8x384xf32>
    %600 = vector.shape_cast %599 : vector<1x8x384xf32> to vector<8x384xf32>
    %601 = vector.extract_strided_slice %598 {offsets = [7, 0, 0], sizes = [1, 8, 384], strides = [1, 1, 1]} : vector<8x8x384xf32> to vector<1x8x384xf32>
    %602 = vector.shape_cast %601 : vector<1x8x384xf32> to vector<8x384xf32>
    %603 = arith.select %18, %600, %602 : vector<8x384xi1>, vector<8x384xf32>
    %604 = vector.extract_strided_slice %598 {offsets = [1, 0, 0], sizes = [1, 8, 384], strides = [1, 1, 1]} : vector<8x8x384xf32> to vector<1x8x384xf32>
    %605 = vector.shape_cast %604 : vector<1x8x384xf32> to vector<8x384xf32>
    %606 = vector.extract_strided_slice %598 {offsets = [6, 0, 0], sizes = [1, 8, 384], strides = [1, 1, 1]} : vector<8x8x384xf32> to vector<1x8x384xf32>
    %607 = vector.shape_cast %606 : vector<1x8x384xf32> to vector<8x384xf32>
    %608 = arith.select %18, %605, %607 : vector<8x384xi1>, vector<8x384xf32>
    %609 = vector.extract_strided_slice %598 {offsets = [2, 0, 0], sizes = [1, 8, 384], strides = [1, 1, 1]} : vector<8x8x384xf32> to vector<1x8x384xf32>
    %610 = vector.shape_cast %609 : vector<1x8x384xf32> to vector<8x384xf32>
    %611 = vector.extract_strided_slice %598 {offsets = [5, 0, 0], sizes = [1, 8, 384], strides = [1, 1, 1]} : vector<8x8x384xf32> to vector<1x8x384xf32>
    %612 = vector.shape_cast %611 : vector<1x8x384xf32> to vector<8x384xf32>
    %613 = arith.select %18, %610, %612 : vector<8x384xi1>, vector<8x384xf32>
    %614 = vector.extract_strided_slice %598 {offsets = [3, 0, 0], sizes = [1, 8, 384], strides = [1, 1, 1]} : vector<8x8x384xf32> to vector<1x8x384xf32>
    %615 = vector.shape_cast %614 : vector<1x8x384xf32> to vector<8x384xf32>
    %616 = vector.extract_strided_slice %598 {offsets = [4, 0, 0], sizes = [1, 8, 384], strides = [1, 1, 1]} : vector<8x8x384xf32> to vector<1x8x384xf32>
    %617 = vector.shape_cast %616 : vector<1x8x384xf32> to vector<8x384xf32>
    %618 = arith.select %18, %615, %617 : vector<8x384xi1>, vector<8x384xf32>
    %619 = vector.extract_strided_slice %598 {offsets = [4, 0, 0], sizes = [1, 8, 384], strides = [1, 1, 1]} : vector<8x8x384xf32> to vector<1x8x384xf32>
    %620 = vector.shape_cast %619 : vector<1x8x384xf32> to vector<8x384xf32>
    %621 = vector.extract_strided_slice %598 {offsets = [3, 0, 0], sizes = [1, 8, 384], strides = [1, 1, 1]} : vector<8x8x384xf32> to vector<1x8x384xf32>
    %622 = vector.shape_cast %621 : vector<1x8x384xf32> to vector<8x384xf32>
    %623 = arith.select %18, %620, %622 : vector<8x384xi1>, vector<8x384xf32>
    %624 = vector.extract_strided_slice %598 {offsets = [5, 0, 0], sizes = [1, 8, 384], strides = [1, 1, 1]} : vector<8x8x384xf32> to vector<1x8x384xf32>
    %625 = vector.shape_cast %624 : vector<1x8x384xf32> to vector<8x384xf32>
    %626 = vector.extract_strided_slice %598 {offsets = [2, 0, 0], sizes = [1, 8, 384], strides = [1, 1, 1]} : vector<8x8x384xf32> to vector<1x8x384xf32>
    %627 = vector.shape_cast %626 : vector<1x8x384xf32> to vector<8x384xf32>
    %628 = arith.select %18, %625, %627 : vector<8x384xi1>, vector<8x384xf32>
    %629 = vector.extract_strided_slice %598 {offsets = [6, 0, 0], sizes = [1, 8, 384], strides = [1, 1, 1]} : vector<8x8x384xf32> to vector<1x8x384xf32>
    %630 = vector.shape_cast %629 : vector<1x8x384xf32> to vector<8x384xf32>
    %631 = vector.extract_strided_slice %598 {offsets = [1, 0, 0], sizes = [1, 8, 384], strides = [1, 1, 1]} : vector<8x8x384xf32> to vector<1x8x384xf32>
    %632 = vector.shape_cast %631 : vector<1x8x384xf32> to vector<8x384xf32>
    %633 = arith.select %18, %630, %632 : vector<8x384xi1>, vector<8x384xf32>
    %634 = vector.extract_strided_slice %598 {offsets = [7, 0, 0], sizes = [1, 8, 384], strides = [1, 1, 1]} : vector<8x8x384xf32> to vector<1x8x384xf32>
    %635 = vector.shape_cast %634 : vector<1x8x384xf32> to vector<8x384xf32>
    %636 = vector.extract_strided_slice %598 {offsets = [0, 0, 0], sizes = [1, 8, 384], strides = [1, 1, 1]} : vector<8x8x384xf32> to vector<1x8x384xf32>
    %637 = vector.shape_cast %636 : vector<1x8x384xf32> to vector<8x384xf32>
    %638 = arith.select %18, %635, %637 : vector<8x384xi1>, vector<8x384xf32>
    %c0_96 = arith.constant 0 : index
    %c0_97 = arith.constant 0 : index
    %639 = vector.load %arg12[%c0_96, %c0_97] : memref<1x128xf32, #tpu.memory_space<vmem>>, vector<1x128xf32>
    %640 = vector.shape_cast %639 : vector<1x128xf32> to vector<1x128xf32>
    %641 = vector.broadcast %640 : vector<1x128xf32> to vector<8x128xf32>
    %cst_98 = arith.constant 0.000000e+00 : f32
    %642 = vector.broadcast %cst_98 : f32 to vector<8x128xf32>
    %cst_99 = arith.constant dense<0.000000e+00> : vector<8x384xf32>
    %643 = tpu.matmul %642, %593, %cst_99 {dimension_numbers = #tpu.dot_dimension_numbers<[1], [0], [0], [1], [0, 0, 1, 1], [], []>} : vector<8x128xf32>, vector<128x384xf32>, vector<8x384xf32> -> vector<8x384xf32>
    %644 = vector.extract_strided_slice %603 {offsets = [0, 0], sizes = [8, 128], strides = [1, 1]} : vector<8x384xf32> to vector<8x128xf32>
    %645 = vector.extract_strided_slice %643 {offsets = [0, 0], sizes = [8, 128], strides = [1, 1]} : vector<8x384xf32> to vector<8x128xf32>
    %646 = arith.addf %644, %645 : vector<8x128xf32>
    %647 = arith.negf %646 : vector<8x128xf32>
    %648 = math.exp %647 : vector<8x128xf32>
    %cst_100 = arith.constant 1.000000e+00 : f32
    %649 = vector.broadcast %cst_100 : f32 to vector<8x128xf32>
    %650 = arith.addf %649, %648 : vector<8x128xf32>
    %651 = arith.divf %649, %650 : vector<8x128xf32>
    %652 = vector.extract_strided_slice %603 {offsets = [0, 128], sizes = [8, 128], strides = [1, 1]} : vector<8x384xf32> to vector<8x128xf32>
    %653 = vector.extract_strided_slice %643 {offsets = [0, 128], sizes = [8, 128], strides = [1, 1]} : vector<8x384xf32> to vector<8x128xf32>
    %654 = arith.addf %652, %653 : vector<8x128xf32>
    %655 = arith.negf %654 : vector<8x128xf32>
    %656 = math.exp %655 : vector<8x128xf32>
    %cst_101 = arith.constant 1.000000e+00 : f32
    %657 = vector.broadcast %cst_101 : f32 to vector<8x128xf32>
    %658 = arith.addf %657, %656 : vector<8x128xf32>
    %659 = arith.divf %657, %658 : vector<8x128xf32>
    %660 = vector.extract_strided_slice %603 {offsets = [0, 256], sizes = [8, 128], strides = [1, 1]} : vector<8x384xf32> to vector<8x128xf32>
    %661 = vector.extract_strided_slice %643 {offsets = [0, 256], sizes = [8, 128], strides = [1, 1]} : vector<8x384xf32> to vector<8x128xf32>
    %662 = arith.addf %661, %641 : vector<8x128xf32>
    %663 = arith.mulf %651, %662 : vector<8x128xf32>
    %664 = arith.addf %660, %663 : vector<8x128xf32>
    %665 = math.tanh %664 : vector<8x128xf32>
    %cst_102 = arith.constant 1.000000e+00 : f32
    %666 = vector.broadcast %cst_102 : f32 to vector<8x128xf32>
    %667 = arith.subf %666, %659 : vector<8x128xf32>
    %668 = arith.mulf %667, %665 : vector<8x128xf32>
    %669 = arith.mulf %659, %642 : vector<8x128xf32>
    %670 = arith.addf %668, %669 : vector<8x128xf32>
    %cst_103 = arith.constant dense<0.000000e+00> : vector<8x384xf32>
    %671 = tpu.matmul %670, %593, %cst_103 {dimension_numbers = #tpu.dot_dimension_numbers<[1], [0], [0], [1], [0, 0, 1, 1], [], []>} : vector<8x128xf32>, vector<128x384xf32>, vector<8x384xf32> -> vector<8x384xf32>
    %672 = vector.extract_strided_slice %608 {offsets = [0, 0], sizes = [8, 128], strides = [1, 1]} : vector<8x384xf32> to vector<8x128xf32>
    %673 = vector.extract_strided_slice %671 {offsets = [0, 0], sizes = [8, 128], strides = [1, 1]} : vector<8x384xf32> to vector<8x128xf32>
    %674 = arith.addf %672, %673 : vector<8x128xf32>
    %675 = arith.negf %674 : vector<8x128xf32>
    %676 = math.exp %675 : vector<8x128xf32>
    %cst_104 = arith.constant 1.000000e+00 : f32
    %677 = vector.broadcast %cst_104 : f32 to vector<8x128xf32>
    %678 = arith.addf %677, %676 : vector<8x128xf32>
    %679 = arith.divf %677, %678 : vector<8x128xf32>
    %680 = vector.extract_strided_slice %608 {offsets = [0, 128], sizes = [8, 128], strides = [1, 1]} : vector<8x384xf32> to vector<8x128xf32>
    %681 = vector.extract_strided_slice %671 {offsets = [0, 128], sizes = [8, 128], strides = [1, 1]} : vector<8x384xf32> to vector<8x128xf32>
    %682 = arith.addf %680, %681 : vector<8x128xf32>
    %683 = arith.negf %682 : vector<8x128xf32>
    %684 = math.exp %683 : vector<8x128xf32>
    %cst_105 = arith.constant 1.000000e+00 : f32
    %685 = vector.broadcast %cst_105 : f32 to vector<8x128xf32>
    %686 = arith.addf %685, %684 : vector<8x128xf32>
    %687 = arith.divf %685, %686 : vector<8x128xf32>
    %688 = vector.extract_strided_slice %608 {offsets = [0, 256], sizes = [8, 128], strides = [1, 1]} : vector<8x384xf32> to vector<8x128xf32>
    %689 = vector.extract_strided_slice %671 {offsets = [0, 256], sizes = [8, 128], strides = [1, 1]} : vector<8x384xf32> to vector<8x128xf32>
    %690 = arith.addf %689, %641 : vector<8x128xf32>
    %691 = arith.mulf %679, %690 : vector<8x128xf32>
    %692 = arith.addf %688, %691 : vector<8x128xf32>
    %693 = math.tanh %692 : vector<8x128xf32>
    %cst_106 = arith.constant 1.000000e+00 : f32
    %694 = vector.broadcast %cst_106 : f32 to vector<8x128xf32>
    %695 = arith.subf %694, %687 : vector<8x128xf32>
    %696 = arith.mulf %695, %693 : vector<8x128xf32>
    %697 = arith.mulf %687, %670 : vector<8x128xf32>
    %698 = arith.addf %696, %697 : vector<8x128xf32>
    %cst_107 = arith.constant dense<0.000000e+00> : vector<8x384xf32>
    %699 = tpu.matmul %698, %593, %cst_107 {dimension_numbers = #tpu.dot_dimension_numbers<[1], [0], [0], [1], [0, 0, 1, 1], [], []>} : vector<8x128xf32>, vector<128x384xf32>, vector<8x384xf32> -> vector<8x384xf32>
    %700 = vector.extract_strided_slice %613 {offsets = [0, 0], sizes = [8, 128], strides = [1, 1]} : vector<8x384xf32> to vector<8x128xf32>
    %701 = vector.extract_strided_slice %699 {offsets = [0, 0], sizes = [8, 128], strides = [1, 1]} : vector<8x384xf32> to vector<8x128xf32>
    %702 = arith.addf %700, %701 : vector<8x128xf32>
    %703 = arith.negf %702 : vector<8x128xf32>
    %704 = math.exp %703 : vector<8x128xf32>
    %cst_108 = arith.constant 1.000000e+00 : f32
    %705 = vector.broadcast %cst_108 : f32 to vector<8x128xf32>
    %706 = arith.addf %705, %704 : vector<8x128xf32>
    %707 = arith.divf %705, %706 : vector<8x128xf32>
    %708 = vector.extract_strided_slice %613 {offsets = [0, 128], sizes = [8, 128], strides = [1, 1]} : vector<8x384xf32> to vector<8x128xf32>
    %709 = vector.extract_strided_slice %699 {offsets = [0, 128], sizes = [8, 128], strides = [1, 1]} : vector<8x384xf32> to vector<8x128xf32>
    %710 = arith.addf %708, %709 : vector<8x128xf32>
    %711 = arith.negf %710 : vector<8x128xf32>
    %712 = math.exp %711 : vector<8x128xf32>
    %cst_109 = arith.constant 1.000000e+00 : f32
    %713 = vector.broadcast %cst_109 : f32 to vector<8x128xf32>
    %714 = arith.addf %713, %712 : vector<8x128xf32>
    %715 = arith.divf %713, %714 : vector<8x128xf32>
    %716 = vector.extract_strided_slice %613 {offsets = [0, 256], sizes = [8, 128], strides = [1, 1]} : vector<8x384xf32> to vector<8x128xf32>
    %717 = vector.extract_strided_slice %699 {offsets = [0, 256], sizes = [8, 128], strides = [1, 1]} : vector<8x384xf32> to vector<8x128xf32>
    %718 = arith.addf %717, %641 : vector<8x128xf32>
    %719 = arith.mulf %707, %718 : vector<8x128xf32>
    %720 = arith.addf %716, %719 : vector<8x128xf32>
    %721 = math.tanh %720 : vector<8x128xf32>
    %cst_110 = arith.constant 1.000000e+00 : f32
    %722 = vector.broadcast %cst_110 : f32 to vector<8x128xf32>
    %723 = arith.subf %722, %715 : vector<8x128xf32>
    %724 = arith.mulf %723, %721 : vector<8x128xf32>
    %725 = arith.mulf %715, %698 : vector<8x128xf32>
    %726 = arith.addf %724, %725 : vector<8x128xf32>
    %cst_111 = arith.constant dense<0.000000e+00> : vector<8x384xf32>
    %727 = tpu.matmul %726, %593, %cst_111 {dimension_numbers = #tpu.dot_dimension_numbers<[1], [0], [0], [1], [0, 0, 1, 1], [], []>} : vector<8x128xf32>, vector<128x384xf32>, vector<8x384xf32> -> vector<8x384xf32>
    %728 = vector.extract_strided_slice %618 {offsets = [0, 0], sizes = [8, 128], strides = [1, 1]} : vector<8x384xf32> to vector<8x128xf32>
    %729 = vector.extract_strided_slice %727 {offsets = [0, 0], sizes = [8, 128], strides = [1, 1]} : vector<8x384xf32> to vector<8x128xf32>
    %730 = arith.addf %728, %729 : vector<8x128xf32>
    %731 = arith.negf %730 : vector<8x128xf32>
    %732 = math.exp %731 : vector<8x128xf32>
    %cst_112 = arith.constant 1.000000e+00 : f32
    %733 = vector.broadcast %cst_112 : f32 to vector<8x128xf32>
    %734 = arith.addf %733, %732 : vector<8x128xf32>
    %735 = arith.divf %733, %734 : vector<8x128xf32>
    %736 = vector.extract_strided_slice %618 {offsets = [0, 128], sizes = [8, 128], strides = [1, 1]} : vector<8x384xf32> to vector<8x128xf32>
    %737 = vector.extract_strided_slice %727 {offsets = [0, 128], sizes = [8, 128], strides = [1, 1]} : vector<8x384xf32> to vector<8x128xf32>
    %738 = arith.addf %736, %737 : vector<8x128xf32>
    %739 = arith.negf %738 : vector<8x128xf32>
    %740 = math.exp %739 : vector<8x128xf32>
    %cst_113 = arith.constant 1.000000e+00 : f32
    %741 = vector.broadcast %cst_113 : f32 to vector<8x128xf32>
    %742 = arith.addf %741, %740 : vector<8x128xf32>
    %743 = arith.divf %741, %742 : vector<8x128xf32>
    %744 = vector.extract_strided_slice %618 {offsets = [0, 256], sizes = [8, 128], strides = [1, 1]} : vector<8x384xf32> to vector<8x128xf32>
    %745 = vector.extract_strided_slice %727 {offsets = [0, 256], sizes = [8, 128], strides = [1, 1]} : vector<8x384xf32> to vector<8x128xf32>
    %746 = arith.addf %745, %641 : vector<8x128xf32>
    %747 = arith.mulf %735, %746 : vector<8x128xf32>
    %748 = arith.addf %744, %747 : vector<8x128xf32>
    %749 = math.tanh %748 : vector<8x128xf32>
    %cst_114 = arith.constant 1.000000e+00 : f32
    %750 = vector.broadcast %cst_114 : f32 to vector<8x128xf32>
    %751 = arith.subf %750, %743 : vector<8x128xf32>
    %752 = arith.mulf %751, %749 : vector<8x128xf32>
    %753 = arith.mulf %743, %726 : vector<8x128xf32>
    %754 = arith.addf %752, %753 : vector<8x128xf32>
    %cst_115 = arith.constant dense<0.000000e+00> : vector<8x384xf32>
    %755 = tpu.matmul %754, %593, %cst_115 {dimension_numbers = #tpu.dot_dimension_numbers<[1], [0], [0], [1], [0, 0, 1, 1], [], []>} : vector<8x128xf32>, vector<128x384xf32>, vector<8x384xf32> -> vector<8x384xf32>
    %756 = vector.extract_strided_slice %623 {offsets = [0, 0], sizes = [8, 128], strides = [1, 1]} : vector<8x384xf32> to vector<8x128xf32>
    %757 = vector.extract_strided_slice %755 {offsets = [0, 0], sizes = [8, 128], strides = [1, 1]} : vector<8x384xf32> to vector<8x128xf32>
    %758 = arith.addf %756, %757 : vector<8x128xf32>
    %759 = arith.negf %758 : vector<8x128xf32>
    %760 = math.exp %759 : vector<8x128xf32>
    %cst_116 = arith.constant 1.000000e+00 : f32
    %761 = vector.broadcast %cst_116 : f32 to vector<8x128xf32>
    %762 = arith.addf %761, %760 : vector<8x128xf32>
    %763 = arith.divf %761, %762 : vector<8x128xf32>
    %764 = vector.extract_strided_slice %623 {offsets = [0, 128], sizes = [8, 128], strides = [1, 1]} : vector<8x384xf32> to vector<8x128xf32>
    %765 = vector.extract_strided_slice %755 {offsets = [0, 128], sizes = [8, 128], strides = [1, 1]} : vector<8x384xf32> to vector<8x128xf32>
    %766 = arith.addf %764, %765 : vector<8x128xf32>
    %767 = arith.negf %766 : vector<8x128xf32>
    %768 = math.exp %767 : vector<8x128xf32>
    %cst_117 = arith.constant 1.000000e+00 : f32
    %769 = vector.broadcast %cst_117 : f32 to vector<8x128xf32>
    %770 = arith.addf %769, %768 : vector<8x128xf32>
    %771 = arith.divf %769, %770 : vector<8x128xf32>
    %772 = vector.extract_strided_slice %623 {offsets = [0, 256], sizes = [8, 128], strides = [1, 1]} : vector<8x384xf32> to vector<8x128xf32>
    %773 = vector.extract_strided_slice %755 {offsets = [0, 256], sizes = [8, 128], strides = [1, 1]} : vector<8x384xf32> to vector<8x128xf32>
    %774 = arith.addf %773, %641 : vector<8x128xf32>
    %775 = arith.mulf %763, %774 : vector<8x128xf32>
    %776 = arith.addf %772, %775 : vector<8x128xf32>
    %777 = math.tanh %776 : vector<8x128xf32>
    %cst_118 = arith.constant 1.000000e+00 : f32
    %778 = vector.broadcast %cst_118 : f32 to vector<8x128xf32>
    %779 = arith.subf %778, %771 : vector<8x128xf32>
    %780 = arith.mulf %779, %777 : vector<8x128xf32>
    %781 = arith.mulf %771, %754 : vector<8x128xf32>
    %782 = arith.addf %780, %781 : vector<8x128xf32>
    %cst_119 = arith.constant dense<0.000000e+00> : vector<8x384xf32>
    %783 = tpu.matmul %782, %593, %cst_119 {dimension_numbers = #tpu.dot_dimension_numbers<[1], [0], [0], [1], [0, 0, 1, 1], [], []>} : vector<8x128xf32>, vector<128x384xf32>, vector<8x384xf32> -> vector<8x384xf32>
    %784 = vector.extract_strided_slice %628 {offsets = [0, 0], sizes = [8, 128], strides = [1, 1]} : vector<8x384xf32> to vector<8x128xf32>
    %785 = vector.extract_strided_slice %783 {offsets = [0, 0], sizes = [8, 128], strides = [1, 1]} : vector<8x384xf32> to vector<8x128xf32>
    %786 = arith.addf %784, %785 : vector<8x128xf32>
    %787 = arith.negf %786 : vector<8x128xf32>
    %788 = math.exp %787 : vector<8x128xf32>
    %cst_120 = arith.constant 1.000000e+00 : f32
    %789 = vector.broadcast %cst_120 : f32 to vector<8x128xf32>
    %790 = arith.addf %789, %788 : vector<8x128xf32>
    %791 = arith.divf %789, %790 : vector<8x128xf32>
    %792 = vector.extract_strided_slice %628 {offsets = [0, 128], sizes = [8, 128], strides = [1, 1]} : vector<8x384xf32> to vector<8x128xf32>
    %793 = vector.extract_strided_slice %783 {offsets = [0, 128], sizes = [8, 128], strides = [1, 1]} : vector<8x384xf32> to vector<8x128xf32>
    %794 = arith.addf %792, %793 : vector<8x128xf32>
    %795 = arith.negf %794 : vector<8x128xf32>
    %796 = math.exp %795 : vector<8x128xf32>
    %cst_121 = arith.constant 1.000000e+00 : f32
    %797 = vector.broadcast %cst_121 : f32 to vector<8x128xf32>
    %798 = arith.addf %797, %796 : vector<8x128xf32>
    %799 = arith.divf %797, %798 : vector<8x128xf32>
    %800 = vector.extract_strided_slice %628 {offsets = [0, 256], sizes = [8, 128], strides = [1, 1]} : vector<8x384xf32> to vector<8x128xf32>
    %801 = vector.extract_strided_slice %783 {offsets = [0, 256], sizes = [8, 128], strides = [1, 1]} : vector<8x384xf32> to vector<8x128xf32>
    %802 = arith.addf %801, %641 : vector<8x128xf32>
    %803 = arith.mulf %791, %802 : vector<8x128xf32>
    %804 = arith.addf %800, %803 : vector<8x128xf32>
    %805 = math.tanh %804 : vector<8x128xf32>
    %cst_122 = arith.constant 1.000000e+00 : f32
    %806 = vector.broadcast %cst_122 : f32 to vector<8x128xf32>
    %807 = arith.subf %806, %799 : vector<8x128xf32>
    %808 = arith.mulf %807, %805 : vector<8x128xf32>
    %809 = arith.mulf %799, %782 : vector<8x128xf32>
    %810 = arith.addf %808, %809 : vector<8x128xf32>
    %cst_123 = arith.constant dense<0.000000e+00> : vector<8x384xf32>
    %811 = tpu.matmul %810, %593, %cst_123 {dimension_numbers = #tpu.dot_dimension_numbers<[1], [0], [0], [1], [0, 0, 1, 1], [], []>} : vector<8x128xf32>, vector<128x384xf32>, vector<8x384xf32> -> vector<8x384xf32>
    %812 = vector.extract_strided_slice %633 {offsets = [0, 0], sizes = [8, 128], strides = [1, 1]} : vector<8x384xf32> to vector<8x128xf32>
    %813 = vector.extract_strided_slice %811 {offsets = [0, 0], sizes = [8, 128], strides = [1, 1]} : vector<8x384xf32> to vector<8x128xf32>
    %814 = arith.addf %812, %813 : vector<8x128xf32>
    %815 = arith.negf %814 : vector<8x128xf32>
    %816 = math.exp %815 : vector<8x128xf32>
    %cst_124 = arith.constant 1.000000e+00 : f32
    %817 = vector.broadcast %cst_124 : f32 to vector<8x128xf32>
    %818 = arith.addf %817, %816 : vector<8x128xf32>
    %819 = arith.divf %817, %818 : vector<8x128xf32>
    %820 = vector.extract_strided_slice %633 {offsets = [0, 128], sizes = [8, 128], strides = [1, 1]} : vector<8x384xf32> to vector<8x128xf32>
    %821 = vector.extract_strided_slice %811 {offsets = [0, 128], sizes = [8, 128], strides = [1, 1]} : vector<8x384xf32> to vector<8x128xf32>
    %822 = arith.addf %820, %821 : vector<8x128xf32>
    %823 = arith.negf %822 : vector<8x128xf32>
    %824 = math.exp %823 : vector<8x128xf32>
    %cst_125 = arith.constant 1.000000e+00 : f32
    %825 = vector.broadcast %cst_125 : f32 to vector<8x128xf32>
    %826 = arith.addf %825, %824 : vector<8x128xf32>
    %827 = arith.divf %825, %826 : vector<8x128xf32>
    %828 = vector.extract_strided_slice %633 {offsets = [0, 256], sizes = [8, 128], strides = [1, 1]} : vector<8x384xf32> to vector<8x128xf32>
    %829 = vector.extract_strided_slice %811 {offsets = [0, 256], sizes = [8, 128], strides = [1, 1]} : vector<8x384xf32> to vector<8x128xf32>
    %830 = arith.addf %829, %641 : vector<8x128xf32>
    %831 = arith.mulf %819, %830 : vector<8x128xf32>
    %832 = arith.addf %828, %831 : vector<8x128xf32>
    %833 = math.tanh %832 : vector<8x128xf32>
    %cst_126 = arith.constant 1.000000e+00 : f32
    %834 = vector.broadcast %cst_126 : f32 to vector<8x128xf32>
    %835 = arith.subf %834, %827 : vector<8x128xf32>
    %836 = arith.mulf %835, %833 : vector<8x128xf32>
    %837 = arith.mulf %827, %810 : vector<8x128xf32>
    %838 = arith.addf %836, %837 : vector<8x128xf32>
    %cst_127 = arith.constant dense<0.000000e+00> : vector<8x384xf32>
    %839 = tpu.matmul %838, %593, %cst_127 {dimension_numbers = #tpu.dot_dimension_numbers<[1], [0], [0], [1], [0, 0, 1, 1], [], []>} : vector<8x128xf32>, vector<128x384xf32>, vector<8x384xf32> -> vector<8x384xf32>
    %840 = vector.extract_strided_slice %638 {offsets = [0, 0], sizes = [8, 128], strides = [1, 1]} : vector<8x384xf32> to vector<8x128xf32>
    %841 = vector.extract_strided_slice %839 {offsets = [0, 0], sizes = [8, 128], strides = [1, 1]} : vector<8x384xf32> to vector<8x128xf32>
    %842 = arith.addf %840, %841 : vector<8x128xf32>
    %843 = arith.negf %842 : vector<8x128xf32>
    %844 = math.exp %843 : vector<8x128xf32>
    %cst_128 = arith.constant 1.000000e+00 : f32
    %845 = vector.broadcast %cst_128 : f32 to vector<8x128xf32>
    %846 = arith.addf %845, %844 : vector<8x128xf32>
    %847 = arith.divf %845, %846 : vector<8x128xf32>
    %848 = vector.extract_strided_slice %638 {offsets = [0, 128], sizes = [8, 128], strides = [1, 1]} : vector<8x384xf32> to vector<8x128xf32>
    %849 = vector.extract_strided_slice %839 {offsets = [0, 128], sizes = [8, 128], strides = [1, 1]} : vector<8x384xf32> to vector<8x128xf32>
    %850 = arith.addf %848, %849 : vector<8x128xf32>
    %851 = arith.negf %850 : vector<8x128xf32>
    %852 = math.exp %851 : vector<8x128xf32>
    %cst_129 = arith.constant 1.000000e+00 : f32
    %853 = vector.broadcast %cst_129 : f32 to vector<8x128xf32>
    %854 = arith.addf %853, %852 : vector<8x128xf32>
    %855 = arith.divf %853, %854 : vector<8x128xf32>
    %856 = vector.extract_strided_slice %638 {offsets = [0, 256], sizes = [8, 128], strides = [1, 1]} : vector<8x384xf32> to vector<8x128xf32>
    %857 = vector.extract_strided_slice %839 {offsets = [0, 256], sizes = [8, 128], strides = [1, 1]} : vector<8x384xf32> to vector<8x128xf32>
    %858 = arith.addf %857, %641 : vector<8x128xf32>
    %859 = arith.mulf %847, %858 : vector<8x128xf32>
    %860 = arith.addf %856, %859 : vector<8x128xf32>
    %861 = math.tanh %860 : vector<8x128xf32>
    %cst_130 = arith.constant 1.000000e+00 : f32
    %862 = vector.broadcast %cst_130 : f32 to vector<8x128xf32>
    %863 = arith.subf %862, %855 : vector<8x128xf32>
    %864 = arith.mulf %863, %861 : vector<8x128xf32>
    %865 = arith.mulf %855, %838 : vector<8x128xf32>
    %866 = arith.addf %864, %865 : vector<8x128xf32>
    %867 = arith.select %21, %670, %866 : vector<8x128xi1>, vector<8x128xf32>
    %868 = arith.select %21, %698, %838 : vector<8x128xi1>, vector<8x128xf32>
    %869 = arith.select %21, %726, %810 : vector<8x128xi1>, vector<8x128xf32>
    %870 = arith.select %21, %754, %782 : vector<8x128xi1>, vector<8x128xf32>
    %871 = arith.select %21, %782, %754 : vector<8x128xi1>, vector<8x128xf32>
    %872 = arith.select %21, %810, %726 : vector<8x128xi1>, vector<8x128xf32>
    %873 = arith.select %21, %838, %698 : vector<8x128xi1>, vector<8x128xf32>
    %874 = arith.select %21, %866, %670 : vector<8x128xi1>, vector<8x128xf32>
    %875 = tpu.concatenate %867, %868, %869, %870, %871, %872, %873, %874 in 0 : vector<8x128xf32>, vector<8x128xf32>, vector<8x128xf32>, vector<8x128xf32>, vector<8x128xf32>, vector<8x128xf32>, vector<8x128xf32>, vector<8x128xf32> -> vector<64x128xf32>
    %cst_131 = arith.constant 0.000000e+00 : f32
    %876 = vector.broadcast %cst_131 : f32 to vector<64x128xf32>
    %877 = arith.maximumf %875, %876 : vector<64x128xf32>
    %c0_132 = arith.constant 0 : index
    %c0_133 = arith.constant 0 : index
    %878 = vector.load %arg13[%c0_132, %c0_133] : memref<128x32xf32, #tpu.memory_space<vmem>>, vector<128x32xf32>
    %cst_134 = arith.constant dense<0.000000e+00> : vector<64x32xf32>
    %879 = tpu.matmul %877, %878, %cst_134 {dimension_numbers = #tpu.dot_dimension_numbers<[1], [0], [0], [1], [0, 0, 1, 1], [], []>} : vector<64x128xf32>, vector<128x32xf32>, vector<64x32xf32> -> vector<64x32xf32>
    %c0_135 = arith.constant 0 : index
    %c0_136 = arith.constant 0 : index
    %880 = vector.load %arg14[%c0_135, %c0_136] : memref<1x32xf32, #tpu.memory_space<vmem>>, vector<1x32xf32>
    %881 = vector.broadcast %880 : vector<1x32xf32> to vector<64x32xf32>
    %882 = arith.addf %879, %881 : vector<64x32xf32>
    %c0_137 = arith.constant 0 : index
    %c0_138 = arith.constant 0 : index
    %883 = vector.load %arg15[%c0_137, %c0_138] : memref<64x32xf32, #tpu.memory_space<vmem>>, vector<64x32xf32>
    tpu.vector_store %arg15[%c0_137, %c0_138], %882 {strides = array<i32>} : memref<64x32xf32, #tpu.memory_space<vmem>>, vector<64x32xf32>,
    return
  }
}

</mosaic_0001>

<llo_original>
// kernel: simple_rnn_forward.1
$region0: #{simple_rnn_forward.1}
  #allocation0 [shape = 'u32[]', space=smem, size = 0x4, offset = 0x4, fixed_abs, tag = 'smem constant byte address 0x4 - core index']
  #allocation1 [shape = 'u32[144,128]{1,0:T(1,128)}', space=vmem, size = 0x12000, scoped, tag = 'internal scratch']
  %s0 = inlined_call_operand.vmem [shape: f32[8,8,12], index: 0, kind: input, shape index: {}]
  %s1 = inlined_call_operand.vmem [shape: f32[12,384], index: 1, kind: input, shape index: {}]
  %s2 = inlined_call_operand.hbm [shape: f32[128,384], index: 2, kind: input, shape index: {}]
  %s3 = inlined_call_operand.vmem [shape: f32[1,384], index: 3, kind: input, shape index: {}]
  %s4 = inlined_call_operand.vmem [shape: f32[1,128], index: 4, kind: input, shape index: {}]
  %s5 = inlined_call_operand.hbm [shape: f32[128,384], index: 5, kind: input, shape index: {}]
  %s6 = inlined_call_operand.hbm [shape: f32[128,384], index: 6, kind: input, shape index: {}]
  %s7 = inlined_call_operand.vmem [shape: f32[1,384], index: 7, kind: input, shape index: {}]
  %s8 = inlined_call_operand.vmem [shape: f32[1,128], index: 8, kind: input, shape index: {}]
  %s9 = inlined_call_operand.hbm [shape: f32[128,384], index: 9, kind: input, shape index: {}]
  %s10 = inlined_call_operand.hbm [shape: f32[128,384], index: 10, kind: input, shape index: {}]
  %s11 = inlined_call_operand.vmem [shape: f32[1,384], index: 11, kind: input, shape index: {}]
  %s12 = inlined_call_operand.vmem [shape: f32[1,128], index: 12, kind: input, shape index: {}]
  %s13 = inlined_call_operand.vmem [shape: f32[128,32], index: 13, kind: input, shape index: {}]
  %s14 = inlined_call_operand.vmem [shape: f32[1,32], index: 14, kind: input, shape index: {}]
  %s15 = inlined_call_operand.vmem [shape: f32[64,32], index: 15, kind: output, shape index: {}]
  %s16 = sld [smem:[#allocation0]]
  $region90: #{simple_rnn_forward.1} parent=0
    _
  %s18 = ssub.s32 1, %s16
  %s19 = scalar_select 0, %s18, %s16
  $region1: #{simple_rnn_forward.1} parent=0
    #allocation2 [shape = 'u8[196608]{0}', space=vmem, size = 0x30000, scoped, tag = 'input window, operand 2, single buffered']
    #allocation3 [shape = 's32[1]{0}', space=sflag, size = 0x4, scoped, tag = 'scoped memory for simple_rnn_forward.1']
    #allocation4 [shape = 'u8[196608]{0}', space=vmem, size = 0x30000, scoped, tag = 'input window, operand 5, single buffered']
    #allocation5 [shape = 's32[1]{0}', space=sflag, size = 0x4, scoped, tag = 'scoped memory for simple_rnn_forward.1']
    #allocation6 [shape = 'u8[196608]{0}', space=vmem, size = 0x30000, scoped, tag = 'input window, operand 6, single buffered']
    #allocation7 [shape = 'u8[196608]{0}', space=vmem, size = 0x30000, scoped, tag = 'input window, operand 9, single buffered']
    #allocation8 [shape = 's32[1]{0}', space=sflag, size = 0x4, scoped, tag = 'scoped memory for simple_rnn_forward.1']
    #allocation9 [shape = 'u8[196608]{0}', space=vmem, size = 0x30000, scoped, tag = 'input window, operand 10, single buffered']
    %20 = vsyncpa [#allocation3], 0
    %21 = vsyncpa [#allocation5], 0
    %22 = vsyncpa [#allocation8], 0
    // Predicated region
    $region2: #{simple_rnn_forward.1} parent=1 // pred_check
      _
    $region3: #{simple_rnn_forward.1} parent=1 // pred_check_branch
      %24 = sbr.rel (0) target = $region5
    $region4: #{simple_rnn_forward.1} parent=1 // pred_region
      _
    $region5: #{simple_rnn_forward.1} parent=1 // pred_fallthru
      _
    // Predicated region
    $region6: #{simple_rnn_forward.1} parent=1 // pred_check
      _
    $region7: #{simple_rnn_forward.1} parent=1 // pred_check_branch
      %26 = sbr.rel (0) target = $region9
    $region8: #{simple_rnn_forward.1} parent=1 // pred_region
      _
    $region9: #{simple_rnn_forward.1} parent=1 // pred_fallthru
      _
    // Predicated region
    $region10: #{simple_rnn_forward.1} parent=1 // pred_check
      _
    $region11: #{simple_rnn_forward.1} parent=1 // pred_check_branch
      %28 = sbr.rel (0) target = $region13
    $region12: #{simple_rnn_forward.1} parent=1 // pred_region
      %s30 = ssub.s32 6144, 6144
      %31 = vsyncadd [#allocation3], %s30
      %s32 = sshll.u32 [#allocation2], 4
      %s33 = int_to_ptr.vmem [resolvable:$true] %s32
      %38 = dma.hbm_to_vmem [thread:$0]  %s2, 6144, %s33, [#allocation3], 384, 384, 24
    $region13: #{simple_rnn_forward.1} parent=1 // pred_fallthru
      _
    // Predicated region
    $region14: #{simple_rnn_forward.1} parent=1 // pred_check
      _
    $region15: #{simple_rnn_forward.1} parent=1 // pred_check_branch
      %40 = sbr.rel (0) target = $region17
    $region16: #{simple_rnn_forward.1} parent=1 // pred_region
      _
    $region17: #{simple_rnn_forward.1} parent=1 // pred_fallthru
      _
    // Predicated region
    $region18: #{simple_rnn_forward.1} parent=1 // pred_check
      _
    $region19: #{simple_rnn_forward.1} parent=1 // pred_check_branch
      %42 = sbr.rel (0) target = $region21
    $region20: #{simple_rnn_forward.1} parent=1 // pred_region
      _
    $region21: #{simple_rnn_forward.1} parent=1 // pred_fallthru
      _
    // Predicated region
    $region22: #{simple_rnn_forward.1} parent=1 // pred_check
      _
    $region23: #{simple_rnn_forward.1} parent=1 // pred_check_branch
      %44 = sbr.rel (0) target = $region25
    $region24: #{simple_rnn_forward.1} parent=1 // pred_region
      %s46 = ssub.s32 6144, 6144
      %47 = vsyncadd [#allocation5], %s46
      %s48 = sshll.u32 [#allocation4], 4
      %s49 = int_to_ptr.vmem [resolvable:$true] %s48
      %54 = dma.hbm_to_vmem [thread:$0]  %s5, 6144, %s49, [#allocation5], 384, 384, 24
    $region25: #{simple_rnn_forward.1} parent=1 // pred_fallthru
      _
    // Predicated region
    $region26: #{simple_rnn_forward.1} parent=1 // pred_check
      _
    $region27: #{simple_rnn_forward.1} parent=1 // pred_check_branch
      %56 = sbr.rel (0) target = $region29
    $region28: #{simple_rnn_forward.1} parent=1 // pred_region
      %s58 = ssub.s32 6144, 6144
      %59 = vsyncadd [#allocation5], %s58
      %s60 = sshll.u32 [#allocation6], 4
      %s61 = int_to_ptr.vmem [resolvable:$true] %s60
      %66 = dma.hbm_to_vmem [thread:$0]  %s6, 6144, %s61, [#allocation5], 384, 384, 24
    $region29: #{simple_rnn_forward.1} parent=1 // pred_fallthru
      _
    // Predicated region
    $region30: #{simple_rnn_forward.1} parent=1 // pred_check
      _
    $region31: #{simple_rnn_forward.1} parent=1 // pred_check_branch
      %68 = sbr.rel (0) target = $region33
    $region32: #{simple_rnn_forward.1} parent=1 // pred_region
      _
    $region33: #{simple_rnn_forward.1} parent=1 // pred_fallthru
      _
    // Predicated region
    $region34: #{simple_rnn_forward.1} parent=1 // pred_check
      _
    $region35: #{simple_rnn_forward.1} parent=1 // pred_check_branch
      %70 = sbr.rel (0) target = $region37
    $region36: #{simple_rnn_forward.1} parent=1 // pred_region
      _
    $region37: #{simple_rnn_forward.1} parent=1 // pred_fallthru
      _
    // Predicated region
    $region38: #{simple_rnn_forward.1} parent=1 // pred_check
      _
    $region39: #{simple_rnn_forward.1} parent=1 // pred_check_branch
      %72 = sbr.rel (0) target = $region41
    $region40: #{simple_rnn_forward.1} parent=1 // pred_region
      %s74 = ssub.s32 6144, 6144
      %75 = vsyncadd [#allocation8], %s74
      %s76 = sshll.u32 [#allocation7], 4
      %s77 = int_to_ptr.vmem [resolvable:$true] %s76
      %82 = dma.hbm_to_vmem [thread:$0]  %s9, 6144, %s77, [#allocation8], 384, 384, 24
    $region41: #{simple_rnn_forward.1} parent=1 // pred_fallthru
      _
    // Predicated region
    $region42: #{simple_rnn_forward.1} parent=1 // pred_check
      _
    $region43: #{simple_rnn_forward.1} parent=1 // pred_check_branch
      %84 = sbr.rel (0) target = $region45
    $region44: #{simple_rnn_forward.1} parent=1 // pred_region
      %s86 = ssub.s32 6144, 6144
      %87 = vsyncadd [#allocation8], %s86
      %s88 = sshll.u32 [#allocation9], 4
      %s89 = int_to_ptr.vmem [resolvable:$true] %s88
      %94 = dma.hbm_to_vmem [thread:$0]  %s10, 6144, %s89, [#allocation8], 384, 384, 24
    $region45: #{simple_rnn_forward.1} parent=1 // pred_fallthru
      _
    // Predicated region
    $region46: #{simple_rnn_forward.1} parent=1 // pred_check
      _
    $region47: #{simple_rnn_forward.1} parent=1 // pred_check_branch
      %96 = sbr.rel (0) target = $region49
    $region48: #{simple_rnn_forward.1} parent=1 // pred_region
      _
    $region49: #{simple_rnn_forward.1} parent=1 // pred_fallthru
      _
    // Predicated region
    $region50: #{simple_rnn_forward.1} parent=1 // pred_check
      _
    $region51: #{simple_rnn_forward.1} parent=1 // pred_check_branch
      %98 = sbr.rel (0) target = $region53
    $region52: #{simple_rnn_forward.1} parent=1 // pred_region
      _
    $region53: #{simple_rnn_forward.1} parent=1 // pred_fallthru
      _
    // Predicated region
    $region54: #{simple_rnn_forward.1} parent=1 // pred_check
      _
    $region55: #{simple_rnn_forward.1} parent=1 // pred_check_branch
      %100 = sbr.rel (0) target = $region57
    $region56: #{simple_rnn_forward.1} parent=1 // pred_region
      _
    $region57: #{simple_rnn_forward.1} parent=1 // pred_fallthru
      _
    // Predicated region
    $region58: #{simple_rnn_forward.1} parent=1 // pred_check
      _
    $region59: #{simple_rnn_forward.1} parent=1 // pred_check_branch
      %102 = sbr.rel (0) target = $region61
    $region60: #{simple_rnn_forward.1} parent=1 // pred_region
      _
    $region61: #{simple_rnn_forward.1} parent=1 // pred_fallthru
      _
    // Predicated region
    $region62: #{simple_rnn_forward.1} parent=1 // pred_check
      _
    $region63: #{simple_rnn_forward.1} parent=1 // pred_check_branch
      %104 = sbr.rel (0) target = $region65
    $region64: #{simple_rnn_forward.1} parent=1 // pred_region
      %105 = dma.done [#allocation3], 6144
    $region65: #{simple_rnn_forward.1} parent=1 // pred_fallthru
      _
    // Predicated region
    $region66: #{simple_rnn_forward.1} parent=1 // pred_check
      _
    $region67: #{simple_rnn_forward.1} parent=1 // pred_check_branch
      %107 = sbr.rel (0) target = $region69
    $region68: #{simple_rnn_forward.1} parent=1 // pred_region
      %108 = dma.done [#allocation5], 6144
    $region69: #{simple_rnn_forward.1} parent=1 // pred_fallthru
      _
    // Predicated region
    $region70: #{simple_rnn_forward.1} parent=1 // pred_check
      _
    $region71: #{simple_rnn_forward.1} parent=1 // pred_check_branch
      %110 = sbr.rel (0) target = $region73
    $region72: #{simple_rnn_forward.1} parent=1 // pred_region
      %111 = dma.done [#allocation5], 6144
    $region73: #{simple_rnn_forward.1} parent=1 // pred_fallthru
      _
    // Predicated region
    $region74: #{simple_rnn_forward.1} parent=1 // pred_check
      _
    $region75: #{simple_rnn_forward.1} parent=1 // pred_check_branch
      %113 = sbr.rel (0) target = $region77
    $region76: #{simple_rnn_forward.1} parent=1 // pred_region
      %114 = dma.done [#allocation8], 6144
    $region77: #{simple_rnn_forward.1} parent=1 // pred_fallthru
      _
    // Predicated region
    $region78: #{simple_rnn_forward.1} parent=1 // pred_check
      _
    $region79: #{simple_rnn_forward.1} parent=1 // pred_check_branch
      %116 = sbr.rel (0) target = $region81
    $region80: #{simple_rnn_forward.1} parent=1 // pred_region
      %117 = dma.done [#allocation8], 6144
    $region81: #{simple_rnn_forward.1} parent=1 // pred_fallthru
      _
    %v118 = vlaneseq
    %v119 = vand.u32 %v118, 127
    %v120 = vadd.s32 %v119, 128
    %v121 = vadd.s32 %v119, 256
    %vm122 = vcmp.lt.s32.totalorder %v119, 0
    %v123 = vsub.s32 0, %v119
    %v124 = vsel %vm122, %v123, %v119
    %v125 = vshrl.u32 %v124, 7
    %v126 = vand.u32 %v124, 127
    %v127 = vsub.s32 0, %v126
    %v128 = vsel %vm122, %v127, %v126
    %vm129 = vcmp.lt.s32.totalorder %v120, 0
    %v130 = vsub.s32 0, %v120
    %v131 = vsel %vm129, %v130, %v120
    %v132 = vshrl.u32 %v131, 7
    %v133 = vand.u32 %v131, 127
    %v134 = vsub.s32 0, %v133
    %v135 = vsel %vm129, %v134, %v133
    %vm136 = vcmp.lt.s32.totalorder %v121, 0
    %v137 = vsub.s32 0, %v121
    %v138 = vsel %vm136, %v137, %v121
    %v139 = vshrl.u32 %v138, 7
    %v140 = vand.u32 %v138, 127
    %v141 = vsub.s32 0, %v140
    %v142 = vsel %vm136, %v141, %v140
    %vm143 = vcmp.ne.s32.totalorder %v128, 0
    %vm144 = vcmp.ne.s32.totalorder %v135, 0
    %vm145 = vcmp.ne.s32.totalorder %v142, 0
    %vm146 = vcmp.lt.s32.totalorder %v128, 0
    %vm147 = vcmp.lt.s32.totalorder %v135, 0
    %vm148 = vcmp.lt.s32.totalorder %v142, 0
    %vm149 = vmand %vm146, %vm143
    %vm150 = vmand %vm147, %vm144
    %vm151 = vmand %vm148, %vm145
    %v152 = vadd.s32 %v128, 128
    %v153 = vadd.s32 %v135, 128
    %v154 = vadd.s32 %v142, 128
    %v155 = vsel %vm149, %v152, %v128
    %v156 = vsel %vm150, %v153, %v135
    %v157 = vsel %vm151, %v154, %v142
    %vm158 = vcmp.lt.s32.totalorder %v155, 32
    %vm159 = vcmp.lt.s32.totalorder %v156, 32
    %vm160 = vcmp.lt.s32.totalorder %v157, 32
    %vm161 = vcmp.lt.s32.totalorder %v119, 32
    %v162 = vld [vmem:[%s0] sm:$0xff]
    %v163 = vld [vmem:[%s0 + $0x8] sm:$0xff]
    %v164 = vld [vmem:[%s0 + $0x10] sm:$0xff]
    %v165 = vld [vmem:[%s0 + $0x18] sm:$0xff]
    %v166 = vld [vmem:[%s0 + $0x20] sm:$0xff]
    %v167 = vld [vmem:[%s0 + $0x28] sm:$0xff]
    %v168 = vld [vmem:[%s0 + $0x30] sm:$0xff]
    %v169 = vld [vmem:[%s0 + $0x38] sm:$0xff]
    %v170 = vld [vmem:[%s1] sm:$0xff]
    %v171 = vld [vmem:[%s1 + $0x8] sm:$0xff]
    %v172 = vld [vmem:[%s1 + $0x10] sm:$0xff]
    %v173 = vld [vmem:[%s1 + $0x18] sm:$0xf]
    %v174 = vld [vmem:[%s1 + $0x20] sm:$0xf]
    %v175 = vld [vmem:[%s1 + $0x28] sm:$0xf]
    %v176 = vld [vmem:[#allocation2] sm:$0xff]
    %v177 = vld [vmem:[#allocation2 + $0x8] sm:$0xff]
    %v178 = vld [vmem:[#allocation2 + $0x10] sm:$0xff]
    %v179 = vld [vmem:[#allocation2 + $0x18] sm:$0xff]
    %v180 = vld [vmem:[#allocation2 + $0x20] sm:$0xff]
    %v181 = vld [vmem:[#allocation2 + $0x28] sm:$0xff]
    %v182 = vld [vmem:[#allocation2 + $0x30] sm:$0xff]
    %v183 = vld [vmem:[#allocation2 + $0x38] sm:$0xff]
    %v184 = vld [vmem:[#allocation2 + $0x40] sm:$0xff]
    %v185 = vld [vmem:[#allocation2 + $0x48] sm:$0xff]
    %v186 = vld [vmem:[#allocation2 + $0x50] sm:$0xff]
    %v187 = vld [vmem:[#allocation2 + $0x58] sm:$0xff]
    %v188 = vld [vmem:[#allocation2 + $0x60] sm:$0xff]
    %v189 = vld [vmem:[#allocation2 + $0x68] sm:$0xff]
    %v190 = vld [vmem:[#allocation2 + $0x70] sm:$0xff]
    %v191 = vld [vmem:[#allocation2 + $0x78] sm:$0xff]
    %v192 = vld [vmem:[#allocation2 + $0x80] sm:$0xff]
    %v193 = vld [vmem:[#allocation2 + $0x88] sm:$0xff]
    %v194 = vld [vmem:[#allocation2 + $0x90] sm:$0xff]
    %v195 = vld [vmem:[#allocation2 + $0x98] sm:$0xff]
    %v196 = vld [vmem:[#allocation2 + $0xa0] sm:$0xff]
    %v197 = vld [vmem:[#allocation2 + $0xa8] sm:$0xff]
    %v198 = vld [vmem:[#allocation2 + $0xb0] sm:$0xff]
    %v199 = vld [vmem:[#allocation2 + $0xb8] sm:$0xff]
    %v200 = vld [vmem:[#allocation2 + $0xc0] sm:$0xff]
    %v201 = vld [vmem:[#allocation2 + $0xc8] sm:$0xff]
    %v202 = vld [vmem:[#allocation2 + $0xd0] sm:$0xff]
    %v203 = vld [vmem:[#allocation2 + $0xd8] sm:$0xff]
    %v204 = vld [vmem:[#allocation2 + $0xe0] sm:$0xff]
    %v205 = vld [vmem:[#allocation2 + $0xe8] sm:$0xff]
    %v206 = vld [vmem:[#allocation2 + $0xf0] sm:$0xff]
    %v207 = vld [vmem:[#allocation2 + $0xf8] sm:$0xff]
    %v208 = vld [vmem:[#allocation2 + $0x100] sm:$0xff]
    %v209 = vld [vmem:[#allocation2 + $0x108] sm:$0xff]
    %v210 = vld [vmem:[#allocation2 + $0x110] sm:$0xff]
    %v211 = vld [vmem:[#allocation2 + $0x118] sm:$0xff]
    %v212 = vld [vmem:[#allocation2 + $0x120] sm:$0xff]
    %v213 = vld [vmem:[#allocation2 + $0x128] sm:$0xff]
    %v214 = vld [vmem:[#allocation2 + $0x130] sm:$0xff]
    %v215 = vld [vmem:[#allocation2 + $0x138] sm:$0xff]
    %v216 = vld [vmem:[#allocation2 + $0x140] sm:$0xff]
    %v217 = vld [vmem:[#allocation2 + $0x148] sm:$0xff]
    %v218 = vld [vmem:[#allocation2 + $0x150] sm:$0xff]
    %v219 = vld [vmem:[#allocation2 + $0x158] sm:$0xff]
    %v220 = vld [vmem:[#allocation2 + $0x160] sm:$0xff]
    %v221 = vld [vmem:[#allocation2 + $0x168] sm:$0xff]
    %v222 = vld [vmem:[#allocation2 + $0x170] sm:$0xff]
    %v223 = vld [vmem:[#allocation2 + $0x178] sm:$0xff]
    %v224 = vld [vmem:[%s3] sm:$0x7]
    %v226 = vlaneseq
    %v227 = vshrl.u32 %v226, 7
    %v228 = vsub.s32 0, %v227
    %v229 = vrot.slane %v224, %v228
    %v230 = vlaneseq
    %v231 = vshrl.u32 %v230, 7
    %v232 = vsub.s32 1, %v231
    %v233 = vrot.slane %v224, %v232
    %v234 = vlaneseq
    %v235 = vshrl.u32 %v234, 7
    %v236 = vsub.s32 2, %v235
    %v237 = vrot.slane %v224, %v236
    %vm241 = vcmask 97280
    %v243 = vsel %vm241, %v162, 0
    %v246 = vsel %vm241, %v163, 0
    %v249 = vsel %vm241, %v164, 0
    %v252 = vsel %vm241, %v165, 0
    %v255 = vsel %vm241, %v166, 0
    %v258 = vsel %vm241, %v167, 0
    %v261 = vsel %vm241, %v168, 0
    %v264 = vsel %vm241, %v169, 0
    %vm266 = vcmask 1043456
    %v268 = vsel %vm266, %v173, 0
    %v271 = vsel %vm266, %v174, 0
    %v274 = vsel %vm266, %v175, 0
    %276 = vmatprep.subr.mxu0 %v171
    %277 = vmatpush1.msra.mxu0 %v170
    %278 = vmatprep.subr.mxu0 %v271
    %279 = vmatpush1.msra.mxu0 %v268
    %280 = vmatprep.subr.mxu0 0.0
    %281 = vmatpush1.msra.mxu0 0.0
    %282 = vmatprep.subr.mxu0 0.0
    %283 = vmatpush1.msra.mxu0 0.0
    %284 = vmatprep.subr.mxu0 0.0
    %285 = vmatpush1.msra.mxu0 0.0
    %286 = vmatprep.subr.mxu0 0.0
    %287 = vmatpush1.msra.mxu0 0.0
    %288 = vmatprep.subr.mxu0 0.0
    %289 = vmatpush1.msra.mxu0 0.0
    %290 = vmatprep.subr.mxu0 0.0
    %291 = vmatpush1.msra.mxu0 0.0
    %292 = vmatprep.subr.mxu0 0.0
    %293 = vmatpush1.msra.mxu0 0.0
    %294 = vmatprep.subr.mxu0 0.0
    %295 = vmatpush1.msra.mxu0 0.0
    %296 = vmatprep.subr.mxu0 0.0
    %297 = vmatpush1.msra.mxu0 0.0
    %298 = vmatprep.subr.mxu0 0.0
    %299 = vmatpush1.msra.mxu0 0.0
    %300 = vmatprep.subr.mxu0 0.0
    %301 = vmatpush1.msra.mxu0 0.0
    %302 = vmatprep.subr.mxu0 0.0
    %303 = vmatpush1.msra.mxu0 0.0
    %304 = vmatprep.subr.mxu0 0.0
    %305 = vmatpush1.msra.mxu0 0.0
    %306 = vmatprep.subr.mxu0 0.0
    %307 = vmatpush1.msra.mxu0 0.0
    %308 = vmatprep.subr.mxu0 0.0
    %309 = vmatpush1.msra.mxu0 0.0
    %310 = vmatprep.subr.mxu0 0.0
    %311 = vmatpush1.msra.mxu0 0.0
    %312 = vmatprep.subr.mxu0 0.0
    %313 = vmatpush1.msra.mxu0 0.0
    %314 = vmatprep.subr.mxu0 0.0
    %315 = vmatpush1.msra.mxu0 0.0
    %316 = vmatprep.subr.mxu0 0.0
    %317 = vmatpush1.msra.mxu0 0.0
    %318 = vmatprep.subr.mxu0 0.0
    %319 = vmatpush1.msra.mxu0 0.0
    %320 = vmatprep.subr.mxu0 0.0
    %321 = vmatpush1.msra.mxu0 0.0
    %322 = vmatprep.subr.mxu0 0.0
    %323 = vmatpush1.msra.mxu0 0.0
    %324 = vmatprep.subr.mxu0 0.0
    %325 = vmatpush1.msra.mxu0 0.0
    %326 = vmatprep.subr.mxu0 0.0
    %327 = vmatpush1.msra.mxu0 0.0
    %328 = vmatprep.subr.mxu0 0.0
    %329 = vmatpush1.msra.mxu0 0.0
    %330 = vmatprep.subr.mxu0 0.0
    %331 = vmatpush1.msra.mxu0 0.0
    %332 = vmatprep.subr.mxu0 0.0
    %333 = vmatpush1.msra.mxu0 0.0
    %334 = vmatprep.subr.mxu0 0.0
    %335 = vmatpush1.msra.mxu0 0.0
    %336 = vmatprep.subr.mxu0 0.0
    %337 = vmatpush1.msra.mxu0 0.0
    %338 = vmatprep.subr.mxu0 0.0
    %339 = vmatpush1.msra.mxu0 0.0
    %340 = vmatprep.mubr.f32.mxu0 0.0
    %341 = vmatmul.mubr.f32.gmra.mrb[0].mxu0 %v243
    %v342 = vpop.f32.mrb[0].mxu0
    %v343 = vadd.f32 %v229, %v342
    %v344 = vpop.f32.mrb[0].mxu0
    %v345 = vadd.f32 %v233, %v344
    %346 = vmatprep.mubr.f32.mxu0 0.0
    %347 = vmatmul.mubr.f32.gmra.mrb[0].mxu0 %v246
    %v348 = vpop.f32.mrb[0].mxu0
    %v349 = vadd.f32 %v229, %v348
    %v350 = vpop.f32.mrb[0].mxu0
    %v351 = vadd.f32 %v233, %v350
    %352 = vmatprep.mubr.f32.mxu0 0.0
    %353 = vmatmul.mubr.f32.gmra.mrb[0].mxu0 %v249
    %v354 = vpop.f32.mrb[0].mxu0
    %v355 = vadd.f32 %v229, %v354
    %v356 = vpop.f32.mrb[0].mxu0
    %v357 = vadd.f32 %v233, %v356
    %358 = vmatprep.mubr.f32.mxu0 0.0
    %359 = vmatmul.mubr.f32.gmra.mrb[0].mxu0 %v252
    %v360 = vpop.f32.mrb[0].mxu0
    %v361 = vadd.f32 %v229, %v360
    %v362 = vpop.f32.mrb[0].mxu0
    %v363 = vadd.f32 %v233, %v362
    %364 = vmatprep.mubr.f32.mxu0 0.0
    %365 = vmatmul.mubr.f32.gmra.mrb[0].mxu0 %v255
    %v366 = vpop.f32.mrb[0].mxu0
    %v367 = vadd.f32 %v229, %v366
    %v368 = vpop.f32.mrb[0].mxu0
    %v369 = vadd.f32 %v233, %v368
    %370 = vmatprep.mubr.f32.mxu0 0.0
    %371 = vmatmul.mubr.f32.gmra.mrb[0].mxu0 %v258
    %v372 = vpop.f32.mrb[0].mxu0
    %v373 = vadd.f32 %v229, %v372
    %v374 = vpop.f32.mrb[0].mxu0
    %v375 = vadd.f32 %v233, %v374
    %376 = vmatprep.mubr.f32.mxu0 0.0
    %377 = vmatmul.mubr.f32.gmra.mrb[0].mxu0 %v261
    %v378 = vpop.f32.mrb[0].mxu0
    %v379 = vadd.f32 %v229, %v378
    %v380 = vpop.f32.mrb[0].mxu0
    %v381 = vadd.f32 %v233, %v380
    %382 = vmatprep.mubr.f32.mxu0 0.0
    %383 = vmatmul.mubr.f32.gmra.mrb[0].mxu0 %v264
    %v384 = vpop.f32.mrb[0].mxu0
    %v385 = vadd.f32 %v229, %v384
    %v386 = vpop.f32.mrb[0].mxu0
    %v387 = vadd.f32 %v233, %v386
    %388 = vdwg.mxu0
    %389 = vmatprep.subr.mxu0 0.0
    %390 = vmatpush1.msra.mxu0 %v172
    %391 = vmatprep.subr.mxu0 0.0
    %392 = vmatpush1.msra.mxu0 %v274
    %393 = vmatprep.subr.mxu0 0.0
    %394 = vmatpush1.msra.mxu0 0.0
    %395 = vmatprep.subr.mxu0 0.0
    %396 = vmatpush1.msra.mxu0 0.0
    %397 = vmatprep.subr.mxu0 0.0
    %398 = vmatpush1.msra.mxu0 0.0
    %399 = vmatprep.subr.mxu0 0.0
    %400 = vmatpush1.msra.mxu0 0.0
    %401 = vmatprep.subr.mxu0 0.0
    %402 = vmatpush1.msra.mxu0 0.0
    %403 = vmatprep.subr.mxu0 0.0
    %404 = vmatpush1.msra.mxu0 0.0
    %405 = vmatprep.subr.mxu0 0.0
    %406 = vmatpush1.msra.mxu0 0.0
    %407 = vmatprep.subr.mxu0 0.0
    %408 = vmatpush1.msra.mxu0 0.0
    %409 = vmatprep.subr.mxu0 0.0
    %410 = vmatpush1.msra.mxu0 0.0
    %411 = vmatprep.subr.mxu0 0.0
    %412 = vmatpush1.msra.mxu0 0.0
    %413 = vmatprep.subr.mxu0 0.0
    %414 = vmatpush1.msra.mxu0 0.0
    %415 = vmatprep.subr.mxu0 0.0
    %416 = vmatpush1.msra.mxu0 0.0
    %417 = vmatprep.subr.mxu0 0.0
    %418 = vmatpush1.msra.mxu0 0.0
    %419 = vmatprep.subr.mxu0 0.0
    %420 = vmatpush1.msra.mxu0 0.0
    %421 = vmatprep.subr.mxu0 0.0
    %422 = vmatpush1.msra.mxu0 0.0
    %423 = vmatprep.subr.mxu0 0.0
    %424 = vmatpush1.msra.mxu0 0.0
    %425 = vmatprep.subr.mxu0 0.0
    %426 = vmatpush1.msra.mxu0 0.0
    %427 = vmatprep.subr.mxu0 0.0
    %428 = vmatpush1.msra.mxu0 0.0
    %429 = vmatprep.subr.mxu0 0.0
    %430 = vmatpush1.msra.mxu0 0.0
    %431 = vmatprep.subr.mxu0 0.0
    %432 = vmatpush1.msra.mxu0 0.0
    %433 = vmatprep.subr.mxu0 0.0
    %434 = vmatpush1.msra.mxu0 0.0
    %435 = vmatprep.subr.mxu0 0.0
    %436 = vmatpush1.msra.mxu0 0.0
    %437 = vmatprep.subr.mxu0 0.0
    %438 = vmatpush1.msra.mxu0 0.0
    %439 = vmatprep.subr.mxu0 0.0
    %440 = vmatpush1.msra.mxu0 0.0
    %441 = vmatprep.subr.mxu0 0.0
    %442 = vmatpush1.msra.mxu0 0.0
    %443 = vmatprep.subr.mxu0 0.0
    %444 = vmatpush1.msra.mxu0 0.0
    %445 = vmatprep.subr.mxu0 0.0
    %446 = vmatpush1.msra.mxu0 0.0
    %447 = vmatprep.subr.mxu0 0.0
    %448 = vmatpush1.msra.mxu0 0.0
    %449 = vmatprep.subr.mxu0 0.0
    %450 = vmatpush1.msra.mxu0 0.0
    %451 = vmatprep.subr.mxu0 0.0
    %452 = vmatpush1.msra.mxu0 0.0
    %453 = vmatprep.mubr.f32.mxu0 0.0
    %454 = vmatmul.mubr.f32.gmra.mrb[0].mxu0 %v243
    %v455 = vpop.f32.mrb[0].mxu0
    %v456 = vadd.f32 %v237, %v455
    %v457 = vpop.f32.mrb[0].mxu0
    %458 = vmatprep.mubr.f32.mxu0 0.0
    %459 = vmatmul.mubr.f32.gmra.mrb[0].mxu0 %v246
    %v460 = vpop.f32.mrb[0].mxu0
    %v461 = vadd.f32 %v237, %v460
    %v462 = vpop.f32.mrb[0].mxu0
    %463 = vmatprep.mubr.f32.mxu0 0.0
    %464 = vmatmul.mubr.f32.gmra.mrb[0].mxu0 %v249
    %v465 = vpop.f32.mrb[0].mxu0
    %v466 = vadd.f32 %v237, %v465
    %v467 = vpop.f32.mrb[0].mxu0
    %468 = vmatprep.mubr.f32.mxu0 0.0
    %469 = vmatmul.mubr.f32.gmra.mrb[0].mxu0 %v252
    %v470 = vpop.f32.mrb[0].mxu0
    %v471 = vadd.f32 %v237, %v470
    %v472 = vpop.f32.mrb[0].mxu0
    %473 = vmatprep.mubr.f32.mxu0 0.0
    %474 = vmatmul.mubr.f32.gmra.mrb[0].mxu0 %v255
    %v475 = vpop.f32.mrb[0].mxu0
    %v476 = vadd.f32 %v237, %v475
    %v477 = vpop.f32.mrb[0].mxu0
    %478 = vmatprep.mubr.f32.mxu0 0.0
    %479 = vmatmul.mubr.f32.gmra.mrb[0].mxu0 %v258
    %v480 = vpop.f32.mrb[0].mxu0
    %v481 = vadd.f32 %v237, %v480
    %v482 = vpop.f32.mrb[0].mxu0
    %483 = vmatprep.mubr.f32.mxu0 0.0
    %484 = vmatmul.mubr.f32.gmra.mrb[0].mxu0 %v261
    %v485 = vpop.f32.mrb[0].mxu0
    %v486 = vadd.f32 %v237, %v485
    %v487 = vpop.f32.mrb[0].mxu0
    %488 = vmatprep.mubr.f32.mxu0 0.0
    %489 = vmatmul.mubr.f32.gmra.mrb[0].mxu0 %v264
    %v490 = vpop.f32.mrb[0].mxu0
    %v491 = vadd.f32 %v237, %v490
    %v492 = vpop.f32.mrb[0].mxu0
    %493 = vdwg.mxu0
    %v494 = vsel %vm158, %v343, %v385
    %v495 = vsel %vm159, %v345, %v387
    %v496 = vsel %vm160, %v456, %v491
    %v497 = vsel %vm158, %v349, %v379
    %v498 = vsel %vm159, %v351, %v381
    %v499 = vsel %vm160, %v461, %v486
    %v500 = vsel %vm158, %v355, %v373
    %v501 = vsel %vm159, %v357, %v375
    %v502 = vsel %vm160, %v466, %v481
    %v503 = vsel %vm158, %v361, %v367
    %v504 = vsel %vm159, %v363, %v369
    %v505 = vsel %vm160, %v471, %v476
    %v506 = vsel %vm158, %v367, %v361
    %v507 = vsel %vm159, %v369, %v363
    %v508 = vsel %vm160, %v476, %v471
    %v509 = vsel %vm158, %v373, %v355
    %v510 = vsel %vm159, %v375, %v357
    %v511 = vsel %vm160, %v481, %v466
    %v512 = vsel %vm158, %v379, %v349
    %v513 = vsel %vm159, %v381, %v351
    %v514 = vsel %vm160, %v486, %v461
    %v515 = vsel %vm158, %v385, %v343
    %v516 = vsel %vm159, %v387, %v345
    %v517 = vsel %vm160, %v491, %v456
    %v518 = vld [vmem:[%s4] sm:$0x1]
    %v520 = vlaneseq
    %v521 = vshrl.u32 %v520, 7
    %v522 = vsub.s32 0, %v521
    %v523 = vrot.slane %v518, %v522
    %525 = vmatprep.subr.mxu0 %v177
    %526 = vmatpush1.msra.mxu0 %v176
    %527 = vmatprep.subr.mxu0 %v180
    %528 = vmatpush1.msra.mxu0 %v179
    %529 = vmatprep.subr.mxu0 %v183
    %530 = vmatpush1.msra.mxu0 %v182
    %531 = vmatprep.subr.mxu0 %v186
    %532 = vmatpush1.msra.mxu0 %v185
    %533 = vmatprep.subr.mxu0 %v189
    %534 = vmatpush1.msra.mxu0 %v188
    %535 = vmatprep.subr.mxu0 %v192
    %536 = vmatpush1.msra.mxu0 %v191
    %537 = vmatprep.subr.mxu0 %v195
    %538 = vmatpush1.msra.mxu0 %v194
    %539 = vmatprep.subr.mxu0 %v198
    %540 = vmatpush1.msra.mxu0 %v197
    %541 = vmatprep.subr.mxu0 %v201
    %542 = vmatpush1.msra.mxu0 %v200
    %543 = vmatprep.subr.mxu0 %v204
    %544 = vmatpush1.msra.mxu0 %v203
    %545 = vmatprep.subr.mxu0 %v207
    %546 = vmatpush1.msra.mxu0 %v206
    %547 = vmatprep.subr.mxu0 %v210
    %548 = vmatpush1.msra.mxu0 %v209
    %549 = vmatprep.subr.mxu0 %v213
    %550 = vmatpush1.msra.mxu0 %v212
    %551 = vmatprep.subr.mxu0 %v216
    %552 = vmatpush1.msra.mxu0 %v215
    %553 = vmatprep.subr.mxu0 %v219
    %554 = vmatpush1.msra.mxu0 %v218
    %555 = vmatprep.subr.mxu0 %v222
    %556 = vmatpush1.msra.mxu0 %v221
    %557 = vmatprep.subr.mxu0 0.0
    %558 = vmatpush1.msra.mxu0 0.0
    %559 = vmatprep.subr.mxu0 0.0
    %560 = vmatpush1.msra.mxu0 0.0
    %561 = vmatprep.subr.mxu0 0.0
    %562 = vmatpush1.msra.mxu0 0.0
    %563 = vmatprep.subr.mxu0 0.0
    %564 = vmatpush1.msra.mxu0 0.0
    %565 = vmatprep.subr.mxu0 0.0
    %566 = vmatpush1.msra.mxu0 0.0
    %567 = vmatprep.subr.mxu0 0.0
    %568 = vmatpush1.msra.mxu0 0.0
    %569 = vmatprep.subr.mxu0 0.0
    %570 = vmatpush1.msra.mxu0 0.0
    %571 = vmatprep.subr.mxu0 0.0
    %572 = vmatpush1.msra.mxu0 0.0
    %573 = vmatprep.subr.mxu0 0.0
    %574 = vmatpush1.msra.mxu0 0.0
    %575 = vmatprep.subr.mxu0 0.0
    %576 = vmatpush1.msra.mxu0 0.0
    %577 = vmatprep.subr.mxu0 0.0
    %578 = vmatpush1.msra.mxu0 0.0
    %579 = vmatprep.subr.mxu0 0.0
    %580 = vmatpush1.msra.mxu0 0.0
    %581 = vmatprep.subr.mxu0 0.0
    %582 = vmatpush1.msra.mxu0 0.0
    %583 = vmatprep.subr.mxu0 0.0
    %584 = vmatpush1.msra.mxu0 0.0
    %585 = vmatprep.subr.mxu0 0.0
    %586 = vmatpush1.msra.mxu0 0.0
    %587 = vmatprep.subr.mxu0 0.0
    %588 = vmatpush1.msra.mxu0 0.0
    %589 = vmatprep.mubr.f32.mxu0 0.0
    %590 = vmatmul.mubr.f32.gmra.mrb[0].mxu0 0.0
    %v591 = vpop.f32.mrb[0].mxu0
    %v592 = vadd.f32 0.0, %v591
    %v593 = vpop.f32.mrb[0].mxu0
    %v594 = vadd.f32 0.0, %v593
    %595 = vdwg.mxu0
    %596 = vmatprep.subr.mxu0 0.0
    %597 = vmatpush1.msra.mxu0 %v178
    %598 = vmatprep.subr.mxu0 0.0
    %599 = vmatpush1.msra.mxu0 %v181
    %600 = vmatprep.subr.mxu0 0.0
    %601 = vmatpush1.msra.mxu0 %v184
    %602 = vmatprep.subr.mxu0 0.0
    %603 = vmatpush1.msra.mxu0 %v187
    %604 = vmatprep.subr.mxu0 0.0
    %605 = vmatpush1.msra.mxu0 %v190
    %606 = vmatprep.subr.mxu0 0.0
    %607 = vmatpush1.msra.mxu0 %v193
    %608 = vmatprep.subr.mxu0 0.0
    %609 = vmatpush1.msra.mxu0 %v196
    %610 = vmatprep.subr.mxu0 0.0
    %611 = vmatpush1.msra.mxu0 %v199
    %612 = vmatprep.subr.mxu0 0.0
    %613 = vmatpush1.msra.mxu0 %v202
    %614 = vmatprep.subr.mxu0 0.0
    %615 = vmatpush1.msra.mxu0 %v205
    %616 = vmatprep.subr.mxu0 0.0
    %617 = vmatpush1.msra.mxu0 %v208
    %618 = vmatprep.subr.mxu0 0.0
    %619 = vmatpush1.msra.mxu0 %v211
    %620 = vmatprep.subr.mxu0 0.0
    %621 = vmatpush1.msra.mxu0 %v214
    %622 = vmatprep.subr.mxu0 0.0
    %623 = vmatpush1.msra.mxu0 %v217
    %624 = vmatprep.subr.mxu0 0.0
    %625 = vmatpush1.msra.mxu0 %v220
    %626 = vmatprep.subr.mxu0 0.0
    %627 = vmatpush1.msra.mxu0 %v223
    %628 = vmatprep.subr.mxu0 0.0
    %629 = vmatpush1.msra.mxu0 0.0
    %630 = vmatprep.subr.mxu0 0.0
    %631 = vmatpush1.msra.mxu0 0.0
    %632 = vmatprep.subr.mxu0 0.0
    %633 = vmatpush1.msra.mxu0 0.0
    %634 = vmatprep.subr.mxu0 0.0
    %635 = vmatpush1.msra.mxu0 0.0
    %636 = vmatprep.subr.mxu0 0.0
    %637 = vmatpush1.msra.mxu0 0.0
    %638 = vmatprep.subr.mxu0 0.0
    %639 = vmatpush1.msra.mxu0 0.0
    %640 = vmatprep.subr.mxu0 0.0
    %641 = vmatpush1.msra.mxu0 0.0
    %642 = vmatprep.subr.mxu0 0.0
    %643 = vmatpush1.msra.mxu0 0.0
    %644 = vmatprep.subr.mxu0 0.0
    %645 = vmatpush1.msra.mxu0 0.0
    %646 = vmatprep.subr.mxu0 0.0
    %647 = vmatpush1.msra.mxu0 0.0
    %648 = vmatprep.subr.mxu0 0.0
    %649 = vmatpush1.msra.mxu0 0.0
    %650 = vmatprep.subr.mxu0 0.0
    %651 = vmatpush1.msra.mxu0 0.0
    %652 = vmatprep.subr.mxu0 0.0
    %653 = vmatpush1.msra.mxu0 0.0
    %654 = vmatprep.subr.mxu0 0.0
    %655 = vmatpush1.msra.mxu0 0.0
    %656 = vmatprep.subr.mxu0 0.0
    %657 = vmatpush1.msra.mxu0 0.0
    %658 = vmatprep.subr.mxu0 0.0
    %659 = vmatpush1.msra.mxu0 0.0
    %660 = vmatprep.mubr.f32.mxu0 0.0
    %661 = vmatmul.mubr.f32.gmra.mrb[0].mxu0 0.0
    %v662 = vpop.f32.mrb[0].mxu0
    %v663 = vadd.f32 0.0, %v662
    %v664 = vpop.f32.mrb[0].mxu0
    %665 = vdwg.mxu0
    %v666 = vadd.f32 %v494, %v592
    %v667 = vxor.u32 %v666, 2147483648
    %v668 = vmul.f32 %v667, 1.442695
    %v669 = vpow.pop %v668
    %v670 = vadd.f32 %v669, 1.0
    %v671 = vrcp.pop %v670
    %v672 = vmul.f32 1.0, %v671
    %v673 = vadd.f32 %v495, %v594
    %v674 = vxor.u32 %v673, 2147483648
    %v675 = vmul.f32 %v674, 1.442695
    %v676 = vpow.pop %v675
    %v677 = vadd.f32 %v676, 1.0
    %v678 = vrcp.pop %v677
    %v679 = vmul.f32 1.0, %v678
    %v680 = vadd.f32 %v663, %v523
    %v681 = vmul.f32 %v672, %v680
    %v682 = vadd.f32 %v496, %v681
    %v683 = vtanh.pop %v682
    %v684 = vsub.f32 1.0, %v679
    %v685 = vmul.f32 %v684, %v683
    %v686 = vmul.f32 %v679, 0.0
    %v687 = vadd.f32 %v685, %v686
    %688 = vmatprep.subr.mxu0 %v177
    %689 = vmatpush1.msra.mxu0 %v176
    %690 = vmatprep.subr.mxu0 %v180
    %691 = vmatpush1.msra.mxu0 %v179
    %692 = vmatprep.subr.mxu0 %v183
    %693 = vmatpush1.msra.mxu0 %v182
    %694 = vmatprep.subr.mxu0 %v186
    %695 = vmatpush1.msra.mxu0 %v185
    %696 = vmatprep.subr.mxu0 %v189
    %697 = vmatpush1.msra.mxu0 %v188
    %698 = vmatprep.subr.mxu0 %v192
    %699 = vmatpush1.msra.mxu0 %v191
    %700 = vmatprep.subr.mxu0 %v195
    %701 = vmatpush1.msra.mxu0 %v194
    %702 = vmatprep.subr.mxu0 %v198
    %703 = vmatpush1.msra.mxu0 %v197
    %704 = vmatprep.subr.mxu0 %v201
    %705 = vmatpush1.msra.mxu0 %v200
    %706 = vmatprep.subr.mxu0 %v204
    %707 = vmatpush1.msra.mxu0 %v203
    %708 = vmatprep.subr.mxu0 %v207
    %709 = vmatpush1.msra.mxu0 %v206
    %710 = vmatprep.subr.mxu0 %v210
    %711 = vmatpush1.msra.mxu0 %v209
    %712 = vmatprep.subr.mxu0 %v213
    %713 = vmatpush1.msra.mxu0 %v212
    %714 = vmatprep.subr.mxu0 %v216
    %715 = vmatpush1.msra.mxu0 %v215
    %716 = vmatprep.subr.mxu0 %v219
    %717 = vmatpush1.msra.mxu0 %v218
    %718 = vmatprep.subr.mxu0 %v222
    %719 = vmatpush1.msra.mxu0 %v221
    %720 = vmatprep.subr.mxu0 0.0
    %721 = vmatpush1.msra.mxu0 0.0
    %722 = vmatprep.subr.mxu0 0.0
    %723 = vmatpush1.msra.mxu0 0.0
    %724 = vmatprep.subr.mxu0 0.0
    %725 = vmatpush1.msra.mxu0 0.0
    %726 = vmatprep.subr.mxu0 0.0
    %727 = vmatpush1.msra.mxu0 0.0
    %728 = vmatprep.subr.mxu0 0.0
    %729 = vmatpush1.msra.mxu0 0.0
    %730 = vmatprep.subr.mxu0 0.0
    %731 = vmatpush1.msra.mxu0 0.0
    %732 = vmatprep.subr.mxu0 0.0
    %733 = vmatpush1.msra.mxu0 0.0
    %734 = vmatprep.subr.mxu0 0.0
    %735 = vmatpush1.msra.mxu0 0.0
    %736 = vmatprep.subr.mxu0 0.0
    %737 = vmatpush1.msra.mxu0 0.0
    %738 = vmatprep.subr.mxu0 0.0
    %739 = vmatpush1.msra.mxu0 0.0
    %740 = vmatprep.subr.mxu0 0.0
    %741 = vmatpush1.msra.mxu0 0.0
    %742 = vmatprep.subr.mxu0 0.0
    %743 = vmatpush1.msra.mxu0 0.0
    %744 = vmatprep.subr.mxu0 0.0
    %745 = vmatpush1.msra.mxu0 0.0
    %746 = vmatprep.subr.mxu0 0.0
    %747 = vmatpush1.msra.mxu0 0.0
    %748 = vmatprep.subr.mxu0 0.0
    %749 = vmatpush1.msra.mxu0 0.0
    %750 = vmatprep.subr.mxu0 0.0
    %751 = vmatpush1.msra.mxu0 0.0
    %752 = vmatprep.mubr.f32.mxu0 0.0
    %753 = vmatmul.mubr.f32.gmra.mrb[0].mxu0 %v687
    %v754 = vpop.f32.mrb[0].mxu0
    %v755 = vadd.f32 0.0, %v754
    %v756 = vpop.f32.mrb[0].mxu0
    %v757 = vadd.f32 0.0, %v756
    %758 = vdwg.mxu0
    %759 = vmatprep.subr.mxu0 0.0
    %760 = vmatpush1.msra.mxu0 %v178
    %761 = vmatprep.subr.mxu0 0.0
    %762 = vmatpush1.msra.mxu0 %v181
    %763 = vmatprep.subr.mxu0 0.0
    %764 = vmatpush1.msra.mxu0 %v184
    %765 = vmatprep.subr.mxu0 0.0
    %766 = vmatpush1.msra.mxu0 %v187
    %767 = vmatprep.subr.mxu0 0.0
    %768 = vmatpush1.msra.mxu0 %v190
    %769 = vmatprep.subr.mxu0 0.0
    %770 = vmatpush1.msra.mxu0 %v193
    %771 = vmatprep.subr.mxu0 0.0
    %772 = vmatpush1.msra.mxu0 %v196
    %773 = vmatprep.subr.mxu0 0.0
    %774 = vmatpush1.msra.mxu0 %v199
    %775 = vmatprep.subr.mxu0 0.0
    %776 = vmatpush1.msra.mxu0 %v202
    %777 = vmatprep.subr.mxu0 0.0
    %778 = vmatpush1.msra.mxu0 %v205
    %779 = vmatprep.subr.mxu0 0.0
    %780 = vmatpush1.msra.mxu0 %v208
    %781 = vmatprep.subr.mxu0 0.0
    %782 = vmatpush1.msra.mxu0 %v211
    %783 = vmatprep.subr.mxu0 0.0
    %784 = vmatpush1.msra.mxu0 %v214
    %785 = vmatprep.subr.mxu0 0.0
    %786 = vmatpush1.msra.mxu0 %v217
    %787 = vmatprep.subr.mxu0 0.0
    %788 = vmatpush1.msra.mxu0 %v220
    %789 = vmatprep.subr.mxu0 0.0
    %790 = vmatpush1.msra.mxu0 %v223
    %791 = vmatprep.subr.mxu0 0.0
    %792 = vmatpush1.msra.mxu0 0.0
    %793 = vmatprep.subr.mxu0 0.0
    %794 = vmatpush1.msra.mxu0 0.0
    %795 = vmatprep.subr.mxu0 0.0
    %796 = vmatpush1.msra.mxu0 0.0
    %797 = vmatprep.subr.mxu0 0.0
    %798 = vmatpush1.msra.mxu0 0.0
    %799 = vmatprep.subr.mxu0 0.0
    %800 = vmatpush1.msra.mxu0 0.0
    %801 = vmatprep.subr.mxu0 0.0
    %802 = vmatpush1.msra.mxu0 0.0
    %803 = vmatprep.subr.mxu0 0.0
    %804 = vmatpush1.msra.mxu0 0.0
    %805 = vmatprep.subr.mxu0 0.0
    %806 = vmatpush1.msra.mxu0 0.0
    %807 = vmatprep.subr.mxu0 0.0
    %808 = vmatpush1.msra.mxu0 0.0
    %809 = vmatprep.subr.mxu0 0.0
    %810 = vmatpush1.msra.mxu0 0.0
    %811 = vmatprep.subr.mxu0 0.0
    %812 = vmatpush1.msra.mxu0 0.0
    %813 = vmatprep.subr.mxu0 0.0
    %814 = vmatpush1.msra.mxu0 0.0
    %815 = vmatprep.subr.mxu0 0.0
    %816 = vmatpush1.msra.mxu0 0.0
    %817 = vmatprep.subr.mxu0 0.0
    %818 = vmatpush1.msra.mxu0 0.0
    %819 = vmatprep.subr.mxu0 0.0
    %820 = vmatpush1.msra.mxu0 0.0
    %821 = vmatprep.subr.mxu0 0.0
    %822 = vmatpush1.msra.mxu0 0.0
    %823 = vmatprep.mubr.f32.mxu0 0.0
    %824 = vmatmul.mubr.f32.gmra.mrb[0].mxu0 %v687
    %v825 = vpop.f32.mrb[0].mxu0
    %v826 = vadd.f32 0.0, %v825
    %v827 = vpop.f32.mrb[0].mxu0
    %828 = vdwg.mxu0
    %v829 = vadd.f32 %v497, %v755
    %v830 = vxor.u32 %v829, 2147483648
    %v831 = vmul.f32 %v830, 1.442695
    %v832 = vpow.pop %v831
    %v833 = vadd.f32 %v832, 1.0
    %v834 = vrcp.pop %v833
    %v835 = vmul.f32 1.0, %v834
    %v836 = vadd.f32 %v498, %v757
    %v837 = vxor.u32 %v836, 2147483648
    %v838 = vmul.f32 %v837, 1.442695
    %v839 = vpow.pop %v838
    %v840 = vadd.f32 %v839, 1.0
    %v841 = vrcp.pop %v840
    %v842 = vmul.f32 1.0, %v841
    %v843 = vadd.f32 %v826, %v523
    %v844 = vmul.f32 %v835, %v843
    %v845 = vadd.f32 %v499, %v844
    %v846 = vtanh.pop %v845
    %v847 = vsub.f32 1.0, %v842
    %v848 = vmul.f32 %v847, %v846
    %v849 = vmul.f32 %v842, %v687
    %v850 = vadd.f32 %v848, %v849
    %851 = vmatprep.subr.mxu0 %v177
    %852 = vmatpush1.msra.mxu0 %v176
    %853 = vmatprep.subr.mxu0 %v180
    %854 = vmatpush1.msra.mxu0 %v179
    %855 = vmatprep.subr.mxu0 %v183
    %856 = vmatpush1.msra.mxu0 %v182
    %857 = vmatprep.subr.mxu0 %v186
    %858 = vmatpush1.msra.mxu0 %v185
    %859 = vmatprep.subr.mxu0 %v189
    %860 = vmatpush1.msra.mxu0 %v188
    %861 = vmatprep.subr.mxu0 %v192
    %862 = vmatpush1.msra.mxu0 %v191
    %863 = vmatprep.subr.mxu0 %v195
    %864 = vmatpush1.msra.mxu0 %v194
    %865 = vmatprep.subr.mxu0 %v198
    %866 = vmatpush1.msra.mxu0 %v197
    %867 = vmatprep.subr.mxu0 %v201
    %868 = vmatpush1.msra.mxu0 %v200
    %869 = vmatprep.subr.mxu0 %v204
    %870 = vmatpush1.msra.mxu0 %v203
    %871 = vmatprep.subr.mxu0 %v207
    %872 = vmatpush1.msra.mxu0 %v206
    %873 = vmatprep.subr.mxu0 %v210
    %874 = vmatpush1.msra.mxu0 %v209
    %875 = vmatprep.subr.mxu0 %v213
    %876 = vmatpush1.msra.mxu0 %v212
    %877 = vmatprep.subr.mxu0 %v216
    %878 = vmatpush1.msra.mxu0 %v215
    %879 = vmatprep.subr.mxu0 %v219
    %880 = vmatpush1.msra.mxu0 %v218
    %881 = vmatprep.subr.mxu0 %v222
    %882 = vmatpush1.msra.mxu0 %v221
    %883 = vmatprep.subr.mxu0 0.0
    %884 = vmatpush1.msra.mxu0 0.0
    %885 = vmatprep.subr.mxu0 0.0
    %886 = vmatpush1.msra.mxu0 0.0
    %887 = vmatprep.subr.mxu0 0.0
    %888 = vmatpush1.msra.mxu0 0.0
    %889 = vmatprep.subr.mxu0 0.0
    %890 = vmatpush1.msra.mxu0 0.0
    %891 = vmatprep.subr.mxu0 0.0
    %892 = vmatpush1.msra.mxu0 0.0
    %893 = vmatprep.subr.mxu0 0.0
    %894 = vmatpush1.msra.mxu0 0.0
    %895 = vmatprep.subr.mxu0 0.0
    %896 = vmatpush1.msra.mxu0 0.0
    %897 = vmatprep.subr.mxu0 0.0
    %898 = vmatpush1.msra.mxu0 0.0
    %899 = vmatprep.subr.mxu0 0.0
    %900 = vmatpush1.msra.mxu0 0.0
    %901 = vmatprep.subr.mxu0 0.0
    %902 = vmatpush1.msra.mxu0 0.0
    %903 = vmatprep.subr.mxu0 0.0
    %904 = vmatpush1.msra.mxu0 0.0
    %905 = vmatprep.subr.mxu0 0.0
    %906 = vmatpush1.msra.mxu0 0.0
    %907 = vmatprep.subr.mxu0 0.0
    %908 = vmatpush1.msra.mxu0 0.0
    %909 = vmatprep.subr.mxu0 0.0
    %910 = vmatpush1.msra.mxu0 0.0
    %911 = vmatprep.subr.mxu0 0.0
    %912 = vmatpush1.msra.mxu0 0.0
    %913 = vmatprep.subr.mxu0 0.0
    %914 = vmatpush1.msra.mxu0 0.0
    %915 = vmatprep.mubr.f32.mxu0 0.0
    %916 = vmatmul.mubr.f32.gmra.mrb[0].mxu0 %v850
    %v917 = vpop.f32.mrb[0].mxu0
    %v918 = vadd.f32 0.0, %v917
    %v919 = vpop.f32.mrb[0].mxu0
    %v920 = vadd.f32 0.0, %v919
    %921 = vdwg.mxu0
    %922 = vmatprep.subr.mxu0 0.0
    %923 = vmatpush1.msra.mxu0 %v178
    %924 = vmatprep.subr.mxu0 0.0
    %925 = vmatpush1.msra.mxu0 %v181
    %926 = vmatprep.subr.mxu0 0.0
    %927 = vmatpush1.msra.mxu0 %v184
    %928 = vmatprep.subr.mxu0 0.0
    %929 = vmatpush1.msra.mxu0 %v187
    %930 = vmatprep.subr.mxu0 0.0
    %931 = vmatpush1.msra.mxu0 %v190
    %932 = vmatprep.subr.mxu0 0.0
    %933 = vmatpush1.msra.mxu0 %v193
    %934 = vmatprep.subr.mxu0 0.0
    %935 = vmatpush1.msra.mxu0 %v196
    %936 = vmatprep.subr.mxu0 0.0
    %937 = vmatpush1.msra.mxu0 %v199
    %938 = vmatprep.subr.mxu0 0.0
    %939 = vmatpush1.msra.mxu0 %v202
    %940 = vmatprep.subr.mxu0 0.0
    %941 = vmatpush1.msra.mxu0 %v205
    %942 = vmatprep.subr.mxu0 0.0
    %943 = vmatpush1.msra.mxu0 %v208
    %944 = vmatprep.subr.mxu0 0.0
    %945 = vmatpush1.msra.mxu0 %v211
    %946 = vmatprep.subr.mxu0 0.0
    %947 = vmatpush1.msra.mxu0 %v214
    %948 = vmatprep.subr.mxu0 0.0
    %949 = vmatpush1.msra.mxu0 %v217
    %950 = vmatprep.subr.mxu0 0.0
    %951 = vmatpush1.msra.mxu0 %v220
    %952 = vmatprep.subr.mxu0 0.0
    %953 = vmatpush1.msra.mxu0 %v223
    %954 = vmatprep.subr.mxu0 0.0
    %955 = vmatpush1.msra.mxu0 0.0
    %956 = vmatprep.subr.mxu0 0.0
    %957 = vmatpush1.msra.mxu0 0.0
    %958 = vmatprep.subr.mxu0 0.0
    %959 = vmatpush1.msra.mxu0 0.0
    %960 = vmatprep.subr.mxu0 0.0
    %961 = vmatpush1.msra.mxu0 0.0
    %962 = vmatprep.subr.mxu0 0.0
    %963 = vmatpush1.msra.mxu0 0.0
    %964 = vmatprep.subr.mxu0 0.0
    %965 = vmatpush1.msra.mxu0 0.0
    %966 = vmatprep.subr.mxu0 0.0
    %967 = vmatpush1.msra.mxu0 0.0
    %968 = vmatprep.subr.mxu0 0.0
    %969 = vmatpush1.msra.mxu0 0.0
    %970 = vmatprep.subr.mxu0 0.0
    %971 = vmatpush1.msra.mxu0 0.0
    %972 = vmatprep.subr.mxu0 0.0
    %973 = vmatpush1.msra.mxu0 0.0
    %974 = vmatprep.subr.mxu0 0.0
    %975 = vmatpush1.msra.mxu0 0.0
    %976 = vmatprep.subr.mxu0 0.0
    %977 = vmatpush1.msra.mxu0 0.0
    %978 = vmatprep.subr.mxu0 0.0
    %979 = vmatpush1.msra.mxu0 0.0
    %980 = vmatprep.subr.mxu0 0.0
    %981 = vmatpush1.msra.mxu0 0.0
    %982 = vmatprep.subr.mxu0 0.0
    %983 = vmatpush1.msra.mxu0 0.0
    %984 = vmatprep.subr.mxu0 0.0
    %985 = vmatpush1.msra.mxu0 0.0
    %986 = vmatprep.mubr.f32.mxu0 0.0
    %987 = vmatmul.mubr.f32.gmra.mrb[0].mxu0 %v850
    %v988 = vpop.f32.mrb[0].mxu0
    %v989 = vadd.f32 0.0, %v988
    %v990 = vpop.f32.mrb[0].mxu0
    %991 = vdwg.mxu0
    %v992 = vadd.f32 %v500, %v918
    %v993 = vxor.u32 %v992, 2147483648
    %v994 = vmul.f32 %v993, 1.442695
    %v995 = vpow.pop %v994
    %v996 = vadd.f32 %v995, 1.0
    %v997 = vrcp.pop %v996
    %v998 = vmul.f32 1.0, %v997
    %v999 = vadd.f32 %v501, %v920
    %v1000 = vxor.u32 %v999, 2147483648
    %v1001 = vmul.f32 %v1000, 1.442695
    %v1002 = vpow.pop %v1001
    %v1003 = vadd.f32 %v1002, 1.0
    %v1004 = vrcp.pop %v1003
    %v1005 = vmul.f32 1.0, %v1004
    %v1006 = vadd.f32 %v989, %v523
    %v1007 = vmul.f32 %v998, %v1006
    %v1008 = vadd.f32 %v502, %v1007
    %v1009 = vtanh.pop %v1008
    %v1010 = vsub.f32 1.0, %v1005
    %v1011 = vmul.f32 %v1010, %v1009
    %v1012 = vmul.f32 %v1005, %v850
    %v1013 = vadd.f32 %v1011, %v1012
    %1014 = vmatprep.subr.mxu0 %v177
    %1015 = vmatpush1.msra.mxu0 %v176
    %1016 = vmatprep.subr.mxu0 %v180
    %1017 = vmatpush1.msra.mxu0 %v179
    %1018 = vmatprep.subr.mxu0 %v183
    %1019 = vmatpush1.msra.mxu0 %v182
    %1020 = vmatprep.subr.mxu0 %v186
    %1021 = vmatpush1.msra.mxu0 %v185
    %1022 = vmatprep.subr.mxu0 %v189
    %1023 = vmatpush1.msra.mxu0 %v188
    %1024 = vmatprep.subr.mxu0 %v192
    %1025 = vmatpush1.msra.mxu0 %v191
    %1026 = vmatprep.subr.mxu0 %v195
    %1027 = vmatpush1.msra.mxu0 %v194
    %1028 = vmatprep.subr.mxu0 %v198
    %1029 = vmatpush1.msra.mxu0 %v197
    %1030 = vmatprep.subr.mxu0 %v201
    %1031 = vmatpush1.msra.mxu0 %v200
    %1032 = vmatprep.subr.mxu0 %v204
    %1033 = vmatpush1.msra.mxu0 %v203
    %1034 = vmatprep.subr.mxu0 %v207
    %1035 = vmatpush1.msra.mxu0 %v206
    %1036 = vmatprep.subr.mxu0 %v210
    %1037 = vmatpush1.msra.mxu0 %v209
    %1038 = vmatprep.subr.mxu0 %v213
    %1039 = vmatpush1.msra.mxu0 %v212
    %1040 = vmatprep.subr.mxu0 %v216
    %1041 = vmatpush1.msra.mxu0 %v215
    %1042 = vmatprep.subr.mxu0 %v219
    %1043 = vmatpush1.msra.mxu0 %v218
    %1044 = vmatprep.subr.mxu0 %v222
    %1045 = vmatpush1.msra.mxu0 %v221
    %1046 = vmatprep.subr.mxu0 0.0
    %1047 = vmatpush1.msra.mxu0 0.0
    %1048 = vmatprep.subr.mxu0 0.0
    %1049 = vmatpush1.msra.mxu0 0.0
    %1050 = vmatprep.subr.mxu0 0.0
    %1051 = vmatpush1.msra.mxu0 0.0
    %1052 = vmatprep.subr.mxu0 0.0
    %1053 = vmatpush1.msra.mxu0 0.0
    %1054 = vmatprep.subr.mxu0 0.0
    %1055 = vmatpush1.msra.mxu0 0.0
    %1056 = vmatprep.subr.mxu0 0.0
    %1057 = vmatpush1.msra.mxu0 0.0
    %1058 = vmatprep.subr.mxu0 0.0
    %1059 = vmatpush1.msra.mxu0 0.0
    %1060 = vmatprep.subr.mxu0 0.0
    %1061 = vmatpush1.msra.mxu0 0.0
    %1062 = vmatprep.subr.mxu0 0.0
    %1063 = vmatpush1.msra.mxu0 0.0
    %1064 = vmatprep.subr.mxu0 0.0
    %1065 = vmatpush1.msra.mxu0 0.0
    %1066 = vmatprep.subr.mxu0 0.0
    %1067 = vmatpush1.msra.mxu0 0.0
    %1068 = vmatprep.subr.mxu0 0.0
    %1069 = vmatpush1.msra.mxu0 0.0
    %1070 = vmatprep.subr.mxu0 0.0
    %1071 = vmatpush1.msra.mxu0 0.0
    %1072 = vmatprep.subr.mxu0 0.0
    %1073 = vmatpush1.msra.mxu0 0.0
    %1074 = vmatprep.subr.mxu0 0.0
    %1075 = vmatpush1.msra.mxu0 0.0
    %1076 = vmatprep.subr.mxu0 0.0
    %1077 = vmatpush1.msra.mxu0 0.0
    %1078 = vmatprep.mubr.f32.mxu0 0.0
    %1079 = vmatmul.mubr.f32.gmra.mrb[0].mxu0 %v1013
    %v1080 = vpop.f32.mrb[0].mxu0
    %v1081 = vadd.f32 0.0, %v1080
    %v1082 = vpop.f32.mrb[0].mxu0
    %v1083 = vadd.f32 0.0, %v1082
    %1084 = vdwg.mxu0
    %1085 = vmatprep.subr.mxu0 0.0
    %1086 = vmatpush1.msra.mxu0 %v178
    %1087 = vmatprep.subr.mxu0 0.0
    %1088 = vmatpush1.msra.mxu0 %v181
    %1089 = vmatprep.subr.mxu0 0.0
    %1090 = vmatpush1.msra.mxu0 %v184
    %1091 = vmatprep.subr.mxu0 0.0
    %1092 = vmatpush1.msra.mxu0 %v187
    %1093 = vmatprep.subr.mxu0 0.0
    %1094 = vmatpush1.msra.mxu0 %v190
    %1095 = vmatprep.subr.mxu0 0.0
    %1096 = vmatpush1.msra.mxu0 %v193
    %1097 = vmatprep.subr.mxu0 0.0
    %1098 = vmatpush1.msra.mxu0 %v196
    %1099 = vmatprep.subr.mxu0 0.0
    %1100 = vmatpush1.msra.mxu0 %v199
    %1101 = vmatprep.subr.mxu0 0.0
    %1102 = vmatpush1.msra.mxu0 %v202
    %1103 = vmatprep.subr.mxu0 0.0
    %1104 = vmatpush1.msra.mxu0 %v205
    %1105 = vmatprep.subr.mxu0 0.0
    %1106 = vmatpush1.msra.mxu0 %v208
    %1107 = vmatprep.subr.mxu0 0.0
    %1108 = vmatpush1.msra.mxu0 %v211
    %1109 = vmatprep.subr.mxu0 0.0
    %1110 = vmatpush1.msra.mxu0 %v214
    %1111 = vmatprep.subr.mxu0 0.0
    %1112 = vmatpush1.msra.mxu0 %v217
    %1113 = vmatprep.subr.mxu0 0.0
    %1114 = vmatpush1.msra.mxu0 %v220
    %1115 = vmatprep.subr.mxu0 0.0
    %1116 = vmatpush1.msra.mxu0 %v223
    %1117 = vmatprep.subr.mxu0 0.0
    %1118 = vmatpush1.msra.mxu0 0.0
    %1119 = vmatprep.subr.mxu0 0.0
    %1120 = vmatpush1.msra.mxu0 0.0
    %1121 = vmatprep.subr.mxu0 0.0
    %1122 = vmatpush1.msra.mxu0 0.0
    %1123 = vmatprep.subr.mxu0 0.0
    %1124 = vmatpush1.msra.mxu0 0.0
    %1125 = vmatprep.subr.mxu0 0.0
    %1126 = vmatpush1.msra.mxu0 0.0
    %1127 = vmatprep.subr.mxu0 0.0
    %1128 = vmatpush1.msra.mxu0 0.0
    %1129 = vmatprep.subr.mxu0 0.0
    %1130 = vmatpush1.msra.mxu0 0.0
    %1131 = vmatprep.subr.mxu0 0.0
    %1132 = vmatpush1.msra.mxu0 0.0
    %1133 = vmatprep.subr.mxu0 0.0
    %1134 = vmatpush1.msra.mxu0 0.0
    %1135 = vmatprep.subr.mxu0 0.0
    %1136 = vmatpush1.msra.mxu0 0.0
    %1137 = vmatprep.subr.mxu0 0.0
    %1138 = vmatpush1.msra.mxu0 0.0
    %1139 = vmatprep.subr.mxu0 0.0
    %1140 = vmatpush1.msra.mxu0 0.0
    %1141 = vmatprep.subr.mxu0 0.0
    %1142 = vmatpush1.msra.mxu0 0.0
    %1143 = vmatprep.subr.mxu0 0.0
    %1144 = vmatpush1.msra.mxu0 0.0
    %1145 = vmatprep.subr.mxu0 0.0
    %1146 = vmatpush1.msra.mxu0 0.0
    %1147 = vmatprep.subr.mxu0 0.0
    %1148 = vmatpush1.msra.mxu0 0.0
    %1149 = vmatprep.mubr.f32.mxu0 0.0
    %1150 = vmatmul.mubr.f32.gmra.mrb[0].mxu0 %v1013
    %v1151 = vpop.f32.mrb[0].mxu0
    %v1152 = vadd.f32 0.0, %v1151
    %v1153 = vpop.f32.mrb[0].mxu0
    %1154 = vdwg.mxu0
    %v1155 = vadd.f32 %v503, %v1081
    %v1156 = vxor.u32 %v1155, 2147483648
    %v1157 = vmul.f32 %v1156, 1.442695
    %v1158 = vpow.pop %v1157
    %v1159 = vadd.f32 %v1158, 1.0
    %v1160 = vrcp.pop %v1159
    %v1161 = vmul.f32 1.0, %v1160
    %v1162 = vadd.f32 %v504, %v1083
    %v1163 = vxor.u32 %v1162, 2147483648
    %v1164 = vmul.f32 %v1163, 1.442695
    %v1165 = vpow.pop %v1164
    %v1166 = vadd.f32 %v1165, 1.0
    %v1167 = vrcp.pop %v1166
    %v1168 = vmul.f32 1.0, %v1167
    %v1169 = vadd.f32 %v1152, %v523
    %v1170 = vmul.f32 %v1161, %v1169
    %v1171 = vadd.f32 %v505, %v1170
    %v1172 = vtanh.pop %v1171
    %v1173 = vsub.f32 1.0, %v1168
    %v1174 = vmul.f32 %v1173, %v1172
    %v1175 = vmul.f32 %v1168, %v1013
    %v1176 = vadd.f32 %v1174, %v1175
    %1177 = vmatprep.subr.mxu0 %v177
    %1178 = vmatpush1.msra.mxu0 %v176
    %1179 = vmatprep.subr.mxu0 %v180
    %1180 = vmatpush1.msra.mxu0 %v179
    %1181 = vmatprep.subr.mxu0 %v183
    %1182 = vmatpush1.msra.mxu0 %v182
    %1183 = vmatprep.subr.mxu0 %v186
    %1184 = vmatpush1.msra.mxu0 %v185
    %1185 = vmatprep.subr.mxu0 %v189
    %1186 = vmatpush1.msra.mxu0 %v188
    %1187 = vmatprep.subr.mxu0 %v192
    %1188 = vmatpush1.msra.mxu0 %v191
    %1189 = vmatprep.subr.mxu0 %v195
    %1190 = vmatpush1.msra.mxu0 %v194
    %1191 = vmatprep.subr.mxu0 %v198
    %1192 = vmatpush1.msra.mxu0 %v197
    %1193 = vmatprep.subr.mxu0 %v201
    %1194 = vmatpush1.msra.mxu0 %v200
    %1195 = vmatprep.subr.mxu0 %v204
    %1196 = vmatpush1.msra.mxu0 %v203
    %1197 = vmatprep.subr.mxu0 %v207
    %1198 = vmatpush1.msra.mxu0 %v206
    %1199 = vmatprep.subr.mxu0 %v210
    %1200 = vmatpush1.msra.mxu0 %v209
    %1201 = vmatprep.subr.mxu0 %v213
    %1202 = vmatpush1.msra.mxu0 %v212
    %1203 = vmatprep.subr.mxu0 %v216
    %1204 = vmatpush1.msra.mxu0 %v215
    %1205 = vmatprep.subr.mxu0 %v219
    %1206 = vmatpush1.msra.mxu0 %v218
    %1207 = vmatprep.subr.mxu0 %v222
    %1208 = vmatpush1.msra.mxu0 %v221
    %1209 = vmatprep.subr.mxu0 0.0
    %1210 = vmatpush1.msra.mxu0 0.0
    %1211 = vmatprep.subr.mxu0 0.0
    %1212 = vmatpush1.msra.mxu0 0.0
    %1213 = vmatprep.subr.mxu0 0.0
    %1214 = vmatpush1.msra.mxu0 0.0
    %1215 = vmatprep.subr.mxu0 0.0
    %1216 = vmatpush1.msra.mxu0 0.0
    %1217 = vmatprep.subr.mxu0 0.0
    %1218 = vmatpush1.msra.mxu0 0.0
    %1219 = vmatprep.subr.mxu0 0.0
    %1220 = vmatpush1.msra.mxu0 0.0
    %1221 = vmatprep.subr.mxu0 0.0
    %1222 = vmatpush1.msra.mxu0 0.0
    %1223 = vmatprep.subr.mxu0 0.0
    %1224 = vmatpush1.msra.mxu0 0.0
    %1225 = vmatprep.subr.mxu0 0.0
    %1226 = vmatpush1.msra.mxu0 0.0
    %1227 = vmatprep.subr.mxu0 0.0
    %1228 = vmatpush1.msra.mxu0 0.0
    %1229 = vmatprep.subr.mxu0 0.0
    %1230 = vmatpush1.msra.mxu0 0.0
    %1231 = vmatprep.subr.mxu0 0.0
    %1232 = vmatpush1.msra.mxu0 0.0
    %1233 = vmatprep.subr.mxu0 0.0
    %1234 = vmatpush1.msra.mxu0 0.0
    %1235 = vmatprep.subr.mxu0 0.0
    %1236 = vmatpush1.msra.mxu0 0.0
    %1237 = vmatprep.subr.mxu0 0.0
    %1238 = vmatpush1.msra.mxu0 0.0
    %1239 = vmatprep.subr.mxu0 0.0
    %1240 = vmatpush1.msra.mxu0 0.0
    %1241 = vmatprep.mubr.f32.mxu0 0.0
    %1242 = vmatmul.mubr.f32.gmra.mrb[0].mxu0 %v1176
    %v1243 = vpop.f32.mrb[0].mxu0
    %v1244 = vadd.f32 0.0, %v1243
    %v1245 = vpop.f32.mrb[0].mxu0
    %v1246 = vadd.f32 0.0, %v1245
    %1247 = vdwg.mxu0
    %1248 = vmatprep.subr.mxu0 0.0
    %1249 = vmatpush1.msra.mxu0 %v178
    %1250 = vmatprep.subr.mxu0 0.0
    %1251 = vmatpush1.msra.mxu0 %v181
    %1252 = vmatprep.subr.mxu0 0.0
    %1253 = vmatpush1.msra.mxu0 %v184
    %1254 = vmatprep.subr.mxu0 0.0
    %1255 = vmatpush1.msra.mxu0 %v187
    %1256 = vmatprep.subr.mxu0 0.0
    %1257 = vmatpush1.msra.mxu0 %v190
    %1258 = vmatprep.subr.mxu0 0.0
    %1259 = vmatpush1.msra.mxu0 %v193
    %1260 = vmatprep.subr.mxu0 0.0
    %1261 = vmatpush1.msra.mxu0 %v196
    %1262 = vmatprep.subr.mxu0 0.0
    %1263 = vmatpush1.msra.mxu0 %v199
    %1264 = vmatprep.subr.mxu0 0.0
    %1265 = vmatpush1.msra.mxu0 %v202
    %1266 = vmatprep.subr.mxu0 0.0
    %1267 = vmatpush1.msra.mxu0 %v205
    %1268 = vmatprep.subr.mxu0 0.0
    %1269 = vmatpush1.msra.mxu0 %v208
    %1270 = vmatprep.subr.mxu0 0.0
    %1271 = vmatpush1.msra.mxu0 %v211
    %1272 = vmatprep.subr.mxu0 0.0
    %1273 = vmatpush1.msra.mxu0 %v214
    %1274 = vmatprep.subr.mxu0 0.0
    %1275 = vmatpush1.msra.mxu0 %v217
    %1276 = vmatprep.subr.mxu0 0.0
    %1277 = vmatpush1.msra.mxu0 %v220
    %1278 = vmatprep.subr.mxu0 0.0
    %1279 = vmatpush1.msra.mxu0 %v223
    %1280 = vmatprep.subr.mxu0 0.0
    %1281 = vmatpush1.msra.mxu0 0.0
    %1282 = vmatprep.subr.mxu0 0.0
    %1283 = vmatpush1.msra.mxu0 0.0
    %1284 = vmatprep.subr.mxu0 0.0
    %1285 = vmatpush1.msra.mxu0 0.0
    %1286 = vmatprep.subr.mxu0 0.0
    %1287 = vmatpush1.msra.mxu0 0.0
    %1288 = vmatprep.subr.mxu0 0.0
    %1289 = vmatpush1.msra.mxu0 0.0
    %1290 = vmatprep.subr.mxu0 0.0
    %1291 = vmatpush1.msra.mxu0 0.0
    %1292 = vmatprep.subr.mxu0 0.0
    %1293 = vmatpush1.msra.mxu0 0.0
    %1294 = vmatprep.subr.mxu0 0.0
    %1295 = vmatpush1.msra.mxu0 0.0
    %1296 = vmatprep.subr.mxu0 0.0
    %1297 = vmatpush1.msra.mxu0 0.0
    %1298 = vmatprep.subr.mxu0 0.0
    %1299 = vmatpush1.msra.mxu0 0.0
    %1300 = vmatprep.subr.mxu0 0.0
    %1301 = vmatpush1.msra.mxu0 0.0
    %1302 = vmatprep.subr.mxu0 0.0
    %1303 = vmatpush1.msra.mxu0 0.0
    %1304 = vmatprep.subr.mxu0 0.0
    %1305 = vmatpush1.msra.mxu0 0.0
    %1306 = vmatprep.subr.mxu0 0.0
    %1307 = vmatpush1.msra.mxu0 0.0
    %1308 = vmatprep.subr.mxu0 0.0
    %1309 = vmatpush1.msra.mxu0 0.0
    %1310 = vmatprep.subr.mxu0 0.0
    %1311 = vmatpush1.msra.mxu0 0.0
    %1312 = vmatprep.mubr.f32.mxu0 0.0
    %1313 = vmatmul.mubr.f32.gmra.mrb[0].mxu0 %v1176
    %v1314 = vpop.f32.mrb[0].mxu0
    %v1315 = vadd.f32 0.0, %v1314
    %v1316 = vpop.f32.mrb[0].mxu0
    %1317 = vdwg.mxu0
    %v1318 = vadd.f32 %v506, %v1244
    %v1319 = vxor.u32 %v1318, 2147483648
    %v1320 = vmul.f32 %v1319, 1.442695
    %v1321 = vpow.pop %v1320
    %v1322 = vadd.f32 %v1321, 1.0
    %v1323 = vrcp.pop %v1322
    %v1324 = vmul.f32 1.0, %v1323
    %v1325 = vadd.f32 %v507, %v1246
    %v1326 = vxor.u32 %v1325, 2147483648
    %v1327 = vmul.f32 %v1326, 1.442695
    %v1328 = vpow.pop %v1327
    %v1329 = vadd.f32 %v1328, 1.0
    %v1330 = vrcp.pop %v1329
    %v1331 = vmul.f32 1.0, %v1330
    %v1332 = vadd.f32 %v1315, %v523
    %v1333 = vmul.f32 %v1324, %v1332
    %v1334 = vadd.f32 %v508, %v1333
    %v1335 = vtanh.pop %v1334
    %v1336 = vsub.f32 1.0, %v1331
    %v1337 = vmul.f32 %v1336, %v1335
    %v1338 = vmul.f32 %v1331, %v1176
    %v1339 = vadd.f32 %v1337, %v1338
    %1340 = vmatprep.subr.mxu0 %v177
    %1341 = vmatpush1.msra.mxu0 %v176
    %1342 = vmatprep.subr.mxu0 %v180
    %1343 = vmatpush1.msra.mxu0 %v179
    %1344 = vmatprep.subr.mxu0 %v183
    %1345 = vmatpush1.msra.mxu0 %v182
    %1346 = vmatprep.subr.mxu0 %v186
    %1347 = vmatpush1.msra.mxu0 %v185
    %1348 = vmatprep.subr.mxu0 %v189
    %1349 = vmatpush1.msra.mxu0 %v188
    %1350 = vmatprep.subr.mxu0 %v192
    %1351 = vmatpush1.msra.mxu0 %v191
    %1352 = vmatprep.subr.mxu0 %v195
    %1353 = vmatpush1.msra.mxu0 %v194
    %1354 = vmatprep.subr.mxu0 %v198
    %1355 = vmatpush1.msra.mxu0 %v197
    %1356 = vmatprep.subr.mxu0 %v201
    %1357 = vmatpush1.msra.mxu0 %v200
    %1358 = vmatprep.subr.mxu0 %v204
    %1359 = vmatpush1.msra.mxu0 %v203
    %1360 = vmatprep.subr.mxu0 %v207
    %1361 = vmatpush1.msra.mxu0 %v206
    %1362 = vmatprep.subr.mxu0 %v210
    %1363 = vmatpush1.msra.mxu0 %v209
    %1364 = vmatprep.subr.mxu0 %v213
    %1365 = vmatpush1.msra.mxu0 %v212
    %1366 = vmatprep.subr.mxu0 %v216
    %1367 = vmatpush1.msra.mxu0 %v215
    %1368 = vmatprep.subr.mxu0 %v219
    %1369 = vmatpush1.msra.mxu0 %v218
    %1370 = vmatprep.subr.mxu0 %v222
    %1371 = vmatpush1.msra.mxu0 %v221
    %1372 = vmatprep.subr.mxu0 0.0
    %1373 = vmatpush1.msra.mxu0 0.0
    %1374 = vmatprep.subr.mxu0 0.0
    %1375 = vmatpush1.msra.mxu0 0.0
    %1376 = vmatprep.subr.mxu0 0.0
    %1377 = vmatpush1.msra.mxu0 0.0
    %1378 = vmatprep.subr.mxu0 0.0
    %1379 = vmatpush1.msra.mxu0 0.0
    %1380 = vmatprep.subr.mxu0 0.0
    %1381 = vmatpush1.msra.mxu0 0.0
    %1382 = vmatprep.subr.mxu0 0.0
    %1383 = vmatpush1.msra.mxu0 0.0
    %1384 = vmatprep.subr.mxu0 0.0
    %1385 = vmatpush1.msra.mxu0 0.0
    %1386 = vmatprep.subr.mxu0 0.0
    %1387 = vmatpush1.msra.mxu0 0.0
    %1388 = vmatprep.subr.mxu0 0.0
    %1389 = vmatpush1.msra.mxu0 0.0
    %1390 = vmatprep.subr.mxu0 0.0
    %1391 = vmatpush1.msra.mxu0 0.0
    %1392 = vmatprep.subr.mxu0 0.0
    %1393 = vmatpush1.msra.mxu0 0.0
    %1394 = vmatprep.subr.mxu0 0.0
    %1395 = vmatpush1.msra.mxu0 0.0
    %1396 = vmatprep.subr.mxu0 0.0
    %1397 = vmatpush1.msra.mxu0 0.0
    %1398 = vmatprep.subr.mxu0 0.0
    %1399 = vmatpush1.msra.mxu0 0.0
    %1400 = vmatprep.subr.mxu0 0.0
    %1401 = vmatpush1.msra.mxu0 0.0
    %1402 = vmatprep.subr.mxu0 0.0
    %1403 = vmatpush1.msra.mxu0 0.0
    %1404 = vmatprep.mubr.f32.mxu0 0.0
    %1405 = vmatmul.mubr.f32.gmra.mrb[0].mxu0 %v1339
    %v1406 = vpop.f32.mrb[0].mxu0
    %v1407 = vadd.f32 0.0, %v1406
    %v1408 = vpop.f32.mrb[0].mxu0
    %v1409 = vadd.f32 0.0, %v1408
    %1410 = vdwg.mxu0
    %1411 = vmatprep.subr.mxu0 0.0
    %1412 = vmatpush1.msra.mxu0 %v178
    %1413 = vmatprep.subr.mxu0 0.0
    %1414 = vmatpush1.msra.mxu0 %v181
    %1415 = vmatprep.subr.mxu0 0.0
    %1416 = vmatpush1.msra.mxu0 %v184
    %1417 = vmatprep.subr.mxu0 0.0
    %1418 = vmatpush1.msra.mxu0 %v187
    %1419 = vmatprep.subr.mxu0 0.0
    %1420 = vmatpush1.msra.mxu0 %v190
    %1421 = vmatprep.subr.mxu0 0.0
    %1422 = vmatpush1.msra.mxu0 %v193
    %1423 = vmatprep.subr.mxu0 0.0
    %1424 = vmatpush1.msra.mxu0 %v196
    %1425 = vmatprep.subr.mxu0 0.0
    %1426 = vmatpush1.msra.mxu0 %v199
    %1427 = vmatprep.subr.mxu0 0.0
    %1428 = vmatpush1.msra.mxu0 %v202
    %1429 = vmatprep.subr.mxu0 0.0
    %1430 = vmatpush1.msra.mxu0 %v205
    %1431 = vmatprep.subr.mxu0 0.0
    %1432 = vmatpush1.msra.mxu0 %v208
    %1433 = vmatprep.subr.mxu0 0.0
    %1434 = vmatpush1.msra.mxu0 %v211
    %1435 = vmatprep.subr.mxu0 0.0
    %1436 = vmatpush1.msra.mxu0 %v214
    %1437 = vmatprep.subr.mxu0 0.0
    %1438 = vmatpush1.msra.mxu0 %v217
    %1439 = vmatprep.subr.mxu0 0.0
    %1440 = vmatpush1.msra.mxu0 %v220
    %1441 = vmatprep.subr.mxu0 0.0
    %1442 = vmatpush1.msra.mxu0 %v223
    %1443 = vmatprep.subr.mxu0 0.0
    %1444 = vmatpush1.msra.mxu0 0.0
    %1445 = vmatprep.subr.mxu0 0.0
    %1446 = vmatpush1.msra.mxu0 0.0
    %1447 = vmatprep.subr.mxu0 0.0
    %1448 = vmatpush1.msra.mxu0 0.0
    %1449 = vmatprep.subr.mxu0 0.0
    %1450 = vmatpush1.msra.mxu0 0.0
    %1451 = vmatprep.subr.mxu0 0.0
    %1452 = vmatpush1.msra.mxu0 0.0
    %1453 = vmatprep.subr.mxu0 0.0
    %1454 = vmatpush1.msra.mxu0 0.0
    %1455 = vmatprep.subr.mxu0 0.0
    %1456 = vmatpush1.msra.mxu0 0.0
    %1457 = vmatprep.subr.mxu0 0.0
    %1458 = vmatpush1.msra.mxu0 0.0
    %1459 = vmatprep.subr.mxu0 0.0
    %1460 = vmatpush1.msra.mxu0 0.0
    %1461 = vmatprep.subr.mxu0 0.0
    %1462 = vmatpush1.msra.mxu0 0.0
    %1463 = vmatprep.subr.mxu0 0.0
    %1464 = vmatpush1.msra.mxu0 0.0
    %1465 = vmatprep.subr.mxu0 0.0
    %1466 = vmatpush1.msra.mxu0 0.0
    %1467 = vmatprep.subr.mxu0 0.0
    %1468 = vmatpush1.msra.mxu0 0.0
    %1469 = vmatprep.subr.mxu0 0.0
    %1470 = vmatpush1.msra.mxu0 0.0
    %1471 = vmatprep.subr.mxu0 0.0
    %1472 = vmatpush1.msra.mxu0 0.0
    %1473 = vmatprep.subr.mxu0 0.0
    %1474 = vmatpush1.msra.mxu0 0.0
    %1475 = vmatprep.mubr.f32.mxu0 0.0
    %1476 = vmatmul.mubr.f32.gmra.mrb[0].mxu0 %v1339
    %v1477 = vpop.f32.mrb[0].mxu0
    %v1478 = vadd.f32 0.0, %v1477
    %v1479 = vpop.f32.mrb[0].mxu0
    %1480 = vdwg.mxu0
    %v1481 = vadd.f32 %v509, %v1407
    %v1482 = vxor.u32 %v1481, 2147483648
    %v1483 = vmul.f32 %v1482, 1.442695
    %v1484 = vpow.pop %v1483
    %v1485 = vadd.f32 %v1484, 1.0
    %v1486 = vrcp.pop %v1485
    %v1487 = vmul.f32 1.0, %v1486
    %v1488 = vadd.f32 %v510, %v1409
    %v1489 = vxor.u32 %v1488, 2147483648
    %v1490 = vmul.f32 %v1489, 1.442695
    %v1491 = vpow.pop %v1490
    %v1492 = vadd.f32 %v1491, 1.0
    %v1493 = vrcp.pop %v1492
    %v1494 = vmul.f32 1.0, %v1493
    %v1495 = vadd.f32 %v1478, %v523
    %v1496 = vmul.f32 %v1487, %v1495
    %v1497 = vadd.f32 %v511, %v1496
    %v1498 = vtanh.pop %v1497
    %v1499 = vsub.f32 1.0, %v1494
    %v1500 = vmul.f32 %v1499, %v1498
    %v1501 = vmul.f32 %v1494, %v1339
    %v1502 = vadd.f32 %v1500, %v1501
    %1503 = vmatprep.subr.mxu0 %v177
    %1504 = vmatpush1.msra.mxu0 %v176
    %1505 = vmatprep.subr.mxu0 %v180
    %1506 = vmatpush1.msra.mxu0 %v179
    %1507 = vmatprep.subr.mxu0 %v183
    %1508 = vmatpush1.msra.mxu0 %v182
    %1509 = vmatprep.subr.mxu0 %v186
    %1510 = vmatpush1.msra.mxu0 %v185
    %1511 = vmatprep.subr.mxu0 %v189
    %1512 = vmatpush1.msra.mxu0 %v188
    %1513 = vmatprep.subr.mxu0 %v192
    %1514 = vmatpush1.msra.mxu0 %v191
    %1515 = vmatprep.subr.mxu0 %v195
    %1516 = vmatpush1.msra.mxu0 %v194
    %1517 = vmatprep.subr.mxu0 %v198
    %1518 = vmatpush1.msra.mxu0 %v197
    %1519 = vmatprep.subr.mxu0 %v201
    %1520 = vmatpush1.msra.mxu0 %v200
    %1521 = vmatprep.subr.mxu0 %v204
    %1522 = vmatpush1.msra.mxu0 %v203
    %1523 = vmatprep.subr.mxu0 %v207
    %1524 = vmatpush1.msra.mxu0 %v206
    %1525 = vmatprep.subr.mxu0 %v210
    %1526 = vmatpush1.msra.mxu0 %v209
    %1527 = vmatprep.subr.mxu0 %v213
    %1528 = vmatpush1.msra.mxu0 %v212
    %1529 = vmatprep.subr.mxu0 %v216
    %1530 = vmatpush1.msra.mxu0 %v215
    %1531 = vmatprep.subr.mxu0 %v219
    %1532 = vmatpush1.msra.mxu0 %v218
    %1533 = vmatprep.subr.mxu0 %v222
    %1534 = vmatpush1.msra.mxu0 %v221
    %1535 = vmatprep.subr.mxu0 0.0
    %1536 = vmatpush1.msra.mxu0 0.0
    %1537 = vmatprep.subr.mxu0 0.0
    %1538 = vmatpush1.msra.mxu0 0.0
    %1539 = vmatprep.subr.mxu0 0.0
    %1540 = vmatpush1.msra.mxu0 0.0
    %1541 = vmatprep.subr.mxu0 0.0
    %1542 = vmatpush1.msra.mxu0 0.0
    %1543 = vmatprep.subr.mxu0 0.0
    %1544 = vmatpush1.msra.mxu0 0.0
    %1545 = vmatprep.subr.mxu0 0.0
    %1546 = vmatpush1.msra.mxu0 0.0
    %1547 = vmatprep.subr.mxu0 0.0
    %1548 = vmatpush1.msra.mxu0 0.0
    %1549 = vmatprep.subr.mxu0 0.0
    %1550 = vmatpush1.msra.mxu0 0.0
    %1551 = vmatprep.subr.mxu0 0.0
    %1552 = vmatpush1.msra.mxu0 0.0
    %1553 = vmatprep.subr.mxu0 0.0
    %1554 = vmatpush1.msra.mxu0 0.0
    %1555 = vmatprep.subr.mxu0 0.0
    %1556 = vmatpush1.msra.mxu0 0.0
    %1557 = vmatprep.subr.mxu0 0.0
    %1558 = vmatpush1.msra.mxu0 0.0
    %1559 = vmatprep.subr.mxu0 0.0
    %1560 = vmatpush1.msra.mxu0 0.0
    %1561 = vmatprep.subr.mxu0 0.0
    %1562 = vmatpush1.msra.mxu0 0.0
    %1563 = vmatprep.subr.mxu0 0.0
    %1564 = vmatpush1.msra.mxu0 0.0
    %1565 = vmatprep.subr.mxu0 0.0
    %1566 = vmatpush1.msra.mxu0 0.0
    %1567 = vmatprep.mubr.f32.mxu0 0.0
    %1568 = vmatmul.mubr.f32.gmra.mrb[0].mxu0 %v1502
    %v1569 = vpop.f32.mrb[0].mxu0
    %v1570 = vadd.f32 0.0, %v1569
    %v1571 = vpop.f32.mrb[0].mxu0
    %v1572 = vadd.f32 0.0, %v1571
    %1573 = vdwg.mxu0
    %1574 = vmatprep.subr.mxu0 0.0
    %1575 = vmatpush1.msra.mxu0 %v178
    %1576 = vmatprep.subr.mxu0 0.0
    %1577 = vmatpush1.msra.mxu0 %v181
    %1578 = vmatprep.subr.mxu0 0.0
    %1579 = vmatpush1.msra.mxu0 %v184
    %1580 = vmatprep.subr.mxu0 0.0
    %1581 = vmatpush1.msra.mxu0 %v187
    %1582 = vmatprep.subr.mxu0 0.0
    %1583 = vmatpush1.msra.mxu0 %v190
    %1584 = vmatprep.subr.mxu0 0.0
    %1585 = vmatpush1.msra.mxu0 %v193
    %1586 = vmatprep.subr.mxu0 0.0
    %1587 = vmatpush1.msra.mxu0 %v196
    %1588 = vmatprep.subr.mxu0 0.0
    %1589 = vmatpush1.msra.mxu0 %v199
    %1590 = vmatprep.subr.mxu0 0.0
    %1591 = vmatpush1.msra.mxu0 %v202
    %1592 = vmatprep.subr.mxu0 0.0
    %1593 = vmatpush1.msra.mxu0 %v205
    %1594 = vmatprep.subr.mxu0 0.0
    %1595 = vmatpush1.msra.mxu0 %v208
    %1596 = vmatprep.subr.mxu0 0.0
    %1597 = vmatpush1.msra.mxu0 %v211
    %1598 = vmatprep.subr.mxu0 0.0
    %1599 = vmatpush1.msra.mxu0 %v214
    %1600 = vmatprep.subr.mxu0 0.0
    %1601 = vmatpush1.msra.mxu0 %v217
    %1602 = vmatprep.subr.mxu0 0.0
    %1603 = vmatpush1.msra.mxu0 %v220
    %1604 = vmatprep.subr.mxu0 0.0
    %1605 = vmatpush1.msra.mxu0 %v223
    %1606 = vmatprep.subr.mxu0 0.0
    %1607 = vmatpush1.msra.mxu0 0.0
    %1608 = vmatprep.subr.mxu0 0.0
    %1609 = vmatpush1.msra.mxu0 0.0
    %1610 = vmatprep.subr.mxu0 0.0
    %1611 = vmatpush1.msra.mxu0 0.0
    %1612 = vmatprep.subr.mxu0 0.0
    %1613 = vmatpush1.msra.mxu0 0.0
    %1614 = vmatprep.subr.mxu0 0.0
    %1615 = vmatpush1.msra.mxu0 0.0
    %1616 = vmatprep.subr.mxu0 0.0
    %1617 = vmatpush1.msra.mxu0 0.0
    %1618 = vmatprep.subr.mxu0 0.0
    %1619 = vmatpush1.msra.mxu0 0.0
    %1620 = vmatprep.subr.mxu0 0.0
    %1621 = vmatpush1.msra.mxu0 0.0
    %1622 = vmatprep.subr.mxu0 0.0
    %1623 = vmatpush1.msra.mxu0 0.0
    %1624 = vmatprep.subr.mxu0 0.0
    %1625 = vmatpush1.msra.mxu0 0.0
    %1626 = vmatprep.subr.mxu0 0.0
    %1627 = vmatpush1.msra.mxu0 0.0
    %1628 = vmatprep.subr.mxu0 0.0
    %1629 = vmatpush1.msra.mxu0 0.0
    %1630 = vmatprep.subr.mxu0 0.0
    %1631 = vmatpush1.msra.mxu0 0.0
    %1632 = vmatprep.subr.mxu0 0.0
    %1633 = vmatpush1.msra.mxu0 0.0
    %1634 = vmatprep.subr.mxu0 0.0
    %1635 = vmatpush1.msra.mxu0 0.0
    %1636 = vmatprep.subr.mxu0 0.0
    %1637 = vmatpush1.msra.mxu0 0.0
    %1638 = vmatprep.mubr.f32.mxu0 0.0
    %1639 = vmatmul.mubr.f32.gmra.mrb[0].mxu0 %v1502
    %v1640 = vpop.f32.mrb[0].mxu0
    %v1641 = vadd.f32 0.0, %v1640
    %v1642 = vpop.f32.mrb[0].mxu0
    %1643 = vdwg.mxu0
    %v1644 = vadd.f32 %v512, %v1570
    %v1645 = vxor.u32 %v1644, 2147483648
    %v1646 = vmul.f32 %v1645, 1.442695
    %v1647 = vpow.pop %v1646
    %v1648 = vadd.f32 %v1647, 1.0
    %v1649 = vrcp.pop %v1648
    %v1650 = vmul.f32 1.0, %v1649
    %v1651 = vadd.f32 %v513, %v1572
    %v1652 = vxor.u32 %v1651, 2147483648
    %v1653 = vmul.f32 %v1652, 1.442695
    %v1654 = vpow.pop %v1653
    %v1655 = vadd.f32 %v1654, 1.0
    %v1656 = vrcp.pop %v1655
    %v1657 = vmul.f32 1.0, %v1656
    %v1658 = vadd.f32 %v1641, %v523
    %v1659 = vmul.f32 %v1650, %v1658
    %v1660 = vadd.f32 %v514, %v1659
    %v1661 = vtanh.pop %v1660
    %v1662 = vsub.f32 1.0, %v1657
    %v1663 = vmul.f32 %v1662, %v1661
    %v1664 = vmul.f32 %v1657, %v1502
    %v1665 = vadd.f32 %v1663, %v1664
    %1666 = vmatprep.subr.mxu0 %v177
    %1667 = vmatpush1.msra.mxu0 %v176
    %1668 = vmatprep.subr.mxu0 %v180
    %1669 = vmatpush1.msra.mxu0 %v179
    %1670 = vmatprep.subr.mxu0 %v183
    %1671 = vmatpush1.msra.mxu0 %v182
    %1672 = vmatprep.subr.mxu0 %v186
    %1673 = vmatpush1.msra.mxu0 %v185
    %1674 = vmatprep.subr.mxu0 %v189
    %1675 = vmatpush1.msra.mxu0 %v188
    %1676 = vmatprep.subr.mxu0 %v192
    %1677 = vmatpush1.msra.mxu0 %v191
    %1678 = vmatprep.subr.mxu0 %v195
    %1679 = vmatpush1.msra.mxu0 %v194
    %1680 = vmatprep.subr.mxu0 %v198
    %1681 = vmatpush1.msra.mxu0 %v197
    %1682 = vmatprep.subr.mxu0 %v201
    %1683 = vmatpush1.msra.mxu0 %v200
    %1684 = vmatprep.subr.mxu0 %v204
    %1685 = vmatpush1.msra.mxu0 %v203
    %1686 = vmatprep.subr.mxu0 %v207
    %1687 = vmatpush1.msra.mxu0 %v206
    %1688 = vmatprep.subr.mxu0 %v210
    %1689 = vmatpush1.msra.mxu0 %v209
    %1690 = vmatprep.subr.mxu0 %v213
    %1691 = vmatpush1.msra.mxu0 %v212
    %1692 = vmatprep.subr.mxu0 %v216
    %1693 = vmatpush1.msra.mxu0 %v215
    %1694 = vmatprep.subr.mxu0 %v219
    %1695 = vmatpush1.msra.mxu0 %v218
    %1696 = vmatprep.subr.mxu0 %v222
    %1697 = vmatpush1.msra.mxu0 %v221
    %1698 = vmatprep.subr.mxu0 0.0
    %1699 = vmatpush1.msra.mxu0 0.0
    %1700 = vmatprep.subr.mxu0 0.0
    %1701 = vmatpush1.msra.mxu0 0.0
    %1702 = vmatprep.subr.mxu0 0.0
    %1703 = vmatpush1.msra.mxu0 0.0
    %1704 = vmatprep.subr.mxu0 0.0
    %1705 = vmatpush1.msra.mxu0 0.0
    %1706 = vmatprep.subr.mxu0 0.0
    %1707 = vmatpush1.msra.mxu0 0.0
    %1708 = vmatprep.subr.mxu0 0.0
    %1709 = vmatpush1.msra.mxu0 0.0
    %1710 = vmatprep.subr.mxu0 0.0
    %1711 = vmatpush1.msra.mxu0 0.0
    %1712 = vmatprep.subr.mxu0 0.0
    %1713 = vmatpush1.msra.mxu0 0.0
    %1714 = vmatprep.subr.mxu0 0.0
    %1715 = vmatpush1.msra.mxu0 0.0
    %1716 = vmatprep.subr.mxu0 0.0
    %1717 = vmatpush1.msra.mxu0 0.0
    %1718 = vmatprep.subr.mxu0 0.0
    %1719 = vmatpush1.msra.mxu0 0.0
    %1720 = vmatprep.subr.mxu0 0.0
    %1721 = vmatpush1.msra.mxu0 0.0
    %1722 = vmatprep.subr.mxu0 0.0
    %1723 = vmatpush1.msra.mxu0 0.0
    %1724 = vmatprep.subr.mxu0 0.0
    %1725 = vmatpush1.msra.mxu0 0.0
    %1726 = vmatprep.subr.mxu0 0.0
    %1727 = vmatpush1.msra.mxu0 0.0
    %1728 = vmatprep.subr.mxu0 0.0
    %1729 = vmatpush1.msra.mxu0 0.0
    %1730 = vmatprep.mubr.f32.mxu0 0.0
    %1731 = vmatmul.mubr.f32.gmra.mrb[0].mxu0 %v1665
    %v1732 = vpop.f32.mrb[0].mxu0
    %v1733 = vadd.f32 0.0, %v1732
    %v1734 = vpop.f32.mrb[0].mxu0
    %v1735 = vadd.f32 0.0, %v1734
    %1736 = vdwg.mxu0
    %1737 = vmatprep.subr.mxu0 0.0
    %1738 = vmatpush1.msra.mxu0 %v178
    %1739 = vmatprep.subr.mxu0 0.0
    %1740 = vmatpush1.msra.mxu0 %v181
    %1741 = vmatprep.subr.mxu0 0.0
    %1742 = vmatpush1.msra.mxu0 %v184
    %1743 = vmatprep.subr.mxu0 0.0
    %1744 = vmatpush1.msra.mxu0 %v187
    %1745 = vmatprep.subr.mxu0 0.0
    %1746 = vmatpush1.msra.mxu0 %v190
    %1747 = vmatprep.subr.mxu0 0.0
    %1748 = vmatpush1.msra.mxu0 %v193
    %1749 = vmatprep.subr.mxu0 0.0
    %1750 = vmatpush1.msra.mxu0 %v196
    %1751 = vmatprep.subr.mxu0 0.0
    %1752 = vmatpush1.msra.mxu0 %v199
    %1753 = vmatprep.subr.mxu0 0.0
    %1754 = vmatpush1.msra.mxu0 %v202
    %1755 = vmatprep.subr.mxu0 0.0
    %1756 = vmatpush1.msra.mxu0 %v205
    %1757 = vmatprep.subr.mxu0 0.0
    %1758 = vmatpush1.msra.mxu0 %v208
    %1759 = vmatprep.subr.mxu0 0.0
    %1760 = vmatpush1.msra.mxu0 %v211
    %1761 = vmatprep.subr.mxu0 0.0
    %1762 = vmatpush1.msra.mxu0 %v214
    %1763 = vmatprep.subr.mxu0 0.0
    %1764 = vmatpush1.msra.mxu0 %v217
    %1765 = vmatprep.subr.mxu0 0.0
    %1766 = vmatpush1.msra.mxu0 %v220
    %1767 = vmatprep.subr.mxu0 0.0
    %1768 = vmatpush1.msra.mxu0 %v223
    %1769 = vmatprep.subr.mxu0 0.0
    %1770 = vmatpush1.msra.mxu0 0.0
    %1771 = vmatprep.subr.mxu0 0.0
    %1772 = vmatpush1.msra.mxu0 0.0
    %1773 = vmatprep.subr.mxu0 0.0
    %1774 = vmatpush1.msra.mxu0 0.0
    %1775 = vmatprep.subr.mxu0 0.0
    %1776 = vmatpush1.msra.mxu0 0.0
    %1777 = vmatprep.subr.mxu0 0.0
    %1778 = vmatpush1.msra.mxu0 0.0
    %1779 = vmatprep.subr.mxu0 0.0
    %1780 = vmatpush1.msra.mxu0 0.0
    %1781 = vmatprep.subr.mxu0 0.0
    %1782 = vmatpush1.msra.mxu0 0.0
    %1783 = vmatprep.subr.mxu0 0.0
    %1784 = vmatpush1.msra.mxu0 0.0
    %1785 = vmatprep.subr.mxu0 0.0
    %1786 = vmatpush1.msra.mxu0 0.0
    %1787 = vmatprep.subr.mxu0 0.0
    %1788 = vmatpush1.msra.mxu0 0.0
    %1789 = vmatprep.subr.mxu0 0.0
    %1790 = vmatpush1.msra.mxu0 0.0
    %1791 = vmatprep.subr.mxu0 0.0
    %1792 = vmatpush1.msra.mxu0 0.0
    %1793 = vmatprep.subr.mxu0 0.0
    %1794 = vmatpush1.msra.mxu0 0.0
    %1795 = vmatprep.subr.mxu0 0.0
    %1796 = vmatpush1.msra.mxu0 0.0
    %1797 = vmatprep.subr.mxu0 0.0
    %1798 = vmatpush1.msra.mxu0 0.0
    %1799 = vmatprep.subr.mxu0 0.0
    %1800 = vmatpush1.msra.mxu0 0.0
    %1801 = vmatprep.mubr.f32.mxu0 0.0
    %1802 = vmatmul.mubr.f32.gmra.mrb[0].mxu0 %v1665
    %v1803 = vpop.f32.mrb[0].mxu0
    %v1804 = vadd.f32 0.0, %v1803
    %v1805 = vpop.f32.mrb[0].mxu0
    %1806 = vdwg.mxu0
    %v1807 = vadd.f32 %v515, %v1733
    %v1808 = vxor.u32 %v1807, 2147483648
    %v1809 = vmul.f32 %v1808, 1.442695
    %v1810 = vpow.pop %v1809
    %v1811 = vadd.f32 %v1810, 1.0
    %v1812 = vrcp.pop %v1811
    %v1813 = vmul.f32 1.0, %v1812
    %v1814 = vadd.f32 %v516, %v1735
    %v1815 = vxor.u32 %v1814, 2147483648
    %v1816 = vmul.f32 %v1815, 1.442695
    %v1817 = vpow.pop %v1816
    %v1818 = vadd.f32 %v1817, 1.0
    %v1819 = vrcp.pop %v1818
    %v1820 = vmul.f32 1.0, %v1819
    %v1821 = vadd.f32 %v1804, %v523
    %v1822 = vmul.f32 %v1813, %v1821
    %v1823 = vadd.f32 %v517, %v1822
    %v1824 = vtanh.pop %v1823
    %v1825 = vsub.f32 1.0, %v1820
    %v1826 = vmul.f32 %v1825, %v1824
    %v1827 = vmul.f32 %v1820, %v1665
    %v1828 = vadd.f32 %v1826, %v1827
    %v1829 = vsel %vm161, %v687, %v1828
    %v1830 = vsel %vm161, %v850, %v1665
    %v1831 = vsel %vm161, %v1013, %v1502
    %v1832 = vsel %vm161, %v1176, %v1339
    %v1833 = vsel %vm161, %v1339, %v1176
    %v1834 = vsel %vm161, %v1502, %v1013
    %v1835 = vsel %vm161, %v1665, %v850
    %v1836 = vsel %vm161, %v1828, %v687
    %v1837 = vld [vmem:[#allocation4] sm:$0xff]
    %v1838 = vld [vmem:[#allocation4 + $0x8] sm:$0xff]
    %v1839 = vld [vmem:[#allocation4 + $0x10] sm:$0xff]
    %v1840 = vld [vmem:[#allocation4 + $0x18] sm:$0xff]
    %v1841 = vld [vmem:[#allocation4 + $0x20] sm:$0xff]
    %v1842 = vld [vmem:[#allocation4 + $0x28] sm:$0xff]
    %v1843 = vld [vmem:[#allocation4 + $0x30] sm:$0xff]
    %v1844 = vld [vmem:[#allocation4 + $0x38] sm:$0xff]
    %v1845 = vld [vmem:[#allocation4 + $0x40] sm:$0xff]
    %v1846 = vld [vmem:[#allocation4 + $0x48] sm:$0xff]
    %v1847 = vld [vmem:[#allocation4 + $0x50] sm:$0xff]
    %v1848 = vld [vmem:[#allocation4 + $0x58] sm:$0xff]
    %v1849 = vld [vmem:[#allocation4 + $0x60] sm:$0xff]
    %v1850 = vld [vmem:[#allocation4 + $0x68] sm:$0xff]
    %v1851 = vld [vmem:[#allocation4 + $0x70] sm:$0xff]
    %v1852 = vld [vmem:[#allocation4 + $0x78] sm:$0xff]
    %v1853 = vld [vmem:[#allocation4 + $0x80] sm:$0xff]
    %v1854 = vld [vmem:[#allocation4 + $0x88] sm:$0xff]
    %v1855 = vld [vmem:[#allocation4 + $0x90] sm:$0xff]
    %v1856 = vld [vmem:[#allocation4 + $0x98] sm:$0xff]
    %v1857 = vld [vmem:[#allocation4 + $0xa0] sm:$0xff]
    %v1858 = vld [vmem:[#allocation4 + $0xa8] sm:$0xff]
    %v1859 = vld [vmem:[#allocation4 + $0xb0] sm:$0xff]
    %v1860 = vld [vmem:[#allocation4 + $0xb8] sm:$0xff]
    %v1861 = vld [vmem:[#allocation4 + $0xc0] sm:$0xff]
    %v1862 = vld [vmem:[#allocation4 + $0xc8] sm:$0xff]
    %v1863 = vld [vmem:[#allocation4 + $0xd0] sm:$0xff]
    %v1864 = vld [vmem:[#allocation4 + $0xd8] sm:$0xff]
    %v1865 = vld [vmem:[#allocation4 + $0xe0] sm:$0xff]
    %v1866 = vld [vmem:[#allocation4 + $0xe8] sm:$0xff]
    %v1867 = vld [vmem:[#allocation4 + $0xf0] sm:$0xff]
    %v1868 = vld [vmem:[#allocation4 + $0xf8] sm:$0xff]
    %v1869 = vld [vmem:[#allocation4 + $0x100] sm:$0xff]
    %v1870 = vld [vmem:[#allocation4 + $0x108] sm:$0xff]
    %v1871 = vld [vmem:[#allocation4 + $0x110] sm:$0xff]
    %v1872 = vld [vmem:[#allocation4 + $0x118] sm:$0xff]
    %v1873 = vld [vmem:[#allocation4 + $0x120] sm:$0xff]
    %v1874 = vld [vmem:[#allocation4 + $0x128] sm:$0xff]
    %v1875 = vld [vmem:[#allocation4 + $0x130] sm:$0xff]
    %v1876 = vld [vmem:[#allocation4 + $0x138] sm:$0xff]
    %v1877 = vld [vmem:[#allocation4 + $0x140] sm:$0xff]
    %v1878 = vld [vmem:[#allocation4 + $0x148] sm:$0xff]
    %v1879 = vld [vmem:[#allocation4 + $0x150] sm:$0xff]
    %v1880 = vld [vmem:[#allocation4 + $0x158] sm:$0xff]
    %v1881 = vld [vmem:[#allocation4 + $0x160] sm:$0xff]
    %v1882 = vld [vmem:[#allocation4 + $0x168] sm:$0xff]
    %v1883 = vld [vmem:[#allocation4 + $0x170] sm:$0xff]
    %v1884 = vld [vmem:[#allocation4 + $0x178] sm:$0xff]
    %v1885 = vld [vmem:[#allocation6] sm:$0xff]
    %v1886 = vld [vmem:[#allocation6 + $0x8] sm:$0xff]
    %v1887 = vld [vmem:[#allocation6 + $0x10] sm:$0xff]
    %v1888 = vld [vmem:[#allocation6 + $0x18] sm:$0xff]
    %v1889 = vld [vmem:[#allocation6 + $0x20] sm:$0xff]
    %v1890 = vld [vmem:[#allocation6 + $0x28] sm:$0xff]
    %v1891 = vld [vmem:[#allocation6 + $0x30] sm:$0xff]
    %v1892 = vld [vmem:[#allocation6 + $0x38] sm:$0xff]
    %v1893 = vld [vmem:[#allocation6 + $0x40] sm:$0xff]
    %v1894 = vld [vmem:[#allocation6 + $0x48] sm:$0xff]
    %v1895 = vld [vmem:[#allocation6 + $0x50] sm:$0xff]
    %v1896 = vld [vmem:[#allocation6 + $0x58] sm:$0xff]
    %v1897 = vld [vmem:[#allocation6 + $0x60] sm:$0xff]
    %v1898 = vld [vmem:[#allocation6 + $0x68] sm:$0xff]
    %v1899 = vld [vmem:[#allocation6 + $0x70] sm:$0xff]
    %v1900 = vld [vmem:[#allocation6 + $0x78] sm:$0xff]
    %v1901 = vld [vmem:[#allocation6 + $0x80] sm:$0xff]
    %v1902 = vld [vmem:[#allocation6 + $0x88] sm:$0xff]
    %v1903 = vld [vmem:[#allocation6 + $0x90] sm:$0xff]
    %v1904 = vld [vmem:[#allocation6 + $0x98] sm:$0xff]
    %v1905 = vld [vmem:[#allocation6 + $0xa0] sm:$0xff]
    %v1906 = vld [vmem:[#allocation6 + $0xa8] sm:$0xff]
    %v1907 = vld [vmem:[#allocation6 + $0xb0] sm:$0xff]
    %v1908 = vld [vmem:[#allocation6 + $0xb8] sm:$0xff]
    %v1909 = vld [vmem:[#allocation6 + $0xc0] sm:$0xff]
    %v1910 = vld [vmem:[#allocation6 + $0xc8] sm:$0xff]
    %v1911 = vld [vmem:[#allocation6 + $0xd0] sm:$0xff]
    %v1912 = vld [vmem:[#allocation6 + $0xd8] sm:$0xff]
    %v1913 = vld [vmem:[#allocation6 + $0xe0] sm:$0xff]
    %v1914 = vld [vmem:[#allocation6 + $0xe8] sm:$0xff]
    %v1915 = vld [vmem:[#allocation6 + $0xf0] sm:$0xff]
    %v1916 = vld [vmem:[#allocation6 + $0xf8] sm:$0xff]
    %v1917 = vld [vmem:[#allocation6 + $0x100] sm:$0xff]
    %v1918 = vld [vmem:[#allocation6 + $0x108] sm:$0xff]
    %v1919 = vld [vmem:[#allocation6 + $0x110] sm:$0xff]
    %v1920 = vld [vmem:[#allocation6 + $0x118] sm:$0xff]
    %v1921 = vld [vmem:[#allocation6 + $0x120] sm:$0xff]
    %v1922 = vld [vmem:[#allocation6 + $0x128] sm:$0xff]
    %v1923 = vld [vmem:[#allocation6 + $0x130] sm:$0xff]
    %v1924 = vld [vmem:[#allocation6 + $0x138] sm:$0xff]
    %v1925 = vld [vmem:[#allocation6 + $0x140] sm:$0xff]
    %v1926 = vld [vmem:[#allocation6 + $0x148] sm:$0xff]
    %v1927 = vld [vmem:[#allocation6 + $0x150] sm:$0xff]
    %v1928 = vld [vmem:[#allocation6 + $0x158] sm:$0xff]
    %v1929 = vld [vmem:[#allocation6 + $0x160] sm:$0xff]
    %v1930 = vld [vmem:[#allocation6 + $0x168] sm:$0xff]
    %v1931 = vld [vmem:[#allocation6 + $0x170] sm:$0xff]
    %v1932 = vld [vmem:[#allocation6 + $0x178] sm:$0xff]
    %v1933 = vld [vmem:[%s7] sm:$0x7]
    %v1935 = vlaneseq
    %v1936 = vshrl.u32 %v1935, 7
    %v1937 = vsub.s32 0, %v1936
    %v1938 = vrot.slane %v1933, %v1937
    %v1939 = vlaneseq
    %v1940 = vshrl.u32 %v1939, 7
    %v1941 = vsub.s32 1, %v1940
    %v1942 = vrot.slane %v1933, %v1941
    %v1943 = vlaneseq
    %v1944 = vshrl.u32 %v1943, 7
    %v1945 = vsub.s32 2, %v1944
    %v1946 = vrot.slane %v1933, %v1945
    %1950 = vmatprep.subr.mxu0 %v1838
    %1951 = vmatpush1.msra.mxu0 %v1837
    %1952 = vmatprep.subr.mxu0 %v1841
    %1953 = vmatpush1.msra.mxu0 %v1840
    %1954 = vmatprep.subr.mxu0 %v1844
    %1955 = vmatpush1.msra.mxu0 %v1843
    %1956 = vmatprep.subr.mxu0 %v1847
    %1957 = vmatpush1.msra.mxu0 %v1846
    %1958 = vmatprep.subr.mxu0 %v1850
    %1959 = vmatpush1.msra.mxu0 %v1849
    %1960 = vmatprep.subr.mxu0 %v1853
    %1961 = vmatpush1.msra.mxu0 %v1852
    %1962 = vmatprep.subr.mxu0 %v1856
    %1963 = vmatpush1.msra.mxu0 %v1855
    %1964 = vmatprep.subr.mxu0 %v1859
    %1965 = vmatpush1.msra.mxu0 %v1858
    %1966 = vmatprep.subr.mxu0 %v1862
    %1967 = vmatpush1.msra.mxu0 %v1861
    %1968 = vmatprep.subr.mxu0 %v1865
    %1969 = vmatpush1.msra.mxu0 %v1864
    %1970 = vmatprep.subr.mxu0 %v1868
    %1971 = vmatpush1.msra.mxu0 %v1867
    %1972 = vmatprep.subr.mxu0 %v1871
    %1973 = vmatpush1.msra.mxu0 %v1870
    %1974 = vmatprep.subr.mxu0 %v1874
    %1975 = vmatpush1.msra.mxu0 %v1873
    %1976 = vmatprep.subr.mxu0 %v1877
    %1977 = vmatpush1.msra.mxu0 %v1876
    %1978 = vmatprep.subr.mxu0 %v1880
    %1979 = vmatpush1.msra.mxu0 %v1879
    %1980 = vmatprep.subr.mxu0 %v1883
    %1981 = vmatpush1.msra.mxu0 %v1882
    %1982 = vmatprep.subr.mxu0 0.0
    %1983 = vmatpush1.msra.mxu0 0.0
    %1984 = vmatprep.subr.mxu0 0.0
    %1985 = vmatpush1.msra.mxu0 0.0
    %1986 = vmatprep.subr.mxu0 0.0
    %1987 = vmatpush1.msra.mxu0 0.0
    %1988 = vmatprep.subr.mxu0 0.0
    %1989 = vmatpush1.msra.mxu0 0.0
    %1990 = vmatprep.subr.mxu0 0.0
    %1991 = vmatpush1.msra.mxu0 0.0
    %1992 = vmatprep.subr.mxu0 0.0
    %1993 = vmatpush1.msra.mxu0 0.0
    %1994 = vmatprep.subr.mxu0 0.0
    %1995 = vmatpush1.msra.mxu0 0.0
    %1996 = vmatprep.subr.mxu0 0.0
    %1997 = vmatpush1.msra.mxu0 0.0
    %1998 = vmatprep.subr.mxu0 0.0
    %1999 = vmatpush1.msra.mxu0 0.0
    %2000 = vmatprep.subr.mxu0 0.0
    %2001 = vmatpush1.msra.mxu0 0.0
    %2002 = vmatprep.subr.mxu0 0.0
    %2003 = vmatpush1.msra.mxu0 0.0
    %2004 = vmatprep.subr.mxu0 0.0
    %2005 = vmatpush1.msra.mxu0 0.0
    %2006 = vmatprep.subr.mxu0 0.0
    %2007 = vmatpush1.msra.mxu0 0.0
    %2008 = vmatprep.subr.mxu0 0.0
    %2009 = vmatpush1.msra.mxu0 0.0
    %2010 = vmatprep.subr.mxu0 0.0
    %2011 = vmatpush1.msra.mxu0 0.0
    %2012 = vmatprep.subr.mxu0 0.0
    %2013 = vmatpush1.msra.mxu0 0.0
    %2014 = vmatprep.mubr.f32.mxu0 0.0
    %2015 = vmatmul.mubr.f32.gmra.mrb[0].mxu0 %v1829
    %v2016 = vpop.f32.mrb[0].mxu0
    %v2017 = vadd.f32 %v1938, %v2016
    %v2018 = vpop.f32.mrb[0].mxu0
    %v2019 = vadd.f32 %v1942, %v2018
    %2020 = vmatprep.mubr.f32.mxu0 0.0
    %2021 = vmatmul.mubr.f32.gmra.mrb[0].mxu0 %v1830
    %v2022 = vpop.f32.mrb[0].mxu0
    %v2023 = vadd.f32 %v1938, %v2022
    %v2024 = vpop.f32.mrb[0].mxu0
    %v2025 = vadd.f32 %v1942, %v2024
    %2026 = vmatprep.mubr.f32.mxu0 0.0
    %2027 = vmatmul.mubr.f32.gmra.mrb[0].mxu0 %v1831
    %v2028 = vpop.f32.mrb[0].mxu0
    %v2029 = vadd.f32 %v1938, %v2028
    %v2030 = vpop.f32.mrb[0].mxu0
    %v2031 = vadd.f32 %v1942, %v2030
    %2032 = vmatprep.mubr.f32.mxu0 0.0
    %2033 = vmatmul.mubr.f32.gmra.mrb[0].mxu0 %v1832
    %v2034 = vpop.f32.mrb[0].mxu0
    %v2035 = vadd.f32 %v1938, %v2034
    %v2036 = vpop.f32.mrb[0].mxu0
    %v2037 = vadd.f32 %v1942, %v2036
    %2038 = vmatprep.mubr.f32.mxu0 0.0
    %2039 = vmatmul.mubr.f32.gmra.mrb[0].mxu0 %v1833
    %v2040 = vpop.f32.mrb[0].mxu0
    %v2041 = vadd.f32 %v1938, %v2040
    %v2042 = vpop.f32.mrb[0].mxu0
    %v2043 = vadd.f32 %v1942, %v2042
    %2044 = vmatprep.mubr.f32.mxu0 0.0
    %2045 = vmatmul.mubr.f32.gmra.mrb[0].mxu0 %v1834
    %v2046 = vpop.f32.mrb[0].mxu0
    %v2047 = vadd.f32 %v1938, %v2046
    %v2048 = vpop.f32.mrb[0].mxu0
    %v2049 = vadd.f32 %v1942, %v2048
    %2050 = vmatprep.mubr.f32.mxu0 0.0
    %2051 = vmatmul.mubr.f32.gmra.mrb[0].mxu0 %v1835
    %v2052 = vpop.f32.mrb[0].mxu0
    %v2053 = vadd.f32 %v1938, %v2052
    %v2054 = vpop.f32.mrb[0].mxu0
    %v2055 = vadd.f32 %v1942, %v2054
    %2056 = vmatprep.mubr.f32.mxu0 0.0
    %2057 = vmatmul.mubr.f32.gmra.mrb[0].mxu0 %v1836
    %v2058 = vpop.f32.mrb[0].mxu0
    %v2059 = vadd.f32 %v1938, %v2058
    %v2060 = vpop.f32.mrb[0].mxu0
    %v2061 = vadd.f32 %v1942, %v2060
    %2062 = vdwg.mxu0
    %2063 = vmatprep.subr.mxu0 0.0
    %2064 = vmatpush1.msra.mxu0 %v1839
    %2065 = vmatprep.subr.mxu0 0.0
    %2066 = vmatpush1.msra.mxu0 %v1842
    %2067 = vmatprep.subr.mxu0 0.0
    %2068 = vmatpush1.msra.mxu0 %v1845
    %2069 = vmatprep.subr.mxu0 0.0
    %2070 = vmatpush1.msra.mxu0 %v1848
    %2071 = vmatprep.subr.mxu0 0.0
    %2072 = vmatpush1.msra.mxu0 %v1851
    %2073 = vmatprep.subr.mxu0 0.0
    %2074 = vmatpush1.msra.mxu0 %v1854
    %2075 = vmatprep.subr.mxu0 0.0
    %2076 = vmatpush1.msra.mxu0 %v1857
    %2077 = vmatprep.subr.mxu0 0.0
    %2078 = vmatpush1.msra.mxu0 %v1860
    %2079 = vmatprep.subr.mxu0 0.0
    %2080 = vmatpush1.msra.mxu0 %v1863
    %2081 = vmatprep.subr.mxu0 0.0
    %2082 = vmatpush1.msra.mxu0 %v1866
    %2083 = vmatprep.subr.mxu0 0.0
    %2084 = vmatpush1.msra.mxu0 %v1869
    %2085 = vmatprep.subr.mxu0 0.0
    %2086 = vmatpush1.msra.mxu0 %v1872
    %2087 = vmatprep.subr.mxu0 0.0
    %2088 = vmatpush1.msra.mxu0 %v1875
    %2089 = vmatprep.subr.mxu0 0.0
    %2090 = vmatpush1.msra.mxu0 %v1878
    %2091 = vmatprep.subr.mxu0 0.0
    %2092 = vmatpush1.msra.mxu0 %v1881
    %2093 = vmatprep.subr.mxu0 0.0
    %2094 = vmatpush1.msra.mxu0 %v1884
    %2095 = vmatprep.subr.mxu0 0.0
    %2096 = vmatpush1.msra.mxu0 0.0
    %2097 = vmatprep.subr.mxu0 0.0
    %2098 = vmatpush1.msra.mxu0 0.0
    %2099 = vmatprep.subr.mxu0 0.0
    %2100 = vmatpush1.msra.mxu0 0.0
    %2101 = vmatprep.subr.mxu0 0.0
    %2102 = vmatpush1.msra.mxu0 0.0
    %2103 = vmatprep.subr.mxu0 0.0
    %2104 = vmatpush1.msra.mxu0 0.0
    %2105 = vmatprep.subr.mxu0 0.0
    %2106 = vmatpush1.msra.mxu0 0.0
    %2107 = vmatprep.subr.mxu0 0.0
    %2108 = vmatpush1.msra.mxu0 0.0
    %2109 = vmatprep.subr.mxu0 0.0
    %2110 = vmatpush1.msra.mxu0 0.0
    %2111 = vmatprep.subr.mxu0 0.0
    %2112 = vmatpush1.msra.mxu0 0.0
    %2113 = vmatprep.subr.mxu0 0.0
    %2114 = vmatpush1.msra.mxu0 0.0
    %2115 = vmatprep.subr.mxu0 0.0
    %2116 = vmatpush1.msra.mxu0 0.0
    %2117 = vmatprep.subr.mxu0 0.0
    %2118 = vmatpush1.msra.mxu0 0.0
    %2119 = vmatprep.subr.mxu0 0.0
    %2120 = vmatpush1.msra.mxu0 0.0
    %2121 = vmatprep.subr.mxu0 0.0
    %2122 = vmatpush1.msra.mxu0 0.0
    %2123 = vmatprep.subr.mxu0 0.0
    %2124 = vmatpush1.msra.mxu0 0.0
    %2125 = vmatprep.subr.mxu0 0.0
    %2126 = vmatpush1.msra.mxu0 0.0
    %2127 = vmatprep.mubr.f32.mxu0 0.0
    %2128 = vmatmul.mubr.f32.gmra.mrb[0].mxu0 %v1829
    %v2129 = vpop.f32.mrb[0].mxu0
    %v2130 = vadd.f32 %v1946, %v2129
    %v2131 = vpop.f32.mrb[0].mxu0
    %2132 = vmatprep.mubr.f32.mxu0 0.0
    %2133 = vmatmul.mubr.f32.gmra.mrb[0].mxu0 %v1830
    %v2134 = vpop.f32.mrb[0].mxu0
    %v2135 = vadd.f32 %v1946, %v2134
    %v2136 = vpop.f32.mrb[0].mxu0
    %2137 = vmatprep.mubr.f32.mxu0 0.0
    %2138 = vmatmul.mubr.f32.gmra.mrb[0].mxu0 %v1831
    %v2139 = vpop.f32.mrb[0].mxu0
    %v2140 = vadd.f32 %v1946, %v2139
    %v2141 = vpop.f32.mrb[0].mxu0
    %2142 = vmatprep.mubr.f32.mxu0 0.0
    %2143 = vmatmul.mubr.f32.gmra.mrb[0].mxu0 %v1832
    %v2144 = vpop.f32.mrb[0].mxu0
    %v2145 = vadd.f32 %v1946, %v2144
    %v2146 = vpop.f32.mrb[0].mxu0
    %2147 = vmatprep.mubr.f32.mxu0 0.0
    %2148 = vmatmul.mubr.f32.gmra.mrb[0].mxu0 %v1833
    %v2149 = vpop.f32.mrb[0].mxu0
    %v2150 = vadd.f32 %v1946, %v2149
    %v2151 = vpop.f32.mrb[0].mxu0
    %2152 = vmatprep.mubr.f32.mxu0 0.0
    %2153 = vmatmul.mubr.f32.gmra.mrb[0].mxu0 %v1834
    %v2154 = vpop.f32.mrb[0].mxu0
    %v2155 = vadd.f32 %v1946, %v2154
    %v2156 = vpop.f32.mrb[0].mxu0
    %2157 = vmatprep.mubr.f32.mxu0 0.0
    %2158 = vmatmul.mubr.f32.gmra.mrb[0].mxu0 %v1835
    %v2159 = vpop.f32.mrb[0].mxu0
    %v2160 = vadd.f32 %v1946, %v2159
    %v2161 = vpop.f32.mrb[0].mxu0
    %2162 = vmatprep.mubr.f32.mxu0 0.0
    %2163 = vmatmul.mubr.f32.gmra.mrb[0].mxu0 %v1836
    %v2164 = vpop.f32.mrb[0].mxu0
    %v2165 = vadd.f32 %v1946, %v2164
    %v2166 = vpop.f32.mrb[0].mxu0
    %2167 = vdwg.mxu0
    %v2168 = vsel %vm158, %v2017, %v2059
    %v2169 = vsel %vm159, %v2019, %v2061
    %v2170 = vsel %vm160, %v2130, %v2165
    %v2171 = vsel %vm158, %v2023, %v2053
    %v2172 = vsel %vm159, %v2025, %v2055
    %v2173 = vsel %vm160, %v2135, %v2160
    %v2174 = vsel %vm158, %v2029, %v2047
    %v2175 = vsel %vm159, %v2031, %v2049
    %v2176 = vsel %vm160, %v2140, %v2155
    %v2177 = vsel %vm158, %v2035, %v2041
    %v2178 = vsel %vm159, %v2037, %v2043
    %v2179 = vsel %vm160, %v2145, %v2150
    %v2180 = vsel %vm158, %v2041, %v2035
    %v2181 = vsel %vm159, %v2043, %v2037
    %v2182 = vsel %vm160, %v2150, %v2145
    %v2183 = vsel %vm158, %v2047, %v2029
    %v2184 = vsel %vm159, %v2049, %v2031
    %v2185 = vsel %vm160, %v2155, %v2140
    %v2186 = vsel %vm158, %v2053, %v2023
    %v2187 = vsel %vm159, %v2055, %v2025
    %v2188 = vsel %vm160, %v2160, %v2135
    %v2189 = vsel %vm158, %v2059, %v2017
    %v2190 = vsel %vm159, %v2061, %v2019
    %v2191 = vsel %vm160, %v2165, %v2130
    %v2192 = vld [vmem:[%s8] sm:$0x1]
    %v2194 = vlaneseq
    %v2195 = vshrl.u32 %v2194, 7
    %v2196 = vsub.s32 0, %v2195
    %v2197 = vrot.slane %v2192, %v2196
    %2199 = vmatprep.subr.mxu0 %v1886
    %2200 = vmatpush1.msra.mxu0 %v1885
    %2201 = vmatprep.subr.mxu0 %v1889
    %2202 = vmatpush1.msra.mxu0 %v1888
    %2203 = vmatprep.subr.mxu0 %v1892
    %2204 = vmatpush1.msra.mxu0 %v1891
    %2205 = vmatprep.subr.mxu0 %v1895
    %2206 = vmatpush1.msra.mxu0 %v1894
    %2207 = vmatprep.subr.mxu0 %v1898
    %2208 = vmatpush1.msra.mxu0 %v1897
    %2209 = vmatprep.subr.mxu0 %v1901
    %2210 = vmatpush1.msra.mxu0 %v1900
    %2211 = vmatprep.subr.mxu0 %v1904
    %2212 = vmatpush1.msra.mxu0 %v1903
    %2213 = vmatprep.subr.mxu0 %v1907
    %2214 = vmatpush1.msra.mxu0 %v1906
    %2215 = vmatprep.subr.mxu0 %v1910
    %2216 = vmatpush1.msra.mxu0 %v1909
    %2217 = vmatprep.subr.mxu0 %v1913
    %2218 = vmatpush1.msra.mxu0 %v1912
    %2219 = vmatprep.subr.mxu0 %v1916
    %2220 = vmatpush1.msra.mxu0 %v1915
    %2221 = vmatprep.subr.mxu0 %v1919
    %2222 = vmatpush1.msra.mxu0 %v1918
    %2223 = vmatprep.subr.mxu0 %v1922
    %2224 = vmatpush1.msra.mxu0 %v1921
    %2225 = vmatprep.subr.mxu0 %v1925
    %2226 = vmatpush1.msra.mxu0 %v1924
    %2227 = vmatprep.subr.mxu0 %v1928
    %2228 = vmatpush1.msra.mxu0 %v1927
    %2229 = vmatprep.subr.mxu0 %v1931
    %2230 = vmatpush1.msra.mxu0 %v1930
    %2231 = vmatprep.subr.mxu0 0.0
    %2232 = vmatpush1.msra.mxu0 0.0
    %2233 = vmatprep.subr.mxu0 0.0
    %2234 = vmatpush1.msra.mxu0 0.0
    %2235 = vmatprep.subr.mxu0 0.0
    %2236 = vmatpush1.msra.mxu0 0.0
    %2237 = vmatprep.subr.mxu0 0.0
    %2238 = vmatpush1.msra.mxu0 0.0
    %2239 = vmatprep.subr.mxu0 0.0
    %2240 = vmatpush1.msra.mxu0 0.0
    %2241 = vmatprep.subr.mxu0 0.0
    %2242 = vmatpush1.msra.mxu0 0.0
    %2243 = vmatprep.subr.mxu0 0.0
    %2244 = vmatpush1.msra.mxu0 0.0
    %2245 = vmatprep.subr.mxu0 0.0
    %2246 = vmatpush1.msra.mxu0 0.0
    %2247 = vmatprep.subr.mxu0 0.0
    %2248 = vmatpush1.msra.mxu0 0.0
    %2249 = vmatprep.subr.mxu0 0.0
    %2250 = vmatpush1.msra.mxu0 0.0
    %2251 = vmatprep.subr.mxu0 0.0
    %2252 = vmatpush1.msra.mxu0 0.0
    %2253 = vmatprep.subr.mxu0 0.0
    %2254 = vmatpush1.msra.mxu0 0.0
    %2255 = vmatprep.subr.mxu0 0.0
    %2256 = vmatpush1.msra.mxu0 0.0
    %2257 = vmatprep.subr.mxu0 0.0
    %2258 = vmatpush1.msra.mxu0 0.0
    %2259 = vmatprep.subr.mxu0 0.0
    %2260 = vmatpush1.msra.mxu0 0.0
    %2261 = vmatprep.subr.mxu0 0.0
    %2262 = vmatpush1.msra.mxu0 0.0
    %2263 = vmatprep.mubr.f32.mxu0 0.0
    %2264 = vmatmul.mubr.f32.gmra.mrb[0].mxu0 0.0
    %v2265 = vpop.f32.mrb[0].mxu0
    %v2266 = vadd.f32 0.0, %v2265
    %v2267 = vpop.f32.mrb[0].mxu0
    %v2268 = vadd.f32 0.0, %v2267
    %2269 = vdwg.mxu0
    %2270 = vmatprep.subr.mxu0 0.0
    %2271 = vmatpush1.msra.mxu0 %v1887
    %2272 = vmatprep.subr.mxu0 0.0
    %2273 = vmatpush1.msra.mxu0 %v1890
    %2274 = vmatprep.subr.mxu0 0.0
    %2275 = vmatpush1.msra.mxu0 %v1893
    %2276 = vmatprep.subr.mxu0 0.0
    %2277 = vmatpush1.msra.mxu0 %v1896
    %2278 = vmatprep.subr.mxu0 0.0
    %2279 = vmatpush1.msra.mxu0 %v1899
    %2280 = vmatprep.subr.mxu0 0.0
    %2281 = vmatpush1.msra.mxu0 %v1902
    %2282 = vmatprep.subr.mxu0 0.0
    %2283 = vmatpush1.msra.mxu0 %v1905
    %2284 = vmatprep.subr.mxu0 0.0
    %2285 = vmatpush1.msra.mxu0 %v1908
    %2286 = vmatprep.subr.mxu0 0.0
    %2287 = vmatpush1.msra.mxu0 %v1911
    %2288 = vmatprep.subr.mxu0 0.0
    %2289 = vmatpush1.msra.mxu0 %v1914
    %2290 = vmatprep.subr.mxu0 0.0
    %2291 = vmatpush1.msra.mxu0 %v1917
    %2292 = vmatprep.subr.mxu0 0.0
    %2293 = vmatpush1.msra.mxu0 %v1920
    %2294 = vmatprep.subr.mxu0 0.0
    %2295 = vmatpush1.msra.mxu0 %v1923
    %2296 = vmatprep.subr.mxu0 0.0
    %2297 = vmatpush1.msra.mxu0 %v1926
    %2298 = vmatprep.subr.mxu0 0.0
    %2299 = vmatpush1.msra.mxu0 %v1929
    %2300 = vmatprep.subr.mxu0 0.0
    %2301 = vmatpush1.msra.mxu0 %v1932
    %2302 = vmatprep.subr.mxu0 0.0
    %2303 = vmatpush1.msra.mxu0 0.0
    %2304 = vmatprep.subr.mxu0 0.0
    %2305 = vmatpush1.msra.mxu0 0.0
    %2306 = vmatprep.subr.mxu0 0.0
    %2307 = vmatpush1.msra.mxu0 0.0
    %2308 = vmatprep.subr.mxu0 0.0
    %2309 = vmatpush1.msra.mxu0 0.0
    %2310 = vmatprep.subr.mxu0 0.0
    %2311 = vmatpush1.msra.mxu0 0.0
    %2312 = vmatprep.subr.mxu0 0.0
    %2313 = vmatpush1.msra.mxu0 0.0
    %2314 = vmatprep.subr.mxu0 0.0
    %2315 = vmatpush1.msra.mxu0 0.0
    %2316 = vmatprep.subr.mxu0 0.0
    %2317 = vmatpush1.msra.mxu0 0.0
    %2318 = vmatprep.subr.mxu0 0.0
    %2319 = vmatpush1.msra.mxu0 0.0
    %2320 = vmatprep.subr.mxu0 0.0
    %2321 = vmatpush1.msra.mxu0 0.0
    %2322 = vmatprep.subr.mxu0 0.0
    %2323 = vmatpush1.msra.mxu0 0.0
    %2324 = vmatprep.subr.mxu0 0.0
    %2325 = vmatpush1.msra.mxu0 0.0
    %2326 = vmatprep.subr.mxu0 0.0
    %2327 = vmatpush1.msra.mxu0 0.0
    %2328 = vmatprep.subr.mxu0 0.0
    %2329 = vmatpush1.msra.mxu0 0.0
    %2330 = vmatprep.subr.mxu0 0.0
    %2331 = vmatpush1.msra.mxu0 0.0
    %2332 = vmatprep.subr.mxu0 0.0
    %2333 = vmatpush1.msra.mxu0 0.0
    %2334 = vmatprep.mubr.f32.mxu0 0.0
    %2335 = vmatmul.mubr.f32.gmra.mrb[0].mxu0 0.0
    %v2336 = vpop.f32.mrb[0].mxu0
    %v2337 = vadd.f32 0.0, %v2336
    %v2338 = vpop.f32.mrb[0].mxu0
    %2339 = vdwg.mxu0
    %v2340 = vadd.f32 %v2168, %v2266
    %v2341 = vxor.u32 %v2340, 2147483648
    %v2342 = vmul.f32 %v2341, 1.442695
    %v2343 = vpow.pop %v2342
    %v2344 = vadd.f32 %v2343, 1.0
    %v2345 = vrcp.pop %v2344
    %v2346 = vmul.f32 1.0, %v2345
    %v2347 = vadd.f32 %v2169, %v2268
    %v2348 = vxor.u32 %v2347, 2147483648
    %v2349 = vmul.f32 %v2348, 1.442695
    %v2350 = vpow.pop %v2349
    %v2351 = vadd.f32 %v2350, 1.0
    %v2352 = vrcp.pop %v2351
    %v2353 = vmul.f32 1.0, %v2352
    %v2354 = vadd.f32 %v2337, %v2197
    %v2355 = vmul.f32 %v2346, %v2354
    %v2356 = vadd.f32 %v2170, %v2355
    %v2357 = vtanh.pop %v2356
    %v2358 = vsub.f32 1.0, %v2353
    %v2359 = vmul.f32 %v2358, %v2357
    %v2360 = vmul.f32 %v2353, 0.0
    %v2361 = vadd.f32 %v2359, %v2360
    %2362 = vmatprep.subr.mxu0 %v1886
    %2363 = vmatpush1.msra.mxu0 %v1885
    %2364 = vmatprep.subr.mxu0 %v1889
    %2365 = vmatpush1.msra.mxu0 %v1888
    %2366 = vmatprep.subr.mxu0 %v1892
    %2367 = vmatpush1.msra.mxu0 %v1891
    %2368 = vmatprep.subr.mxu0 %v1895
    %2369 = vmatpush1.msra.mxu0 %v1894
    %2370 = vmatprep.subr.mxu0 %v1898
    %2371 = vmatpush1.msra.mxu0 %v1897
    %2372 = vmatprep.subr.mxu0 %v1901
    %2373 = vmatpush1.msra.mxu0 %v1900
    %2374 = vmatprep.subr.mxu0 %v1904
    %2375 = vmatpush1.msra.mxu0 %v1903
    %2376 = vmatprep.subr.mxu0 %v1907
    %2377 = vmatpush1.msra.mxu0 %v1906
    %2378 = vmatprep.subr.mxu0 %v1910
    %2379 = vmatpush1.msra.mxu0 %v1909
    %2380 = vmatprep.subr.mxu0 %v1913
    %2381 = vmatpush1.msra.mxu0 %v1912
    %2382 = vmatprep.subr.mxu0 %v1916
    %2383 = vmatpush1.msra.mxu0 %v1915
    %2384 = vmatprep.subr.mxu0 %v1919
    %2385 = vmatpush1.msra.mxu0 %v1918
    %2386 = vmatprep.subr.mxu0 %v1922
    %2387 = vmatpush1.msra.mxu0 %v1921
    %2388 = vmatprep.subr.mxu0 %v1925
    %2389 = vmatpush1.msra.mxu0 %v1924
    %2390 = vmatprep.subr.mxu0 %v1928
    %2391 = vmatpush1.msra.mxu0 %v1927
    %2392 = vmatprep.subr.mxu0 %v1931
    %2393 = vmatpush1.msra.mxu0 %v1930
    %2394 = vmatprep.subr.mxu0 0.0
    %2395 = vmatpush1.msra.mxu0 0.0
    %2396 = vmatprep.subr.mxu0 0.0
    %2397 = vmatpush1.msra.mxu0 0.0
    %2398 = vmatprep.subr.mxu0 0.0
    %2399 = vmatpush1.msra.mxu0 0.0
    %2400 = vmatprep.subr.mxu0 0.0
    %2401 = vmatpush1.msra.mxu0 0.0
    %2402 = vmatprep.subr.mxu0 0.0
    %2403 = vmatpush1.msra.mxu0 0.0
    %2404 = vmatprep.subr.mxu0 0.0
    %2405 = vmatpush1.msra.mxu0 0.0
    %2406 = vmatprep.subr.mxu0 0.0
    %2407 = vmatpush1.msra.mxu0 0.0
    %2408 = vmatprep.subr.mxu0 0.0
    %2409 = vmatpush1.msra.mxu0 0.0
    %2410 = vmatprep.subr.mxu0 0.0
    %2411 = vmatpush1.msra.mxu0 0.0
    %2412 = vmatprep.subr.mxu0 0.0
    %2413 = vmatpush1.msra.mxu0 0.0
    %2414 = vmatprep.subr.mxu0 0.0
    %2415 = vmatpush1.msra.mxu0 0.0
    %2416 = vmatprep.subr.mxu0 0.0
    %2417 = vmatpush1.msra.mxu0 0.0
    %2418 = vmatprep.subr.mxu0 0.0
    %2419 = vmatpush1.msra.mxu0 0.0
    %2420 = vmatprep.subr.mxu0 0.0
    %2421 = vmatpush1.msra.mxu0 0.0
    %2422 = vmatprep.subr.mxu0 0.0
    %2423 = vmatpush1.msra.mxu0 0.0
    %2424 = vmatprep.subr.mxu0 0.0
    %2425 = vmatpush1.msra.mxu0 0.0
    %2426 = vmatprep.mubr.f32.mxu0 0.0
    %2427 = vmatmul.mubr.f32.gmra.mrb[0].mxu0 %v2361
    %v2428 = vpop.f32.mrb[0].mxu0
    %v2429 = vadd.f32 0.0, %v2428
    %v2430 = vpop.f32.mrb[0].mxu0
    %v2431 = vadd.f32 0.0, %v2430
    %2432 = vdwg.mxu0
    %2433 = vmatprep.subr.mxu0 0.0
    %2434 = vmatpush1.msra.mxu0 %v1887
    %2435 = vmatprep.subr.mxu0 0.0
    %2436 = vmatpush1.msra.mxu0 %v1890
    %2437 = vmatprep.subr.mxu0 0.0
    %2438 = vmatpush1.msra.mxu0 %v1893
    %2439 = vmatprep.subr.mxu0 0.0
    %2440 = vmatpush1.msra.mxu0 %v1896
    %2441 = vmatprep.subr.mxu0 0.0
    %2442 = vmatpush1.msra.mxu0 %v1899
    %2443 = vmatprep.subr.mxu0 0.0
    %2444 = vmatpush1.msra.mxu0 %v1902
    %2445 = vmatprep.subr.mxu0 0.0
    %2446 = vmatpush1.msra.mxu0 %v1905
    %2447 = vmatprep.subr.mxu0 0.0
    %2448 = vmatpush1.msra.mxu0 %v1908
    %2449 = vmatprep.subr.mxu0 0.0
    %2450 = vmatpush1.msra.mxu0 %v1911
    %2451 = vmatprep.subr.mxu0 0.0
    %2452 = vmatpush1.msra.mxu0 %v1914
    %2453 = vmatprep.subr.mxu0 0.0
    %2454 = vmatpush1.msra.mxu0 %v1917
    %2455 = vmatprep.subr.mxu0 0.0
    %2456 = vmatpush1.msra.mxu0 %v1920
    %2457 = vmatprep.subr.mxu0 0.0
    %2458 = vmatpush1.msra.mxu0 %v1923
    %2459 = vmatprep.subr.mxu0 0.0
    %2460 = vmatpush1.msra.mxu0 %v1926
    %2461 = vmatprep.subr.mxu0 0.0
    %2462 = vmatpush1.msra.mxu0 %v1929
    %2463 = vmatprep.subr.mxu0 0.0
    %2464 = vmatpush1.msra.mxu0 %v1932
    %2465 = vmatprep.subr.mxu0 0.0
    %2466 = vmatpush1.msra.mxu0 0.0
    %2467 = vmatprep.subr.mxu0 0.0
    %2468 = vmatpush1.msra.mxu0 0.0
    %2469 = vmatprep.subr.mxu0 0.0
    %2470 = vmatpush1.msra.mxu0 0.0
    %2471 = vmatprep.subr.mxu0 0.0
    %2472 = vmatpush1.msra.mxu0 0.0
    %2473 = vmatprep.subr.mxu0 0.0
    %2474 = vmatpush1.msra.mxu0 0.0
    %2475 = vmatprep.subr.mxu0 0.0
    %2476 = vmatpush1.msra.mxu0 0.0
    %2477 = vmatprep.subr.mxu0 0.0
    %2478 = vmatpush1.msra.mxu0 0.0
    %2479 = vmatprep.subr.mxu0 0.0
    %2480 = vmatpush1.msra.mxu0 0.0
    %2481 = vmatprep.subr.mxu0 0.0
    %2482 = vmatpush1.msra.mxu0 0.0
    %2483 = vmatprep.subr.mxu0 0.0
    %2484 = vmatpush1.msra.mxu0 0.0
    %2485 = vmatprep.subr.mxu0 0.0
    %2486 = vmatpush1.msra.mxu0 0.0
    %2487 = vmatprep.subr.mxu0 0.0
    %2488 = vmatpush1.msra.mxu0 0.0
    %2489 = vmatprep.subr.mxu0 0.0
    %2490 = vmatpush1.msra.mxu0 0.0
    %2491 = vmatprep.subr.mxu0 0.0
    %2492 = vmatpush1.msra.mxu0 0.0
    %2493 = vmatprep.subr.mxu0 0.0
    %2494 = vmatpush1.msra.mxu0 0.0
    %2495 = vmatprep.subr.mxu0 0.0
    %2496 = vmatpush1.msra.mxu0 0.0
    %2497 = vmatprep.mubr.f32.mxu0 0.0
    %2498 = vmatmul.mubr.f32.gmra.mrb[0].mxu0 %v2361
    %v2499 = vpop.f32.mrb[0].mxu0
    %v2500 = vadd.f32 0.0, %v2499
    %v2501 = vpop.f32.mrb[0].mxu0
    %2502 = vdwg.mxu0
    %v2503 = vadd.f32 %v2171, %v2429
    %v2504 = vxor.u32 %v2503, 2147483648
    %v2505 = vmul.f32 %v2504, 1.442695
    %v2506 = vpow.pop %v2505
    %v2507 = vadd.f32 %v2506, 1.0
    %v2508 = vrcp.pop %v2507
    %v2509 = vmul.f32 1.0, %v2508
    %v2510 = vadd.f32 %v2172, %v2431
    %v2511 = vxor.u32 %v2510, 2147483648
    %v2512 = vmul.f32 %v2511, 1.442695
    %v2513 = vpow.pop %v2512
    %v2514 = vadd.f32 %v2513, 1.0
    %v2515 = vrcp.pop %v2514
    %v2516 = vmul.f32 1.0, %v2515
    %v2517 = vadd.f32 %v2500, %v2197
    %v2518 = vmul.f32 %v2509, %v2517
    %v2519 = vadd.f32 %v2173, %v2518
    %v2520 = vtanh.pop %v2519
    %v2521 = vsub.f32 1.0, %v2516
    %v2522 = vmul.f32 %v2521, %v2520
    %v2523 = vmul.f32 %v2516, %v2361
    %v2524 = vadd.f32 %v2522, %v2523
    %2525 = vmatprep.subr.mxu0 %v1886
    %2526 = vmatpush1.msra.mxu0 %v1885
    %2527 = vmatprep.subr.mxu0 %v1889
    %2528 = vmatpush1.msra.mxu0 %v1888
    %2529 = vmatprep.subr.mxu0 %v1892
    %2530 = vmatpush1.msra.mxu0 %v1891
    %2531 = vmatprep.subr.mxu0 %v1895
    %2532 = vmatpush1.msra.mxu0 %v1894
    %2533 = vmatprep.subr.mxu0 %v1898
    %2534 = vmatpush1.msra.mxu0 %v1897
    %2535 = vmatprep.subr.mxu0 %v1901
    %2536 = vmatpush1.msra.mxu0 %v1900
    %2537 = vmatprep.subr.mxu0 %v1904
    %2538 = vmatpush1.msra.mxu0 %v1903
    %2539 = vmatprep.subr.mxu0 %v1907
    %2540 = vmatpush1.msra.mxu0 %v1906
    %2541 = vmatprep.subr.mxu0 %v1910
    %2542 = vmatpush1.msra.mxu0 %v1909
    %2543 = vmatprep.subr.mxu0 %v1913
    %2544 = vmatpush1.msra.mxu0 %v1912
    %2545 = vmatprep.subr.mxu0 %v1916
    %2546 = vmatpush1.msra.mxu0 %v1915
    %2547 = vmatprep.subr.mxu0 %v1919
    %2548 = vmatpush1.msra.mxu0 %v1918
    %2549 = vmatprep.subr.mxu0 %v1922
    %2550 = vmatpush1.msra.mxu0 %v1921
    %2551 = vmatprep.subr.mxu0 %v1925
    %2552 = vmatpush1.msra.mxu0 %v1924
    %2553 = vmatprep.subr.mxu0 %v1928
    %2554 = vmatpush1.msra.mxu0 %v1927
    %2555 = vmatprep.subr.mxu0 %v1931
    %2556 = vmatpush1.msra.mxu0 %v1930
    %2557 = vmatprep.subr.mxu0 0.0
    %2558 = vmatpush1.msra.mxu0 0.0
    %2559 = vmatprep.subr.mxu0 0.0
    %2560 = vmatpush1.msra.mxu0 0.0
    %2561 = vmatprep.subr.mxu0 0.0
    %2562 = vmatpush1.msra.mxu0 0.0
    %2563 = vmatprep.subr.mxu0 0.0
    %2564 = vmatpush1.msra.mxu0 0.0
    %2565 = vmatprep.subr.mxu0 0.0
    %2566 = vmatpush1.msra.mxu0 0.0
    %2567 = vmatprep.subr.mxu0 0.0
    %2568 = vmatpush1.msra.mxu0 0.0
    %2569 = vmatprep.subr.mxu0 0.0
    %2570 = vmatpush1.msra.mxu0 0.0
    %2571 = vmatprep.subr.mxu0 0.0
    %2572 = vmatpush1.msra.mxu0 0.0
    %2573 = vmatprep.subr.mxu0 0.0
    %2574 = vmatpush1.msra.mxu0 0.0
    %2575 = vmatprep.subr.mxu0 0.0
    %2576 = vmatpush1.msra.mxu0 0.0
    %2577 = vmatprep.subr.mxu0 0.0
    %2578 = vmatpush1.msra.mxu0 0.0
    %2579 = vmatprep.subr.mxu0 0.0
    %2580 = vmatpush1.msra.mxu0 0.0
    %2581 = vmatprep.subr.mxu0 0.0
    %2582 = vmatpush1.msra.mxu0 0.0
    %2583 = vmatprep.subr.mxu0 0.0
    %2584 = vmatpush1.msra.mxu0 0.0
    %2585 = vmatprep.subr.mxu0 0.0
    %2586 = vmatpush1.msra.mxu0 0.0
    %2587 = vmatprep.subr.mxu0 0.0
    %2588 = vmatpush1.msra.mxu0 0.0
    %2589 = vmatprep.mubr.f32.mxu0 0.0
    %2590 = vmatmul.mubr.f32.gmra.mrb[0].mxu0 %v2524
    %v2591 = vpop.f32.mrb[0].mxu0
    %v2592 = vadd.f32 0.0, %v2591
    %v2593 = vpop.f32.mrb[0].mxu0
    %v2594 = vadd.f32 0.0, %v2593
    %2595 = vdwg.mxu0
    %2596 = vmatprep.subr.mxu0 0.0
    %2597 = vmatpush1.msra.mxu0 %v1887
    %2598 = vmatprep.subr.mxu0 0.0
    %2599 = vmatpush1.msra.mxu0 %v1890
    %2600 = vmatprep.subr.mxu0 0.0
    %2601 = vmatpush1.msra.mxu0 %v1893
    %2602 = vmatprep.subr.mxu0 0.0
    %2603 = vmatpush1.msra.mxu0 %v1896
    %2604 = vmatprep.subr.mxu0 0.0
    %2605 = vmatpush1.msra.mxu0 %v1899
    %2606 = vmatprep.subr.mxu0 0.0
    %2607 = vmatpush1.msra.mxu0 %v1902
    %2608 = vmatprep.subr.mxu0 0.0
    %2609 = vmatpush1.msra.mxu0 %v1905
    %2610 = vmatprep.subr.mxu0 0.0
    %2611 = vmatpush1.msra.mxu0 %v1908
    %2612 = vmatprep.subr.mxu0 0.0
    %2613 = vmatpush1.msra.mxu0 %v1911
    %2614 = vmatprep.subr.mxu0 0.0
    %2615 = vmatpush1.msra.mxu0 %v1914
    %2616 = vmatprep.subr.mxu0 0.0
    %2617 = vmatpush1.msra.mxu0 %v1917
    %2618 = vmatprep.subr.mxu0 0.0
    %2619 = vmatpush1.msra.mxu0 %v1920
    %2620 = vmatprep.subr.mxu0 0.0
    %2621 = vmatpush1.msra.mxu0 %v1923
    %2622 = vmatprep.subr.mxu0 0.0
    %2623 = vmatpush1.msra.mxu0 %v1926
    %2624 = vmatprep.subr.mxu0 0.0
    %2625 = vmatpush1.msra.mxu0 %v1929
    %2626 = vmatprep.subr.mxu0 0.0
    %2627 = vmatpush1.msra.mxu0 %v1932
    %2628 = vmatprep.subr.mxu0 0.0
    %2629 = vmatpush1.msra.mxu0 0.0
    %2630 = vmatprep.subr.mxu0 0.0
    %2631 = vmatpush1.msra.mxu0 0.0
    %2632 = vmatprep.subr.mxu0 0.0
    %2633 = vmatpush1.msra.mxu0 0.0
    %2634 = vmatprep.subr.mxu0 0.0
    %2635 = vmatpush1.msra.mxu0 0.0
    %2636 = vmatprep.subr.mxu0 0.0
    %2637 = vmatpush1.msra.mxu0 0.0
    %2638 = vmatprep.subr.mxu0 0.0
    %2639 = vmatpush1.msra.mxu0 0.0
    %2640 = vmatprep.subr.mxu0 0.0
    %2641 = vmatpush1.msra.mxu0 0.0
    %2642 = vmatprep.subr.mxu0 0.0
    %2643 = vmatpush1.msra.mxu0 0.0
    %2644 = vmatprep.subr.mxu0 0.0
    %2645 = vmatpush1.msra.mxu0 0.0
    %2646 = vmatprep.subr.mxu0 0.0
    %2647 = vmatpush1.msra.mxu0 0.0
    %2648 = vmatprep.subr.mxu0 0.0
    %2649 = vmatpush1.msra.mxu0 0.0
    %2650 = vmatprep.subr.mxu0 0.0
    %2651 = vmatpush1.msra.mxu0 0.0
    %2652 = vmatprep.subr.mxu0 0.0
    %2653 = vmatpush1.msra.mxu0 0.0
    %2654 = vmatprep.subr.mxu0 0.0
    %2655 = vmatpush1.msra.mxu0 0.0
    %2656 = vmatprep.subr.mxu0 0.0
    %2657 = vmatpush1.msra.mxu0 0.0
    %2658 = vmatprep.subr.mxu0 0.0
    %2659 = vmatpush1.msra.mxu0 0.0
    %2660 = vmatprep.mubr.f32.mxu0 0.0
    %2661 = vmatmul.mubr.f32.gmra.mrb[0].mxu0 %v2524
    %v2662 = vpop.f32.mrb[0].mxu0
    %v2663 = vadd.f32 0.0, %v2662
    %v2664 = vpop.f32.mrb[0].mxu0
    %2665 = vdwg.mxu0
    %v2666 = vadd.f32 %v2174, %v2592
    %v2667 = vxor.u32 %v2666, 2147483648
    %v2668 = vmul.f32 %v2667, 1.442695
    %v2669 = vpow.pop %v2668
    %v2670 = vadd.f32 %v2669, 1.0
    %v2671 = vrcp.pop %v2670
    %v2672 = vmul.f32 1.0, %v2671
    %v2673 = vadd.f32 %v2175, %v2594
    %v2674 = vxor.u32 %v2673, 2147483648
    %v2675 = vmul.f32 %v2674, 1.442695
    %v2676 = vpow.pop %v2675
    %v2677 = vadd.f32 %v2676, 1.0
    %v2678 = vrcp.pop %v2677
    %v2679 = vmul.f32 1.0, %v2678
    %v2680 = vadd.f32 %v2663, %v2197
    %v2681 = vmul.f32 %v2672, %v2680
    %v2682 = vadd.f32 %v2176, %v2681
    %v2683 = vtanh.pop %v2682
    %v2684 = vsub.f32 1.0, %v2679
    %v2685 = vmul.f32 %v2684, %v2683
    %v2686 = vmul.f32 %v2679, %v2524
    %v2687 = vadd.f32 %v2685, %v2686
    %2688 = vmatprep.subr.mxu0 %v1886
    %2689 = vmatpush1.msra.mxu0 %v1885
    %2690 = vmatprep.subr.mxu0 %v1889
    %2691 = vmatpush1.msra.mxu0 %v1888
    %2692 = vmatprep.subr.mxu0 %v1892
    %2693 = vmatpush1.msra.mxu0 %v1891
    %2694 = vmatprep.subr.mxu0 %v1895
    %2695 = vmatpush1.msra.mxu0 %v1894
    %2696 = vmatprep.subr.mxu0 %v1898
    %2697 = vmatpush1.msra.mxu0 %v1897
    %2698 = vmatprep.subr.mxu0 %v1901
    %2699 = vmatpush1.msra.mxu0 %v1900
    %2700 = vmatprep.subr.mxu0 %v1904
    %2701 = vmatpush1.msra.mxu0 %v1903
    %2702 = vmatprep.subr.mxu0 %v1907
    %2703 = vmatpush1.msra.mxu0 %v1906
    %2704 = vmatprep.subr.mxu0 %v1910
    %2705 = vmatpush1.msra.mxu0 %v1909
    %2706 = vmatprep.subr.mxu0 %v1913
    %2707 = vmatpush1.msra.mxu0 %v1912
    %2708 = vmatprep.subr.mxu0 %v1916
    %2709 = vmatpush1.msra.mxu0 %v1915
    %2710 = vmatprep.subr.mxu0 %v1919
    %2711 = vmatpush1.msra.mxu0 %v1918
    %2712 = vmatprep.subr.mxu0 %v1922
    %2713 = vmatpush1.msra.mxu0 %v1921
    %2714 = vmatprep.subr.mxu0 %v1925
    %2715 = vmatpush1.msra.mxu0 %v1924
    %2716 = vmatprep.subr.mxu0 %v1928
    %2717 = vmatpush1.msra.mxu0 %v1927
    %2718 = vmatprep.subr.mxu0 %v1931
    %2719 = vmatpush1.msra.mxu0 %v1930
    %2720 = vmatprep.subr.mxu0 0.0
    %2721 = vmatpush1.msra.mxu0 0.0
    %2722 = vmatprep.subr.mxu0 0.0
    %2723 = vmatpush1.msra.mxu0 0.0
    %2724 = vmatprep.subr.mxu0 0.0
    %2725 = vmatpush1.msra.mxu0 0.0
    %2726 = vmatprep.subr.mxu0 0.0
    %2727 = vmatpush1.msra.mxu0 0.0
    %2728 = vmatprep.subr.mxu0 0.0
    %2729 = vmatpush1.msra.mxu0 0.0
    %2730 = vmatprep.subr.mxu0 0.0
    %2731 = vmatpush1.msra.mxu0 0.0
    %2732 = vmatprep.subr.mxu0 0.0
    %2733 = vmatpush1.msra.mxu0 0.0
    %2734 = vmatprep.subr.mxu0 0.0
    %2735 = vmatpush1.msra.mxu0 0.0
    %2736 = vmatprep.subr.mxu0 0.0
    %2737 = vmatpush1.msra.mxu0 0.0
    %2738 = vmatprep.subr.mxu0 0.0
    %2739 = vmatpush1.msra.mxu0 0.0
    %2740 = vmatprep.subr.mxu0 0.0
    %2741 = vmatpush1.msra.mxu0 0.0
    %2742 = vmatprep.subr.mxu0 0.0
    %2743 = vmatpush1.msra.mxu0 0.0
    %2744 = vmatprep.subr.mxu0 0.0
    %2745 = vmatpush1.msra.mxu0 0.0
    %2746 = vmatprep.subr.mxu0 0.0
    %2747 = vmatpush1.msra.mxu0 0.0
    %2748 = vmatprep.subr.mxu0 0.0
    %2749 = vmatpush1.msra.mxu0 0.0
    %2750 = vmatprep.subr.mxu0 0.0
    %2751 = vmatpush1.msra.mxu0 0.0
    %2752 = vmatprep.mubr.f32.mxu0 0.0
    %2753 = vmatmul.mubr.f32.gmra.mrb[0].mxu0 %v2687
    %v2754 = vpop.f32.mrb[0].mxu0
    %v2755 = vadd.f32 0.0, %v2754
    %v2756 = vpop.f32.mrb[0].mxu0
    %v2757 = vadd.f32 0.0, %v2756
    %2758 = vdwg.mxu0
    %2759 = vmatprep.subr.mxu0 0.0
    %2760 = vmatpush1.msra.mxu0 %v1887
    %2761 = vmatprep.subr.mxu0 0.0
    %2762 = vmatpush1.msra.mxu0 %v1890
    %2763 = vmatprep.subr.mxu0 0.0
    %2764 = vmatpush1.msra.mxu0 %v1893
    %2765 = vmatprep.subr.mxu0 0.0
    %2766 = vmatpush1.msra.mxu0 %v1896
    %2767 = vmatprep.subr.mxu0 0.0
    %2768 = vmatpush1.msra.mxu0 %v1899
    %2769 = vmatprep.subr.mxu0 0.0
    %2770 = vmatpush1.msra.mxu0 %v1902
    %2771 = vmatprep.subr.mxu0 0.0
    %2772 = vmatpush1.msra.mxu0 %v1905
    %2773 = vmatprep.subr.mxu0 0.0
    %2774 = vmatpush1.msra.mxu0 %v1908
    %2775 = vmatprep.subr.mxu0 0.0
    %2776 = vmatpush1.msra.mxu0 %v1911
    %2777 = vmatprep.subr.mxu0 0.0
    %2778 = vmatpush1.msra.mxu0 %v1914
    %2779 = vmatprep.subr.mxu0 0.0
    %2780 = vmatpush1.msra.mxu0 %v1917
    %2781 = vmatprep.subr.mxu0 0.0
    %2782 = vmatpush1.msra.mxu0 %v1920
    %2783 = vmatprep.subr.mxu0 0.0
    %2784 = vmatpush1.msra.mxu0 %v1923
    %2785 = vmatprep.subr.mxu0 0.0
    %2786 = vmatpush1.msra.mxu0 %v1926
    %2787 = vmatprep.subr.mxu0 0.0
    %2788 = vmatpush1.msra.mxu0 %v1929
    %2789 = vmatprep.subr.mxu0 0.0
    %2790 = vmatpush1.msra.mxu0 %v1932
    %2791 = vmatprep.subr.mxu0 0.0
    %2792 = vmatpush1.msra.mxu0 0.0
    %2793 = vmatprep.subr.mxu0 0.0
    %2794 = vmatpush1.msra.mxu0 0.0
    %2795 = vmatprep.subr.mxu0 0.0
    %2796 = vmatpush1.msra.mxu0 0.0
    %2797 = vmatprep.subr.mxu0 0.0
    %2798 = vmatpush1.msra.mxu0 0.0
    %2799 = vmatprep.subr.mxu0 0.0
    %2800 = vmatpush1.msra.mxu0 0.0
    %2801 = vmatprep.subr.mxu0 0.0
    %2802 = vmatpush1.msra.mxu0 0.0
    %2803 = vmatprep.subr.mxu0 0.0
    %2804 = vmatpush1.msra.mxu0 0.0
    %2805 = vmatprep.subr.mxu0 0.0
    %2806 = vmatpush1.msra.mxu0 0.0
    %2807 = vmatprep.subr.mxu0 0.0
    %2808 = vmatpush1.msra.mxu0 0.0
    %2809 = vmatprep.subr.mxu0 0.0
    %2810 = vmatpush1.msra.mxu0 0.0
    %2811 = vmatprep.subr.mxu0 0.0
    %2812 = vmatpush1.msra.mxu0 0.0
    %2813 = vmatprep.subr.mxu0 0.0
    %2814 = vmatpush1.msra.mxu0 0.0
    %2815 = vmatprep.subr.mxu0 0.0
    %2816 = vmatpush1.msra.mxu0 0.0
    %2817 = vmatprep.subr.mxu0 0.0
    %2818 = vmatpush1.msra.mxu0 0.0
    %2819 = vmatprep.subr.mxu0 0.0
    %2820 = vmatpush1.msra.mxu0 0.0
    %2821 = vmatprep.subr.mxu0 0.0
    %2822 = vmatpush1.msra.mxu0 0.0
    %2823 = vmatprep.mubr.f32.mxu0 0.0
    %2824 = vmatmul.mubr.f32.gmra.mrb[0].mxu0 %v2687
    %v2825 = vpop.f32.mrb[0].mxu0
    %v2826 = vadd.f32 0.0, %v2825
    %v2827 = vpop.f32.mrb[0].mxu0
    %2828 = vdwg.mxu0
    %v2829 = vadd.f32 %v2177, %v2755
    %v2830 = vxor.u32 %v2829, 2147483648
    %v2831 = vmul.f32 %v2830, 1.442695
    %v2832 = vpow.pop %v2831
    %v2833 = vadd.f32 %v2832, 1.0
    %v2834 = vrcp.pop %v2833
    %v2835 = vmul.f32 1.0, %v2834
    %v2836 = vadd.f32 %v2178, %v2757
    %v2837 = vxor.u32 %v2836, 2147483648
    %v2838 = vmul.f32 %v2837, 1.442695
    %v2839 = vpow.pop %v2838
    %v2840 = vadd.f32 %v2839, 1.0
    %v2841 = vrcp.pop %v2840
    %v2842 = vmul.f32 1.0, %v2841
    %v2843 = vadd.f32 %v2826, %v2197
    %v2844 = vmul.f32 %v2835, %v2843
    %v2845 = vadd.f32 %v2179, %v2844
    %v2846 = vtanh.pop %v2845
    %v2847 = vsub.f32 1.0, %v2842
    %v2848 = vmul.f32 %v2847, %v2846
    %v2849 = vmul.f32 %v2842, %v2687
    %v2850 = vadd.f32 %v2848, %v2849
    %2851 = vmatprep.subr.mxu0 %v1886
    %2852 = vmatpush1.msra.mxu0 %v1885
    %2853 = vmatprep.subr.mxu0 %v1889
    %2854 = vmatpush1.msra.mxu0 %v1888
    %2855 = vmatprep.subr.mxu0 %v1892
    %2856 = vmatpush1.msra.mxu0 %v1891
    %2857 = vmatprep.subr.mxu0 %v1895
    %2858 = vmatpush1.msra.mxu0 %v1894
    %2859 = vmatprep.subr.mxu0 %v1898
    %2860 = vmatpush1.msra.mxu0 %v1897
    %2861 = vmatprep.subr.mxu0 %v1901
    %2862 = vmatpush1.msra.mxu0 %v1900
    %2863 = vmatprep.subr.mxu0 %v1904
    %2864 = vmatpush1.msra.mxu0 %v1903
    %2865 = vmatprep.subr.mxu0 %v1907
    %2866 = vmatpush1.msra.mxu0 %v1906
    %2867 = vmatprep.subr.mxu0 %v1910
    %2868 = vmatpush1.msra.mxu0 %v1909
    %2869 = vmatprep.subr.mxu0 %v1913
    %2870 = vmatpush1.msra.mxu0 %v1912
    %2871 = vmatprep.subr.mxu0 %v1916
    %2872 = vmatpush1.msra.mxu0 %v1915
    %2873 = vmatprep.subr.mxu0 %v1919
    %2874 = vmatpush1.msra.mxu0 %v1918
    %2875 = vmatprep.subr.mxu0 %v1922
    %2876 = vmatpush1.msra.mxu0 %v1921
    %2877 = vmatprep.subr.mxu0 %v1925
    %2878 = vmatpush1.msra.mxu0 %v1924
    %2879 = vmatprep.subr.mxu0 %v1928
    %2880 = vmatpush1.msra.mxu0 %v1927
    %2881 = vmatprep.subr.mxu0 %v1931
    %2882 = vmatpush1.msra.mxu0 %v1930
    %2883 = vmatprep.subr.mxu0 0.0
    %2884 = vmatpush1.msra.mxu0 0.0
    %2885 = vmatprep.subr.mxu0 0.0
    %2886 = vmatpush1.msra.mxu0 0.0
    %2887 = vmatprep.subr.mxu0 0.0
    %2888 = vmatpush1.msra.mxu0 0.0
    %2889 = vmatprep.subr.mxu0 0.0
    %2890 = vmatpush1.msra.mxu0 0.0
    %2891 = vmatprep.subr.mxu0 0.0
    %2892 = vmatpush1.msra.mxu0 0.0
    %2893 = vmatprep.subr.mxu0 0.0
    %2894 = vmatpush1.msra.mxu0 0.0
    %2895 = vmatprep.subr.mxu0 0.0
    %2896 = vmatpush1.msra.mxu0 0.0
    %2897 = vmatprep.subr.mxu0 0.0
    %2898 = vmatpush1.msra.mxu0 0.0
    %2899 = vmatprep.subr.mxu0 0.0
    %2900 = vmatpush1.msra.mxu0 0.0
    %2901 = vmatprep.subr.mxu0 0.0
    %2902 = vmatpush1.msra.mxu0 0.0
    %2903 = vmatprep.subr.mxu0 0.0
    %2904 = vmatpush1.msra.mxu0 0.0
    %2905 = vmatprep.subr.mxu0 0.0
    %2906 = vmatpush1.msra.mxu0 0.0
    %2907 = vmatprep.subr.mxu0 0.0
    %2908 = vmatpush1.msra.mxu0 0.0
    %2909 = vmatprep.subr.mxu0 0.0
    %2910 = vmatpush1.msra.mxu0 0.0
    %2911 = vmatprep.subr.mxu0 0.0
    %2912 = vmatpush1.msra.mxu0 0.0
    %2913 = vmatprep.subr.mxu0 0.0
    %2914 = vmatpush1.msra.mxu0 0.0
    %2915 = vmatprep.mubr.f32.mxu0 0.0
    %2916 = vmatmul.mubr.f32.gmra.mrb[0].mxu0 %v2850
    %v2917 = vpop.f32.mrb[0].mxu0
    %v2918 = vadd.f32 0.0, %v2917
    %v2919 = vpop.f32.mrb[0].mxu0
    %v2920 = vadd.f32 0.0, %v2919
    %2921 = vdwg.mxu0
    %2922 = vmatprep.subr.mxu0 0.0
    %2923 = vmatpush1.msra.mxu0 %v1887
    %2924 = vmatprep.subr.mxu0 0.0
    %2925 = vmatpush1.msra.mxu0 %v1890
    %2926 = vmatprep.subr.mxu0 0.0
    %2927 = vmatpush1.msra.mxu0 %v1893
    %2928 = vmatprep.subr.mxu0 0.0
    %2929 = vmatpush1.msra.mxu0 %v1896
    %2930 = vmatprep.subr.mxu0 0.0
    %2931 = vmatpush1.msra.mxu0 %v1899
    %2932 = vmatprep.subr.mxu0 0.0
    %2933 = vmatpush1.msra.mxu0 %v1902
    %2934 = vmatprep.subr.mxu0 0.0
    %2935 = vmatpush1.msra.mxu0 %v1905
    %2936 = vmatprep.subr.mxu0 0.0
    %2937 = vmatpush1.msra.mxu0 %v1908
    %2938 = vmatprep.subr.mxu0 0.0
    %2939 = vmatpush1.msra.mxu0 %v1911
    %2940 = vmatprep.subr.mxu0 0.0
    %2941 = vmatpush1.msra.mxu0 %v1914
    %2942 = vmatprep.subr.mxu0 0.0
    %2943 = vmatpush1.msra.mxu0 %v1917
    %2944 = vmatprep.subr.mxu0 0.0
    %2945 = vmatpush1.msra.mxu0 %v1920
    %2946 = vmatprep.subr.mxu0 0.0
    %2947 = vmatpush1.msra.mxu0 %v1923
    %2948 = vmatprep.subr.mxu0 0.0
    %2949 = vmatpush1.msra.mxu0 %v1926
    %2950 = vmatprep.subr.mxu0 0.0
    %2951 = vmatpush1.msra.mxu0 %v1929
    %2952 = vmatprep.subr.mxu0 0.0
    %2953 = vmatpush1.msra.mxu0 %v1932
    %2954 = vmatprep.subr.mxu0 0.0
    %2955 = vmatpush1.msra.mxu0 0.0
    %2956 = vmatprep.subr.mxu0 0.0
    %2957 = vmatpush1.msra.mxu0 0.0
    %2958 = vmatprep.subr.mxu0 0.0
    %2959 = vmatpush1.msra.mxu0 0.0
    %2960 = vmatprep.subr.mxu0 0.0
    %2961 = vmatpush1.msra.mxu0 0.0
    %2962 = vmatprep.subr.mxu0 0.0
    %2963 = vmatpush1.msra.mxu0 0.0
    %2964 = vmatprep.subr.mxu0 0.0
    %2965 = vmatpush1.msra.mxu0 0.0
    %2966 = vmatprep.subr.mxu0 0.0
    %2967 = vmatpush1.msra.mxu0 0.0
    %2968 = vmatprep.subr.mxu0 0.0
    %2969 = vmatpush1.msra.mxu0 0.0
    %2970 = vmatprep.subr.mxu0 0.0
    %2971 = vmatpush1.msra.mxu0 0.0
    %2972 = vmatprep.subr.mxu0 0.0
    %2973 = vmatpush1.msra.mxu0 0.0
    %2974 = vmatprep.subr.mxu0 0.0
    %2975 = vmatpush1.msra.mxu0 0.0
    %2976 = vmatprep.subr.mxu0 0.0
    %2977 = vmatpush1.msra.mxu0 0.0
    %2978 = vmatprep.subr.mxu0 0.0
    %2979 = vmatpush1.msra.mxu0 0.0
    %2980 = vmatprep.subr.mxu0 0.0
    %2981 = vmatpush1.msra.mxu0 0.0
    %2982 = vmatprep.subr.mxu0 0.0
    %2983 = vmatpush1.msra.mxu0 0.0
    %2984 = vmatprep.subr.mxu0 0.0
    %2985 = vmatpush1.msra.mxu0 0.0
    %2986 = vmatprep.mubr.f32.mxu0 0.0
    %2987 = vmatmul.mubr.f32.gmra.mrb[0].mxu0 %v2850
    %v2988 = vpop.f32.mrb[0].mxu0
    %v2989 = vadd.f32 0.0, %v2988
    %v2990 = vpop.f32.mrb[0].mxu0
    %2991 = vdwg.mxu0
    %v2992 = vadd.f32 %v2180, %v2918
    %v2993 = vxor.u32 %v2992, 2147483648
    %v2994 = vmul.f32 %v2993, 1.442695
    %v2995 = vpow.pop %v2994
    %v2996 = vadd.f32 %v2995, 1.0
    %v2997 = vrcp.pop %v2996
    %v2998 = vmul.f32 1.0, %v2997
    %v2999 = vadd.f32 %v2181, %v2920
    %v3000 = vxor.u32 %v2999, 2147483648
    %v3001 = vmul.f32 %v3000, 1.442695
    %v3002 = vpow.pop %v3001
    %v3003 = vadd.f32 %v3002, 1.0
    %v3004 = vrcp.pop %v3003
    %v3005 = vmul.f32 1.0, %v3004
    %v3006 = vadd.f32 %v2989, %v2197
    %v3007 = vmul.f32 %v2998, %v3006
    %v3008 = vadd.f32 %v2182, %v3007
    %v3009 = vtanh.pop %v3008
    %v3010 = vsub.f32 1.0, %v3005
    %v3011 = vmul.f32 %v3010, %v3009
    %v3012 = vmul.f32 %v3005, %v2850
    %v3013 = vadd.f32 %v3011, %v3012
    %3014 = vmatprep.subr.mxu0 %v1886
    %3015 = vmatpush1.msra.mxu0 %v1885
    %3016 = vmatprep.subr.mxu0 %v1889
    %3017 = vmatpush1.msra.mxu0 %v1888
    %3018 = vmatprep.subr.mxu0 %v1892
    %3019 = vmatpush1.msra.mxu0 %v1891
    %3020 = vmatprep.subr.mxu0 %v1895
    %3021 = vmatpush1.msra.mxu0 %v1894
    %3022 = vmatprep.subr.mxu0 %v1898
    %3023 = vmatpush1.msra.mxu0 %v1897
    %3024 = vmatprep.subr.mxu0 %v1901
    %3025 = vmatpush1.msra.mxu0 %v1900
    %3026 = vmatprep.subr.mxu0 %v1904
    %3027 = vmatpush1.msra.mxu0 %v1903
    %3028 = vmatprep.subr.mxu0 %v1907
    %3029 = vmatpush1.msra.mxu0 %v1906
    %3030 = vmatprep.subr.mxu0 %v1910
    %3031 = vmatpush1.msra.mxu0 %v1909
    %3032 = vmatprep.subr.mxu0 %v1913
    %3033 = vmatpush1.msra.mxu0 %v1912
    %3034 = vmatprep.subr.mxu0 %v1916
    %3035 = vmatpush1.msra.mxu0 %v1915
    %3036 = vmatprep.subr.mxu0 %v1919
    %3037 = vmatpush1.msra.mxu0 %v1918
    %3038 = vmatprep.subr.mxu0 %v1922
    %3039 = vmatpush1.msra.mxu0 %v1921
    %3040 = vmatprep.subr.mxu0 %v1925
    %3041 = vmatpush1.msra.mxu0 %v1924
    %3042 = vmatprep.subr.mxu0 %v1928
    %3043 = vmatpush1.msra.mxu0 %v1927
    %3044 = vmatprep.subr.mxu0 %v1931
    %3045 = vmatpush1.msra.mxu0 %v1930
    %3046 = vmatprep.subr.mxu0 0.0
    %3047 = vmatpush1.msra.mxu0 0.0
    %3048 = vmatprep.subr.mxu0 0.0
    %3049 = vmatpush1.msra.mxu0 0.0
    %3050 = vmatprep.subr.mxu0 0.0
    %3051 = vmatpush1.msra.mxu0 0.0
    %3052 = vmatprep.subr.mxu0 0.0
    %3053 = vmatpush1.msra.mxu0 0.0
    %3054 = vmatprep.subr.mxu0 0.0
    %3055 = vmatpush1.msra.mxu0 0.0
    %3056 = vmatprep.subr.mxu0 0.0
    %3057 = vmatpush1.msra.mxu0 0.0
    %3058 = vmatprep.subr.mxu0 0.0
    %3059 = vmatpush1.msra.mxu0 0.0
    %3060 = vmatprep.subr.mxu0 0.0
    %3061 = vmatpush1.msra.mxu0 0.0
    %3062 = vmatprep.subr.mxu0 0.0
    %3063 = vmatpush1.msra.mxu0 0.0
    %3064 = vmatprep.subr.mxu0 0.0
    %3065 = vmatpush1.msra.mxu0 0.0
    %3066 = vmatprep.subr.mxu0 0.0
    %3067 = vmatpush1.msra.mxu0 0.0
    %3068 = vmatprep.subr.mxu0 0.0
    %3069 = vmatpush1.msra.mxu0 0.0
    %3070 = vmatprep.subr.mxu0 0.0
    %3071 = vmatpush1.msra.mxu0 0.0
    %3072 = vmatprep.subr.mxu0 0.0
    %3073 = vmatpush1.msra.mxu0 0.0
    %3074 = vmatprep.subr.mxu0 0.0
    %3075 = vmatpush1.msra.mxu0 0.0
    %3076 = vmatprep.subr.mxu0 0.0
    %3077 = vmatpush1.msra.mxu0 0.0
    %3078 = vmatprep.mubr.f32.mxu0 0.0
    %3079 = vmatmul.mubr.f32.gmra.mrb[0].mxu0 %v3013
    %v3080 = vpop.f32.mrb[0].mxu0
    %v3081 = vadd.f32 0.0, %v3080
    %v3082 = vpop.f32.mrb[0].mxu0
    %v3083 = vadd.f32 0.0, %v3082
    %3084 = vdwg.mxu0
    %3085 = vmatprep.subr.mxu0 0.0
    %3086 = vmatpush1.msra.mxu0 %v1887
    %3087 = vmatprep.subr.mxu0 0.0
    %3088 = vmatpush1.msra.mxu0 %v1890
    %3089 = vmatprep.subr.mxu0 0.0
    %3090 = vmatpush1.msra.mxu0 %v1893
    %3091 = vmatprep.subr.mxu0 0.0
    %3092 = vmatpush1.msra.mxu0 %v1896
    %3093 = vmatprep.subr.mxu0 0.0
    %3094 = vmatpush1.msra.mxu0 %v1899
    %3095 = vmatprep.subr.mxu0 0.0
    %3096 = vmatpush1.msra.mxu0 %v1902
    %3097 = vmatprep.subr.mxu0 0.0
    %3098 = vmatpush1.msra.mxu0 %v1905
    %3099 = vmatprep.subr.mxu0 0.0
    %3100 = vmatpush1.msra.mxu0 %v1908
    %3101 = vmatprep.subr.mxu0 0.0
    %3102 = vmatpush1.msra.mxu0 %v1911
    %3103 = vmatprep.subr.mxu0 0.0
    %3104 = vmatpush1.msra.mxu0 %v1914
    %3105 = vmatprep.subr.mxu0 0.0
    %3106 = vmatpush1.msra.mxu0 %v1917
    %3107 = vmatprep.subr.mxu0 0.0
    %3108 = vmatpush1.msra.mxu0 %v1920
    %3109 = vmatprep.subr.mxu0 0.0
    %3110 = vmatpush1.msra.mxu0 %v1923
    %3111 = vmatprep.subr.mxu0 0.0
    %3112 = vmatpush1.msra.mxu0 %v1926
    %3113 = vmatprep.subr.mxu0 0.0
    %3114 = vmatpush1.msra.mxu0 %v1929
    %3115 = vmatprep.subr.mxu0 0.0
    %3116 = vmatpush1.msra.mxu0 %v1932
    %3117 = vmatprep.subr.mxu0 0.0
    %3118 = vmatpush1.msra.mxu0 0.0
    %3119 = vmatprep.subr.mxu0 0.0
    %3120 = vmatpush1.msra.mxu0 0.0
    %3121 = vmatprep.subr.mxu0 0.0
    %3122 = vmatpush1.msra.mxu0 0.0
    %3123 = vmatprep.subr.mxu0 0.0
    %3124 = vmatpush1.msra.mxu0 0.0
    %3125 = vmatprep.subr.mxu0 0.0
    %3126 = vmatpush1.msra.mxu0 0.0
    %3127 = vmatprep.subr.mxu0 0.0
    %3128 = vmatpush1.msra.mxu0 0.0
    %3129 = vmatprep.subr.mxu0 0.0
    %3130 = vmatpush1.msra.mxu0 0.0
    %3131 = vmatprep.subr.mxu0 0.0
    %3132 = vmatpush1.msra.mxu0 0.0
    %3133 = vmatprep.subr.mxu0 0.0
    %3134 = vmatpush1.msra.mxu0 0.0
    %3135 = vmatprep.subr.mxu0 0.0
    %3136 = vmatpush1.msra.mxu0 0.0
    %3137 = vmatprep.subr.mxu0 0.0
    %3138 = vmatpush1.msra.mxu0 0.0
    %3139 = vmatprep.subr.mxu0 0.0
    %3140 = vmatpush1.msra.mxu0 0.0
    %3141 = vmatprep.subr.mxu0 0.0
    %3142 = vmatpush1.msra.mxu0 0.0
    %3143 = vmatprep.subr.mxu0 0.0
    %3144 = vmatpush1.msra.mxu0 0.0
    %3145 = vmatprep.subr.mxu0 0.0
    %3146 = vmatpush1.msra.mxu0 0.0
    %3147 = vmatprep.subr.mxu0 0.0
    %3148 = vmatpush1.msra.mxu0 0.0
    %3149 = vmatprep.mubr.f32.mxu0 0.0
    %3150 = vmatmul.mubr.f32.gmra.mrb[0].mxu0 %v3013
    %v3151 = vpop.f32.mrb[0].mxu0
    %v3152 = vadd.f32 0.0, %v3151
    %v3153 = vpop.f32.mrb[0].mxu0
    %3154 = vdwg.mxu0
    %v3155 = vadd.f32 %v2183, %v3081
    %v3156 = vxor.u32 %v3155, 2147483648
    %v3157 = vmul.f32 %v3156, 1.442695
    %v3158 = vpow.pop %v3157
    %v3159 = vadd.f32 %v3158, 1.0
    %v3160 = vrcp.pop %v3159
    %v3161 = vmul.f32 1.0, %v3160
    %v3162 = vadd.f32 %v2184, %v3083
    %v3163 = vxor.u32 %v3162, 2147483648
    %v3164 = vmul.f32 %v3163, 1.442695
    %v3165 = vpow.pop %v3164
    %v3166 = vadd.f32 %v3165, 1.0
    %v3167 = vrcp.pop %v3166
    %v3168 = vmul.f32 1.0, %v3167
    %v3169 = vadd.f32 %v3152, %v2197
    %v3170 = vmul.f32 %v3161, %v3169
    %v3171 = vadd.f32 %v2185, %v3170
    %v3172 = vtanh.pop %v3171
    %v3173 = vsub.f32 1.0, %v3168
    %v3174 = vmul.f32 %v3173, %v3172
    %v3175 = vmul.f32 %v3168, %v3013
    %v3176 = vadd.f32 %v3174, %v3175
    %3177 = vmatprep.subr.mxu0 %v1886
    %3178 = vmatpush1.msra.mxu0 %v1885
    %3179 = vmatprep.subr.mxu0 %v1889
    %3180 = vmatpush1.msra.mxu0 %v1888
    %3181 = vmatprep.subr.mxu0 %v1892
    %3182 = vmatpush1.msra.mxu0 %v1891
    %3183 = vmatprep.subr.mxu0 %v1895
    %3184 = vmatpush1.msra.mxu0 %v1894
    %3185 = vmatprep.subr.mxu0 %v1898
    %3186 = vmatpush1.msra.mxu0 %v1897
    %3187 = vmatprep.subr.mxu0 %v1901
    %3188 = vmatpush1.msra.mxu0 %v1900
    %3189 = vmatprep.subr.mxu0 %v1904
    %3190 = vmatpush1.msra.mxu0 %v1903
    %3191 = vmatprep.subr.mxu0 %v1907
    %3192 = vmatpush1.msra.mxu0 %v1906
    %3193 = vmatprep.subr.mxu0 %v1910
    %3194 = vmatpush1.msra.mxu0 %v1909
    %3195 = vmatprep.subr.mxu0 %v1913
    %3196 = vmatpush1.msra.mxu0 %v1912
    %3197 = vmatprep.subr.mxu0 %v1916
    %3198 = vmatpush1.msra.mxu0 %v1915
    %3199 = vmatprep.subr.mxu0 %v1919
    %3200 = vmatpush1.msra.mxu0 %v1918
    %3201 = vmatprep.subr.mxu0 %v1922
    %3202 = vmatpush1.msra.mxu0 %v1921
    %3203 = vmatprep.subr.mxu0 %v1925
    %3204 = vmatpush1.msra.mxu0 %v1924
    %3205 = vmatprep.subr.mxu0 %v1928
    %3206 = vmatpush1.msra.mxu0 %v1927
    %3207 = vmatprep.subr.mxu0 %v1931
    %3208 = vmatpush1.msra.mxu0 %v1930
    %3209 = vmatprep.subr.mxu0 0.0
    %3210 = vmatpush1.msra.mxu0 0.0
    %3211 = vmatprep.subr.mxu0 0.0
    %3212 = vmatpush1.msra.mxu0 0.0
    %3213 = vmatprep.subr.mxu0 0.0
    %3214 = vmatpush1.msra.mxu0 0.0
    %3215 = vmatprep.subr.mxu0 0.0
    %3216 = vmatpush1.msra.mxu0 0.0
    %3217 = vmatprep.subr.mxu0 0.0
    %3218 = vmatpush1.msra.mxu0 0.0
    %3219 = vmatprep.subr.mxu0 0.0
    %3220 = vmatpush1.msra.mxu0 0.0
    %3221 = vmatprep.subr.mxu0 0.0
    %3222 = vmatpush1.msra.mxu0 0.0
    %3223 = vmatprep.subr.mxu0 0.0
    %3224 = vmatpush1.msra.mxu0 0.0
    %3225 = vmatprep.subr.mxu0 0.0
    %3226 = vmatpush1.msra.mxu0 0.0
    %3227 = vmatprep.subr.mxu0 0.0
    %3228 = vmatpush1.msra.mxu0 0.0
    %3229 = vmatprep.subr.mxu0 0.0
    %3230 = vmatpush1.msra.mxu0 0.0
    %3231 = vmatprep.subr.mxu0 0.0
    %3232 = vmatpush1.msra.mxu0 0.0
    %3233 = vmatprep.subr.mxu0 0.0
    %3234 = vmatpush1.msra.mxu0 0.0
    %3235 = vmatprep.subr.mxu0 0.0
    %3236 = vmatpush1.msra.mxu0 0.0
    %3237 = vmatprep.subr.mxu0 0.0
    %3238 = vmatpush1.msra.mxu0 0.0
    %3239 = vmatprep.subr.mxu0 0.0
    %3240 = vmatpush1.msra.mxu0 0.0
    %3241 = vmatprep.mubr.f32.mxu0 0.0
    %3242 = vmatmul.mubr.f32.gmra.mrb[0].mxu0 %v3176
    %v3243 = vpop.f32.mrb[0].mxu0
    %v3244 = vadd.f32 0.0, %v3243
    %v3245 = vpop.f32.mrb[0].mxu0
    %v3246 = vadd.f32 0.0, %v3245
    %3247 = vdwg.mxu0
    %3248 = vmatprep.subr.mxu0 0.0
    %3249 = vmatpush1.msra.mxu0 %v1887
    %3250 = vmatprep.subr.mxu0 0.0
    %3251 = vmatpush1.msra.mxu0 %v1890
    %3252 = vmatprep.subr.mxu0 0.0
    %3253 = vmatpush1.msra.mxu0 %v1893
    %3254 = vmatprep.subr.mxu0 0.0
    %3255 = vmatpush1.msra.mxu0 %v1896
    %3256 = vmatprep.subr.mxu0 0.0
    %3257 = vmatpush1.msra.mxu0 %v1899
    %3258 = vmatprep.subr.mxu0 0.0
    %3259 = vmatpush1.msra.mxu0 %v1902
    %3260 = vmatprep.subr.mxu0 0.0
    %3261 = vmatpush1.msra.mxu0 %v1905
    %3262 = vmatprep.subr.mxu0 0.0
    %3263 = vmatpush1.msra.mxu0 %v1908
    %3264 = vmatprep.subr.mxu0 0.0
    %3265 = vmatpush1.msra.mxu0 %v1911
    %3266 = vmatprep.subr.mxu0 0.0
    %3267 = vmatpush1.msra.mxu0 %v1914
    %3268 = vmatprep.subr.mxu0 0.0
    %3269 = vmatpush1.msra.mxu0 %v1917
    %3270 = vmatprep.subr.mxu0 0.0
    %3271 = vmatpush1.msra.mxu0 %v1920
    %3272 = vmatprep.subr.mxu0 0.0
    %3273 = vmatpush1.msra.mxu0 %v1923
    %3274 = vmatprep.subr.mxu0 0.0
    %3275 = vmatpush1.msra.mxu0 %v1926
    %3276 = vmatprep.subr.mxu0 0.0
    %3277 = vmatpush1.msra.mxu0 %v1929
    %3278 = vmatprep.subr.mxu0 0.0
    %3279 = vmatpush1.msra.mxu0 %v1932
    %3280 = vmatprep.subr.mxu0 0.0
    %3281 = vmatpush1.msra.mxu0 0.0
    %3282 = vmatprep.subr.mxu0 0.0
    %3283 = vmatpush1.msra.mxu0 0.0
    %3284 = vmatprep.subr.mxu0 0.0
    %3285 = vmatpush1.msra.mxu0 0.0
    %3286 = vmatprep.subr.mxu0 0.0
    %3287 = vmatpush1.msra.mxu0 0.0
    %3288 = vmatprep.subr.mxu0 0.0
    %3289 = vmatpush1.msra.mxu0 0.0
    %3290 = vmatprep.subr.mxu0 0.0
    %3291 = vmatpush1.msra.mxu0 0.0
    %3292 = vmatprep.subr.mxu0 0.0
    %3293 = vmatpush1.msra.mxu0 0.0
    %3294 = vmatprep.subr.mxu0 0.0
    %3295 = vmatpush1.msra.mxu0 0.0
    %3296 = vmatprep.subr.mxu0 0.0
    %3297 = vmatpush1.msra.mxu0 0.0
    %3298 = vmatprep.subr.mxu0 0.0
    %3299 = vmatpush1.msra.mxu0 0.0
    %3300 = vmatprep.subr.mxu0 0.0
    %3301 = vmatpush1.msra.mxu0 0.0
    %3302 = vmatprep.subr.mxu0 0.0
    %3303 = vmatpush1.msra.mxu0 0.0
    %3304 = vmatprep.subr.mxu0 0.0
    %3305 = vmatpush1.msra.mxu0 0.0
    %3306 = vmatprep.subr.mxu0 0.0
    %3307 = vmatpush1.msra.mxu0 0.0
    %3308 = vmatprep.subr.mxu0 0.0
    %3309 = vmatpush1.msra.mxu0 0.0
    %3310 = vmatprep.subr.mxu0 0.0
    %3311 = vmatpush1.msra.mxu0 0.0
    %3312 = vmatprep.mubr.f32.mxu0 0.0
    %3313 = vmatmul.mubr.f32.gmra.mrb[0].mxu0 %v3176
    %v3314 = vpop.f32.mrb[0].mxu0
    %v3315 = vadd.f32 0.0, %v3314
    %v3316 = vpop.f32.mrb[0].mxu0
    %3317 = vdwg.mxu0
    %v3318 = vadd.f32 %v2186, %v3244
    %v3319 = vxor.u32 %v3318, 2147483648
    %v3320 = vmul.f32 %v3319, 1.442695
    %v3321 = vpow.pop %v3320
    %v3322 = vadd.f32 %v3321, 1.0
    %v3323 = vrcp.pop %v3322
    %v3324 = vmul.f32 1.0, %v3323
    %v3325 = vadd.f32 %v2187, %v3246
    %v3326 = vxor.u32 %v3325, 2147483648
    %v3327 = vmul.f32 %v3326, 1.442695
    %v3328 = vpow.pop %v3327
    %v3329 = vadd.f32 %v3328, 1.0
    %v3330 = vrcp.pop %v3329
    %v3331 = vmul.f32 1.0, %v3330
    %v3332 = vadd.f32 %v3315, %v2197
    %v3333 = vmul.f32 %v3324, %v3332
    %v3334 = vadd.f32 %v2188, %v3333
    %v3335 = vtanh.pop %v3334
    %v3336 = vsub.f32 1.0, %v3331
    %v3337 = vmul.f32 %v3336, %v3335
    %v3338 = vmul.f32 %v3331, %v3176
    %v3339 = vadd.f32 %v3337, %v3338
    %3340 = vmatprep.subr.mxu0 %v1886
    %3341 = vmatpush1.msra.mxu0 %v1885
    %3342 = vmatprep.subr.mxu0 %v1889
    %3343 = vmatpush1.msra.mxu0 %v1888
    %3344 = vmatprep.subr.mxu0 %v1892
    %3345 = vmatpush1.msra.mxu0 %v1891
    %3346 = vmatprep.subr.mxu0 %v1895
    %3347 = vmatpush1.msra.mxu0 %v1894
    %3348 = vmatprep.subr.mxu0 %v1898
    %3349 = vmatpush1.msra.mxu0 %v1897
    %3350 = vmatprep.subr.mxu0 %v1901
    %3351 = vmatpush1.msra.mxu0 %v1900
    %3352 = vmatprep.subr.mxu0 %v1904
    %3353 = vmatpush1.msra.mxu0 %v1903
    %3354 = vmatprep.subr.mxu0 %v1907
    %3355 = vmatpush1.msra.mxu0 %v1906
    %3356 = vmatprep.subr.mxu0 %v1910
    %3357 = vmatpush1.msra.mxu0 %v1909
    %3358 = vmatprep.subr.mxu0 %v1913
    %3359 = vmatpush1.msra.mxu0 %v1912
    %3360 = vmatprep.subr.mxu0 %v1916
    %3361 = vmatpush1.msra.mxu0 %v1915
    %3362 = vmatprep.subr.mxu0 %v1919
    %3363 = vmatpush1.msra.mxu0 %v1918
    %3364 = vmatprep.subr.mxu0 %v1922
    %3365 = vmatpush1.msra.mxu0 %v1921
    %3366 = vmatprep.subr.mxu0 %v1925
    %3367 = vmatpush1.msra.mxu0 %v1924
    %3368 = vmatprep.subr.mxu0 %v1928
    %3369 = vmatpush1.msra.mxu0 %v1927
    %3370 = vmatprep.subr.mxu0 %v1931
    %3371 = vmatpush1.msra.mxu0 %v1930
    %3372 = vmatprep.subr.mxu0 0.0
    %3373 = vmatpush1.msra.mxu0 0.0
    %3374 = vmatprep.subr.mxu0 0.0
    %3375 = vmatpush1.msra.mxu0 0.0
    %3376 = vmatprep.subr.mxu0 0.0
    %3377 = vmatpush1.msra.mxu0 0.0
    %3378 = vmatprep.subr.mxu0 0.0
    %3379 = vmatpush1.msra.mxu0 0.0
    %3380 = vmatprep.subr.mxu0 0.0
    %3381 = vmatpush1.msra.mxu0 0.0
    %3382 = vmatprep.subr.mxu0 0.0
    %3383 = vmatpush1.msra.mxu0 0.0
    %3384 = vmatprep.subr.mxu0 0.0
    %3385 = vmatpush1.msra.mxu0 0.0
    %3386 = vmatprep.subr.mxu0 0.0
    %3387 = vmatpush1.msra.mxu0 0.0
    %3388 = vmatprep.subr.mxu0 0.0
    %3389 = vmatpush1.msra.mxu0 0.0
    %3390 = vmatprep.subr.mxu0 0.0
    %3391 = vmatpush1.msra.mxu0 0.0
    %3392 = vmatprep.subr.mxu0 0.0
    %3393 = vmatpush1.msra.mxu0 0.0
    %3394 = vmatprep.subr.mxu0 0.0
    %3395 = vmatpush1.msra.mxu0 0.0
    %3396 = vmatprep.subr.mxu0 0.0
    %3397 = vmatpush1.msra.mxu0 0.0
    %3398 = vmatprep.subr.mxu0 0.0
    %3399 = vmatpush1.msra.mxu0 0.0
    %3400 = vmatprep.subr.mxu0 0.0
    %3401 = vmatpush1.msra.mxu0 0.0
    %3402 = vmatprep.subr.mxu0 0.0
    %3403 = vmatpush1.msra.mxu0 0.0
    %3404 = vmatprep.mubr.f32.mxu0 0.0
    %3405 = vmatmul.mubr.f32.gmra.mrb[0].mxu0 %v3339
    %v3406 = vpop.f32.mrb[0].mxu0
    %v3407 = vadd.f32 0.0, %v3406
    %v3408 = vpop.f32.mrb[0].mxu0
    %v3409 = vadd.f32 0.0, %v3408
    %3410 = vdwg.mxu0
    %3411 = vmatprep.subr.mxu0 0.0
    %3412 = vmatpush1.msra.mxu0 %v1887
    %3413 = vmatprep.subr.mxu0 0.0
    %3414 = vmatpush1.msra.mxu0 %v1890
    %3415 = vmatprep.subr.mxu0 0.0
    %3416 = vmatpush1.msra.mxu0 %v1893
    %3417 = vmatprep.subr.mxu0 0.0
    %3418 = vmatpush1.msra.mxu0 %v1896
    %3419 = vmatprep.subr.mxu0 0.0
    %3420 = vmatpush1.msra.mxu0 %v1899
    %3421 = vmatprep.subr.mxu0 0.0
    %3422 = vmatpush1.msra.mxu0 %v1902
    %3423 = vmatprep.subr.mxu0 0.0
    %3424 = vmatpush1.msra.mxu0 %v1905
    %3425 = vmatprep.subr.mxu0 0.0
    %3426 = vmatpush1.msra.mxu0 %v1908
    %3427 = vmatprep.subr.mxu0 0.0
    %3428 = vmatpush1.msra.mxu0 %v1911
    %3429 = vmatprep.subr.mxu0 0.0
    %3430 = vmatpush1.msra.mxu0 %v1914
    %3431 = vmatprep.subr.mxu0 0.0
    %3432 = vmatpush1.msra.mxu0 %v1917
    %3433 = vmatprep.subr.mxu0 0.0
    %3434 = vmatpush1.msra.mxu0 %v1920
    %3435 = vmatprep.subr.mxu0 0.0
    %3436 = vmatpush1.msra.mxu0 %v1923
    %3437 = vmatprep.subr.mxu0 0.0
    %3438 = vmatpush1.msra.mxu0 %v1926
    %3439 = vmatprep.subr.mxu0 0.0
    %3440 = vmatpush1.msra.mxu0 %v1929
    %3441 = vmatprep.subr.mxu0 0.0
    %3442 = vmatpush1.msra.mxu0 %v1932
    %3443 = vmatprep.subr.mxu0 0.0
    %3444 = vmatpush1.msra.mxu0 0.0
    %3445 = vmatprep.subr.mxu0 0.0
    %3446 = vmatpush1.msra.mxu0 0.0
    %3447 = vmatprep.subr.mxu0 0.0
    %3448 = vmatpush1.msra.mxu0 0.0
    %3449 = vmatprep.subr.mxu0 0.0
    %3450 = vmatpush1.msra.mxu0 0.0
    %3451 = vmatprep.subr.mxu0 0.0
    %3452 = vmatpush1.msra.mxu0 0.0
    %3453 = vmatprep.subr.mxu0 0.0
    %3454 = vmatpush1.msra.mxu0 0.0
    %3455 = vmatprep.subr.mxu0 0.0
    %3456 = vmatpush1.msra.mxu0 0.0
    %3457 = vmatprep.subr.mxu0 0.0
    %3458 = vmatpush1.msra.mxu0 0.0
    %3459 = vmatprep.subr.mxu0 0.0
    %3460 = vmatpush1.msra.mxu0 0.0
    %3461 = vmatprep.subr.mxu0 0.0
    %3462 = vmatpush1.msra.mxu0 0.0
    %3463 = vmatprep.subr.mxu0 0.0
    %3464 = vmatpush1.msra.mxu0 0.0
    %3465 = vmatprep.subr.mxu0 0.0
    %3466 = vmatpush1.msra.mxu0 0.0
    %3467 = vmatprep.subr.mxu0 0.0
    %3468 = vmatpush1.msra.mxu0 0.0
    %3469 = vmatprep.subr.mxu0 0.0
    %3470 = vmatpush1.msra.mxu0 0.0
    %3471 = vmatprep.subr.mxu0 0.0
    %3472 = vmatpush1.msra.mxu0 0.0
    %3473 = vmatprep.subr.mxu0 0.0
    %3474 = vmatpush1.msra.mxu0 0.0
    %3475 = vmatprep.mubr.f32.mxu0 0.0
    %3476 = vmatmul.mubr.f32.gmra.mrb[0].mxu0 %v3339
    %v3477 = vpop.f32.mrb[0].mxu0
    %v3478 = vadd.f32 0.0, %v3477
    %v3479 = vpop.f32.mrb[0].mxu0
    %3480 = vdwg.mxu0
    %v3481 = vadd.f32 %v2189, %v3407
    %v3482 = vxor.u32 %v3481, 2147483648
    %v3483 = vmul.f32 %v3482, 1.442695
    %v3484 = vpow.pop %v3483
    %v3485 = vadd.f32 %v3484, 1.0
    %v3486 = vrcp.pop %v3485
    %v3487 = vmul.f32 1.0, %v3486
    %v3488 = vadd.f32 %v2190, %v3409
    %v3489 = vxor.u32 %v3488, 2147483648
    %v3490 = vmul.f32 %v3489, 1.442695
    %v3491 = vpow.pop %v3490
    %v3492 = vadd.f32 %v3491, 1.0
    %v3493 = vrcp.pop %v3492
    %v3494 = vmul.f32 1.0, %v3493
    %v3495 = vadd.f32 %v3478, %v2197
    %v3496 = vmul.f32 %v3487, %v3495
    %v3497 = vadd.f32 %v2191, %v3496
    %v3498 = vtanh.pop %v3497
    %v3499 = vsub.f32 1.0, %v3494
    %v3500 = vmul.f32 %v3499, %v3498
    %v3501 = vmul.f32 %v3494, %v3339
    %v3502 = vadd.f32 %v3500, %v3501
    %v3503 = vsel %vm161, %v2361, %v3502
    %v3504 = vsel %vm161, %v2524, %v3339
    %v3505 = vsel %vm161, %v2687, %v3176
    %v3506 = vsel %vm161, %v2850, %v3013
    %v3507 = vsel %vm161, %v3013, %v2850
    %v3508 = vsel %vm161, %v3176, %v2687
    %v3509 = vsel %vm161, %v3339, %v2524
    %v3510 = vsel %vm161, %v3502, %v2361
    %v3511 = vld [vmem:[#allocation7] sm:$0xff]
    %v3512 = vld [vmem:[#allocation7 + $0x8] sm:$0xff]
    %v3513 = vld [vmem:[#allocation7 + $0x10] sm:$0xff]
    %v3514 = vld [vmem:[#allocation7 + $0x18] sm:$0xff]
    %v3515 = vld [vmem:[#allocation7 + $0x20] sm:$0xff]
    %v3516 = vld [vmem:[#allocation7 + $0x28] sm:$0xff]
    %v3517 = vld [vmem:[#allocation7 + $0x30] sm:$0xff]
    %v3518 = vld [vmem:[#allocation7 + $0x38] sm:$0xff]
    %v3519 = vld [vmem:[#allocation7 + $0x40] sm:$0xff]
    %v3520 = vld [vmem:[#allocation7 + $0x48] sm:$0xff]
    %v3521 = vld [vmem:[#allocation7 + $0x50] sm:$0xff]
    %v3522 = vld [vmem:[#allocation7 + $0x58] sm:$0xff]
    %v3523 = vld [vmem:[#allocation7 + $0x60] sm:$0xff]
    %v3524 = vld [vmem:[#allocation7 + $0x68] sm:$0xff]
    %v3525 = vld [vmem:[#allocation7 + $0x70] sm:$0xff]
    %v3526 = vld [vmem:[#allocation7 + $0x78] sm:$0xff]
    %v3527 = vld [vmem:[#allocation7 + $0x80] sm:$0xff]
    %v3528 = vld [vmem:[#allocation7 + $0x88] sm:$0xff]
    %v3529 = vld [vmem:[#allocation7 + $0x90] sm:$0xff]
    %v3530 = vld [vmem:[#allocation7 + $0x98] sm:$0xff]
    %v3531 = vld [vmem:[#allocation7 + $0xa0] sm:$0xff]
    %v3532 = vld [vmem:[#allocation7 + $0xa8] sm:$0xff]
    %v3533 = vld [vmem:[#allocation7 + $0xb0] sm:$0xff]
    %v3534 = vld [vmem:[#allocation7 + $0xb8] sm:$0xff]
    %v3535 = vld [vmem:[#allocation7 + $0xc0] sm:$0xff]
    %v3536 = vld [vmem:[#allocation7 + $0xc8] sm:$0xff]
    %v3537 = vld [vmem:[#allocation7 + $0xd0] sm:$0xff]
    %v3538 = vld [vmem:[#allocation7 + $0xd8] sm:$0xff]
    %v3539 = vld [vmem:[#allocation7 + $0xe0] sm:$0xff]
    %v3540 = vld [vmem:[#allocation7 + $0xe8] sm:$0xff]
    %v3541 = vld [vmem:[#allocation7 + $0xf0] sm:$0xff]
    %v3542 = vld [vmem:[#allocation7 + $0xf8] sm:$0xff]
    %v3543 = vld [vmem:[#allocation7 + $0x100] sm:$0xff]
    %v3544 = vld [vmem:[#allocation7 + $0x108] sm:$0xff]
    %v3545 = vld [vmem:[#allocation7 + $0x110] sm:$0xff]
    %v3546 = vld [vmem:[#allocation7 + $0x118] sm:$0xff]
    %v3547 = vld [vmem:[#allocation7 + $0x120] sm:$0xff]
    %v3548 = vld [vmem:[#allocation7 + $0x128] sm:$0xff]
    %v3549 = vld [vmem:[#allocation7 + $0x130] sm:$0xff]
    %v3550 = vld [vmem:[#allocation7 + $0x138] sm:$0xff]
    %v3551 = vld [vmem:[#allocation7 + $0x140] sm:$0xff]
    %v3552 = vld [vmem:[#allocation7 + $0x148] sm:$0xff]
    %v3553 = vld [vmem:[#allocation7 + $0x150] sm:$0xff]
    %v3554 = vld [vmem:[#allocation7 + $0x158] sm:$0xff]
    %v3555 = vld [vmem:[#allocation7 + $0x160] sm:$0xff]
    %v3556 = vld [vmem:[#allocation7 + $0x168] sm:$0xff]
    %v3557 = vld [vmem:[#allocation7 + $0x170] sm:$0xff]
    %v3558 = vld [vmem:[#allocation7 + $0x178] sm:$0xff]
    %v3559 = vld [vmem:[#allocation9] sm:$0xff]
    %v3560 = vld [vmem:[#allocation9 + $0x8] sm:$0xff]
    %v3561 = vld [vmem:[#allocation9 + $0x10] sm:$0xff]
    %v3562 = vld [vmem:[#allocation9 + $0x18] sm:$0xff]
    %v3563 = vld [vmem:[#allocation9 + $0x20] sm:$0xff]
    %v3564 = vld [vmem:[#allocation9 + $0x28] sm:$0xff]
    %v3565 = vld [vmem:[#allocation9 + $0x30] sm:$0xff]
    %v3566 = vld [vmem:[#allocation9 + $0x38] sm:$0xff]
    %v3567 = vld [vmem:[#allocation9 + $0x40] sm:$0xff]
    %v3568 = vld [vmem:[#allocation9 + $0x48] sm:$0xff]
    %v3569 = vld [vmem:[#allocation9 + $0x50] sm:$0xff]
    %v3570 = vld [vmem:[#allocation9 + $0x58] sm:$0xff]
    %v3571 = vld [vmem:[#allocation9 + $0x60] sm:$0xff]
    %v3572 = vld [vmem:[#allocation9 + $0x68] sm:$0xff]
    %v3573 = vld [vmem:[#allocation9 + $0x70] sm:$0xff]
    %v3574 = vld [vmem:[#allocation9 + $0x78] sm:$0xff]
    %v3575 = vld [vmem:[#allocation9 + $0x80] sm:$0xff]
    %v3576 = vld [vmem:[#allocation9 + $0x88] sm:$0xff]
    %v3577 = vld [vmem:[#allocation9 + $0x90] sm:$0xff]
    %v3578 = vld [vmem:[#allocation9 + $0x98] sm:$0xff]
    %v3579 = vld [vmem:[#allocation9 + $0xa0] sm:$0xff]
    %v3580 = vld [vmem:[#allocation9 + $0xa8] sm:$0xff]
    %v3581 = vld [vmem:[#allocation9 + $0xb0] sm:$0xff]
    %v3582 = vld [vmem:[#allocation9 + $0xb8] sm:$0xff]
    %v3583 = vld [vmem:[#allocation9 + $0xc0] sm:$0xff]
    %v3584 = vld [vmem:[#allocation9 + $0xc8] sm:$0xff]
    %v3585 = vld [vmem:[#allocation9 + $0xd0] sm:$0xff]
    %v3586 = vld [vmem:[#allocation9 + $0xd8] sm:$0xff]
    %v3587 = vld [vmem:[#allocation9 + $0xe0] sm:$0xff]
    %v3588 = vld [vmem:[#allocation9 + $0xe8] sm:$0xff]
    %v3589 = vld [vmem:[#allocation9 + $0xf0] sm:$0xff]
    %v3590 = vld [vmem:[#allocation9 + $0xf8] sm:$0xff]
    %v3591 = vld [vmem:[#allocation9 + $0x100] sm:$0xff]
    %v3592 = vld [vmem:[#allocation9 + $0x108] sm:$0xff]
    %v3593 = vld [vmem:[#allocation9 + $0x110] sm:$0xff]
    %v3594 = vld [vmem:[#allocation9 + $0x118] sm:$0xff]
    %v3595 = vld [vmem:[#allocation9 + $0x120] sm:$0xff]
    %v3596 = vld [vmem:[#allocation9 + $0x128] sm:$0xff]
    %v3597 = vld [vmem:[#allocation9 + $0x130] sm:$0xff]
    %v3598 = vld [vmem:[#allocation9 + $0x138] sm:$0xff]
    %v3599 = vld [vmem:[#allocation9 + $0x140] sm:$0xff]
    %v3600 = vld [vmem:[#allocation9 + $0x148] sm:$0xff]
    %v3601 = vld [vmem:[#allocation9 + $0x150] sm:$0xff]
    %v3602 = vld [vmem:[#allocation9 + $0x158] sm:$0xff]
    %v3603 = vld [vmem:[#allocation9 + $0x160] sm:$0xff]
    %v3604 = vld [vmem:[#allocation9 + $0x168] sm:$0xff]
    %v3605 = vld [vmem:[#allocation9 + $0x170] sm:$0xff]
    %v3606 = vld [vmem:[#allocation9 + $0x178] sm:$0xff]
    %v3607 = vld [vmem:[%s11] sm:$0x7]
    %v3609 = vlaneseq
    %v3610 = vshrl.u32 %v3609, 7
    %v3611 = vsub.s32 0, %v3610
    %v3612 = vrot.slane %v3607, %v3611
    %v3613 = vlaneseq
    %v3614 = vshrl.u32 %v3613, 7
    %v3615 = vsub.s32 1, %v3614
    %v3616 = vrot.slane %v3607, %v3615
    %v3617 = vlaneseq
    %v3618 = vshrl.u32 %v3617, 7
    %v3619 = vsub.s32 2, %v3618
    %v3620 = vrot.slane %v3607, %v3619
    %3624 = vmatprep.subr.mxu0 %v3512
    %3625 = vmatpush1.msra.mxu0 %v3511
    %3626 = vmatprep.subr.mxu0 %v3515
    %3627 = vmatpush1.msra.mxu0 %v3514
    %3628 = vmatprep.subr.mxu0 %v3518
    %3629 = vmatpush1.msra.mxu0 %v3517
    %3630 = vmatprep.subr.mxu0 %v3521
    %3631 = vmatpush1.msra.mxu0 %v3520
    %3632 = vmatprep.subr.mxu0 %v3524
    %3633 = vmatpush1.msra.mxu0 %v3523
    %3634 = vmatprep.subr.mxu0 %v3527
    %3635 = vmatpush1.msra.mxu0 %v3526
    %3636 = vmatprep.subr.mxu0 %v3530
    %3637 = vmatpush1.msra.mxu0 %v3529
    %3638 = vmatprep.subr.mxu0 %v3533
    %3639 = vmatpush1.msra.mxu0 %v3532
    %3640 = vmatprep.subr.mxu0 %v3536
    %3641 = vmatpush1.msra.mxu0 %v3535
    %3642 = vmatprep.subr.mxu0 %v3539
    %3643 = vmatpush1.msra.mxu0 %v3538
    %3644 = vmatprep.subr.mxu0 %v3542
    %3645 = vmatpush1.msra.mxu0 %v3541
    %3646 = vmatprep.subr.mxu0 %v3545
    %3647 = vmatpush1.msra.mxu0 %v3544
    %3648 = vmatprep.subr.mxu0 %v3548
    %3649 = vmatpush1.msra.mxu0 %v3547
    %3650 = vmatprep.subr.mxu0 %v3551
    %3651 = vmatpush1.msra.mxu0 %v3550
    %3652 = vmatprep.subr.mxu0 %v3554
    %3653 = vmatpush1.msra.mxu0 %v3553
    %3654 = vmatprep.subr.mxu0 %v3557
    %3655 = vmatpush1.msra.mxu0 %v3556
    %3656 = vmatprep.subr.mxu0 0.0
    %3657 = vmatpush1.msra.mxu0 0.0
    %3658 = vmatprep.subr.mxu0 0.0
    %3659 = vmatpush1.msra.mxu0 0.0
    %3660 = vmatprep.subr.mxu0 0.0
    %3661 = vmatpush1.msra.mxu0 0.0
    %3662 = vmatprep.subr.mxu0 0.0
    %3663 = vmatpush1.msra.mxu0 0.0
    %3664 = vmatprep.subr.mxu0 0.0
    %3665 = vmatpush1.msra.mxu0 0.0
    %3666 = vmatprep.subr.mxu0 0.0
    %3667 = vmatpush1.msra.mxu0 0.0
    %3668 = vmatprep.subr.mxu0 0.0
    %3669 = vmatpush1.msra.mxu0 0.0
    %3670 = vmatprep.subr.mxu0 0.0
    %3671 = vmatpush1.msra.mxu0 0.0
    %3672 = vmatprep.subr.mxu0 0.0
    %3673 = vmatpush1.msra.mxu0 0.0
    %3674 = vmatprep.subr.mxu0 0.0
    %3675 = vmatpush1.msra.mxu0 0.0
    %3676 = vmatprep.subr.mxu0 0.0
    %3677 = vmatpush1.msra.mxu0 0.0
    %3678 = vmatprep.subr.mxu0 0.0
    %3679 = vmatpush1.msra.mxu0 0.0
    %3680 = vmatprep.subr.mxu0 0.0
    %3681 = vmatpush1.msra.mxu0 0.0
    %3682 = vmatprep.subr.mxu0 0.0
    %3683 = vmatpush1.msra.mxu0 0.0
    %3684 = vmatprep.subr.mxu0 0.0
    %3685 = vmatpush1.msra.mxu0 0.0
    %3686 = vmatprep.subr.mxu0 0.0
    %3687 = vmatpush1.msra.mxu0 0.0
    %3688 = vmatprep.mubr.f32.mxu0 0.0
    %3689 = vmatmul.mubr.f32.gmra.mrb[0].mxu0 %v3503
    %v3690 = vpop.f32.mrb[0].mxu0
    %v3691 = vadd.f32 %v3612, %v3690
    %v3692 = vpop.f32.mrb[0].mxu0
    %v3693 = vadd.f32 %v3616, %v3692
    %3694 = vmatprep.mubr.f32.mxu0 0.0
    %3695 = vmatmul.mubr.f32.gmra.mrb[0].mxu0 %v3504
    %v3696 = vpop.f32.mrb[0].mxu0
    %v3697 = vadd.f32 %v3612, %v3696
    %v3698 = vpop.f32.mrb[0].mxu0
    %v3699 = vadd.f32 %v3616, %v3698
    %3700 = vmatprep.mubr.f32.mxu0 0.0
    %3701 = vmatmul.mubr.f32.gmra.mrb[0].mxu0 %v3505
    %v3702 = vpop.f32.mrb[0].mxu0
    %v3703 = vadd.f32 %v3612, %v3702
    %v3704 = vpop.f32.mrb[0].mxu0
    %v3705 = vadd.f32 %v3616, %v3704
    %3706 = vmatprep.mubr.f32.mxu0 0.0
    %3707 = vmatmul.mubr.f32.gmra.mrb[0].mxu0 %v3506
    %v3708 = vpop.f32.mrb[0].mxu0
    %v3709 = vadd.f32 %v3612, %v3708
    %v3710 = vpop.f32.mrb[0].mxu0
    %v3711 = vadd.f32 %v3616, %v3710
    %3712 = vmatprep.mubr.f32.mxu0 0.0
    %3713 = vmatmul.mubr.f32.gmra.mrb[0].mxu0 %v3507
    %v3714 = vpop.f32.mrb[0].mxu0
    %v3715 = vadd.f32 %v3612, %v3714
    %v3716 = vpop.f32.mrb[0].mxu0
    %v3717 = vadd.f32 %v3616, %v3716
    %3718 = vmatprep.mubr.f32.mxu0 0.0
    %3719 = vmatmul.mubr.f32.gmra.mrb[0].mxu0 %v3508
    %v3720 = vpop.f32.mrb[0].mxu0
    %v3721 = vadd.f32 %v3612, %v3720
    %v3722 = vpop.f32.mrb[0].mxu0
    %v3723 = vadd.f32 %v3616, %v3722
    %3724 = vmatprep.mubr.f32.mxu0 0.0
    %3725 = vmatmul.mubr.f32.gmra.mrb[0].mxu0 %v3509
    %v3726 = vpop.f32.mrb[0].mxu0
    %v3727 = vadd.f32 %v3612, %v3726
    %v3728 = vpop.f32.mrb[0].mxu0
    %v3729 = vadd.f32 %v3616, %v3728
    %3730 = vmatprep.mubr.f32.mxu0 0.0
    %3731 = vmatmul.mubr.f32.gmra.mrb[0].mxu0 %v3510
    %v3732 = vpop.f32.mrb[0].mxu0
    %v3733 = vadd.f32 %v3612, %v3732
    %v3734 = vpop.f32.mrb[0].mxu0
    %v3735 = vadd.f32 %v3616, %v3734
    %3736 = vdwg.mxu0
    %3737 = vmatprep.subr.mxu0 0.0
    %3738 = vmatpush1.msra.mxu0 %v3513
    %3739 = vmatprep.subr.mxu0 0.0
    %3740 = vmatpush1.msra.mxu0 %v3516
    %3741 = vmatprep.subr.mxu0 0.0
    %3742 = vmatpush1.msra.mxu0 %v3519
    %3743 = vmatprep.subr.mxu0 0.0
    %3744 = vmatpush1.msra.mxu0 %v3522
    %3745 = vmatprep.subr.mxu0 0.0
    %3746 = vmatpush1.msra.mxu0 %v3525
    %3747 = vmatprep.subr.mxu0 0.0
    %3748 = vmatpush1.msra.mxu0 %v3528
    %3749 = vmatprep.subr.mxu0 0.0
    %3750 = vmatpush1.msra.mxu0 %v3531
    %3751 = vmatprep.subr.mxu0 0.0
    %3752 = vmatpush1.msra.mxu0 %v3534
    %3753 = vmatprep.subr.mxu0 0.0
    %3754 = vmatpush1.msra.mxu0 %v3537
    %3755 = vmatprep.subr.mxu0 0.0
    %3756 = vmatpush1.msra.mxu0 %v3540
    %3757 = vmatprep.subr.mxu0 0.0
    %3758 = vmatpush1.msra.mxu0 %v3543
    %3759 = vmatprep.subr.mxu0 0.0
    %3760 = vmatpush1.msra.mxu0 %v3546
    %3761 = vmatprep.subr.mxu0 0.0
    %3762 = vmatpush1.msra.mxu0 %v3549
    %3763 = vmatprep.subr.mxu0 0.0
    %3764 = vmatpush1.msra.mxu0 %v3552
    %3765 = vmatprep.subr.mxu0 0.0
    %3766 = vmatpush1.msra.mxu0 %v3555
    %3767 = vmatprep.subr.mxu0 0.0
    %3768 = vmatpush1.msra.mxu0 %v3558
    %3769 = vmatprep.subr.mxu0 0.0
    %3770 = vmatpush1.msra.mxu0 0.0
    %3771 = vmatprep.subr.mxu0 0.0
    %3772 = vmatpush1.msra.mxu0 0.0
    %3773 = vmatprep.subr.mxu0 0.0
    %3774 = vmatpush1.msra.mxu0 0.0
    %3775 = vmatprep.subr.mxu0 0.0
    %3776 = vmatpush1.msra.mxu0 0.0
    %3777 = vmatprep.subr.mxu0 0.0
    %3778 = vmatpush1.msra.mxu0 0.0
    %3779 = vmatprep.subr.mxu0 0.0
    %3780 = vmatpush1.msra.mxu0 0.0
    %3781 = vmatprep.subr.mxu0 0.0
    %3782 = vmatpush1.msra.mxu0 0.0
    %3783 = vmatprep.subr.mxu0 0.0
    %3784 = vmatpush1.msra.mxu0 0.0
    %3785 = vmatprep.subr.mxu0 0.0
    %3786 = vmatpush1.msra.mxu0 0.0
    %3787 = vmatprep.subr.mxu0 0.0
    %3788 = vmatpush1.msra.mxu0 0.0
    %3789 = vmatprep.subr.mxu0 0.0
    %3790 = vmatpush1.msra.mxu0 0.0
    %3791 = vmatprep.subr.mxu0 0.0
    %3792 = vmatpush1.msra.mxu0 0.0
    %3793 = vmatprep.subr.mxu0 0.0
    %3794 = vmatpush1.msra.mxu0 0.0
    %3795 = vmatprep.subr.mxu0 0.0
    %3796 = vmatpush1.msra.mxu0 0.0
    %3797 = vmatprep.subr.mxu0 0.0
    %3798 = vmatpush1.msra.mxu0 0.0
    %3799 = vmatprep.subr.mxu0 0.0
    %3800 = vmatpush1.msra.mxu0 0.0
    %3801 = vmatprep.mubr.f32.mxu0 0.0
    %3802 = vmatmul.mubr.f32.gmra.mrb[0].mxu0 %v3503
    %v3803 = vpop.f32.mrb[0].mxu0
    %v3804 = vadd.f32 %v3620, %v3803
    %v3805 = vpop.f32.mrb[0].mxu0
    %3806 = vmatprep.mubr.f32.mxu0 0.0
    %3807 = vmatmul.mubr.f32.gmra.mrb[0].mxu0 %v3504
    %v3808 = vpop.f32.mrb[0].mxu0
    %v3809 = vadd.f32 %v3620, %v3808
    %v3810 = vpop.f32.mrb[0].mxu0
    %3811 = vmatprep.mubr.f32.mxu0 0.0
    %3812 = vmatmul.mubr.f32.gmra.mrb[0].mxu0 %v3505
    %v3813 = vpop.f32.mrb[0].mxu0
    %v3814 = vadd.f32 %v3620, %v3813
    %v3815 = vpop.f32.mrb[0].mxu0
    %3816 = vmatprep.mubr.f32.mxu0 0.0
    %3817 = vmatmul.mubr.f32.gmra.mrb[0].mxu0 %v3506
    %v3818 = vpop.f32.mrb[0].mxu0
    %v3819 = vadd.f32 %v3620, %v3818
    %v3820 = vpop.f32.mrb[0].mxu0
    %3821 = vmatprep.mubr.f32.mxu0 0.0
    %3822 = vmatmul.mubr.f32.gmra.mrb[0].mxu0 %v3507
    %v3823 = vpop.f32.mrb[0].mxu0
    %v3824 = vadd.f32 %v3620, %v3823
    %v3825 = vpop.f32.mrb[0].mxu0
    %3826 = vmatprep.mubr.f32.mxu0 0.0
    %3827 = vmatmul.mubr.f32.gmra.mrb[0].mxu0 %v3508
    %v3828 = vpop.f32.mrb[0].mxu0
    %v3829 = vadd.f32 %v3620, %v3828
    %v3830 = vpop.f32.mrb[0].mxu0
    %3831 = vmatprep.mubr.f32.mxu0 0.0
    %3832 = vmatmul.mubr.f32.gmra.mrb[0].mxu0 %v3509
    %v3833 = vpop.f32.mrb[0].mxu0
    %v3834 = vadd.f32 %v3620, %v3833
    %v3835 = vpop.f32.mrb[0].mxu0
    %3836 = vmatprep.mubr.f32.mxu0 0.0
    %3837 = vmatmul.mubr.f32.gmra.mrb[0].mxu0 %v3510
    %v3838 = vpop.f32.mrb[0].mxu0
    %v3839 = vadd.f32 %v3620, %v3838
    %v3840 = vpop.f32.mrb[0].mxu0
    %3841 = vdwg.mxu0
    %v3842 = vsel %vm158, %v3691, %v3733
    %v3843 = vsel %vm159, %v3693, %v3735
    %v3844 = vsel %vm160, %v3804, %v3839
    %v3845 = vsel %vm158, %v3697, %v3727
    %v3846 = vsel %vm159, %v3699, %v3729
    %v3847 = vsel %vm160, %v3809, %v3834
    %v3848 = vsel %vm158, %v3703, %v3721
    %v3849 = vsel %vm159, %v3705, %v3723
    %v3850 = vsel %vm160, %v3814, %v3829
    %v3851 = vsel %vm158, %v3709, %v3715
    %v3852 = vsel %vm159, %v3711, %v3717
    %v3853 = vsel %vm160, %v3819, %v3824
    %v3854 = vsel %vm158, %v3715, %v3709
    %v3855 = vsel %vm159, %v3717, %v3711
    %v3856 = vsel %vm160, %v3824, %v3819
    %v3857 = vsel %vm158, %v3721, %v3703
    %v3858 = vsel %vm159, %v3723, %v3705
    %v3859 = vsel %vm160, %v3829, %v3814
    %v3860 = vsel %vm158, %v3727, %v3697
    %v3861 = vsel %vm159, %v3729, %v3699
    %v3862 = vsel %vm160, %v3834, %v3809
    %v3863 = vsel %vm158, %v3733, %v3691
    %v3864 = vsel %vm159, %v3735, %v3693
    %v3865 = vsel %vm160, %v3839, %v3804
    %v3866 = vld [vmem:[%s12] sm:$0x1]
    %v3868 = vlaneseq
    %v3869 = vshrl.u32 %v3868, 7
    %v3870 = vsub.s32 0, %v3869
    %v3871 = vrot.slane %v3866, %v3870
    %3873 = vmatprep.subr.mxu0 %v3560
    %3874 = vmatpush1.msra.mxu0 %v3559
    %3875 = vmatprep.subr.mxu0 %v3563
    %3876 = vmatpush1.msra.mxu0 %v3562
    %3877 = vmatprep.subr.mxu0 %v3566
    %3878 = vmatpush1.msra.mxu0 %v3565
    %3879 = vmatprep.subr.mxu0 %v3569
    %3880 = vmatpush1.msra.mxu0 %v3568
    %3881 = vmatprep.subr.mxu0 %v3572
    %3882 = vmatpush1.msra.mxu0 %v3571
    %3883 = vmatprep.subr.mxu0 %v3575
    %3884 = vmatpush1.msra.mxu0 %v3574
    %3885 = vmatprep.subr.mxu0 %v3578
    %3886 = vmatpush1.msra.mxu0 %v3577
    %3887 = vmatprep.subr.mxu0 %v3581
    %3888 = vmatpush1.msra.mxu0 %v3580
    %3889 = vmatprep.subr.mxu0 %v3584
    %3890 = vmatpush1.msra.mxu0 %v3583
    %3891 = vmatprep.subr.mxu0 %v3587
    %3892 = vmatpush1.msra.mxu0 %v3586
    %3893 = vmatprep.subr.mxu0 %v3590
    %3894 = vmatpush1.msra.mxu0 %v3589
    %3895 = vmatprep.subr.mxu0 %v3593
    %3896 = vmatpush1.msra.mxu0 %v3592
    %3897 = vmatprep.subr.mxu0 %v3596
    %3898 = vmatpush1.msra.mxu0 %v3595
    %3899 = vmatprep.subr.mxu0 %v3599
    %3900 = vmatpush1.msra.mxu0 %v3598
    %3901 = vmatprep.subr.mxu0 %v3602
    %3902 = vmatpush1.msra.mxu0 %v3601
    %3903 = vmatprep.subr.mxu0 %v3605
    %3904 = vmatpush1.msra.mxu0 %v3604
    %3905 = vmatprep.subr.mxu0 0.0
    %3906 = vmatpush1.msra.mxu0 0.0
    %3907 = vmatprep.subr.mxu0 0.0
    %3908 = vmatpush1.msra.mxu0 0.0
    %3909 = vmatprep.subr.mxu0 0.0
    %3910 = vmatpush1.msra.mxu0 0.0
    %3911 = vmatprep.subr.mxu0 0.0
    %3912 = vmatpush1.msra.mxu0 0.0
    %3913 = vmatprep.subr.mxu0 0.0
    %3914 = vmatpush1.msra.mxu0 0.0
    %3915 = vmatprep.subr.mxu0 0.0
    %3916 = vmatpush1.msra.mxu0 0.0
    %3917 = vmatprep.subr.mxu0 0.0
    %3918 = vmatpush1.msra.mxu0 0.0
    %3919 = vmatprep.subr.mxu0 0.0
    %3920 = vmatpush1.msra.mxu0 0.0
    %3921 = vmatprep.subr.mxu0 0.0
    %3922 = vmatpush1.msra.mxu0 0.0
    %3923 = vmatprep.subr.mxu0 0.0
    %3924 = vmatpush1.msra.mxu0 0.0
    %3925 = vmatprep.subr.mxu0 0.0
    %3926 = vmatpush1.msra.mxu0 0.0
    %3927 = vmatprep.subr.mxu0 0.0
    %3928 = vmatpush1.msra.mxu0 0.0
    %3929 = vmatprep.subr.mxu0 0.0
    %3930 = vmatpush1.msra.mxu0 0.0
    %3931 = vmatprep.subr.mxu0 0.0
    %3932 = vmatpush1.msra.mxu0 0.0
    %3933 = vmatprep.subr.mxu0 0.0
    %3934 = vmatpush1.msra.mxu0 0.0
    %3935 = vmatprep.subr.mxu0 0.0
    %3936 = vmatpush1.msra.mxu0 0.0
    %3937 = vmatprep.mubr.f32.mxu0 0.0
    %3938 = vmatmul.mubr.f32.gmra.mrb[0].mxu0 0.0
    %v3939 = vpop.f32.mrb[0].mxu0
    %v3940 = vadd.f32 0.0, %v3939
    %v3941 = vpop.f32.mrb[0].mxu0
    %v3942 = vadd.f32 0.0, %v3941
    %3943 = vdwg.mxu0
    %3944 = vmatprep.subr.mxu0 0.0
    %3945 = vmatpush1.msra.mxu0 %v3561
    %3946 = vmatprep.subr.mxu0 0.0
    %3947 = vmatpush1.msra.mxu0 %v3564
    %3948 = vmatprep.subr.mxu0 0.0
    %3949 = vmatpush1.msra.mxu0 %v3567
    %3950 = vmatprep.subr.mxu0 0.0
    %3951 = vmatpush1.msra.mxu0 %v3570
    %3952 = vmatprep.subr.mxu0 0.0
    %3953 = vmatpush1.msra.mxu0 %v3573
    %3954 = vmatprep.subr.mxu0 0.0
    %3955 = vmatpush1.msra.mxu0 %v3576
    %3956 = vmatprep.subr.mxu0 0.0
    %3957 = vmatpush1.msra.mxu0 %v3579
    %3958 = vmatprep.subr.mxu0 0.0
    %3959 = vmatpush1.msra.mxu0 %v3582
    %3960 = vmatprep.subr.mxu0 0.0
    %3961 = vmatpush1.msra.mxu0 %v3585
    %3962 = vmatprep.subr.mxu0 0.0
    %3963 = vmatpush1.msra.mxu0 %v3588
    %3964 = vmatprep.subr.mxu0 0.0
    %3965 = vmatpush1.msra.mxu0 %v3591
    %3966 = vmatprep.subr.mxu0 0.0
    %3967 = vmatpush1.msra.mxu0 %v3594
    %3968 = vmatprep.subr.mxu0 0.0
    %3969 = vmatpush1.msra.mxu0 %v3597
    %3970 = vmatprep.subr.mxu0 0.0
    %3971 = vmatpush1.msra.mxu0 %v3600
    %3972 = vmatprep.subr.mxu0 0.0
    %3973 = vmatpush1.msra.mxu0 %v3603
    %3974 = vmatprep.subr.mxu0 0.0
    %3975 = vmatpush1.msra.mxu0 %v3606
    %3976 = vmatprep.subr.mxu0 0.0
    %3977 = vmatpush1.msra.mxu0 0.0
    %3978 = vmatprep.subr.mxu0 0.0
    %3979 = vmatpush1.msra.mxu0 0.0
    %3980 = vmatprep.subr.mxu0 0.0
    %3981 = vmatpush1.msra.mxu0 0.0
    %3982 = vmatprep.subr.mxu0 0.0
    %3983 = vmatpush1.msra.mxu0 0.0
    %3984 = vmatprep.subr.mxu0 0.0
    %3985 = vmatpush1.msra.mxu0 0.0
    %3986 = vmatprep.subr.mxu0 0.0
    %3987 = vmatpush1.msra.mxu0 0.0
    %3988 = vmatprep.subr.mxu0 0.0
    %3989 = vmatpush1.msra.mxu0 0.0
    %3990 = vmatprep.subr.mxu0 0.0
    %3991 = vmatpush1.msra.mxu0 0.0
    %3992 = vmatprep.subr.mxu0 0.0
    %3993 = vmatpush1.msra.mxu0 0.0
    %3994 = vmatprep.subr.mxu0 0.0
    %3995 = vmatpush1.msra.mxu0 0.0
    %3996 = vmatprep.subr.mxu0 0.0
    %3997 = vmatpush1.msra.mxu0 0.0
    %3998 = vmatprep.subr.mxu0 0.0
    %3999 = vmatpush1.msra.mxu0 0.0
    %4000 = vmatprep.subr.mxu0 0.0
    %4001 = vmatpush1.msra.mxu0 0.0
    %4002 = vmatprep.subr.mxu0 0.0
    %4003 = vmatpush1.msra.mxu0 0.0
    %4004 = vmatprep.subr.mxu0 0.0
    %4005 = vmatpush1.msra.mxu0 0.0
    %4006 = vmatprep.subr.mxu0 0.0
    %4007 = vmatpush1.msra.mxu0 0.0
    %4008 = vmatprep.mubr.f32.mxu0 0.0
    %4009 = vmatmul.mubr.f32.gmra.mrb[0].mxu0 0.0
    %v4010 = vpop.f32.mrb[0].mxu0
    %v4011 = vadd.f32 0.0, %v4010
    %v4012 = vpop.f32.mrb[0].mxu0
    %4013 = vdwg.mxu0
    %v4014 = vadd.f32 %v3842, %v3940
    %v4015 = vxor.u32 %v4014, 2147483648
    %v4016 = vmul.f32 %v4015, 1.442695
    %v4017 = vpow.pop %v4016
    %v4018 = vadd.f32 %v4017, 1.0
    %v4019 = vrcp.pop %v4018
    %v4020 = vmul.f32 1.0, %v4019
    %v4021 = vadd.f32 %v3843, %v3942
    %v4022 = vxor.u32 %v4021, 2147483648
    %v4023 = vmul.f32 %v4022, 1.442695
    %v4024 = vpow.pop %v4023
    %v4025 = vadd.f32 %v4024, 1.0
    %v4026 = vrcp.pop %v4025
    %v4027 = vmul.f32 1.0, %v4026
    %v4028 = vadd.f32 %v4011, %v3871
    %v4029 = vmul.f32 %v4020, %v4028
    %v4030 = vadd.f32 %v3844, %v4029
    %v4031 = vtanh.pop %v4030
    %v4032 = vsub.f32 1.0, %v4027
    %v4033 = vmul.f32 %v4032, %v4031
    %v4034 = vmul.f32 %v4027, 0.0
    %v4035 = vadd.f32 %v4033, %v4034
    %4036 = vmatprep.subr.mxu0 %v3560
    %4037 = vmatpush1.msra.mxu0 %v3559
    %4038 = vmatprep.subr.mxu0 %v3563
    %4039 = vmatpush1.msra.mxu0 %v3562
    %4040 = vmatprep.subr.mxu0 %v3566
    %4041 = vmatpush1.msra.mxu0 %v3565
    %4042 = vmatprep.subr.mxu0 %v3569
    %4043 = vmatpush1.msra.mxu0 %v3568
    %4044 = vmatprep.subr.mxu0 %v3572
    %4045 = vmatpush1.msra.mxu0 %v3571
    %4046 = vmatprep.subr.mxu0 %v3575
    %4047 = vmatpush1.msra.mxu0 %v3574
    %4048 = vmatprep.subr.mxu0 %v3578
    %4049 = vmatpush1.msra.mxu0 %v3577
    %4050 = vmatprep.subr.mxu0 %v3581
    %4051 = vmatpush1.msra.mxu0 %v3580
    %4052 = vmatprep.subr.mxu0 %v3584
    %4053 = vmatpush1.msra.mxu0 %v3583
    %4054 = vmatprep.subr.mxu0 %v3587
    %4055 = vmatpush1.msra.mxu0 %v3586
    %4056 = vmatprep.subr.mxu0 %v3590
    %4057 = vmatpush1.msra.mxu0 %v3589
    %4058 = vmatprep.subr.mxu0 %v3593
    %4059 = vmatpush1.msra.mxu0 %v3592
    %4060 = vmatprep.subr.mxu0 %v3596
    %4061 = vmatpush1.msra.mxu0 %v3595
    %4062 = vmatprep.subr.mxu0 %v3599
    %4063 = vmatpush1.msra.mxu0 %v3598
    %4064 = vmatprep.subr.mxu0 %v3602
    %4065 = vmatpush1.msra.mxu0 %v3601
    %4066 = vmatprep.subr.mxu0 %v3605
    %4067 = vmatpush1.msra.mxu0 %v3604
    %4068 = vmatprep.subr.mxu0 0.0
    %4069 = vmatpush1.msra.mxu0 0.0
    %4070 = vmatprep.subr.mxu0 0.0
    %4071 = vmatpush1.msra.mxu0 0.0
    %4072 = vmatprep.subr.mxu0 0.0
    %4073 = vmatpush1.msra.mxu0 0.0
    %4074 = vmatprep.subr.mxu0 0.0
    %4075 = vmatpush1.msra.mxu0 0.0
    %4076 = vmatprep.subr.mxu0 0.0
    %4077 = vmatpush1.msra.mxu0 0.0
    %4078 = vmatprep.subr.mxu0 0.0
    %4079 = vmatpush1.msra.mxu0 0.0
    %4080 = vmatprep.subr.mxu0 0.0
    %4081 = vmatpush1.msra.mxu0 0.0
    %4082 = vmatprep.subr.mxu0 0.0
    %4083 = vmatpush1.msra.mxu0 0.0
    %4084 = vmatprep.subr.mxu0 0.0
    %4085 = vmatpush1.msra.mxu0 0.0
    %4086 = vmatprep.subr.mxu0 0.0
    %4087 = vmatpush1.msra.mxu0 0.0
    %4088 = vmatprep.subr.mxu0 0.0
    %4089 = vmatpush1.msra.mxu0 0.0
    %4090 = vmatprep.subr.mxu0 0.0
    %4091 = vmatpush1.msra.mxu0 0.0
    %4092 = vmatprep.subr.mxu0 0.0
    %4093 = vmatpush1.msra.mxu0 0.0
    %4094 = vmatprep.subr.mxu0 0.0
    %4095 = vmatpush1.msra.mxu0 0.0
    %4096 = vmatprep.subr.mxu0 0.0
    %4097 = vmatpush1.msra.mxu0 0.0
    %4098 = vmatprep.subr.mxu0 0.0
    %4099 = vmatpush1.msra.mxu0 0.0
    %4100 = vmatprep.mubr.f32.mxu0 0.0
    %4101 = vmatmul.mubr.f32.gmra.mrb[0].mxu0 %v4035
    %v4102 = vpop.f32.mrb[0].mxu0
    %v4103 = vadd.f32 0.0, %v4102
    %v4104 = vpop.f32.mrb[0].mxu0
    %v4105 = vadd.f32 0.0, %v4104
    %4106 = vdwg.mxu0
    %4107 = vmatprep.subr.mxu0 0.0
    %4108 = vmatpush1.msra.mxu0 %v3561
    %4109 = vmatprep.subr.mxu0 0.0
    %4110 = vmatpush1.msra.mxu0 %v3564
    %4111 = vmatprep.subr.mxu0 0.0
    %4112 = vmatpush1.msra.mxu0 %v3567
    %4113 = vmatprep.subr.mxu0 0.0
    %4114 = vmatpush1.msra.mxu0 %v3570
    %4115 = vmatprep.subr.mxu0 0.0
    %4116 = vmatpush1.msra.mxu0 %v3573
    %4117 = vmatprep.subr.mxu0 0.0
    %4118 = vmatpush1.msra.mxu0 %v3576
    %4119 = vmatprep.subr.mxu0 0.0
    %4120 = vmatpush1.msra.mxu0 %v3579
    %4121 = vmatprep.subr.mxu0 0.0
    %4122 = vmatpush1.msra.mxu0 %v3582
    %4123 = vmatprep.subr.mxu0 0.0
    %4124 = vmatpush1.msra.mxu0 %v3585
    %4125 = vmatprep.subr.mxu0 0.0
    %4126 = vmatpush1.msra.mxu0 %v3588
    %4127 = vmatprep.subr.mxu0 0.0
    %4128 = vmatpush1.msra.mxu0 %v3591
    %4129 = vmatprep.subr.mxu0 0.0
    %4130 = vmatpush1.msra.mxu0 %v3594
    %4131 = vmatprep.subr.mxu0 0.0
    %4132 = vmatpush1.msra.mxu0 %v3597
    %4133 = vmatprep.subr.mxu0 0.0
    %4134 = vmatpush1.msra.mxu0 %v3600
    %4135 = vmatprep.subr.mxu0 0.0
    %4136 = vmatpush1.msra.mxu0 %v3603
    %4137 = vmatprep.subr.mxu0 0.0
    %4138 = vmatpush1.msra.mxu0 %v3606
    %4139 = vmatprep.subr.mxu0 0.0
    %4140 = vmatpush1.msra.mxu0 0.0
    %4141 = vmatprep.subr.mxu0 0.0
    %4142 = vmatpush1.msra.mxu0 0.0
    %4143 = vmatprep.subr.mxu0 0.0
    %4144 = vmatpush1.msra.mxu0 0.0
    %4145 = vmatprep.subr.mxu0 0.0
    %4146 = vmatpush1.msra.mxu0 0.0
    %4147 = vmatprep.subr.mxu0 0.0
    %4148 = vmatpush1.msra.mxu0 0.0
    %4149 = vmatprep.subr.mxu0 0.0
    %4150 = vmatpush1.msra.mxu0 0.0
    %4151 = vmatprep.subr.mxu0 0.0
    %4152 = vmatpush1.msra.mxu0 0.0
    %4153 = vmatprep.subr.mxu0 0.0
    %4154 = vmatpush1.msra.mxu0 0.0
    %4155 = vmatprep.subr.mxu0 0.0
    %4156 = vmatpush1.msra.mxu0 0.0
    %4157 = vmatprep.subr.mxu0 0.0
    %4158 = vmatpush1.msra.mxu0 0.0
    %4159 = vmatprep.subr.mxu0 0.0
    %4160 = vmatpush1.msra.mxu0 0.0
    %4161 = vmatprep.subr.mxu0 0.0
    %4162 = vmatpush1.msra.mxu0 0.0
    %4163 = vmatprep.subr.mxu0 0.0
    %4164 = vmatpush1.msra.mxu0 0.0
    %4165 = vmatprep.subr.mxu0 0.0
    %4166 = vmatpush1.msra.mxu0 0.0
    %4167 = vmatprep.subr.mxu0 0.0
    %4168 = vmatpush1.msra.mxu0 0.0
    %4169 = vmatprep.subr.mxu0 0.0
    %4170 = vmatpush1.msra.mxu0 0.0
    %4171 = vmatprep.mubr.f32.mxu0 0.0
    %4172 = vmatmul.mubr.f32.gmra.mrb[0].mxu0 %v4035
    %v4173 = vpop.f32.mrb[0].mxu0
    %v4174 = vadd.f32 0.0, %v4173
    %v4175 = vpop.f32.mrb[0].mxu0
    %4176 = vdwg.mxu0
    %v4177 = vadd.f32 %v3845, %v4103
    %v4178 = vxor.u32 %v4177, 2147483648
    %v4179 = vmul.f32 %v4178, 1.442695
    %v4180 = vpow.pop %v4179
    %v4181 = vadd.f32 %v4180, 1.0
    %v4182 = vrcp.pop %v4181
    %v4183 = vmul.f32 1.0, %v4182
    %v4184 = vadd.f32 %v3846, %v4105
    %v4185 = vxor.u32 %v4184, 2147483648
    %v4186 = vmul.f32 %v4185, 1.442695
    %v4187 = vpow.pop %v4186
    %v4188 = vadd.f32 %v4187, 1.0
    %v4189 = vrcp.pop %v4188
    %v4190 = vmul.f32 1.0, %v4189
    %v4191 = vadd.f32 %v4174, %v3871
    %v4192 = vmul.f32 %v4183, %v4191
    %v4193 = vadd.f32 %v3847, %v4192
    %v4194 = vtanh.pop %v4193
    %v4195 = vsub.f32 1.0, %v4190
    %v4196 = vmul.f32 %v4195, %v4194
    %v4197 = vmul.f32 %v4190, %v4035
    %v4198 = vadd.f32 %v4196, %v4197
    %4199 = vmatprep.subr.mxu0 %v3560
    %4200 = vmatpush1.msra.mxu0 %v3559
    %4201 = vmatprep.subr.mxu0 %v3563
    %4202 = vmatpush1.msra.mxu0 %v3562
    %4203 = vmatprep.subr.mxu0 %v3566
    %4204 = vmatpush1.msra.mxu0 %v3565
    %4205 = vmatprep.subr.mxu0 %v3569
    %4206 = vmatpush1.msra.mxu0 %v3568
    %4207 = vmatprep.subr.mxu0 %v3572
    %4208 = vmatpush1.msra.mxu0 %v3571
    %4209 = vmatprep.subr.mxu0 %v3575
    %4210 = vmatpush1.msra.mxu0 %v3574
    %4211 = vmatprep.subr.mxu0 %v3578
    %4212 = vmatpush1.msra.mxu0 %v3577
    %4213 = vmatprep.subr.mxu0 %v3581
    %4214 = vmatpush1.msra.mxu0 %v3580
    %4215 = vmatprep.subr.mxu0 %v3584
    %4216 = vmatpush1.msra.mxu0 %v3583
    %4217 = vmatprep.subr.mxu0 %v3587
    %4218 = vmatpush1.msra.mxu0 %v3586
    %4219 = vmatprep.subr.mxu0 %v3590
    %4220 = vmatpush1.msra.mxu0 %v3589
    %4221 = vmatprep.subr.mxu0 %v3593
    %4222 = vmatpush1.msra.mxu0 %v3592
    %4223 = vmatprep.subr.mxu0 %v3596
    %4224 = vmatpush1.msra.mxu0 %v3595
    %4225 = vmatprep.subr.mxu0 %v3599
    %4226 = vmatpush1.msra.mxu0 %v3598
    %4227 = vmatprep.subr.mxu0 %v3602
    %4228 = vmatpush1.msra.mxu0 %v3601
    %4229 = vmatprep.subr.mxu0 %v3605
    %4230 = vmatpush1.msra.mxu0 %v3604
    %4231 = vmatprep.subr.mxu0 0.0
    %4232 = vmatpush1.msra.mxu0 0.0
    %4233 = vmatprep.subr.mxu0 0.0
    %4234 = vmatpush1.msra.mxu0 0.0
    %4235 = vmatprep.subr.mxu0 0.0
    %4236 = vmatpush1.msra.mxu0 0.0
    %4237 = vmatprep.subr.mxu0 0.0
    %4238 = vmatpush1.msra.mxu0 0.0
    %4239 = vmatprep.subr.mxu0 0.0
    %4240 = vmatpush1.msra.mxu0 0.0
    %4241 = vmatprep.subr.mxu0 0.0
    %4242 = vmatpush1.msra.mxu0 0.0
    %4243 = vmatprep.subr.mxu0 0.0
    %4244 = vmatpush1.msra.mxu0 0.0
    %4245 = vmatprep.subr.mxu0 0.0
    %4246 = vmatpush1.msra.mxu0 0.0
    %4247 = vmatprep.subr.mxu0 0.0
    %4248 = vmatpush1.msra.mxu0 0.0
    %4249 = vmatprep.subr.mxu0 0.0
    %4250 = vmatpush1.msra.mxu0 0.0
    %4251 = vmatprep.subr.mxu0 0.0
    %4252 = vmatpush1.msra.mxu0 0.0
    %4253 = vmatprep.subr.mxu0 0.0
    %4254 = vmatpush1.msra.mxu0 0.0
    %4255 = vmatprep.subr.mxu0 0.0
    %4256 = vmatpush1.msra.mxu0 0.0
    %4257 = vmatprep.subr.mxu0 0.0
    %4258 = vmatpush1.msra.mxu0 0.0
    %4259 = vmatprep.subr.mxu0 0.0
    %4260 = vmatpush1.msra.mxu0 0.0
    %4261 = vmatprep.subr.mxu0 0.0
    %4262 = vmatpush1.msra.mxu0 0.0
    %4263 = vmatprep.mubr.f32.mxu0 0.0
    %4264 = vmatmul.mubr.f32.gmra.mrb[0].mxu0 %v4198
    %v4265 = vpop.f32.mrb[0].mxu0
    %v4266 = vadd.f32 0.0, %v4265
    %v4267 = vpop.f32.mrb[0].mxu0
    %v4268 = vadd.f32 0.0, %v4267
    %4269 = vdwg.mxu0
    %4270 = vmatprep.subr.mxu0 0.0
    %4271 = vmatpush1.msra.mxu0 %v3561
    %4272 = vmatprep.subr.mxu0 0.0
    %4273 = vmatpush1.msra.mxu0 %v3564
    %4274 = vmatprep.subr.mxu0 0.0
    %4275 = vmatpush1.msra.mxu0 %v3567
    %4276 = vmatprep.subr.mxu0 0.0
    %4277 = vmatpush1.msra.mxu0 %v3570
    %4278 = vmatprep.subr.mxu0 0.0
    %4279 = vmatpush1.msra.mxu0 %v3573
    %4280 = vmatprep.subr.mxu0 0.0
    %4281 = vmatpush1.msra.mxu0 %v3576
    %4282 = vmatprep.subr.mxu0 0.0
    %4283 = vmatpush1.msra.mxu0 %v3579
    %4284 = vmatprep.subr.mxu0 0.0
    %4285 = vmatpush1.msra.mxu0 %v3582
    %4286 = vmatprep.subr.mxu0 0.0
    %4287 = vmatpush1.msra.mxu0 %v3585
    %4288 = vmatprep.subr.mxu0 0.0
    %4289 = vmatpush1.msra.mxu0 %v3588
    %4290 = vmatprep.subr.mxu0 0.0
    %4291 = vmatpush1.msra.mxu0 %v3591
    %4292 = vmatprep.subr.mxu0 0.0
    %4293 = vmatpush1.msra.mxu0 %v3594
    %4294 = vmatprep.subr.mxu0 0.0
    %4295 = vmatpush1.msra.mxu0 %v3597
    %4296 = vmatprep.subr.mxu0 0.0
    %4297 = vmatpush1.msra.mxu0 %v3600
    %4298 = vmatprep.subr.mxu0 0.0
    %4299 = vmatpush1.msra.mxu0 %v3603
    %4300 = vmatprep.subr.mxu0 0.0
    %4301 = vmatpush1.msra.mxu0 %v3606
    %4302 = vmatprep.subr.mxu0 0.0
    %4303 = vmatpush1.msra.mxu0 0.0
    %4304 = vmatprep.subr.mxu0 0.0
    %4305 = vmatpush1.msra.mxu0 0.0
    %4306 = vmatprep.subr.mxu0 0.0
    %4307 = vmatpush1.msra.mxu0 0.0
    %4308 = vmatprep.subr.mxu0 0.0
    %4309 = vmatpush1.msra.mxu0 0.0
    %4310 = vmatprep.subr.mxu0 0.0
    %4311 = vmatpush1.msra.mxu0 0.0
    %4312 = vmatprep.subr.mxu0 0.0
    %4313 = vmatpush1.msra.mxu0 0.0
    %4314 = vmatprep.subr.mxu0 0.0
    %4315 = vmatpush1.msra.mxu0 0.0
    %4316 = vmatprep.subr.mxu0 0.0
    %4317 = vmatpush1.msra.mxu0 0.0
    %4318 = vmatprep.subr.mxu0 0.0
    %4319 = vmatpush1.msra.mxu0 0.0
    %4320 = vmatprep.subr.mxu0 0.0
    %4321 = vmatpush1.msra.mxu0 0.0
    %4322 = vmatprep.subr.mxu0 0.0
    %4323 = vmatpush1.msra.mxu0 0.0
    %4324 = vmatprep.subr.mxu0 0.0
    %4325 = vmatpush1.msra.mxu0 0.0
    %4326 = vmatprep.subr.mxu0 0.0
    %4327 = vmatpush1.msra.mxu0 0.0
    %4328 = vmatprep.subr.mxu0 0.0
    %4329 = vmatpush1.msra.mxu0 0.0
    %4330 = vmatprep.subr.mxu0 0.0
    %4331 = vmatpush1.msra.mxu0 0.0
    %4332 = vmatprep.subr.mxu0 0.0
    %4333 = vmatpush1.msra.mxu0 0.0
    %4334 = vmatprep.mubr.f32.mxu0 0.0
    %4335 = vmatmul.mubr.f32.gmra.mrb[0].mxu0 %v4198
    %v4336 = vpop.f32.mrb[0].mxu0
    %v4337 = vadd.f32 0.0, %v4336
    %v4338 = vpop.f32.mrb[0].mxu0
    %4339 = vdwg.mxu0
    %v4340 = vadd.f32 %v3848, %v4266
    %v4341 = vxor.u32 %v4340, 2147483648
    %v4342 = vmul.f32 %v4341, 1.442695
    %v4343 = vpow.pop %v4342
    %v4344 = vadd.f32 %v4343, 1.0
    %v4345 = vrcp.pop %v4344
    %v4346 = vmul.f32 1.0, %v4345
    %v4347 = vadd.f32 %v3849, %v4268
    %v4348 = vxor.u32 %v4347, 2147483648
    %v4349 = vmul.f32 %v4348, 1.442695
    %v4350 = vpow.pop %v4349
    %v4351 = vadd.f32 %v4350, 1.0
    %v4352 = vrcp.pop %v4351
    %v4353 = vmul.f32 1.0, %v4352
    %v4354 = vadd.f32 %v4337, %v3871
    %v4355 = vmul.f32 %v4346, %v4354
    %v4356 = vadd.f32 %v3850, %v4355
    %v4357 = vtanh.pop %v4356
    %v4358 = vsub.f32 1.0, %v4353
    %v4359 = vmul.f32 %v4358, %v4357
    %v4360 = vmul.f32 %v4353, %v4198
    %v4361 = vadd.f32 %v4359, %v4360
    %4362 = vmatprep.subr.mxu0 %v3560
    %4363 = vmatpush1.msra.mxu0 %v3559
    %4364 = vmatprep.subr.mxu0 %v3563
    %4365 = vmatpush1.msra.mxu0 %v3562
    %4366 = vmatprep.subr.mxu0 %v3566
    %4367 = vmatpush1.msra.mxu0 %v3565
    %4368 = vmatprep.subr.mxu0 %v3569
    %4369 = vmatpush1.msra.mxu0 %v3568
    %4370 = vmatprep.subr.mxu0 %v3572
    %4371 = vmatpush1.msra.mxu0 %v3571
    %4372 = vmatprep.subr.mxu0 %v3575
    %4373 = vmatpush1.msra.mxu0 %v3574
    %4374 = vmatprep.subr.mxu0 %v3578
    %4375 = vmatpush1.msra.mxu0 %v3577
    %4376 = vmatprep.subr.mxu0 %v3581
    %4377 = vmatpush1.msra.mxu0 %v3580
    %4378 = vmatprep.subr.mxu0 %v3584
    %4379 = vmatpush1.msra.mxu0 %v3583
    %4380 = vmatprep.subr.mxu0 %v3587
    %4381 = vmatpush1.msra.mxu0 %v3586
    %4382 = vmatprep.subr.mxu0 %v3590
    %4383 = vmatpush1.msra.mxu0 %v3589
    %4384 = vmatprep.subr.mxu0 %v3593
    %4385 = vmatpush1.msra.mxu0 %v3592
    %4386 = vmatprep.subr.mxu0 %v3596
    %4387 = vmatpush1.msra.mxu0 %v3595
    %4388 = vmatprep.subr.mxu0 %v3599
    %4389 = vmatpush1.msra.mxu0 %v3598
    %4390 = vmatprep.subr.mxu0 %v3602
    %4391 = vmatpush1.msra.mxu0 %v3601
    %4392 = vmatprep.subr.mxu0 %v3605
    %4393 = vmatpush1.msra.mxu0 %v3604
    %4394 = vmatprep.subr.mxu0 0.0
    %4395 = vmatpush1.msra.mxu0 0.0
    %4396 = vmatprep.subr.mxu0 0.0
    %4397 = vmatpush1.msra.mxu0 0.0
    %4398 = vmatprep.subr.mxu0 0.0
    %4399 = vmatpush1.msra.mxu0 0.0
    %4400 = vmatprep.subr.mxu0 0.0
    %4401 = vmatpush1.msra.mxu0 0.0
    %4402 = vmatprep.subr.mxu0 0.0
    %4403 = vmatpush1.msra.mxu0 0.0
    %4404 = vmatprep.subr.mxu0 0.0
    %4405 = vmatpush1.msra.mxu0 0.0
    %4406 = vmatprep.subr.mxu0 0.0
    %4407 = vmatpush1.msra.mxu0 0.0
    %4408 = vmatprep.subr.mxu0 0.0
    %4409 = vmatpush1.msra.mxu0 0.0
    %4410 = vmatprep.subr.mxu0 0.0
    %4411 = vmatpush1.msra.mxu0 0.0
    %4412 = vmatprep.subr.mxu0 0.0
    %4413 = vmatpush1.msra.mxu0 0.0
    %4414 = vmatprep.subr.mxu0 0.0
    %4415 = vmatpush1.msra.mxu0 0.0
    %4416 = vmatprep.subr.mxu0 0.0
    %4417 = vmatpush1.msra.mxu0 0.0
    %4418 = vmatprep.subr.mxu0 0.0
    %4419 = vmatpush1.msra.mxu0 0.0
    %4420 = vmatprep.subr.mxu0 0.0
    %4421 = vmatpush1.msra.mxu0 0.0
    %4422 = vmatprep.subr.mxu0 0.0
    %4423 = vmatpush1.msra.mxu0 0.0
    %4424 = vmatprep.subr.mxu0 0.0
    %4425 = vmatpush1.msra.mxu0 0.0
    %4426 = vmatprep.mubr.f32.mxu0 0.0
    %4427 = vmatmul.mubr.f32.gmra.mrb[0].mxu0 %v4361
    %v4428 = vpop.f32.mrb[0].mxu0
    %v4429 = vadd.f32 0.0, %v4428
    %v4430 = vpop.f32.mrb[0].mxu0
    %v4431 = vadd.f32 0.0, %v4430
    %4432 = vdwg.mxu0
    %4433 = vmatprep.subr.mxu0 0.0
    %4434 = vmatpush1.msra.mxu0 %v3561
    %4435 = vmatprep.subr.mxu0 0.0
    %4436 = vmatpush1.msra.mxu0 %v3564
    %4437 = vmatprep.subr.mxu0 0.0
    %4438 = vmatpush1.msra.mxu0 %v3567
    %4439 = vmatprep.subr.mxu0 0.0
    %4440 = vmatpush1.msra.mxu0 %v3570
    %4441 = vmatprep.subr.mxu0 0.0
    %4442 = vmatpush1.msra.mxu0 %v3573
    %4443 = vmatprep.subr.mxu0 0.0
    %4444 = vmatpush1.msra.mxu0 %v3576
    %4445 = vmatprep.subr.mxu0 0.0
    %4446 = vmatpush1.msra.mxu0 %v3579
    %4447 = vmatprep.subr.mxu0 0.0
    %4448 = vmatpush1.msra.mxu0 %v3582
    %4449 = vmatprep.subr.mxu0 0.0
    %4450 = vmatpush1.msra.mxu0 %v3585
    %4451 = vmatprep.subr.mxu0 0.0
    %4452 = vmatpush1.msra.mxu0 %v3588
    %4453 = vmatprep.subr.mxu0 0.0
    %4454 = vmatpush1.msra.mxu0 %v3591
    %4455 = vmatprep.subr.mxu0 0.0
    %4456 = vmatpush1.msra.mxu0 %v3594
    %4457 = vmatprep.subr.mxu0 0.0
    %4458 = vmatpush1.msra.mxu0 %v3597
    %4459 = vmatprep.subr.mxu0 0.0
    %4460 = vmatpush1.msra.mxu0 %v3600
    %4461 = vmatprep.subr.mxu0 0.0
    %4462 = vmatpush1.msra.mxu0 %v3603
    %4463 = vmatprep.subr.mxu0 0.0
    %4464 = vmatpush1.msra.mxu0 %v3606
    %4465 = vmatprep.subr.mxu0 0.0
    %4466 = vmatpush1.msra.mxu0 0.0
    %4467 = vmatprep.subr.mxu0 0.0
    %4468 = vmatpush1.msra.mxu0 0.0
    %4469 = vmatprep.subr.mxu0 0.0
    %4470 = vmatpush1.msra.mxu0 0.0
    %4471 = vmatprep.subr.mxu0 0.0
    %4472 = vmatpush1.msra.mxu0 0.0
    %4473 = vmatprep.subr.mxu0 0.0
    %4474 = vmatpush1.msra.mxu0 0.0
    %4475 = vmatprep.subr.mxu0 0.0
    %4476 = vmatpush1.msra.mxu0 0.0
    %4477 = vmatprep.subr.mxu0 0.0
    %4478 = vmatpush1.msra.mxu0 0.0
    %4479 = vmatprep.subr.mxu0 0.0
    %4480 = vmatpush1.msra.mxu0 0.0
    %4481 = vmatprep.subr.mxu0 0.0
    %4482 = vmatpush1.msra.mxu0 0.0
    %4483 = vmatprep.subr.mxu0 0.0
    %4484 = vmatpush1.msra.mxu0 0.0
    %4485 = vmatprep.subr.mxu0 0.0
    %4486 = vmatpush1.msra.mxu0 0.0
    %4487 = vmatprep.subr.mxu0 0.0
    %4488 = vmatpush1.msra.mxu0 0.0
    %4489 = vmatprep.subr.mxu0 0.0
    %4490 = vmatpush1.msra.mxu0 0.0
    %4491 = vmatprep.subr.mxu0 0.0
    %4492 = vmatpush1.msra.mxu0 0.0
    %4493 = vmatprep.subr.mxu0 0.0
    %4494 = vmatpush1.msra.mxu0 0.0
    %4495 = vmatprep.subr.mxu0 0.0
    %4496 = vmatpush1.msra.mxu0 0.0
    %4497 = vmatprep.mubr.f32.mxu0 0.0
    %4498 = vmatmul.mubr.f32.gmra.mrb[0].mxu0 %v4361
    %v4499 = vpop.f32.mrb[0].mxu0
    %v4500 = vadd.f32 0.0, %v4499
    %v4501 = vpop.f32.mrb[0].mxu0
    %4502 = vdwg.mxu0
    %v4503 = vadd.f32 %v3851, %v4429
    %v4504 = vxor.u32 %v4503, 2147483648
    %v4505 = vmul.f32 %v4504, 1.442695
    %v4506 = vpow.pop %v4505
    %v4507 = vadd.f32 %v4506, 1.0
    %v4508 = vrcp.pop %v4507
    %v4509 = vmul.f32 1.0, %v4508
    %v4510 = vadd.f32 %v3852, %v4431
    %v4511 = vxor.u32 %v4510, 2147483648
    %v4512 = vmul.f32 %v4511, 1.442695
    %v4513 = vpow.pop %v4512
    %v4514 = vadd.f32 %v4513, 1.0
    %v4515 = vrcp.pop %v4514
    %v4516 = vmul.f32 1.0, %v4515
    %v4517 = vadd.f32 %v4500, %v3871
    %v4518 = vmul.f32 %v4509, %v4517
    %v4519 = vadd.f32 %v3853, %v4518
    %v4520 = vtanh.pop %v4519
    %v4521 = vsub.f32 1.0, %v4516
    %v4522 = vmul.f32 %v4521, %v4520
    %v4523 = vmul.f32 %v4516, %v4361
    %v4524 = vadd.f32 %v4522, %v4523
    %4525 = vmatprep.subr.mxu0 %v3560
    %4526 = vmatpush1.msra.mxu0 %v3559
    %4527 = vmatprep.subr.mxu0 %v3563
    %4528 = vmatpush1.msra.mxu0 %v3562
    %4529 = vmatprep.subr.mxu0 %v3566
    %4530 = vmatpush1.msra.mxu0 %v3565
    %4531 = vmatprep.subr.mxu0 %v3569
    %4532 = vmatpush1.msra.mxu0 %v3568
    %4533 = vmatprep.subr.mxu0 %v3572
    %4534 = vmatpush1.msra.mxu0 %v3571
    %4535 = vmatprep.subr.mxu0 %v3575
    %4536 = vmatpush1.msra.mxu0 %v3574
    %4537 = vmatprep.subr.mxu0 %v3578
    %4538 = vmatpush1.msra.mxu0 %v3577
    %4539 = vmatprep.subr.mxu0 %v3581
    %4540 = vmatpush1.msra.mxu0 %v3580
    %4541 = vmatprep.subr.mxu0 %v3584
    %4542 = vmatpush1.msra.mxu0 %v3583
    %4543 = vmatprep.subr.mxu0 %v3587
    %4544 = vmatpush1.msra.mxu0 %v3586
    %4545 = vmatprep.subr.mxu0 %v3590
    %4546 = vmatpush1.msra.mxu0 %v3589
    %4547 = vmatprep.subr.mxu0 %v3593
    %4548 = vmatpush1.msra.mxu0 %v3592
    %4549 = vmatprep.subr.mxu0 %v3596
    %4550 = vmatpush1.msra.mxu0 %v3595
    %4551 = vmatprep.subr.mxu0 %v3599
    %4552 = vmatpush1.msra.mxu0 %v3598
    %4553 = vmatprep.subr.mxu0 %v3602
    %4554 = vmatpush1.msra.mxu0 %v3601
    %4555 = vmatprep.subr.mxu0 %v3605
    %4556 = vmatpush1.msra.mxu0 %v3604
    %4557 = vmatprep.subr.mxu0 0.0
    %4558 = vmatpush1.msra.mxu0 0.0
    %4559 = vmatprep.subr.mxu0 0.0
    %4560 = vmatpush1.msra.mxu0 0.0
    %4561 = vmatprep.subr.mxu0 0.0
    %4562 = vmatpush1.msra.mxu0 0.0
    %4563 = vmatprep.subr.mxu0 0.0
    %4564 = vmatpush1.msra.mxu0 0.0
    %4565 = vmatprep.subr.mxu0 0.0
    %4566 = vmatpush1.msra.mxu0 0.0
    %4567 = vmatprep.subr.mxu0 0.0
    %4568 = vmatpush1.msra.mxu0 0.0
    %4569 = vmatprep.subr.mxu0 0.0
    %4570 = vmatpush1.msra.mxu0 0.0
    %4571 = vmatprep.subr.mxu0 0.0
    %4572 = vmatpush1.msra.mxu0 0.0
    %4573 = vmatprep.subr.mxu0 0.0
    %4574 = vmatpush1.msra.mxu0 0.0
    %4575 = vmatprep.subr.mxu0 0.0
    %4576 = vmatpush1.msra.mxu0 0.0
    %4577 = vmatprep.subr.mxu0 0.0
    %4578 = vmatpush1.msra.mxu0 0.0
    %4579 = vmatprep.subr.mxu0 0.0
    %4580 = vmatpush1.msra.mxu0 0.0
    %4581 = vmatprep.subr.mxu0 0.0
    %4582 = vmatpush1.msra.mxu0 0.0
    %4583 = vmatprep.subr.mxu0 0.0
    %4584 = vmatpush1.msra.mxu0 0.0
    %4585 = vmatprep.subr.mxu0 0.0
    %4586 = vmatpush1.msra.mxu0 0.0
    %4587 = vmatprep.subr.mxu0 0.0
    %4588 = vmatpush1.msra.mxu0 0.0
    %4589 = vmatprep.mubr.f32.mxu0 0.0
    %4590 = vmatmul.mubr.f32.gmra.mrb[0].mxu0 %v4524
    %v4591 = vpop.f32.mrb[0].mxu0
    %v4592 = vadd.f32 0.0, %v4591
    %v4593 = vpop.f32.mrb[0].mxu0
    %v4594 = vadd.f32 0.0, %v4593
    %4595 = vdwg.mxu0
    %4596 = vmatprep.subr.mxu0 0.0
    %4597 = vmatpush1.msra.mxu0 %v3561
    %4598 = vmatprep.subr.mxu0 0.0
    %4599 = vmatpush1.msra.mxu0 %v3564
    %4600 = vmatprep.subr.mxu0 0.0
    %4601 = vmatpush1.msra.mxu0 %v3567
    %4602 = vmatprep.subr.mxu0 0.0
    %4603 = vmatpush1.msra.mxu0 %v3570
    %4604 = vmatprep.subr.mxu0 0.0
    %4605 = vmatpush1.msra.mxu0 %v3573
    %4606 = vmatprep.subr.mxu0 0.0
    %4607 = vmatpush1.msra.mxu0 %v3576
    %4608 = vmatprep.subr.mxu0 0.0
    %4609 = vmatpush1.msra.mxu0 %v3579
    %4610 = vmatprep.subr.mxu0 0.0
    %4611 = vmatpush1.msra.mxu0 %v3582
    %4612 = vmatprep.subr.mxu0 0.0
    %4613 = vmatpush1.msra.mxu0 %v3585
    %4614 = vmatprep.subr.mxu0 0.0
    %4615 = vmatpush1.msra.mxu0 %v3588
    %4616 = vmatprep.subr.mxu0 0.0
    %4617 = vmatpush1.msra.mxu0 %v3591
    %4618 = vmatprep.subr.mxu0 0.0
    %4619 = vmatpush1.msra.mxu0 %v3594
    %4620 = vmatprep.subr.mxu0 0.0
    %4621 = vmatpush1.msra.mxu0 %v3597
    %4622 = vmatprep.subr.mxu0 0.0
    %4623 = vmatpush1.msra.mxu0 %v3600
    %4624 = vmatprep.subr.mxu0 0.0
    %4625 = vmatpush1.msra.mxu0 %v3603
    %4626 = vmatprep.subr.mxu0 0.0
    %4627 = vmatpush1.msra.mxu0 %v3606
    %4628 = vmatprep.subr.mxu0 0.0
    %4629 = vmatpush1.msra.mxu0 0.0
    %4630 = vmatprep.subr.mxu0 0.0
    %4631 = vmatpush1.msra.mxu0 0.0
    %4632 = vmatprep.subr.mxu0 0.0
    %4633 = vmatpush1.msra.mxu0 0.0
    %4634 = vmatprep.subr.mxu0 0.0
    %4635 = vmatpush1.msra.mxu0 0.0
    %4636 = vmatprep.subr.mxu0 0.0
    %4637 = vmatpush1.msra.mxu0 0.0
    %4638 = vmatprep.subr.mxu0 0.0
    %4639 = vmatpush1.msra.mxu0 0.0
    %4640 = vmatprep.subr.mxu0 0.0
    %4641 = vmatpush1.msra.mxu0 0.0
    %4642 = vmatprep.subr.mxu0 0.0
    %4643 = vmatpush1.msra.mxu0 0.0
    %4644 = vmatprep.subr.mxu0 0.0
    %4645 = vmatpush1.msra.mxu0 0.0
    %4646 = vmatprep.subr.mxu0 0.0
    %4647 = vmatpush1.msra.mxu0 0.0
    %4648 = vmatprep.subr.mxu0 0.0
    %4649 = vmatpush1.msra.mxu0 0.0
    %4650 = vmatprep.subr.mxu0 0.0
    %4651 = vmatpush1.msra.mxu0 0.0
    %4652 = vmatprep.subr.mxu0 0.0
    %4653 = vmatpush1.msra.mxu0 0.0
    %4654 = vmatprep.subr.mxu0 0.0
    %4655 = vmatpush1.msra.mxu0 0.0
    %4656 = vmatprep.subr.mxu0 0.0
    %4657 = vmatpush1.msra.mxu0 0.0
    %4658 = vmatprep.subr.mxu0 0.0
    %4659 = vmatpush1.msra.mxu0 0.0
    %4660 = vmatprep.mubr.f32.mxu0 0.0
    %4661 = vmatmul.mubr.f32.gmra.mrb[0].mxu0 %v4524
    %v4662 = vpop.f32.mrb[0].mxu0
    %v4663 = vadd.f32 0.0, %v4662
    %v4664 = vpop.f32.mrb[0].mxu0
    %4665 = vdwg.mxu0
    %v4666 = vadd.f32 %v3854, %v4592
    %v4667 = vxor.u32 %v4666, 2147483648
    %v4668 = vmul.f32 %v4667, 1.442695
    %v4669 = vpow.pop %v4668
    %v4670 = vadd.f32 %v4669, 1.0
    %v4671 = vrcp.pop %v4670
    %v4672 = vmul.f32 1.0, %v4671
    %v4673 = vadd.f32 %v3855, %v4594
    %v4674 = vxor.u32 %v4673, 2147483648
    %v4675 = vmul.f32 %v4674, 1.442695
    %v4676 = vpow.pop %v4675
    %v4677 = vadd.f32 %v4676, 1.0
    %v4678 = vrcp.pop %v4677
    %v4679 = vmul.f32 1.0, %v4678
    %v4680 = vadd.f32 %v4663, %v3871
    %v4681 = vmul.f32 %v4672, %v4680
    %v4682 = vadd.f32 %v3856, %v4681
    %v4683 = vtanh.pop %v4682
    %v4684 = vsub.f32 1.0, %v4679
    %v4685 = vmul.f32 %v4684, %v4683
    %v4686 = vmul.f32 %v4679, %v4524
    %v4687 = vadd.f32 %v4685, %v4686
    %4688 = vmatprep.subr.mxu0 %v3560
    %4689 = vmatpush1.msra.mxu0 %v3559
    %4690 = vmatprep.subr.mxu0 %v3563
    %4691 = vmatpush1.msra.mxu0 %v3562
    %4692 = vmatprep.subr.mxu0 %v3566
    %4693 = vmatpush1.msra.mxu0 %v3565
    %4694 = vmatprep.subr.mxu0 %v3569
    %4695 = vmatpush1.msra.mxu0 %v3568
    %4696 = vmatprep.subr.mxu0 %v3572
    %4697 = vmatpush1.msra.mxu0 %v3571
    %4698 = vmatprep.subr.mxu0 %v3575
    %4699 = vmatpush1.msra.mxu0 %v3574
    %4700 = vmatprep.subr.mxu0 %v3578
    %4701 = vmatpush1.msra.mxu0 %v3577
    %4702 = vmatprep.subr.mxu0 %v3581
    %4703 = vmatpush1.msra.mxu0 %v3580
    %4704 = vmatprep.subr.mxu0 %v3584
    %4705 = vmatpush1.msra.mxu0 %v3583
    %4706 = vmatprep.subr.mxu0 %v3587
    %4707 = vmatpush1.msra.mxu0 %v3586
    %4708 = vmatprep.subr.mxu0 %v3590
    %4709 = vmatpush1.msra.mxu0 %v3589
    %4710 = vmatprep.subr.mxu0 %v3593
    %4711 = vmatpush1.msra.mxu0 %v3592
    %4712 = vmatprep.subr.mxu0 %v3596
    %4713 = vmatpush1.msra.mxu0 %v3595
    %4714 = vmatprep.subr.mxu0 %v3599
    %4715 = vmatpush1.msra.mxu0 %v3598
    %4716 = vmatprep.subr.mxu0 %v3602
    %4717 = vmatpush1.msra.mxu0 %v3601
    %4718 = vmatprep.subr.mxu0 %v3605
    %4719 = vmatpush1.msra.mxu0 %v3604
    %4720 = vmatprep.subr.mxu0 0.0
    %4721 = vmatpush1.msra.mxu0 0.0
    %4722 = vmatprep.subr.mxu0 0.0
    %4723 = vmatpush1.msra.mxu0 0.0
    %4724 = vmatprep.subr.mxu0 0.0
    %4725 = vmatpush1.msra.mxu0 0.0
    %4726 = vmatprep.subr.mxu0 0.0
    %4727 = vmatpush1.msra.mxu0 0.0
    %4728 = vmatprep.subr.mxu0 0.0
    %4729 = vmatpush1.msra.mxu0 0.0
    %4730 = vmatprep.subr.mxu0 0.0
    %4731 = vmatpush1.msra.mxu0 0.0
    %4732 = vmatprep.subr.mxu0 0.0
    %4733 = vmatpush1.msra.mxu0 0.0
    %4734 = vmatprep.subr.mxu0 0.0
    %4735 = vmatpush1.msra.mxu0 0.0
    %4736 = vmatprep.subr.mxu0 0.0
    %4737 = vmatpush1.msra.mxu0 0.0
    %4738 = vmatprep.subr.mxu0 0.0
    %4739 = vmatpush1.msra.mxu0 0.0
    %4740 = vmatprep.subr.mxu0 0.0
    %4741 = vmatpush1.msra.mxu0 0.0
    %4742 = vmatprep.subr.mxu0 0.0
    %4743 = vmatpush1.msra.mxu0 0.0
    %4744 = vmatprep.subr.mxu0 0.0
    %4745 = vmatpush1.msra.mxu0 0.0
    %4746 = vmatprep.subr.mxu0 0.0
    %4747 = vmatpush1.msra.mxu0 0.0
    %4748 = vmatprep.subr.mxu0 0.0
    %4749 = vmatpush1.msra.mxu0 0.0
    %4750 = vmatprep.subr.mxu0 0.0
    %4751 = vmatpush1.msra.mxu0 0.0
    %4752 = vmatprep.mubr.f32.mxu0 0.0
    %4753 = vmatmul.mubr.f32.gmra.mrb[0].mxu0 %v4687
    %v4754 = vpop.f32.mrb[0].mxu0
    %v4755 = vadd.f32 0.0, %v4754
    %v4756 = vpop.f32.mrb[0].mxu0
    %v4757 = vadd.f32 0.0, %v4756
    %4758 = vdwg.mxu0
    %4759 = vmatprep.subr.mxu0 0.0
    %4760 = vmatpush1.msra.mxu0 %v3561
    %4761 = vmatprep.subr.mxu0 0.0
    %4762 = vmatpush1.msra.mxu0 %v3564
    %4763 = vmatprep.subr.mxu0 0.0
    %4764 = vmatpush1.msra.mxu0 %v3567
    %4765 = vmatprep.subr.mxu0 0.0
    %4766 = vmatpush1.msra.mxu0 %v3570
    %4767 = vmatprep.subr.mxu0 0.0
    %4768 = vmatpush1.msra.mxu0 %v3573
    %4769 = vmatprep.subr.mxu0 0.0
    %4770 = vmatpush1.msra.mxu0 %v3576
    %4771 = vmatprep.subr.mxu0 0.0
    %4772 = vmatpush1.msra.mxu0 %v3579
    %4773 = vmatprep.subr.mxu0 0.0
    %4774 = vmatpush1.msra.mxu0 %v3582
    %4775 = vmatprep.subr.mxu0 0.0
    %4776 = vmatpush1.msra.mxu0 %v3585
    %4777 = vmatprep.subr.mxu0 0.0
    %4778 = vmatpush1.msra.mxu0 %v3588
    %4779 = vmatprep.subr.mxu0 0.0
    %4780 = vmatpush1.msra.mxu0 %v3591
    %4781 = vmatprep.subr.mxu0 0.0
    %4782 = vmatpush1.msra.mxu0 %v3594
    %4783 = vmatprep.subr.mxu0 0.0
    %4784 = vmatpush1.msra.mxu0 %v3597
    %4785 = vmatprep.subr.mxu0 0.0
    %4786 = vmatpush1.msra.mxu0 %v3600
    %4787 = vmatprep.subr.mxu0 0.0
    %4788 = vmatpush1.msra.mxu0 %v3603
    %4789 = vmatprep.subr.mxu0 0.0
    %4790 = vmatpush1.msra.mxu0 %v3606
    %4791 = vmatprep.subr.mxu0 0.0
    %4792 = vmatpush1.msra.mxu0 0.0
    %4793 = vmatprep.subr.mxu0 0.0
    %4794 = vmatpush1.msra.mxu0 0.0
    %4795 = vmatprep.subr.mxu0 0.0
    %4796 = vmatpush1.msra.mxu0 0.0
    %4797 = vmatprep.subr.mxu0 0.0
    %4798 = vmatpush1.msra.mxu0 0.0
    %4799 = vmatprep.subr.mxu0 0.0
    %4800 = vmatpush1.msra.mxu0 0.0
    %4801 = vmatprep.subr.mxu0 0.0
    %4802 = vmatpush1.msra.mxu0 0.0
    %4803 = vmatprep.subr.mxu0 0.0
    %4804 = vmatpush1.msra.mxu0 0.0
    %4805 = vmatprep.subr.mxu0 0.0
    %4806 = vmatpush1.msra.mxu0 0.0
    %4807 = vmatprep.subr.mxu0 0.0
    %4808 = vmatpush1.msra.mxu0 0.0
    %4809 = vmatprep.subr.mxu0 0.0
    %4810 = vmatpush1.msra.mxu0 0.0
    %4811 = vmatprep.subr.mxu0 0.0
    %4812 = vmatpush1.msra.mxu0 0.0
    %4813 = vmatprep.subr.mxu0 0.0
    %4814 = vmatpush1.msra.mxu0 0.0
    %4815 = vmatprep.subr.mxu0 0.0
    %4816 = vmatpush1.msra.mxu0 0.0
    %4817 = vmatprep.subr.mxu0 0.0
    %4818 = vmatpush1.msra.mxu0 0.0
    %4819 = vmatprep.subr.mxu0 0.0
    %4820 = vmatpush1.msra.mxu0 0.0
    %4821 = vmatprep.subr.mxu0 0.0
    %4822 = vmatpush1.msra.mxu0 0.0
    %4823 = vmatprep.mubr.f32.mxu0 0.0
    %4824 = vmatmul.mubr.f32.gmra.mrb[0].mxu0 %v4687
    %v4825 = vpop.f32.mrb[0].mxu0
    %v4826 = vadd.f32 0.0, %v4825
    %v4827 = vpop.f32.mrb[0].mxu0
    %4828 = vdwg.mxu0
    %v4829 = vadd.f32 %v3857, %v4755
    %v4830 = vxor.u32 %v4829, 2147483648
    %v4831 = vmul.f32 %v4830, 1.442695
    %v4832 = vpow.pop %v4831
    %v4833 = vadd.f32 %v4832, 1.0
    %v4834 = vrcp.pop %v4833
    %v4835 = vmul.f32 1.0, %v4834
    %v4836 = vadd.f32 %v3858, %v4757
    %v4837 = vxor.u32 %v4836, 2147483648
    %v4838 = vmul.f32 %v4837, 1.442695
    %v4839 = vpow.pop %v4838
    %v4840 = vadd.f32 %v4839, 1.0
    %v4841 = vrcp.pop %v4840
    %v4842 = vmul.f32 1.0, %v4841
    %v4843 = vadd.f32 %v4826, %v3871
    %v4844 = vmul.f32 %v4835, %v4843
    %v4845 = vadd.f32 %v3859, %v4844
    %v4846 = vtanh.pop %v4845
    %v4847 = vsub.f32 1.0, %v4842
    %v4848 = vmul.f32 %v4847, %v4846
    %v4849 = vmul.f32 %v4842, %v4687
    %v4850 = vadd.f32 %v4848, %v4849
    %4851 = vmatprep.subr.mxu0 %v3560
    %4852 = vmatpush1.msra.mxu0 %v3559
    %4853 = vmatprep.subr.mxu0 %v3563
    %4854 = vmatpush1.msra.mxu0 %v3562
    %4855 = vmatprep.subr.mxu0 %v3566
    %4856 = vmatpush1.msra.mxu0 %v3565
    %4857 = vmatprep.subr.mxu0 %v3569
    %4858 = vmatpush1.msra.mxu0 %v3568
    %4859 = vmatprep.subr.mxu0 %v3572
    %4860 = vmatpush1.msra.mxu0 %v3571
    %4861 = vmatprep.subr.mxu0 %v3575
    %4862 = vmatpush1.msra.mxu0 %v3574
    %4863 = vmatprep.subr.mxu0 %v3578
    %4864 = vmatpush1.msra.mxu0 %v3577
    %4865 = vmatprep.subr.mxu0 %v3581
    %4866 = vmatpush1.msra.mxu0 %v3580
    %4867 = vmatprep.subr.mxu0 %v3584
    %4868 = vmatpush1.msra.mxu0 %v3583
    %4869 = vmatprep.subr.mxu0 %v3587
    %4870 = vmatpush1.msra.mxu0 %v3586
    %4871 = vmatprep.subr.mxu0 %v3590
    %4872 = vmatpush1.msra.mxu0 %v3589
    %4873 = vmatprep.subr.mxu0 %v3593
    %4874 = vmatpush1.msra.mxu0 %v3592
    %4875 = vmatprep.subr.mxu0 %v3596
    %4876 = vmatpush1.msra.mxu0 %v3595
    %4877 = vmatprep.subr.mxu0 %v3599
    %4878 = vmatpush1.msra.mxu0 %v3598
    %4879 = vmatprep.subr.mxu0 %v3602
    %4880 = vmatpush1.msra.mxu0 %v3601
    %4881 = vmatprep.subr.mxu0 %v3605
    %4882 = vmatpush1.msra.mxu0 %v3604
    %4883 = vmatprep.subr.mxu0 0.0
    %4884 = vmatpush1.msra.mxu0 0.0
    %4885 = vmatprep.subr.mxu0 0.0
    %4886 = vmatpush1.msra.mxu0 0.0
    %4887 = vmatprep.subr.mxu0 0.0
    %4888 = vmatpush1.msra.mxu0 0.0
    %4889 = vmatprep.subr.mxu0 0.0
    %4890 = vmatpush1.msra.mxu0 0.0
    %4891 = vmatprep.subr.mxu0 0.0
    %4892 = vmatpush1.msra.mxu0 0.0
    %4893 = vmatprep.subr.mxu0 0.0
    %4894 = vmatpush1.msra.mxu0 0.0
    %4895 = vmatprep.subr.mxu0 0.0
    %4896 = vmatpush1.msra.mxu0 0.0
    %4897 = vmatprep.subr.mxu0 0.0
    %4898 = vmatpush1.msra.mxu0 0.0
    %4899 = vmatprep.subr.mxu0 0.0
    %4900 = vmatpush1.msra.mxu0 0.0
    %4901 = vmatprep.subr.mxu0 0.0
    %4902 = vmatpush1.msra.mxu0 0.0
    %4903 = vmatprep.subr.mxu0 0.0
    %4904 = vmatpush1.msra.mxu0 0.0
    %4905 = vmatprep.subr.mxu0 0.0
    %4906 = vmatpush1.msra.mxu0 0.0
    %4907 = vmatprep.subr.mxu0 0.0
    %4908 = vmatpush1.msra.mxu0 0.0
    %4909 = vmatprep.subr.mxu0 0.0
    %4910 = vmatpush1.msra.mxu0 0.0
    %4911 = vmatprep.subr.mxu0 0.0
    %4912 = vmatpush1.msra.mxu0 0.0
    %4913 = vmatprep.subr.mxu0 0.0
    %4914 = vmatpush1.msra.mxu0 0.0
    %4915 = vmatprep.mubr.f32.mxu0 0.0
    %4916 = vmatmul.mubr.f32.gmra.mrb[0].mxu0 %v4850
    %v4917 = vpop.f32.mrb[0].mxu0
    %v4918 = vadd.f32 0.0, %v4917
    %v4919 = vpop.f32.mrb[0].mxu0
    %v4920 = vadd.f32 0.0, %v4919
    %4921 = vdwg.mxu0
    %4922 = vmatprep.subr.mxu0 0.0
    %4923 = vmatpush1.msra.mxu0 %v3561
    %4924 = vmatprep.subr.mxu0 0.0
    %4925 = vmatpush1.msra.mxu0 %v3564
    %4926 = vmatprep.subr.mxu0 0.0
    %4927 = vmatpush1.msra.mxu0 %v3567
    %4928 = vmatprep.subr.mxu0 0.0
    %4929 = vmatpush1.msra.mxu0 %v3570
    %4930 = vmatprep.subr.mxu0 0.0
    %4931 = vmatpush1.msra.mxu0 %v3573
    %4932 = vmatprep.subr.mxu0 0.0
    %4933 = vmatpush1.msra.mxu0 %v3576
    %4934 = vmatprep.subr.mxu0 0.0
    %4935 = vmatpush1.msra.mxu0 %v3579
    %4936 = vmatprep.subr.mxu0 0.0
    %4937 = vmatpush1.msra.mxu0 %v3582
    %4938 = vmatprep.subr.mxu0 0.0
    %4939 = vmatpush1.msra.mxu0 %v3585
    %4940 = vmatprep.subr.mxu0 0.0
    %4941 = vmatpush1.msra.mxu0 %v3588
    %4942 = vmatprep.subr.mxu0 0.0
    %4943 = vmatpush1.msra.mxu0 %v3591
    %4944 = vmatprep.subr.mxu0 0.0
    %4945 = vmatpush1.msra.mxu0 %v3594
    %4946 = vmatprep.subr.mxu0 0.0
    %4947 = vmatpush1.msra.mxu0 %v3597
    %4948 = vmatprep.subr.mxu0 0.0
    %4949 = vmatpush1.msra.mxu0 %v3600
    %4950 = vmatprep.subr.mxu0 0.0
    %4951 = vmatpush1.msra.mxu0 %v3603
    %4952 = vmatprep.subr.mxu0 0.0
    %4953 = vmatpush1.msra.mxu0 %v3606
    %4954 = vmatprep.subr.mxu0 0.0
    %4955 = vmatpush1.msra.mxu0 0.0
    %4956 = vmatprep.subr.mxu0 0.0
    %4957 = vmatpush1.msra.mxu0 0.0
    %4958 = vmatprep.subr.mxu0 0.0
    %4959 = vmatpush1.msra.mxu0 0.0
    %4960 = vmatprep.subr.mxu0 0.0
    %4961 = vmatpush1.msra.mxu0 0.0
    %4962 = vmatprep.subr.mxu0 0.0
    %4963 = vmatpush1.msra.mxu0 0.0
    %4964 = vmatprep.subr.mxu0 0.0
    %4965 = vmatpush1.msra.mxu0 0.0
    %4966 = vmatprep.subr.mxu0 0.0
    %4967 = vmatpush1.msra.mxu0 0.0
    %4968 = vmatprep.subr.mxu0 0.0
    %4969 = vmatpush1.msra.mxu0 0.0
    %4970 = vmatprep.subr.mxu0 0.0
    %4971 = vmatpush1.msra.mxu0 0.0
    %4972 = vmatprep.subr.mxu0 0.0
    %4973 = vmatpush1.msra.mxu0 0.0
    %4974 = vmatprep.subr.mxu0 0.0
    %4975 = vmatpush1.msra.mxu0 0.0
    %4976 = vmatprep.subr.mxu0 0.0
    %4977 = vmatpush1.msra.mxu0 0.0
    %4978 = vmatprep.subr.mxu0 0.0
    %4979 = vmatpush1.msra.mxu0 0.0
    %4980 = vmatprep.subr.mxu0 0.0
    %4981 = vmatpush1.msra.mxu0 0.0
    %4982 = vmatprep.subr.mxu0 0.0
    %4983 = vmatpush1.msra.mxu0 0.0
    %4984 = vmatprep.subr.mxu0 0.0
    %4985 = vmatpush1.msra.mxu0 0.0
    %4986 = vmatprep.mubr.f32.mxu0 0.0
    %4987 = vmatmul.mubr.f32.gmra.mrb[0].mxu0 %v4850
    %v4988 = vpop.f32.mrb[0].mxu0
    %v4989 = vadd.f32 0.0, %v4988
    %v4990 = vpop.f32.mrb[0].mxu0
    %4991 = vdwg.mxu0
    %v4992 = vadd.f32 %v3860, %v4918
    %v4993 = vxor.u32 %v4992, 2147483648
    %v4994 = vmul.f32 %v4993, 1.442695
    %v4995 = vpow.pop %v4994
    %v4996 = vadd.f32 %v4995, 1.0
    %v4997 = vrcp.pop %v4996
    %v4998 = vmul.f32 1.0, %v4997
    %v4999 = vadd.f32 %v3861, %v4920
    %v5000 = vxor.u32 %v4999, 2147483648
    %v5001 = vmul.f32 %v5000, 1.442695
    %v5002 = vpow.pop %v5001
    %v5003 = vadd.f32 %v5002, 1.0
    %v5004 = vrcp.pop %v5003
    %v5005 = vmul.f32 1.0, %v5004
    %v5006 = vadd.f32 %v4989, %v3871
    %v5007 = vmul.f32 %v4998, %v5006
    %v5008 = vadd.f32 %v3862, %v5007
    %v5009 = vtanh.pop %v5008
    %v5010 = vsub.f32 1.0, %v5005
    %v5011 = vmul.f32 %v5010, %v5009
    %v5012 = vmul.f32 %v5005, %v4850
    %v5013 = vadd.f32 %v5011, %v5012
    %5014 = vmatprep.subr.mxu0 %v3560
    %5015 = vmatpush1.msra.mxu0 %v3559
    %5016 = vmatprep.subr.mxu0 %v3563
    %5017 = vmatpush1.msra.mxu0 %v3562
    %5018 = vmatprep.subr.mxu0 %v3566
    %5019 = vmatpush1.msra.mxu0 %v3565
    %5020 = vmatprep.subr.mxu0 %v3569
    %5021 = vmatpush1.msra.mxu0 %v3568
    %5022 = vmatprep.subr.mxu0 %v3572
    %5023 = vmatpush1.msra.mxu0 %v3571
    %5024 = vmatprep.subr.mxu0 %v3575
    %5025 = vmatpush1.msra.mxu0 %v3574
    %5026 = vmatprep.subr.mxu0 %v3578
    %5027 = vmatpush1.msra.mxu0 %v3577
    %5028 = vmatprep.subr.mxu0 %v3581
    %5029 = vmatpush1.msra.mxu0 %v3580
    %5030 = vmatprep.subr.mxu0 %v3584
    %5031 = vmatpush1.msra.mxu0 %v3583
    %5032 = vmatprep.subr.mxu0 %v3587
    %5033 = vmatpush1.msra.mxu0 %v3586
    %5034 = vmatprep.subr.mxu0 %v3590
    %5035 = vmatpush1.msra.mxu0 %v3589
    %5036 = vmatprep.subr.mxu0 %v3593
    %5037 = vmatpush1.msra.mxu0 %v3592
    %5038 = vmatprep.subr.mxu0 %v3596
    %5039 = vmatpush1.msra.mxu0 %v3595
    %5040 = vmatprep.subr.mxu0 %v3599
    %5041 = vmatpush1.msra.mxu0 %v3598
    %5042 = vmatprep.subr.mxu0 %v3602
    %5043 = vmatpush1.msra.mxu0 %v3601
    %5044 = vmatprep.subr.mxu0 %v3605
    %5045 = vmatpush1.msra.mxu0 %v3604
    %5046 = vmatprep.subr.mxu0 0.0
    %5047 = vmatpush1.msra.mxu0 0.0
    %5048 = vmatprep.subr.mxu0 0.0
    %5049 = vmatpush1.msra.mxu0 0.0
    %5050 = vmatprep.subr.mxu0 0.0
    %5051 = vmatpush1.msra.mxu0 0.0
    %5052 = vmatprep.subr.mxu0 0.0
    %5053 = vmatpush1.msra.mxu0 0.0
    %5054 = vmatprep.subr.mxu0 0.0
    %5055 = vmatpush1.msra.mxu0 0.0
    %5056 = vmatprep.subr.mxu0 0.0
    %5057 = vmatpush1.msra.mxu0 0.0
    %5058 = vmatprep.subr.mxu0 0.0
    %5059 = vmatpush1.msra.mxu0 0.0
    %5060 = vmatprep.subr.mxu0 0.0
    %5061 = vmatpush1.msra.mxu0 0.0
    %5062 = vmatprep.subr.mxu0 0.0
    %5063 = vmatpush1.msra.mxu0 0.0
    %5064 = vmatprep.subr.mxu0 0.0
    %5065 = vmatpush1.msra.mxu0 0.0
    %5066 = vmatprep.subr.mxu0 0.0
    %5067 = vmatpush1.msra.mxu0 0.0
    %5068 = vmatprep.subr.mxu0 0.0
    %5069 = vmatpush1.msra.mxu0 0.0
    %5070 = vmatprep.subr.mxu0 0.0
    %5071 = vmatpush1.msra.mxu0 0.0
    %5072 = vmatprep.subr.mxu0 0.0
    %5073 = vmatpush1.msra.mxu0 0.0
    %5074 = vmatprep.subr.mxu0 0.0
    %5075 = vmatpush1.msra.mxu0 0.0
    %5076 = vmatprep.subr.mxu0 0.0
    %5077 = vmatpush1.msra.mxu0 0.0
    %5078 = vmatprep.mubr.f32.mxu0 0.0
    %5079 = vmatmul.mubr.f32.gmra.mrb[0].mxu0 %v5013
    %v5080 = vpop.f32.mrb[0].mxu0
    %v5081 = vadd.f32 0.0, %v5080
    %v5082 = vpop.f32.mrb[0].mxu0
    %v5083 = vadd.f32 0.0, %v5082
    %5084 = vdwg.mxu0
    %5085 = vmatprep.subr.mxu0 0.0
    %5086 = vmatpush1.msra.mxu0 %v3561
    %5087 = vmatprep.subr.mxu0 0.0
    %5088 = vmatpush1.msra.mxu0 %v3564
    %5089 = vmatprep.subr.mxu0 0.0
    %5090 = vmatpush1.msra.mxu0 %v3567
    %5091 = vmatprep.subr.mxu0 0.0
    %5092 = vmatpush1.msra.mxu0 %v3570
    %5093 = vmatprep.subr.mxu0 0.0
    %5094 = vmatpush1.msra.mxu0 %v3573
    %5095 = vmatprep.subr.mxu0 0.0
    %5096 = vmatpush1.msra.mxu0 %v3576
    %5097 = vmatprep.subr.mxu0 0.0
    %5098 = vmatpush1.msra.mxu0 %v3579
    %5099 = vmatprep.subr.mxu0 0.0
    %5100 = vmatpush1.msra.mxu0 %v3582
    %5101 = vmatprep.subr.mxu0 0.0
    %5102 = vmatpush1.msra.mxu0 %v3585
    %5103 = vmatprep.subr.mxu0 0.0
    %5104 = vmatpush1.msra.mxu0 %v3588
    %5105 = vmatprep.subr.mxu0 0.0
    %5106 = vmatpush1.msra.mxu0 %v3591
    %5107 = vmatprep.subr.mxu0 0.0
    %5108 = vmatpush1.msra.mxu0 %v3594
    %5109 = vmatprep.subr.mxu0 0.0
    %5110 = vmatpush1.msra.mxu0 %v3597
    %5111 = vmatprep.subr.mxu0 0.0
    %5112 = vmatpush1.msra.mxu0 %v3600
    %5113 = vmatprep.subr.mxu0 0.0
    %5114 = vmatpush1.msra.mxu0 %v3603
    %5115 = vmatprep.subr.mxu0 0.0
    %5116 = vmatpush1.msra.mxu0 %v3606
    %5117 = vmatprep.subr.mxu0 0.0
    %5118 = vmatpush1.msra.mxu0 0.0
    %5119 = vmatprep.subr.mxu0 0.0
    %5120 = vmatpush1.msra.mxu0 0.0
    %5121 = vmatprep.subr.mxu0 0.0
    %5122 = vmatpush1.msra.mxu0 0.0
    %5123 = vmatprep.subr.mxu0 0.0
    %5124 = vmatpush1.msra.mxu0 0.0
    %5125 = vmatprep.subr.mxu0 0.0
    %5126 = vmatpush1.msra.mxu0 0.0
    %5127 = vmatprep.subr.mxu0 0.0
    %5128 = vmatpush1.msra.mxu0 0.0
    %5129 = vmatprep.subr.mxu0 0.0
    %5130 = vmatpush1.msra.mxu0 0.0
    %5131 = vmatprep.subr.mxu0 0.0
    %5132 = vmatpush1.msra.mxu0 0.0
    %5133 = vmatprep.subr.mxu0 0.0
    %5134 = vmatpush1.msra.mxu0 0.0
    %5135 = vmatprep.subr.mxu0 0.0
    %5136 = vmatpush1.msra.mxu0 0.0
    %5137 = vmatprep.subr.mxu0 0.0
    %5138 = vmatpush1.msra.mxu0 0.0
    %5139 = vmatprep.subr.mxu0 0.0
    %5140 = vmatpush1.msra.mxu0 0.0
    %5141 = vmatprep.subr.mxu0 0.0
    %5142 = vmatpush1.msra.mxu0 0.0
    %5143 = vmatprep.subr.mxu0 0.0
    %5144 = vmatpush1.msra.mxu0 0.0
    %5145 = vmatprep.subr.mxu0 0.0
    %5146 = vmatpush1.msra.mxu0 0.0
    %5147 = vmatprep.subr.mxu0 0.0
    %5148 = vmatpush1.msra.mxu0 0.0
    %5149 = vmatprep.mubr.f32.mxu0 0.0
    %5150 = vmatmul.mubr.f32.gmra.mrb[0].mxu0 %v5013
    %v5151 = vpop.f32.mrb[0].mxu0
    %v5152 = vadd.f32 0.0, %v5151
    %v5153 = vpop.f32.mrb[0].mxu0
    %5154 = vdwg.mxu0
    %v5155 = vadd.f32 %v3863, %v5081
    %v5156 = vxor.u32 %v5155, 2147483648
    %v5157 = vmul.f32 %v5156, 1.442695
    %v5158 = vpow.pop %v5157
    %v5159 = vadd.f32 %v5158, 1.0
    %v5160 = vrcp.pop %v5159
    %v5161 = vmul.f32 1.0, %v5160
    %v5162 = vadd.f32 %v3864, %v5083
    %v5163 = vxor.u32 %v5162, 2147483648
    %v5164 = vmul.f32 %v5163, 1.442695
    %v5165 = vpow.pop %v5164
    %v5166 = vadd.f32 %v5165, 1.0
    %v5167 = vrcp.pop %v5166
    %v5168 = vmul.f32 1.0, %v5167
    %v5169 = vadd.f32 %v5152, %v3871
    %v5170 = vmul.f32 %v5161, %v5169
    %v5171 = vadd.f32 %v3865, %v5170
    %v5172 = vtanh.pop %v5171
    %v5173 = vsub.f32 1.0, %v5168
    %v5174 = vmul.f32 %v5173, %v5172
    %v5175 = vmul.f32 %v5168, %v5013
    %v5176 = vadd.f32 %v5174, %v5175
    %v5177 = vsel %vm161, %v4035, %v5176
    %v5178 = vsel %vm161, %v4198, %v5013
    %v5179 = vsel %vm161, %v4361, %v4850
    %v5180 = vsel %vm161, %v4524, %v4687
    %v5181 = vsel %vm161, %v4687, %v4524
    %v5182 = vsel %vm161, %v4850, %v4361
    %v5183 = vsel %vm161, %v5013, %v4198
    %v5184 = vsel %vm161, %v5176, %v4035
    %v5185 = vmax.f32 %v5177, 0.0
    %v5186 = vmax.f32 %v5178, 0.0
    %v5187 = vmax.f32 %v5179, 0.0
    %v5188 = vmax.f32 %v5180, 0.0
    %v5189 = vmax.f32 %v5181, 0.0
    %v5190 = vmax.f32 %v5182, 0.0
    %v5191 = vmax.f32 %v5183, 0.0
    %v5192 = vmax.f32 %v5184, 0.0
    %v5193 = vld [vmem:[%s13] sm:$0xff]
    %v5194 = vld [vmem:[%s13 + $0x8] sm:$0xff]
    %v5195 = vld [vmem:[%s13 + $0x10] sm:$0xff]
    %v5196 = vld [vmem:[%s13 + $0x18] sm:$0xff]
    %v5197 = vld [vmem:[%s13 + $0x20] sm:$0xff]
    %v5198 = vld [vmem:[%s13 + $0x28] sm:$0xff]
    %v5199 = vld [vmem:[%s13 + $0x30] sm:$0xff]
    %v5200 = vld [vmem:[%s13 + $0x38] sm:$0xff]
    %v5201 = vld [vmem:[%s13 + $0x40] sm:$0xff]
    %v5202 = vld [vmem:[%s13 + $0x48] sm:$0xff]
    %v5203 = vld [vmem:[%s13 + $0x50] sm:$0xff]
    %v5204 = vld [vmem:[%s13 + $0x58] sm:$0xff]
    %v5205 = vld [vmem:[%s13 + $0x60] sm:$0xff]
    %v5206 = vld [vmem:[%s13 + $0x68] sm:$0xff]
    %v5207 = vld [vmem:[%s13 + $0x70] sm:$0xff]
    %v5208 = vld [vmem:[%s13 + $0x78] sm:$0xff]
    %v5209 = vld [vmem:[%s14] sm:$0x1]
    %v5211 = vlaneseq
    %v5212 = vshrl.u32 %v5211, 7
    %v5213 = vsub.s32 0, %v5212
    %v5214 = vrot.slane %v5209, %v5213
    %5216 = vmatprep.subr.mxu0 0.0
    %5217 = vmatpush1.msra.mxu0 %v5193
    %5218 = vmatprep.subr.mxu0 0.0
    %5219 = vmatpush1.msra.mxu0 %v5194
    %5220 = vmatprep.subr.mxu0 0.0
    %5221 = vmatpush1.msra.mxu0 %v5195
    %5222 = vmatprep.subr.mxu0 0.0
    %5223 = vmatpush1.msra.mxu0 %v5196
    %5224 = vmatprep.subr.mxu0 0.0
    %5225 = vmatpush1.msra.mxu0 %v5197
    %5226 = vmatprep.subr.mxu0 0.0
    %5227 = vmatpush1.msra.mxu0 %v5198
    %5228 = vmatprep.subr.mxu0 0.0
    %5229 = vmatpush1.msra.mxu0 %v5199
    %5230 = vmatprep.subr.mxu0 0.0
    %5231 = vmatpush1.msra.mxu0 %v5200
    %5232 = vmatprep.subr.mxu0 0.0
    %5233 = vmatpush1.msra.mxu0 %v5201
    %5234 = vmatprep.subr.mxu0 0.0
    %5235 = vmatpush1.msra.mxu0 %v5202
    %5236 = vmatprep.subr.mxu0 0.0
    %5237 = vmatpush1.msra.mxu0 %v5203
    %5238 = vmatprep.subr.mxu0 0.0
    %5239 = vmatpush1.msra.mxu0 %v5204
    %5240 = vmatprep.subr.mxu0 0.0
    %5241 = vmatpush1.msra.mxu0 %v5205
    %5242 = vmatprep.subr.mxu0 0.0
    %5243 = vmatpush1.msra.mxu0 %v5206
    %5244 = vmatprep.subr.mxu0 0.0
    %5245 = vmatpush1.msra.mxu0 %v5207
    %5246 = vmatprep.subr.mxu0 0.0
    %5247 = vmatpush1.msra.mxu0 %v5208
    %5248 = vmatprep.subr.mxu0 0.0
    %5249 = vmatpush1.msra.mxu0 0.0
    %5250 = vmatprep.subr.mxu0 0.0
    %5251 = vmatpush1.msra.mxu0 0.0
    %5252 = vmatprep.subr.mxu0 0.0
    %5253 = vmatpush1.msra.mxu0 0.0
    %5254 = vmatprep.subr.mxu0 0.0
    %5255 = vmatpush1.msra.mxu0 0.0
    %5256 = vmatprep.subr.mxu0 0.0
    %5257 = vmatpush1.msra.mxu0 0.0
    %5258 = vmatprep.subr.mxu0 0.0
    %5259 = vmatpush1.msra.mxu0 0.0
    %5260 = vmatprep.subr.mxu0 0.0
    %5261 = vmatpush1.msra.mxu0 0.0
    %5262 = vmatprep.subr.mxu0 0.0
    %5263 = vmatpush1.msra.mxu0 0.0
    %5264 = vmatprep.subr.mxu0 0.0
    %5265 = vmatpush1.msra.mxu0 0.0
    %5266 = vmatprep.subr.mxu0 0.0
    %5267 = vmatpush1.msra.mxu0 0.0
    %5268 = vmatprep.subr.mxu0 0.0
    %5269 = vmatpush1.msra.mxu0 0.0
    %5270 = vmatprep.subr.mxu0 0.0
    %5271 = vmatpush1.msra.mxu0 0.0
    %5272 = vmatprep.subr.mxu0 0.0
    %5273 = vmatpush1.msra.mxu0 0.0
    %5274 = vmatprep.subr.mxu0 0.0
    %5275 = vmatpush1.msra.mxu0 0.0
    %5276 = vmatprep.subr.mxu0 0.0
    %5277 = vmatpush1.msra.mxu0 0.0
    %5278 = vmatprep.subr.mxu0 0.0
    %5279 = vmatpush1.msra.mxu0 0.0
    %5280 = vmatprep.mubr.f32.mxu0 0.0
    %5281 = vmatmul.mubr.f32.gmra.mrb[0].mxu0 %v5185
    %v5282 = vpop.f32.mrb[0].mxu0
    %v5283 = vadd.f32 %v5214, %v5282
    %v5284 = vpop.f32.mrb[0].mxu0
    %5285 = vmatprep.mubr.f32.mxu0 0.0
    %5286 = vmatmul.mubr.f32.gmra.mrb[0].mxu0 %v5186
    %v5287 = vpop.f32.mrb[0].mxu0
    %v5288 = vadd.f32 %v5214, %v5287
    %v5289 = vpop.f32.mrb[0].mxu0
    %5290 = vmatprep.mubr.f32.mxu0 0.0
    %5291 = vmatmul.mubr.f32.gmra.mrb[0].mxu0 %v5187
    %v5292 = vpop.f32.mrb[0].mxu0
    %v5293 = vadd.f32 %v5214, %v5292
    %v5294 = vpop.f32.mrb[0].mxu0
    %5295 = vmatprep.mubr.f32.mxu0 0.0
    %5296 = vmatmul.mubr.f32.gmra.mrb[0].mxu0 %v5188
    %v5297 = vpop.f32.mrb[0].mxu0
    %v5298 = vadd.f32 %v5214, %v5297
    %v5299 = vpop.f32.mrb[0].mxu0
    %5300 = vmatprep.mubr.f32.mxu0 0.0
    %5301 = vmatmul.mubr.f32.gmra.mrb[0].mxu0 %v5189
    %v5302 = vpop.f32.mrb[0].mxu0
    %v5303 = vadd.f32 %v5214, %v5302
    %v5304 = vpop.f32.mrb[0].mxu0
    %5305 = vmatprep.mubr.f32.mxu0 0.0
    %5306 = vmatmul.mubr.f32.gmra.mrb[0].mxu0 %v5190
    %v5307 = vpop.f32.mrb[0].mxu0
    %v5308 = vadd.f32 %v5214, %v5307
    %v5309 = vpop.f32.mrb[0].mxu0
    %5310 = vmatprep.mubr.f32.mxu0 0.0
    %5311 = vmatmul.mubr.f32.gmra.mrb[0].mxu0 %v5191
    %v5312 = vpop.f32.mrb[0].mxu0
    %v5313 = vadd.f32 %v5214, %v5312
    %v5314 = vpop.f32.mrb[0].mxu0
    %5315 = vmatprep.mubr.f32.mxu0 0.0
    %5316 = vmatmul.mubr.f32.gmra.mrb[0].mxu0 %v5192
    %v5317 = vpop.f32.mrb[0].mxu0
    %v5318 = vadd.f32 %v5214, %v5317
    %v5319 = vpop.f32.mrb[0].mxu0
    %5320 = vdwg.mxu0
    %vm5321 = vcmask 261120
    %5322 = vst.msk [vmem:[%s15] sm:$0xff] %vm5321, %v5283
    %5323 = vst.msk [vmem:[%s15 + $0x8] sm:$0xff] %vm5321, %v5288
    %5324 = vst.msk [vmem:[%s15 + $0x10] sm:$0xff] %vm5321, %v5293
    %5325 = vst.msk [vmem:[%s15 + $0x18] sm:$0xff] %vm5321, %v5298
    %5326 = vst.msk [vmem:[%s15 + $0x20] sm:$0xff] %vm5321, %v5303
    %5327 = vst.msk [vmem:[%s15 + $0x28] sm:$0xff] %vm5321, %v5308
    %5328 = vst.msk [vmem:[%s15 + $0x30] sm:$0xff] %vm5321, %v5313
    %5329 = vst.msk [vmem:[%s15 + $0x38] sm:$0xff] %vm5321, %v5318
    // Predicated region
    $region82: #{simple_rnn_forward.1} parent=1 // pred_check
      _
    $region83: #{simple_rnn_forward.1} parent=1 // pred_check_branch
      %5331 = sbr.rel (0) target = $region85
    $region84: #{simple_rnn_forward.1} parent=1 // pred_region
      _
    $region85: #{simple_rnn_forward.1} parent=1 // pred_fallthru
      _
    // Predicated region
    $region86: #{simple_rnn_forward.1} parent=1 // pred_check
      _
    $region87: #{simple_rnn_forward.1} parent=1 // pred_check_branch
      %5333 = sbr.rel (0) target = $region89
    $region88: #{simple_rnn_forward.1} parent=1 // pred_region
      _
    $region89: #{simple_rnn_forward.1} parent=1 // pred_fallthru
      _
    %5334 = vsyncpa [#allocation3], 1
    %5335 = vsyncpa [#allocation5], 1
    %5336 = vsyncpa [#allocation8], 1

</llo_original>
